<compile_context>
chip_gen: v7x
topology: tpu7x:2x2x1
jax: 0.10.0
libtpu: 0.0.40
codegen_flags: <defaults>
</compile_context>

<pallas_src>
import math

import jax
import jax.numpy as jnp
import numpy as np
from jax.experimental import pallas as pl
from jax.experimental.pallas import tpu as pltpu


# ---------------------------------------------------------------------------
# Fixed model geometry (MediumModel implies 28x28 single-channel inputs).
#   stage l: conv(1 -> C, 3x3, pad 1) + ReLU + maxpool(2) on an H x H image,
#   flattened (NCHW order) into linear_l with OUT features.
# ---------------------------------------------------------------------------
_STAGES = (
    dict(H=28, C=10, OUT=324),   # conv1 / linear1
    dict(H=18, C=10, OUT=64),    # conv2 / linear2
    dict(H=8,  C=5,  OUT=10),    # conv3 / linear3
)


# ---------------------------------------------------------------------------
# Fused Pallas kernel
# ---------------------------------------------------------------------------
def _make_fused_kernel(B):
    """Builds the kernel computing the full MediumModel forward for batch B."""

    def conv_stage(rs, m_ref, cb_ref):
        # rs:     (Hp*B, 4*(W+2)) row-slabs of the zero-padded image (f32),
        #         rs[(io, b), r*(W+2)+p] = xpad[b, 2*io + r, p].
        # m_ref:  (4, 4*(W+2), C*Wp) banded conv matrices, one per 2x2 pool pos.
        # Returns relu(maxpool2x2(conv3x3(img) + bias)) as (Hp*B, C*Wp),
        # rows ordered (pooled_row, batch), cols ordered (channel, pooled_col).
        rs16 = rs.astype(jnp.bfloat16)
        acc = None
        for g in range(4):            # the 4 positions inside each 2x2 window
            y = jnp.dot(rs16, m_ref[g], preferred_element_type=jnp.float32)
            acc = y if acc is None else jnp.maximum(acc, y)
        return jnp.maximum(acc + cb_ref[...], 0.0)

    def linear_stage(pooled, w_ref, lb_ref, Hp, relu):
        # pooled: (Hp*B, C*Wp).  w_ref: (Hp*C*Wp, Out) with rows ordered
        # (pooled_row, channel, pooled_col): the NCHW flatten permutation and
        # the torch (Out, In) transpose are already folded into the weight.
        # Accumulate one (B, C*Wp) x (C*Wp, Out) matmul per pooled row;
        # identical MXU weight streaming to one big matmul, but needs no
        # sublane->lane relayout of the activations.
        cw = pooled.shape[-1]
        out_f = w_ref.shape[-1]
        p16 = pooled.astype(jnp.bfloat16)
        acc = jnp.zeros((B, out_f), jnp.float32) + lb_ref[...]
        for io in range(Hp):
            acc = acc + jnp.dot(p16[io * B:(io + 1) * B, :],
                                w_ref[io * cw:(io + 1) * cw, :],
                                preferred_element_type=jnp.float32)
        return jnp.maximum(acc, 0.0) if relu else acc

    def build_row_slabs(h, rs_ref, H):
        # h: (B, H*H) activations viewed as a (B, 1, H, H) image (row major).
        # Fills rs_ref[(io, b), r*(H+2)+p] = zero-padded image row 2*io+r,
        # column p, and returns it.
        W = H
        Hp = H // 2
        rs_ref[...] = jnp.zeros_like(rs_ref)
        for io in range(Hp):
            for r in range(4):
                p = 2 * io + r                     # padded-image row index
                if 1 <= p <= H:                    # interior row (else zero)
                    rs_ref[io * B:(io + 1) * B,
                           r * (W + 2) + 1: r * (W + 2) + 1 + W] = (
                               h[:, (p - 1) * W: p * W])
        return rs_ref[...]

    def kernel(rs1_ref,
               m1_ref, cb1_ref, w1_ref, lb1_ref,
               m2_ref, cb2_ref, w2_ref, lb2_ref,
               m3_ref, cb3_ref, w3_ref, lb3_ref,
               o_ref,
               rs2_ref, rs3_ref):
        # --- stage 1: conv1 + relu + pool, then linear1 + relu -------------
        p1 = conv_stage(rs1_ref[...], m1_ref, cb1_ref)             # (14B, 140)
        h1 = linear_stage(p1, w1_ref, lb1_ref, Hp=14, relu=True)   # (B, 324)
        # TODO(synk): dropout1 (p=0.3) is identity (eval mode).

        # --- stage 2: view (B,1,18,18), conv2 + relu + pool, linear2 -------
        rs2 = build_row_slabs(h1, rs2_ref, H=18)                   # (9B, 80)
        p2 = conv_stage(rs2, m2_ref, cb2_ref)                      # (9B, 90)
        h2 = linear_stage(p2, w2_ref, lb2_ref, Hp=9, relu=True)    # (B, 64)
        # TODO(synk): dropout2 (p=0.25) is identity (eval mode).

        # --- stage 3: view (B,1,8,8), conv3 + relu + pool, linear3 ---------
        rs3 = build_row_slabs(h2, rs3_ref, H=8)                    # (4B, 40)
        p3 = conv_stage(rs3, m3_ref, cb3_ref)                      # (4B, 20)
        out = linear_stage(p3, w3_ref, lb3_ref, Hp=4, relu=False)  # (B, 10)
        o_ref[...] = out.astype(o_ref.dtype)

    return kernel


def _full_spec(arr):
    n = arr.ndim
    return pl.BlockSpec(arr.shape, lambda i, _n=n: (0,) * _n)


@jax.jit
def medium_model_forward(packed, x):
    """packed: output of pack_params(); x: (B, 1, 28, 28) float32."""
    B = x.shape[0]

    # Tiny host-side prep for the first conv only: zero-pad and rearrange the
    # input into the (pooled_row, batch)-major row-slab layout used in-kernel.
    xpad = jnp.pad(x[:, 0], ((0, 0), (1, 1), (1, 1)))              # (B, 30, 30)
    Hp1 = 14
    slabs = [xpad[:, r::2, :][:, :Hp1].transpose(1, 0, 2) for r in range(4)]
    rs1 = jnp.concatenate(slabs, axis=-1).reshape(Hp1 * B, 4 * 30)  # (14B, 120)

    operands = (rs1,
                packed["m1"], packed["cb1"], packed["w1"], packed["lb1"],
                packed["m2"], packed["cb2"], packed["w2"], packed["lb2"],
                packed["m3"], packed["cb3"], packed["w3"], packed["lb3"])

    return pl.pallas_call(
        _make_fused_kernel(B),
        out_shape=jax.ShapeDtypeStruct((B, 10), jnp.float32),
        grid=(1,),
        in_specs=[_full_spec(op) for op in operands],
        out_specs=pl.BlockSpec((B, 10), lambda i: (0, 0)),
        scratch_shapes=[pltpu.VMEM((9 * B, 4 * 20), jnp.float32),   # rs2
                        pltpu.VMEM((4 * B, 4 * 10), jnp.float32)],  # rs3
        compiler_params=pltpu.CompilerParams(
            dimension_semantics=("arbitrary",)),
    )(*operands)


# ---------------------------------------------------------------------------
# Deterministic parameter init (PyTorch-style uniform bounds, fixed seed)
# ---------------------------------------------------------------------------
def _init_conv(key, cout, cin, k):
    kw, kb = jax.random.split(key)
    bound = 1.0 / math.sqrt(cin * k * k)
    W = jax.random.uniform(kw, (cout, cin, k, k), jnp.float32, -bound, bound)
    b = jax.random.uniform(kb, (cout,), jnp.float32, -bound, bound)
    return W, b


def _init_linear(key, out_f, in_f):
    kw, kb = jax.random.split(key)
    bound = 1.0 / math.sqrt(in_f)
    W = jax.random.uniform(kw, (out_f, in_f), jnp.float32, -bound, bound)
    b = jax.random.uniform(kb, (out_f,), jnp.float32, -bound, bound)
    return W, b


def init_params(key):
    """Raw parameters in PyTorch layout/conventions."""
    ks = jax.random.split(key, 6)
    return {
        "conv1": _init_conv(ks[0], 10, 1, 3),
        "lin1": _init_linear(ks[1], 324, 10 * 14 * 14),
        "conv2": _init_conv(ks[2], 10, 1, 3),
        "lin2": _init_linear(ks[3], 64, 10 * 9 * 9),
        "conv3": _init_conv(ks[4], 5, 1, 3),
        "lin3": _init_linear(ks[5], 10, 5 * 4 * 4),
    }


# ---------------------------------------------------------------------------
# One-time parameter packing: fold conv taps + pooling column selection +
# flatten permutations + transposes into kernel-ready (bf16) tensors.
# ---------------------------------------------------------------------------
def _conv_banded_matrices(w, H):
    """Banded matmul matrices for a padded 3x3 conv + stride-2 pool columns.

    Returns M of shape (4, 4*(H+2), C*(H//2)) such that, for row-slabs
    rs[(io,b), r*(H+2)+p] = xpad[b, 2*io+r, p]:
        (rs @ M[2*dh+dw])[(io,b), c*Wp+jo] = conv_nobias[b, c, 2*io+dh, 2*jo+dw]
    """
    w = np.asarray(w, np.float32).reshape(-1, 3, 3)
    C = w.shape[0]
    Wd = H
    Wp = Wd // 2
    K = 4 * (Wd + 2)
    M = np.zeros((4, K, C * Wp), np.float32)
    cols = np.arange(C) * Wp
    for dh in range(2):
        for dw in range(2):
            g = 2 * dh + dw
            for kh in range(3):
                r = dh + kh
                for kw in range(3):
                    for jo in range(Wp):
                        p = 2 * jo + dw + kw
                        M[g, r * (Wd + 2) + p, cols + jo] = w[:, kh, kw]
    return jnp.asarray(M, jnp.bfloat16)


def _conv_bias_row(b, H):
    Wp = H // 2
    return jnp.asarray(np.repeat(np.asarray(b, np.float32), Wp)[None, :])


def _pack_linear_weight(Wt, C, Hp, Wp):
    """(Out, In) torch weight, In ordered (c, i, j) -> (Hp*C*Wp, Out) bf16
    with rows ordered (i, c, j), matching the kernel's pooled layout."""
    out_f = Wt.shape[0]
    Wn = np.asarray(Wt, np.float32).reshape(out_f, C, Hp, Wp)
    Wn = np.transpose(Wn, (2, 1, 3, 0)).reshape(Hp * C * Wp, out_f)
    return jnp.asarray(Wn, jnp.bfloat16)


def pack_params(params):
    packed = {}
    names = (("conv1", "lin1"), ("conv2", "lin2"), ("conv3", "lin3"))
    for i, ((cname, lname), st) in enumerate(zip(names, _STAGES), 1):
        cw, cb = params[cname]
        lw, lb = params[lname]
        H, C = st["H"], st["C"]
        packed[f"m{i}"] = _conv_banded_matrices(cw, H)
        packed[f"cb{i}"] = _conv_bias_row(cb, H)
        packed[f"w{i}"] = _pack_linear_weight(lw, C, H // 2, H // 2)
        packed[f"lb{i}"] = jnp.asarray(np.asarray(lb, np.float32)[None, :])
    return packed


# ---------------------------------------------------------------------------
# Pure-XLA reference (mirrors MediumModel.forward in eval mode)
# ---------------------------------------------------------------------------
def _reference_forward(params, x):
    def conv_relu_pool(h, w, b):
        y = jax.lax.conv_general_dilated(
            h, w, window_strides=(1, 1), padding=((1, 1), (1, 1)),
            dimension_numbers=("NCHW", "OIHW", "NCHW"))
        y = jax.nn.relu(y + b[None, :, None, None])
        return jax.lax.reduce_window(y, -jnp.inf, jax.lax.max,
                                     (1, 1, 2, 2), (1, 1, 2, 2), "VALID")

    B = x.shape[0]
    h = conv_relu_pool(x, *params["conv1"]).reshape(B, -1)
    h = jax.nn.relu(h @ params["lin1"][0].T + params["lin1"][1])
    h = conv_relu_pool(h.reshape(B, 1, 18, 18), *params["conv2"]).reshape(B, -1)
    h = jax.nn.relu(h @ params["lin2"][0].T + params["lin2"][1])
    h = conv_relu_pool(h.reshape(B, 1, 8, 8), *params["conv3"]).reshape(B, -1)
    return h @ params["lin3"][0].T + params["lin3"][1]


if __name__ == "__main__":
    key = jax.random.PRNGKey(0)
    k_params, k_x = jax.random.split(key)
    params = init_params(k_params)
    packed = pack_params(params)

    # Input shape implied by linear1 (10*14*14): MNIST-style (B, 1, 28, 28).
    x = jax.random.normal(k_x, (2, 1, 28, 28), dtype=jnp.float32)

    out = medium_model_forward(packed, x)
    out = jax.block_until_ready(out)

    assert out.shape == (2, 10), out.shape
    assert bool(jnp.all(jnp.isfinite(out)))
    # Loose tolerance: kernel matmuls use bf16 operands (f32 accumulation).
    ref = _reference_forward(params, x)
    assert bool(jnp.allclose(out, ref, rtol=0.1, atol=0.1)), (
        float(jnp.max(jnp.abs(out - ref))))
    print("KERNEL_OK")
</pallas_src>

<mosaic_0001>
module attributes {stable_mosaic.version = 11 : i64} {
  func.func @kernel(%arg0: i32, %arg1: memref<28x120xf32, #tpu.memory_space<vmem>>, %arg2: memref<4x120x140xbf16, #tpu.memory_space<vmem>>, %arg3: memref<1x140xf32, #tpu.memory_space<vmem>>, %arg4: memref<1960x324xbf16, #tpu.memory_space<vmem>>, %arg5: memref<1x324xf32, #tpu.memory_space<vmem>>, %arg6: memref<4x80x90xbf16, #tpu.memory_space<vmem>>, %arg7: memref<1x90xf32, #tpu.memory_space<vmem>>, %arg8: memref<810x64xbf16, #tpu.memory_space<vmem>>, %arg9: memref<1x64xf32, #tpu.memory_space<vmem>>, %arg10: memref<4x40x20xbf16, #tpu.memory_space<vmem>>, %arg11: memref<1x20xf32, #tpu.memory_space<vmem>>, %arg12: memref<80x10xbf16, #tpu.memory_space<vmem>>, %arg13: memref<1x10xf32, #tpu.memory_space<vmem>>, %arg14: memref<2x10xf32, #tpu.memory_space<vmem>>, %arg15: memref<18x80xf32, #tpu.memory_space<vmem>>, %arg16: memref<8x40xf32, #tpu.memory_space<vmem>>) attributes {dimension_semantics = [#tpu.dimension_semantics<arbitrary>], iteration_bounds = array<i64: 1>, scalar_prefetch = 0 : i64, scratch_operands = 2 : i64, tpu.core_type = #tpu.core_type<tc>, window_params = [{pipeline_mode = #tpu.pipeline_mode<synchronous>, transform_indices = @transform_0, window_bounds = array<i64: 28, 120>}, {pipeline_mode = #tpu.pipeline_mode<synchronous>, transform_indices = @transform_1, window_bounds = array<i64: 4, 120, 140>}, {pipeline_mode = #tpu.pipeline_mode<synchronous>, transform_indices = @transform_2, window_bounds = array<i64: 1, 140>}, {pipeline_mode = #tpu.pipeline_mode<synchronous>, transform_indices = @transform_3, window_bounds = array<i64: 1960, 324>}, {pipeline_mode = #tpu.pipeline_mode<synchronous>, transform_indices = @transform_4, window_bounds = array<i64: 1, 324>}, {pipeline_mode = #tpu.pipeline_mode<synchronous>, transform_indices = @transform_5, window_bounds = array<i64: 4, 80, 90>}, {pipeline_mode = #tpu.pipeline_mode<synchronous>, transform_indices = @transform_6, window_bounds = array<i64: 1, 90>}, {pipeline_mode = #tpu.pipeline_mode<synchronous>, transform_indices = @transform_7, window_bounds = array<i64: 810, 64>}, {pipeline_mode = #tpu.pipeline_mode<synchronous>, transform_indices = @transform_8, window_bounds = array<i64: 1, 64>}, {pipeline_mode = #tpu.pipeline_mode<synchronous>, transform_indices = @transform_9, window_bounds = array<i64: 4, 40, 20>}, {pipeline_mode = #tpu.pipeline_mode<synchronous>, transform_indices = @transform_10, window_bounds = array<i64: 1, 20>}, {pipeline_mode = #tpu.pipeline_mode<synchronous>, transform_indices = @transform_11, window_bounds = array<i64: 80, 10>}, {pipeline_mode = #tpu.pipeline_mode<synchronous>, transform_indices = @transform_12, window_bounds = array<i64: 1, 10>}, {pipeline_mode = #tpu.pipeline_mode<synchronous>, transform_indices = @transform_13, window_bounds = array<i64: 2, 10>}]} {
    %c0 = arith.constant 0 : index
    %c0_0 = arith.constant 0 : index
    %0 = vector.load %arg1[%c0, %c0_0] : memref<28x120xf32, #tpu.memory_space<vmem>>, vector<28x120xf32>
    %1 = arith.truncf %0 : vector<28x120xf32> to vector<28x120xbf16>
    %c0_1 = arith.constant 0 : index
    %c0_2 = arith.constant 0 : index
    %c0_3 = arith.constant 0 : index
    %2 = vector.load %arg2[%c0_1, %c0_2, %c0_3] : memref<4x120x140xbf16, #tpu.memory_space<vmem>>, vector<1x120x140xbf16>
    %3 = vector.shape_cast %2 : vector<1x120x140xbf16> to vector<120x140xbf16>
    %cst = arith.constant dense<0.000000e+00> : vector<28x140xf32>
    %4 = tpu.matmul %1, %3, %cst {dimension_numbers = #tpu.dot_dimension_numbers<[1], [0], [0], [1], [0, 0, 1, 1], [], []>} : vector<28x120xbf16>, vector<120x140xbf16>, vector<28x140xf32> -> vector<28x140xf32>
    %c1 = arith.constant 1 : index
    %c0_4 = arith.constant 0 : index
    %c0_5 = arith.constant 0 : index
    %5 = vector.load %arg2[%c1, %c0_4, %c0_5] : memref<4x120x140xbf16, #tpu.memory_space<vmem>>, vector<1x120x140xbf16>
    %6 = vector.shape_cast %5 : vector<1x120x140xbf16> to vector<120x140xbf16>
    %cst_6 = arith.constant dense<0.000000e+00> : vector<28x140xf32>
    %7 = tpu.matmul %1, %6, %cst_6 {dimension_numbers = #tpu.dot_dimension_numbers<[1], [0], [0], [1], [0, 0, 1, 1], [], []>} : vector<28x120xbf16>, vector<120x140xbf16>, vector<28x140xf32> -> vector<28x140xf32>
    %8 = arith.maximumf %4, %7 : vector<28x140xf32>
    %c2 = arith.constant 2 : index
    %c0_7 = arith.constant 0 : index
    %c0_8 = arith.constant 0 : index
    %9 = vector.load %arg2[%c2, %c0_7, %c0_8] : memref<4x120x140xbf16, #tpu.memory_space<vmem>>, vector<1x120x140xbf16>
    %10 = vector.shape_cast %9 : vector<1x120x140xbf16> to vector<120x140xbf16>
    %cst_9 = arith.constant dense<0.000000e+00> : vector<28x140xf32>
    %11 = tpu.matmul %1, %10, %cst_9 {dimension_numbers = #tpu.dot_dimension_numbers<[1], [0], [0], [1], [0, 0, 1, 1], [], []>} : vector<28x120xbf16>, vector<120x140xbf16>, vector<28x140xf32> -> vector<28x140xf32>
    %12 = arith.maximumf %8, %11 : vector<28x140xf32>
    %c3 = arith.constant 3 : index
    %c0_10 = arith.constant 0 : index
    %c0_11 = arith.constant 0 : index
    %13 = vector.load %arg2[%c3, %c0_10, %c0_11] : memref<4x120x140xbf16, #tpu.memory_space<vmem>>, vector<1x120x140xbf16>
    %14 = vector.shape_cast %13 : vector<1x120x140xbf16> to vector<120x140xbf16>
    %cst_12 = arith.constant dense<0.000000e+00> : vector<28x140xf32>
    %15 = tpu.matmul %1, %14, %cst_12 {dimension_numbers = #tpu.dot_dimension_numbers<[1], [0], [0], [1], [0, 0, 1, 1], [], []>} : vector<28x120xbf16>, vector<120x140xbf16>, vector<28x140xf32> -> vector<28x140xf32>
    %16 = arith.maximumf %12, %15 : vector<28x140xf32>
    %c0_13 = arith.constant 0 : index
    %c0_14 = arith.constant 0 : index
    %17 = vector.load %arg3[%c0_13, %c0_14] : memref<1x140xf32, #tpu.memory_space<vmem>>, vector<1x140xf32>
    %18 = vector.broadcast %17 : vector<1x140xf32> to vector<28x140xf32>
    %19 = arith.addf %16, %18 : vector<28x140xf32>
    %cst_15 = arith.constant 0.000000e+00 : f32
    %20 = vector.broadcast %cst_15 : f32 to vector<28x140xf32>
    %21 = arith.maximumf %19, %20 : vector<28x140xf32>
    %22 = arith.truncf %21 : vector<28x140xf32> to vector<28x140xbf16>
    %cst_16 = arith.constant 0.000000e+00 : f32
    %23 = vector.broadcast %cst_16 : f32 to vector<2x324xf32>
    %c0_17 = arith.constant 0 : index
    %c0_18 = arith.constant 0 : index
    %24 = vector.load %arg5[%c0_17, %c0_18] : memref<1x324xf32, #tpu.memory_space<vmem>>, vector<1x324xf32>
    %25 = vector.broadcast %24 : vector<1x324xf32> to vector<2x324xf32>
    %26 = arith.addf %23, %25 : vector<2x324xf32>
    %27 = vector.extract_strided_slice %22 {offsets = [0, 0], sizes = [2, 140], strides = [1, 1]} : vector<28x140xbf16> to vector<2x140xbf16>
    %c0_19 = arith.constant 0 : index
    %c0_20 = arith.constant 0 : index
    %28 = vector.load %arg4[%c0_19, %c0_20] : memref<1960x324xbf16, #tpu.memory_space<vmem>>, vector<140x324xbf16>
    %cst_21 = arith.constant dense<0.000000e+00> : vector<2x324xf32>
    %29 = tpu.matmul %27, %28, %cst_21 {dimension_numbers = #tpu.dot_dimension_numbers<[1], [0], [0], [1], [0, 0, 1, 1], [], []>} : vector<2x140xbf16>, vector<140x324xbf16>, vector<2x324xf32> -> vector<2x324xf32>
    %30 = arith.addf %26, %29 : vector<2x324xf32>
    %31 = vector.extract_strided_slice %22 {offsets = [2, 0], sizes = [2, 140], strides = [1, 1]} : vector<28x140xbf16> to vector<2x140xbf16>
    %c140 = arith.constant 140 : index
    %c0_22 = arith.constant 0 : index
    %32 = vector.load %arg4[%c140, %c0_22] : memref<1960x324xbf16, #tpu.memory_space<vmem>>, vector<140x324xbf16>
    %cst_23 = arith.constant dense<0.000000e+00> : vector<2x324xf32>
    %33 = tpu.matmul %31, %32, %cst_23 {dimension_numbers = #tpu.dot_dimension_numbers<[1], [0], [0], [1], [0, 0, 1, 1], [], []>} : vector<2x140xbf16>, vector<140x324xbf16>, vector<2x324xf32> -> vector<2x324xf32>
    %34 = arith.addf %30, %33 : vector<2x324xf32>
    %35 = vector.extract_strided_slice %22 {offsets = [4, 0], sizes = [2, 140], strides = [1, 1]} : vector<28x140xbf16> to vector<2x140xbf16>
    %c280 = arith.constant 280 : index
    %c0_24 = arith.constant 0 : index
    %36 = vector.load %arg4[%c280, %c0_24] : memref<1960x324xbf16, #tpu.memory_space<vmem>>, vector<140x324xbf16>
    %cst_25 = arith.constant dense<0.000000e+00> : vector<2x324xf32>
    %37 = tpu.matmul %35, %36, %cst_25 {dimension_numbers = #tpu.dot_dimension_numbers<[1], [0], [0], [1], [0, 0, 1, 1], [], []>} : vector<2x140xbf16>, vector<140x324xbf16>, vector<2x324xf32> -> vector<2x324xf32>
    %38 = arith.addf %34, %37 : vector<2x324xf32>
    %39 = vector.extract_strided_slice %22 {offsets = [6, 0], sizes = [2, 140], strides = [1, 1]} : vector<28x140xbf16> to vector<2x140xbf16>
    %c420 = arith.constant 420 : index
    %c0_26 = arith.constant 0 : index
    %40 = vector.load %arg4[%c420, %c0_26] : memref<1960x324xbf16, #tpu.memory_space<vmem>>, vector<140x324xbf16>
    %cst_27 = arith.constant dense<0.000000e+00> : vector<2x324xf32>
    %41 = tpu.matmul %39, %40, %cst_27 {dimension_numbers = #tpu.dot_dimension_numbers<[1], [0], [0], [1], [0, 0, 1, 1], [], []>} : vector<2x140xbf16>, vector<140x324xbf16>, vector<2x324xf32> -> vector<2x324xf32>
    %42 = arith.addf %38, %41 : vector<2x324xf32>
    %43 = vector.extract_strided_slice %22 {offsets = [8, 0], sizes = [2, 140], strides = [1, 1]} : vector<28x140xbf16> to vector<2x140xbf16>
    %c560 = arith.constant 560 : index
    %c0_28 = arith.constant 0 : index
    %44 = vector.load %arg4[%c560, %c0_28] : memref<1960x324xbf16, #tpu.memory_space<vmem>>, vector<140x324xbf16>
    %cst_29 = arith.constant dense<0.000000e+00> : vector<2x324xf32>
    %45 = tpu.matmul %43, %44, %cst_29 {dimension_numbers = #tpu.dot_dimension_numbers<[1], [0], [0], [1], [0, 0, 1, 1], [], []>} : vector<2x140xbf16>, vector<140x324xbf16>, vector<2x324xf32> -> vector<2x324xf32>
    %46 = arith.addf %42, %45 : vector<2x324xf32>
    %47 = vector.extract_strided_slice %22 {offsets = [10, 0], sizes = [2, 140], strides = [1, 1]} : vector<28x140xbf16> to vector<2x140xbf16>
    %c700 = arith.constant 700 : index
    %c0_30 = arith.constant 0 : index
    %48 = vector.load %arg4[%c700, %c0_30] : memref<1960x324xbf16, #tpu.memory_space<vmem>>, vector<140x324xbf16>
    %cst_31 = arith.constant dense<0.000000e+00> : vector<2x324xf32>
    %49 = tpu.matmul %47, %48, %cst_31 {dimension_numbers = #tpu.dot_dimension_numbers<[1], [0], [0], [1], [0, 0, 1, 1], [], []>} : vector<2x140xbf16>, vector<140x324xbf16>, vector<2x324xf32> -> vector<2x324xf32>
    %50 = arith.addf %46, %49 : vector<2x324xf32>
    %51 = vector.extract_strided_slice %22 {offsets = [12, 0], sizes = [2, 140], strides = [1, 1]} : vector<28x140xbf16> to vector<2x140xbf16>
    %c840 = arith.constant 840 : index
    %c0_32 = arith.constant 0 : index
    %52 = vector.load %arg4[%c840, %c0_32] : memref<1960x324xbf16, #tpu.memory_space<vmem>>, vector<140x324xbf16>
    %cst_33 = arith.constant dense<0.000000e+00> : vector<2x324xf32>
    %53 = tpu.matmul %51, %52, %cst_33 {dimension_numbers = #tpu.dot_dimension_numbers<[1], [0], [0], [1], [0, 0, 1, 1], [], []>} : vector<2x140xbf16>, vector<140x324xbf16>, vector<2x324xf32> -> vector<2x324xf32>
    %54 = arith.addf %50, %53 : vector<2x324xf32>
    %55 = vector.extract_strided_slice %22 {offsets = [14, 0], sizes = [2, 140], strides = [1, 1]} : vector<28x140xbf16> to vector<2x140xbf16>
    %c980 = arith.constant 980 : index
    %c0_34 = arith.constant 0 : index
    %56 = vector.load %arg4[%c980, %c0_34] : memref<1960x324xbf16, #tpu.memory_space<vmem>>, vector<140x324xbf16>
    %cst_35 = arith.constant dense<0.000000e+00> : vector<2x324xf32>
    %57 = tpu.matmul %55, %56, %cst_35 {dimension_numbers = #tpu.dot_dimension_numbers<[1], [0], [0], [1], [0, 0, 1, 1], [], []>} : vector<2x140xbf16>, vector<140x324xbf16>, vector<2x324xf32> -> vector<2x324xf32>
    %58 = arith.addf %54, %57 : vector<2x324xf32>
    %59 = vector.extract_strided_slice %22 {offsets = [16, 0], sizes = [2, 140], strides = [1, 1]} : vector<28x140xbf16> to vector<2x140xbf16>
    %c1120 = arith.constant 1120 : index
    %c0_36 = arith.constant 0 : index
    %60 = vector.load %arg4[%c1120, %c0_36] : memref<1960x324xbf16, #tpu.memory_space<vmem>>, vector<140x324xbf16>
    %cst_37 = arith.constant dense<0.000000e+00> : vector<2x324xf32>
    %61 = tpu.matmul %59, %60, %cst_37 {dimension_numbers = #tpu.dot_dimension_numbers<[1], [0], [0], [1], [0, 0, 1, 1], [], []>} : vector<2x140xbf16>, vector<140x324xbf16>, vector<2x324xf32> -> vector<2x324xf32>
    %62 = arith.addf %58, %61 : vector<2x324xf32>
    %63 = vector.extract_strided_slice %22 {offsets = [18, 0], sizes = [2, 140], strides = [1, 1]} : vector<28x140xbf16> to vector<2x140xbf16>
    %c1260 = arith.constant 1260 : index
    %c0_38 = arith.constant 0 : index
    %64 = vector.load %arg4[%c1260, %c0_38] : memref<1960x324xbf16, #tpu.memory_space<vmem>>, vector<140x324xbf16>
    %cst_39 = arith.constant dense<0.000000e+00> : vector<2x324xf32>
    %65 = tpu.matmul %63, %64, %cst_39 {dimension_numbers = #tpu.dot_dimension_numbers<[1], [0], [0], [1], [0, 0, 1, 1], [], []>} : vector<2x140xbf16>, vector<140x324xbf16>, vector<2x324xf32> -> vector<2x324xf32>
    %66 = arith.addf %62, %65 : vector<2x324xf32>
    %67 = vector.extract_strided_slice %22 {offsets = [20, 0], sizes = [2, 140], strides = [1, 1]} : vector<28x140xbf16> to vector<2x140xbf16>
    %c1400 = arith.constant 1400 : index
    %c0_40 = arith.constant 0 : index
    %68 = vector.load %arg4[%c1400, %c0_40] : memref<1960x324xbf16, #tpu.memory_space<vmem>>, vector<140x324xbf16>
    %cst_41 = arith.constant dense<0.000000e+00> : vector<2x324xf32>
    %69 = tpu.matmul %67, %68, %cst_41 {dimension_numbers = #tpu.dot_dimension_numbers<[1], [0], [0], [1], [0, 0, 1, 1], [], []>} : vector<2x140xbf16>, vector<140x324xbf16>, vector<2x324xf32> -> vector<2x324xf32>
    %70 = arith.addf %66, %69 : vector<2x324xf32>
    %71 = vector.extract_strided_slice %22 {offsets = [22, 0], sizes = [2, 140], strides = [1, 1]} : vector<28x140xbf16> to vector<2x140xbf16>
    %c1540 = arith.constant 1540 : index
    %c0_42 = arith.constant 0 : index
    %72 = vector.load %arg4[%c1540, %c0_42] : memref<1960x324xbf16, #tpu.memory_space<vmem>>, vector<140x324xbf16>
    %cst_43 = arith.constant dense<0.000000e+00> : vector<2x324xf32>
    %73 = tpu.matmul %71, %72, %cst_43 {dimension_numbers = #tpu.dot_dimension_numbers<[1], [0], [0], [1], [0, 0, 1, 1], [], []>} : vector<2x140xbf16>, vector<140x324xbf16>, vector<2x324xf32> -> vector<2x324xf32>
    %74 = arith.addf %70, %73 : vector<2x324xf32>
    %75 = vector.extract_strided_slice %22 {offsets = [24, 0], sizes = [2, 140], strides = [1, 1]} : vector<28x140xbf16> to vector<2x140xbf16>
    %c1680 = arith.constant 1680 : index
    %c0_44 = arith.constant 0 : index
    %76 = vector.load %arg4[%c1680, %c0_44] : memref<1960x324xbf16, #tpu.memory_space<vmem>>, vector<140x324xbf16>
    %cst_45 = arith.constant dense<0.000000e+00> : vector<2x324xf32>
    %77 = tpu.matmul %75, %76, %cst_45 {dimension_numbers = #tpu.dot_dimension_numbers<[1], [0], [0], [1], [0, 0, 1, 1], [], []>} : vector<2x140xbf16>, vector<140x324xbf16>, vector<2x324xf32> -> vector<2x324xf32>
    %78 = arith.addf %74, %77 : vector<2x324xf32>
    %79 = vector.extract_strided_slice %22 {offsets = [26, 0], sizes = [2, 140], strides = [1, 1]} : vector<28x140xbf16> to vector<2x140xbf16>
    %c1820 = arith.constant 1820 : index
    %c0_46 = arith.constant 0 : index
    %80 = vector.load %arg4[%c1820, %c0_46] : memref<1960x324xbf16, #tpu.memory_space<vmem>>, vector<140x324xbf16>
    %cst_47 = arith.constant dense<0.000000e+00> : vector<2x324xf32>
    %81 = tpu.matmul %79, %80, %cst_47 {dimension_numbers = #tpu.dot_dimension_numbers<[1], [0], [0], [1], [0, 0, 1, 1], [], []>} : vector<2x140xbf16>, vector<140x324xbf16>, vector<2x324xf32> -> vector<2x324xf32>
    %82 = arith.addf %78, %81 : vector<2x324xf32>
    %cst_48 = arith.constant 0.000000e+00 : f32
    %83 = vector.broadcast %cst_48 : f32 to vector<2x324xf32>
    %84 = arith.maximumf %82, %83 : vector<2x324xf32>
    %cst_49 = arith.constant 0.000000e+00 : f32
    %85 = vector.broadcast %cst_49 : f32 to vector<18x80xf32>
    %c0_50 = arith.constant 0 : index
    %c0_51 = arith.constant 0 : index
    %86 = vector.load %arg15[%c0_50, %c0_51] : memref<18x80xf32, #tpu.memory_space<vmem>>, vector<18x80xf32>
    tpu.vector_store %arg15[%c0_50, %c0_51], %85 {strides = array<i32>} : memref<18x80xf32, #tpu.memory_space<vmem>>, vector<18x80xf32>,
    %87 = vector.extract_strided_slice %84 {offsets = [0, 0], sizes = [2, 18], strides = [1, 1]} : vector<2x324xf32> to vector<2x18xf32>
    %c0_52 = arith.constant 0 : index
    %c21 = arith.constant 21 : index
    %88 = vector.load %arg15[%c0_52, %c21] : memref<18x80xf32, #tpu.memory_space<vmem>>, vector<2x18xf32>
    tpu.vector_store %arg15[%c0_52, %c21], %87 {strides = array<i32>} : memref<18x80xf32, #tpu.memory_space<vmem>>, vector<2x18xf32>,
    %89 = vector.extract_strided_slice %84 {offsets = [0, 18], sizes = [2, 18], strides = [1, 1]} : vector<2x324xf32> to vector<2x18xf32>
    %c0_53 = arith.constant 0 : index
    %c41 = arith.constant 41 : index
    %90 = vector.load %arg15[%c0_53, %c41] : memref<18x80xf32, #tpu.memory_space<vmem>>, vector<2x18xf32>
    tpu.vector_store %arg15[%c0_53, %c41], %89 {strides = array<i32>} : memref<18x80xf32, #tpu.memory_space<vmem>>, vector<2x18xf32>,
    %91 = vector.extract_strided_slice %84 {offsets = [0, 36], sizes = [2, 18], strides = [1, 1]} : vector<2x324xf32> to vector<2x18xf32>
    %c0_54 = arith.constant 0 : index
    %c61 = arith.constant 61 : index
    %92 = vector.load %arg15[%c0_54, %c61] : memref<18x80xf32, #tpu.memory_space<vmem>>, vector<2x18xf32>
    tpu.vector_store %arg15[%c0_54, %c61], %91 {strides = array<i32>} : memref<18x80xf32, #tpu.memory_space<vmem>>, vector<2x18xf32>,
    %93 = vector.extract_strided_slice %84 {offsets = [0, 18], sizes = [2, 18], strides = [1, 1]} : vector<2x324xf32> to vector<2x18xf32>
    %c2_55 = arith.constant 2 : index
    %c1_56 = arith.constant 1 : index
    %94 = vector.load %arg15[%c2_55, %c1_56] : memref<18x80xf32, #tpu.memory_space<vmem>>, vector<2x18xf32>
    tpu.vector_store %arg15[%c2_55, %c1_56], %93 {strides = array<i32>} : memref<18x80xf32, #tpu.memory_space<vmem>>, vector<2x18xf32>,
    %95 = vector.extract_strided_slice %84 {offsets = [0, 36], sizes = [2, 18], strides = [1, 1]} : vector<2x324xf32> to vector<2x18xf32>
    %c2_57 = arith.constant 2 : index
    %c21_58 = arith.constant 21 : index
    %96 = vector.load %arg15[%c2_57, %c21_58] : memref<18x80xf32, #tpu.memory_space<vmem>>, vector<2x18xf32>
    tpu.vector_store %arg15[%c2_57, %c21_58], %95 {strides = array<i32>} : memref<18x80xf32, #tpu.memory_space<vmem>>, vector<2x18xf32>,
    %97 = vector.extract_strided_slice %84 {offsets = [0, 54], sizes = [2, 18], strides = [1, 1]} : vector<2x324xf32> to vector<2x18xf32>
    %c2_59 = arith.constant 2 : index
    %c41_60 = arith.constant 41 : index
    %98 = vector.load %arg15[%c2_59, %c41_60] : memref<18x80xf32, #tpu.memory_space<vmem>>, vector<2x18xf32>
    tpu.vector_store %arg15[%c2_59, %c41_60], %97 {strides = array<i32>} : memref<18x80xf32, #tpu.memory_space<vmem>>, vector<2x18xf32>,
    %99 = vector.extract_strided_slice %84 {offsets = [0, 72], sizes = [2, 18], strides = [1, 1]} : vector<2x324xf32> to vector<2x18xf32>
    %c2_61 = arith.constant 2 : index
    %c61_62 = arith.constant 61 : index
    %100 = vector.load %arg15[%c2_61, %c61_62] : memref<18x80xf32, #tpu.memory_space<vmem>>, vector<2x18xf32>
    tpu.vector_store %arg15[%c2_61, %c61_62], %99 {strides = array<i32>} : memref<18x80xf32, #tpu.memory_space<vmem>>, vector<2x18xf32>,
    %101 = vector.extract_strided_slice %84 {offsets = [0, 54], sizes = [2, 18], strides = [1, 1]} : vector<2x324xf32> to vector<2x18xf32>
    %c4 = arith.constant 4 : index
    %c1_63 = arith.constant 1 : index
    %102 = vector.load %arg15[%c4, %c1_63] : memref<18x80xf32, #tpu.memory_space<vmem>>, vector<2x18xf32>
    tpu.vector_store %arg15[%c4, %c1_63], %101 {strides = array<i32>} : memref<18x80xf32, #tpu.memory_space<vmem>>, vector<2x18xf32>,
    %103 = vector.extract_strided_slice %84 {offsets = [0, 72], sizes = [2, 18], strides = [1, 1]} : vector<2x324xf32> to vector<2x18xf32>
    %c4_64 = arith.constant 4 : index
    %c21_65 = arith.constant 21 : index
    %104 = vector.load %arg15[%c4_64, %c21_65] : memref<18x80xf32, #tpu.memory_space<vmem>>, vector<2x18xf32>
    tpu.vector_store %arg15[%c4_64, %c21_65], %103 {strides = array<i32>} : memref<18x80xf32, #tpu.memory_space<vmem>>, vector<2x18xf32>,
    %105 = vector.extract_strided_slice %84 {offsets = [0, 90], sizes = [2, 18], strides = [1, 1]} : vector<2x324xf32> to vector<2x18xf32>
    %c4_66 = arith.constant 4 : index
    %c41_67 = arith.constant 41 : index
    %106 = vector.load %arg15[%c4_66, %c41_67] : memref<18x80xf32, #tpu.memory_space<vmem>>, vector<2x18xf32>
    tpu.vector_store %arg15[%c4_66, %c41_67], %105 {strides = array<i32>} : memref<18x80xf32, #tpu.memory_space<vmem>>, vector<2x18xf32>,
    %107 = vector.extract_strided_slice %84 {offsets = [0, 108], sizes = [2, 18], strides = [1, 1]} : vector<2x324xf32> to vector<2x18xf32>
    %c4_68 = arith.constant 4 : index
    %c61_69 = arith.constant 61 : index
    %108 = vector.load %arg15[%c4_68, %c61_69] : memref<18x80xf32, #tpu.memory_space<vmem>>, vector<2x18xf32>
    tpu.vector_store %arg15[%c4_68, %c61_69], %107 {strides = array<i32>} : memref<18x80xf32, #tpu.memory_space<vmem>>, vector<2x18xf32>,
    %109 = vector.extract_strided_slice %84 {offsets = [0, 90], sizes = [2, 18], strides = [1, 1]} : vector<2x324xf32> to vector<2x18xf32>
    %c6 = arith.constant 6 : index
    %c1_70 = arith.constant 1 : index
    %110 = vector.load %arg15[%c6, %c1_70] : memref<18x80xf32, #tpu.memory_space<vmem>>, vector<2x18xf32>
    tpu.vector_store %arg15[%c6, %c1_70], %109 {strides = array<i32>} : memref<18x80xf32, #tpu.memory_space<vmem>>, vector<2x18xf32>,
    %111 = vector.extract_strided_slice %84 {offsets = [0, 108], sizes = [2, 18], strides = [1, 1]} : vector<2x324xf32> to vector<2x18xf32>
    %c6_71 = arith.constant 6 : index
    %c21_72 = arith.constant 21 : index
    %112 = vector.load %arg15[%c6_71, %c21_72] : memref<18x80xf32, #tpu.memory_space<vmem>>, vector<2x18xf32>
    tpu.vector_store %arg15[%c6_71, %c21_72], %111 {strides = array<i32>} : memref<18x80xf32, #tpu.memory_space<vmem>>, vector<2x18xf32>,
    %113 = vector.extract_strided_slice %84 {offsets = [0, 126], sizes = [2, 18], strides = [1, 1]} : vector<2x324xf32> to vector<2x18xf32>
    %c6_73 = arith.constant 6 : index
    %c41_74 = arith.constant 41 : index
    %114 = vector.load %arg15[%c6_73, %c41_74] : memref<18x80xf32, #tpu.memory_space<vmem>>, vector<2x18xf32>
    tpu.vector_store %arg15[%c6_73, %c41_74], %113 {strides = array<i32>} : memref<18x80xf32, #tpu.memory_space<vmem>>, vector<2x18xf32>,
    %115 = vector.extract_strided_slice %84 {offsets = [0, 144], sizes = [2, 18], strides = [1, 1]} : vector<2x324xf32> to vector<2x18xf32>
    %c6_75 = arith.constant 6 : index
    %c61_76 = arith.constant 61 : index
    %116 = vector.load %arg15[%c6_75, %c61_76] : memref<18x80xf32, #tpu.memory_space<vmem>>, vector<2x18xf32>
    tpu.vector_store %arg15[%c6_75, %c61_76], %115 {strides = array<i32>} : memref<18x80xf32, #tpu.memory_space<vmem>>, vector<2x18xf32>,
    %117 = vector.extract_strided_slice %84 {offsets = [0, 126], sizes = [2, 18], strides = [1, 1]} : vector<2x324xf32> to vector<2x18xf32>
    %c8 = arith.constant 8 : index
    %c1_77 = arith.constant 1 : index
    %118 = vector.load %arg15[%c8, %c1_77] : memref<18x80xf32, #tpu.memory_space<vmem>>, vector<2x18xf32>
    tpu.vector_store %arg15[%c8, %c1_77], %117 {strides = array<i32>} : memref<18x80xf32, #tpu.memory_space<vmem>>, vector<2x18xf32>,
    %119 = vector.extract_strided_slice %84 {offsets = [0, 144], sizes = [2, 18], strides = [1, 1]} : vector<2x324xf32> to vector<2x18xf32>
    %c8_78 = arith.constant 8 : index
    %c21_79 = arith.constant 21 : index
    %120 = vector.load %arg15[%c8_78, %c21_79] : memref<18x80xf32, #tpu.memory_space<vmem>>, vector<2x18xf32>
    tpu.vector_store %arg15[%c8_78, %c21_79], %119 {strides = array<i32>} : memref<18x80xf32, #tpu.memory_space<vmem>>, vector<2x18xf32>,
    %121 = vector.extract_strided_slice %84 {offsets = [0, 162], sizes = [2, 18], strides = [1, 1]} : vector<2x324xf32> to vector<2x18xf32>
    %c8_80 = arith.constant 8 : index
    %c41_81 = arith.constant 41 : index
    %122 = vector.load %arg15[%c8_80, %c41_81] : memref<18x80xf32, #tpu.memory_space<vmem>>, vector<2x18xf32>
    tpu.vector_store %arg15[%c8_80, %c41_81], %121 {strides = array<i32>} : memref<18x80xf32, #tpu.memory_space<vmem>>, vector<2x18xf32>,
    %123 = vector.extract_strided_slice %84 {offsets = [0, 180], sizes = [2, 18], strides = [1, 1]} : vector<2x324xf32> to vector<2x18xf32>
    %c8_82 = arith.constant 8 : index
    %c61_83 = arith.constant 61 : index
    %124 = vector.load %arg15[%c8_82, %c61_83] : memref<18x80xf32, #tpu.memory_space<vmem>>, vector<2x18xf32>
    tpu.vector_store %arg15[%c8_82, %c61_83], %123 {strides = array<i32>} : memref<18x80xf32, #tpu.memory_space<vmem>>, vector<2x18xf32>,
    %125 = vector.extract_strided_slice %84 {offsets = [0, 162], sizes = [2, 18], strides = [1, 1]} : vector<2x324xf32> to vector<2x18xf32>
    %c10 = arith.constant 10 : index
    %c1_84 = arith.constant 1 : index
    %126 = vector.load %arg15[%c10, %c1_84] : memref<18x80xf32, #tpu.memory_space<vmem>>, vector<2x18xf32>
    tpu.vector_store %arg15[%c10, %c1_84], %125 {strides = array<i32>} : memref<18x80xf32, #tpu.memory_space<vmem>>, vector<2x18xf32>,
    %127 = vector.extract_strided_slice %84 {offsets = [0, 180], sizes = [2, 18], strides = [1, 1]} : vector<2x324xf32> to vector<2x18xf32>
    %c10_85 = arith.constant 10 : index
    %c21_86 = arith.constant 21 : index
    %128 = vector.load %arg15[%c10_85, %c21_86] : memref<18x80xf32, #tpu.memory_space<vmem>>, vector<2x18xf32>
    tpu.vector_store %arg15[%c10_85, %c21_86], %127 {strides = array<i32>} : memref<18x80xf32, #tpu.memory_space<vmem>>, vector<2x18xf32>,
    %129 = vector.extract_strided_slice %84 {offsets = [0, 198], sizes = [2, 18], strides = [1, 1]} : vector<2x324xf32> to vector<2x18xf32>
    %c10_87 = arith.constant 10 : index
    %c41_88 = arith.constant 41 : index
    %130 = vector.load %arg15[%c10_87, %c41_88] : memref<18x80xf32, #tpu.memory_space<vmem>>, vector<2x18xf32>
    tpu.vector_store %arg15[%c10_87, %c41_88], %129 {strides = array<i32>} : memref<18x80xf32, #tpu.memory_space<vmem>>, vector<2x18xf32>,
    %131 = vector.extract_strided_slice %84 {offsets = [0, 216], sizes = [2, 18], strides = [1, 1]} : vector<2x324xf32> to vector<2x18xf32>
    %c10_89 = arith.constant 10 : index
    %c61_90 = arith.constant 61 : index
    %132 = vector.load %arg15[%c10_89, %c61_90] : memref<18x80xf32, #tpu.memory_space<vmem>>, vector<2x18xf32>
    tpu.vector_store %arg15[%c10_89, %c61_90], %131 {strides = array<i32>} : memref<18x80xf32, #tpu.memory_space<vmem>>, vector<2x18xf32>,
    %133 = vector.extract_strided_slice %84 {offsets = [0, 198], sizes = [2, 18], strides = [1, 1]} : vector<2x324xf32> to vector<2x18xf32>
    %c12 = arith.constant 12 : index
    %c1_91 = arith.constant 1 : index
    %134 = vector.load %arg15[%c12, %c1_91] : memref<18x80xf32, #tpu.memory_space<vmem>>, vector<2x18xf32>
    tpu.vector_store %arg15[%c12, %c1_91], %133 {strides = array<i32>} : memref<18x80xf32, #tpu.memory_space<vmem>>, vector<2x18xf32>,
    %135 = vector.extract_strided_slice %84 {offsets = [0, 216], sizes = [2, 18], strides = [1, 1]} : vector<2x324xf32> to vector<2x18xf32>
    %c12_92 = arith.constant 12 : index
    %c21_93 = arith.constant 21 : index
    %136 = vector.load %arg15[%c12_92, %c21_93] : memref<18x80xf32, #tpu.memory_space<vmem>>, vector<2x18xf32>
    tpu.vector_store %arg15[%c12_92, %c21_93], %135 {strides = array<i32>} : memref<18x80xf32, #tpu.memory_space<vmem>>, vector<2x18xf32>,
    %137 = vector.extract_strided_slice %84 {offsets = [0, 234], sizes = [2, 18], strides = [1, 1]} : vector<2x324xf32> to vector<2x18xf32>
    %c12_94 = arith.constant 12 : index
    %c41_95 = arith.constant 41 : index
    %138 = vector.load %arg15[%c12_94, %c41_95] : memref<18x80xf32, #tpu.memory_space<vmem>>, vector<2x18xf32>
    tpu.vector_store %arg15[%c12_94, %c41_95], %137 {strides = array<i32>} : memref<18x80xf32, #tpu.memory_space<vmem>>, vector<2x18xf32>,
    %139 = vector.extract_strided_slice %84 {offsets = [0, 252], sizes = [2, 18], strides = [1, 1]} : vector<2x324xf32> to vector<2x18xf32>
    %c12_96 = arith.constant 12 : index
    %c61_97 = arith.constant 61 : index
    %140 = vector.load %arg15[%c12_96, %c61_97] : memref<18x80xf32, #tpu.memory_space<vmem>>, vector<2x18xf32>
    tpu.vector_store %arg15[%c12_96, %c61_97], %139 {strides = array<i32>} : memref<18x80xf32, #tpu.memory_space<vmem>>, vector<2x18xf32>,
    %141 = vector.extract_strided_slice %84 {offsets = [0, 234], sizes = [2, 18], strides = [1, 1]} : vector<2x324xf32> to vector<2x18xf32>
    %c14 = arith.constant 14 : index
    %c1_98 = arith.constant 1 : index
    %142 = vector.load %arg15[%c14, %c1_98] : memref<18x80xf32, #tpu.memory_space<vmem>>, vector<2x18xf32>
    tpu.vector_store %arg15[%c14, %c1_98], %141 {strides = array<i32>} : memref<18x80xf32, #tpu.memory_space<vmem>>, vector<2x18xf32>,
    %143 = vector.extract_strided_slice %84 {offsets = [0, 252], sizes = [2, 18], strides = [1, 1]} : vector<2x324xf32> to vector<2x18xf32>
    %c14_99 = arith.constant 14 : index
    %c21_100 = arith.constant 21 : index
    %144 = vector.load %arg15[%c14_99, %c21_100] : memref<18x80xf32, #tpu.memory_space<vmem>>, vector<2x18xf32>
    tpu.vector_store %arg15[%c14_99, %c21_100], %143 {strides = array<i32>} : memref<18x80xf32, #tpu.memory_space<vmem>>, vector<2x18xf32>,
    %145 = vector.extract_strided_slice %84 {offsets = [0, 270], sizes = [2, 18], strides = [1, 1]} : vector<2x324xf32> to vector<2x18xf32>
    %c14_101 = arith.constant 14 : index
    %c41_102 = arith.constant 41 : index
    %146 = vector.load %arg15[%c14_101, %c41_102] : memref<18x80xf32, #tpu.memory_space<vmem>>, vector<2x18xf32>
    tpu.vector_store %arg15[%c14_101, %c41_102], %145 {strides = array<i32>} : memref<18x80xf32, #tpu.memory_space<vmem>>, vector<2x18xf32>,
    %147 = vector.extract_strided_slice %84 {offsets = [0, 288], sizes = [2, 18], strides = [1, 1]} : vector<2x324xf32> to vector<2x18xf32>
    %c14_103 = arith.constant 14 : index
    %c61_104 = arith.constant 61 : index
    %148 = vector.load %arg15[%c14_103, %c61_104] : memref<18x80xf32, #tpu.memory_space<vmem>>, vector<2x18xf32>
    tpu.vector_store %arg15[%c14_103, %c61_104], %147 {strides = array<i32>} : memref<18x80xf32, #tpu.memory_space<vmem>>, vector<2x18xf32>,
    %149 = vector.extract_strided_slice %84 {offsets = [0, 270], sizes = [2, 18], strides = [1, 1]} : vector<2x324xf32> to vector<2x18xf32>
    %c16 = arith.constant 16 : index
    %c1_105 = arith.constant 1 : index
    %150 = vector.load %arg15[%c16, %c1_105] : memref<18x80xf32, #tpu.memory_space<vmem>>, vector<2x18xf32>
    tpu.vector_store %arg15[%c16, %c1_105], %149 {strides = array<i32>} : memref<18x80xf32, #tpu.memory_space<vmem>>, vector<2x18xf32>,
    %151 = vector.extract_strided_slice %84 {offsets = [0, 288], sizes = [2, 18], strides = [1, 1]} : vector<2x324xf32> to vector<2x18xf32>
    %c16_106 = arith.constant 16 : index
    %c21_107 = arith.constant 21 : index
    %152 = vector.load %arg15[%c16_106, %c21_107] : memref<18x80xf32, #tpu.memory_space<vmem>>, vector<2x18xf32>
    tpu.vector_store %arg15[%c16_106, %c21_107], %151 {strides = array<i32>} : memref<18x80xf32, #tpu.memory_space<vmem>>, vector<2x18xf32>,
    %153 = vector.extract_strided_slice %84 {offsets = [0, 306], sizes = [2, 18], strides = [1, 1]} : vector<2x324xf32> to vector<2x18xf32>
    %c16_108 = arith.constant 16 : index
    %c41_109 = arith.constant 41 : index
    %154 = vector.load %arg15[%c16_108, %c41_109] : memref<18x80xf32, #tpu.memory_space<vmem>>, vector<2x18xf32>
    tpu.vector_store %arg15[%c16_108, %c41_109], %153 {strides = array<i32>} : memref<18x80xf32, #tpu.memory_space<vmem>>, vector<2x18xf32>,
    %c0_110 = arith.constant 0 : index
    %c0_111 = arith.constant 0 : index
    %155 = vector.load %arg15[%c0_110, %c0_111] : memref<18x80xf32, #tpu.memory_space<vmem>>, vector<18x80xf32>
    %156 = arith.truncf %155 : vector<18x80xf32> to vector<18x80xbf16>
    %c0_112 = arith.constant 0 : index
    %c0_113 = arith.constant 0 : index
    %c0_114 = arith.constant 0 : index
    %157 = vector.load %arg6[%c0_112, %c0_113, %c0_114] : memref<4x80x90xbf16, #tpu.memory_space<vmem>>, vector<1x80x90xbf16>
    %158 = vector.shape_cast %157 : vector<1x80x90xbf16> to vector<80x90xbf16>
    %cst_115 = arith.constant dense<0.000000e+00> : vector<18x90xf32>
    %159 = tpu.matmul %156, %158, %cst_115 {dimension_numbers = #tpu.dot_dimension_numbers<[1], [0], [0], [1], [0, 0, 1, 1], [], []>} : vector<18x80xbf16>, vector<80x90xbf16>, vector<18x90xf32> -> vector<18x90xf32>
    %c1_116 = arith.constant 1 : index
    %c0_117 = arith.constant 0 : index
    %c0_118 = arith.constant 0 : index
    %160 = vector.load %arg6[%c1_116, %c0_117, %c0_118] : memref<4x80x90xbf16, #tpu.memory_space<vmem>>, vector<1x80x90xbf16>
    %161 = vector.shape_cast %160 : vector<1x80x90xbf16> to vector<80x90xbf16>
    %cst_119 = arith.constant dense<0.000000e+00> : vector<18x90xf32>
    %162 = tpu.matmul %156, %161, %cst_119 {dimension_numbers = #tpu.dot_dimension_numbers<[1], [0], [0], [1], [0, 0, 1, 1], [], []>} : vector<18x80xbf16>, vector<80x90xbf16>, vector<18x90xf32> -> vector<18x90xf32>
    %163 = arith.maximumf %159, %162 : vector<18x90xf32>
    %c2_120 = arith.constant 2 : index
    %c0_121 = arith.constant 0 : index
    %c0_122 = arith.constant 0 : index
    %164 = vector.load %arg6[%c2_120, %c0_121, %c0_122] : memref<4x80x90xbf16, #tpu.memory_space<vmem>>, vector<1x80x90xbf16>
    %165 = vector.shape_cast %164 : vector<1x80x90xbf16> to vector<80x90xbf16>
    %cst_123 = arith.constant dense<0.000000e+00> : vector<18x90xf32>
    %166 = tpu.matmul %156, %165, %cst_123 {dimension_numbers = #tpu.dot_dimension_numbers<[1], [0], [0], [1], [0, 0, 1, 1], [], []>} : vector<18x80xbf16>, vector<80x90xbf16>, vector<18x90xf32> -> vector<18x90xf32>
    %167 = arith.maximumf %163, %166 : vector<18x90xf32>
    %c3_124 = arith.constant 3 : index
    %c0_125 = arith.constant 0 : index
    %c0_126 = arith.constant 0 : index
    %168 = vector.load %arg6[%c3_124, %c0_125, %c0_126] : memref<4x80x90xbf16, #tpu.memory_space<vmem>>, vector<1x80x90xbf16>
    %169 = vector.shape_cast %168 : vector<1x80x90xbf16> to vector<80x90xbf16>
    %cst_127 = arith.constant dense<0.000000e+00> : vector<18x90xf32>
    %170 = tpu.matmul %156, %169, %cst_127 {dimension_numbers = #tpu.dot_dimension_numbers<[1], [0], [0], [1], [0, 0, 1, 1], [], []>} : vector<18x80xbf16>, vector<80x90xbf16>, vector<18x90xf32> -> vector<18x90xf32>
    %171 = arith.maximumf %167, %170 : vector<18x90xf32>
    %c0_128 = arith.constant 0 : index
    %c0_129 = arith.constant 0 : index
    %172 = vector.load %arg7[%c0_128, %c0_129] : memref<1x90xf32, #tpu.memory_space<vmem>>, vector<1x90xf32>
    %173 = vector.broadcast %172 : vector<1x90xf32> to vector<18x90xf32>
    %174 = arith.addf %171, %173 : vector<18x90xf32>
    %cst_130 = arith.constant 0.000000e+00 : f32
    %175 = vector.broadcast %cst_130 : f32 to vector<18x90xf32>
    %176 = arith.maximumf %174, %175 : vector<18x90xf32>
    %177 = arith.truncf %176 : vector<18x90xf32> to vector<18x90xbf16>
    %cst_131 = arith.constant 0.000000e+00 : f32
    %178 = vector.broadcast %cst_131 : f32 to vector<2x64xf32>
    %c0_132 = arith.constant 0 : index
    %c0_133 = arith.constant 0 : index
    %179 = vector.load %arg9[%c0_132, %c0_133] : memref<1x64xf32, #tpu.memory_space<vmem>>, vector<1x64xf32>
    %180 = vector.broadcast %179 : vector<1x64xf32> to vector<2x64xf32>
    %181 = arith.addf %178, %180 : vector<2x64xf32>
    %182 = vector.extract_strided_slice %177 {offsets = [0, 0], sizes = [2, 90], strides = [1, 1]} : vector<18x90xbf16> to vector<2x90xbf16>
    %c0_134 = arith.constant 0 : index
    %c0_135 = arith.constant 0 : index
    %183 = vector.load %arg8[%c0_134, %c0_135] : memref<810x64xbf16, #tpu.memory_space<vmem>>, vector<90x64xbf16>
    %cst_136 = arith.constant dense<0.000000e+00> : vector<2x64xf32>
    %184 = tpu.matmul %182, %183, %cst_136 {dimension_numbers = #tpu.dot_dimension_numbers<[1], [0], [0], [1], [0, 0, 1, 1], [], []>} : vector<2x90xbf16>, vector<90x64xbf16>, vector<2x64xf32> -> vector<2x64xf32>
    %185 = arith.addf %181, %184 : vector<2x64xf32>
    %186 = vector.extract_strided_slice %177 {offsets = [2, 0], sizes = [2, 90], strides = [1, 1]} : vector<18x90xbf16> to vector<2x90xbf16>
    %c90 = arith.constant 90 : index
    %c0_137 = arith.constant 0 : index
    %187 = vector.load %arg8[%c90, %c0_137] : memref<810x64xbf16, #tpu.memory_space<vmem>>, vector<90x64xbf16>
    %cst_138 = arith.constant dense<0.000000e+00> : vector<2x64xf32>
    %188 = tpu.matmul %186, %187, %cst_138 {dimension_numbers = #tpu.dot_dimension_numbers<[1], [0], [0], [1], [0, 0, 1, 1], [], []>} : vector<2x90xbf16>, vector<90x64xbf16>, vector<2x64xf32> -> vector<2x64xf32>
    %189 = arith.addf %185, %188 : vector<2x64xf32>
    %190 = vector.extract_strided_slice %177 {offsets = [4, 0], sizes = [2, 90], strides = [1, 1]} : vector<18x90xbf16> to vector<2x90xbf16>
    %c180 = arith.constant 180 : index
    %c0_139 = arith.constant 0 : index
    %191 = vector.load %arg8[%c180, %c0_139] : memref<810x64xbf16, #tpu.memory_space<vmem>>, vector<90x64xbf16>
    %cst_140 = arith.constant dense<0.000000e+00> : vector<2x64xf32>
    %192 = tpu.matmul %190, %191, %cst_140 {dimension_numbers = #tpu.dot_dimension_numbers<[1], [0], [0], [1], [0, 0, 1, 1], [], []>} : vector<2x90xbf16>, vector<90x64xbf16>, vector<2x64xf32> -> vector<2x64xf32>
    %193 = arith.addf %189, %192 : vector<2x64xf32>
    %194 = vector.extract_strided_slice %177 {offsets = [6, 0], sizes = [2, 90], strides = [1, 1]} : vector<18x90xbf16> to vector<2x90xbf16>
    %c270 = arith.constant 270 : index
    %c0_141 = arith.constant 0 : index
    %195 = vector.load %arg8[%c270, %c0_141] : memref<810x64xbf16, #tpu.memory_space<vmem>>, vector<90x64xbf16>
    %cst_142 = arith.constant dense<0.000000e+00> : vector<2x64xf32>
    %196 = tpu.matmul %194, %195, %cst_142 {dimension_numbers = #tpu.dot_dimension_numbers<[1], [0], [0], [1], [0, 0, 1, 1], [], []>} : vector<2x90xbf16>, vector<90x64xbf16>, vector<2x64xf32> -> vector<2x64xf32>
    %197 = arith.addf %193, %196 : vector<2x64xf32>
    %198 = vector.extract_strided_slice %177 {offsets = [8, 0], sizes = [2, 90], strides = [1, 1]} : vector<18x90xbf16> to vector<2x90xbf16>
    %c360 = arith.constant 360 : index
    %c0_143 = arith.constant 0 : index
    %199 = vector.load %arg8[%c360, %c0_143] : memref<810x64xbf16, #tpu.memory_space<vmem>>, vector<90x64xbf16>
    %cst_144 = arith.constant dense<0.000000e+00> : vector<2x64xf32>
    %200 = tpu.matmul %198, %199, %cst_144 {dimension_numbers = #tpu.dot_dimension_numbers<[1], [0], [0], [1], [0, 0, 1, 1], [], []>} : vector<2x90xbf16>, vector<90x64xbf16>, vector<2x64xf32> -> vector<2x64xf32>
    %201 = arith.addf %197, %200 : vector<2x64xf32>
    %202 = vector.extract_strided_slice %177 {offsets = [10, 0], sizes = [2, 90], strides = [1, 1]} : vector<18x90xbf16> to vector<2x90xbf16>
    %c450 = arith.constant 450 : index
    %c0_145 = arith.constant 0 : index
    %203 = vector.load %arg8[%c450, %c0_145] : memref<810x64xbf16, #tpu.memory_space<vmem>>, vector<90x64xbf16>
    %cst_146 = arith.constant dense<0.000000e+00> : vector<2x64xf32>
    %204 = tpu.matmul %202, %203, %cst_146 {dimension_numbers = #tpu.dot_dimension_numbers<[1], [0], [0], [1], [0, 0, 1, 1], [], []>} : vector<2x90xbf16>, vector<90x64xbf16>, vector<2x64xf32> -> vector<2x64xf32>
    %205 = arith.addf %201, %204 : vector<2x64xf32>
    %206 = vector.extract_strided_slice %177 {offsets = [12, 0], sizes = [2, 90], strides = [1, 1]} : vector<18x90xbf16> to vector<2x90xbf16>
    %c540 = arith.constant 540 : index
    %c0_147 = arith.constant 0 : index
    %207 = vector.load %arg8[%c540, %c0_147] : memref<810x64xbf16, #tpu.memory_space<vmem>>, vector<90x64xbf16>
    %cst_148 = arith.constant dense<0.000000e+00> : vector<2x64xf32>
    %208 = tpu.matmul %206, %207, %cst_148 {dimension_numbers = #tpu.dot_dimension_numbers<[1], [0], [0], [1], [0, 0, 1, 1], [], []>} : vector<2x90xbf16>, vector<90x64xbf16>, vector<2x64xf32> -> vector<2x64xf32>
    %209 = arith.addf %205, %208 : vector<2x64xf32>
    %210 = vector.extract_strided_slice %177 {offsets = [14, 0], sizes = [2, 90], strides = [1, 1]} : vector<18x90xbf16> to vector<2x90xbf16>
    %c630 = arith.constant 630 : index
    %c0_149 = arith.constant 0 : index
    %211 = vector.load %arg8[%c630, %c0_149] : memref<810x64xbf16, #tpu.memory_space<vmem>>, vector<90x64xbf16>
    %cst_150 = arith.constant dense<0.000000e+00> : vector<2x64xf32>
    %212 = tpu.matmul %210, %211, %cst_150 {dimension_numbers = #tpu.dot_dimension_numbers<[1], [0], [0], [1], [0, 0, 1, 1], [], []>} : vector<2x90xbf16>, vector<90x64xbf16>, vector<2x64xf32> -> vector<2x64xf32>
    %213 = arith.addf %209, %212 : vector<2x64xf32>
    %214 = vector.extract_strided_slice %177 {offsets = [16, 0], sizes = [2, 90], strides = [1, 1]} : vector<18x90xbf16> to vector<2x90xbf16>
    %c720 = arith.constant 720 : index
    %c0_151 = arith.constant 0 : index
    %215 = vector.load %arg8[%c720, %c0_151] : memref<810x64xbf16, #tpu.memory_space<vmem>>, vector<90x64xbf16>
    %cst_152 = arith.constant dense<0.000000e+00> : vector<2x64xf32>
    %216 = tpu.matmul %214, %215, %cst_152 {dimension_numbers = #tpu.dot_dimension_numbers<[1], [0], [0], [1], [0, 0, 1, 1], [], []>} : vector<2x90xbf16>, vector<90x64xbf16>, vector<2x64xf32> -> vector<2x64xf32>
    %217 = arith.addf %213, %216 : vector<2x64xf32>
    %cst_153 = arith.constant 0.000000e+00 : f32
    %218 = vector.broadcast %cst_153 : f32 to vector<2x64xf32>
    %219 = arith.maximumf %217, %218 : vector<2x64xf32>
    %cst_154 = arith.constant 0.000000e+00 : f32
    %220 = vector.broadcast %cst_154 : f32 to vector<8x40xf32>
    %c0_155 = arith.constant 0 : index
    %c0_156 = arith.constant 0 : index
    %221 = vector.load %arg16[%c0_155, %c0_156] : memref<8x40xf32, #tpu.memory_space<vmem>>, vector<8x40xf32>
    tpu.vector_store %arg16[%c0_155, %c0_156], %220 {strides = array<i32>} : memref<8x40xf32, #tpu.memory_space<vmem>>, vector<8x40xf32>,
    %222 = vector.extract_strided_slice %219 {offsets = [0, 0], sizes = [2, 8], strides = [1, 1]} : vector<2x64xf32> to vector<2x8xf32>
    %c0_157 = arith.constant 0 : index
    %c11 = arith.constant 11 : index
    %223 = vector.load %arg16[%c0_157, %c11] : memref<8x40xf32, #tpu.memory_space<vmem>>, vector<2x8xf32>
    tpu.vector_store %arg16[%c0_157, %c11], %222 {strides = array<i32>} : memref<8x40xf32, #tpu.memory_space<vmem>>, vector<2x8xf32>,
    %224 = vector.extract_strided_slice %219 {offsets = [0, 8], sizes = [2, 8], strides = [1, 1]} : vector<2x64xf32> to vector<2x8xf32>
    %c0_158 = arith.constant 0 : index
    %c21_159 = arith.constant 21 : index
    %225 = vector.load %arg16[%c0_158, %c21_159] : memref<8x40xf32, #tpu.memory_space<vmem>>, vector<2x8xf32>
    tpu.vector_store %arg16[%c0_158, %c21_159], %224 {strides = array<i32>} : memref<8x40xf32, #tpu.memory_space<vmem>>, vector<2x8xf32>,
    %226 = vector.extract_strided_slice %219 {offsets = [0, 16], sizes = [2, 8], strides = [1, 1]} : vector<2x64xf32> to vector<2x8xf32>
    %c0_160 = arith.constant 0 : index
    %c31 = arith.constant 31 : index
    %227 = vector.load %arg16[%c0_160, %c31] : memref<8x40xf32, #tpu.memory_space<vmem>>, vector<2x8xf32>
    tpu.vector_store %arg16[%c0_160, %c31], %226 {strides = array<i32>} : memref<8x40xf32, #tpu.memory_space<vmem>>, vector<2x8xf32>,
    %228 = vector.extract_strided_slice %219 {offsets = [0, 8], sizes = [2, 8], strides = [1, 1]} : vector<2x64xf32> to vector<2x8xf32>
    %c2_161 = arith.constant 2 : index
    %c1_162 = arith.constant 1 : index
    %229 = vector.load %arg16[%c2_161, %c1_162] : memref<8x40xf32, #tpu.memory_space<vmem>>, vector<2x8xf32>
    tpu.vector_store %arg16[%c2_161, %c1_162], %228 {strides = array<i32>} : memref<8x40xf32, #tpu.memory_space<vmem>>, vector<2x8xf32>,
    %230 = vector.extract_strided_slice %219 {offsets = [0, 16], sizes = [2, 8], strides = [1, 1]} : vector<2x64xf32> to vector<2x8xf32>
    %c2_163 = arith.constant 2 : index
    %c11_164 = arith.constant 11 : index
    %231 = vector.load %arg16[%c2_163, %c11_164] : memref<8x40xf32, #tpu.memory_space<vmem>>, vector<2x8xf32>
    tpu.vector_store %arg16[%c2_163, %c11_164], %230 {strides = array<i32>} : memref<8x40xf32, #tpu.memory_space<vmem>>, vector<2x8xf32>,
    %232 = vector.extract_strided_slice %219 {offsets = [0, 24], sizes = [2, 8], strides = [1, 1]} : vector<2x64xf32> to vector<2x8xf32>
    %c2_165 = arith.constant 2 : index
    %c21_166 = arith.constant 21 : index
    %233 = vector.load %arg16[%c2_165, %c21_166] : memref<8x40xf32, #tpu.memory_space<vmem>>, vector<2x8xf32>
    tpu.vector_store %arg16[%c2_165, %c21_166], %232 {strides = array<i32>} : memref<8x40xf32, #tpu.memory_space<vmem>>, vector<2x8xf32>,
    %234 = vector.extract_strided_slice %219 {offsets = [0, 32], sizes = [2, 8], strides = [1, 1]} : vector<2x64xf32> to vector<2x8xf32>
    %c2_167 = arith.constant 2 : index
    %c31_168 = arith.constant 31 : index
    %235 = vector.load %arg16[%c2_167, %c31_168] : memref<8x40xf32, #tpu.memory_space<vmem>>, vector<2x8xf32>
    tpu.vector_store %arg16[%c2_167, %c31_168], %234 {strides = array<i32>} : memref<8x40xf32, #tpu.memory_space<vmem>>, vector<2x8xf32>,
    %236 = vector.extract_strided_slice %219 {offsets = [0, 24], sizes = [2, 8], strides = [1, 1]} : vector<2x64xf32> to vector<2x8xf32>
    %c4_169 = arith.constant 4 : index
    %c1_170 = arith.constant 1 : index
    %237 = vector.load %arg16[%c4_169, %c1_170] : memref<8x40xf32, #tpu.memory_space<vmem>>, vector<2x8xf32>
    tpu.vector_store %arg16[%c4_169, %c1_170], %236 {strides = array<i32>} : memref<8x40xf32, #tpu.memory_space<vmem>>, vector<2x8xf32>,
    %238 = vector.extract_strided_slice %219 {offsets = [0, 32], sizes = [2, 8], strides = [1, 1]} : vector<2x64xf32> to vector<2x8xf32>
    %c4_171 = arith.constant 4 : index
    %c11_172 = arith.constant 11 : index
    %239 = vector.load %arg16[%c4_171, %c11_172] : memref<8x40xf32, #tpu.memory_space<vmem>>, vector<2x8xf32>
    tpu.vector_store %arg16[%c4_171, %c11_172], %238 {strides = array<i32>} : memref<8x40xf32, #tpu.memory_space<vmem>>, vector<2x8xf32>,
    %240 = vector.extract_strided_slice %219 {offsets = [0, 40], sizes = [2, 8], strides = [1, 1]} : vector<2x64xf32> to vector<2x8xf32>
    %c4_173 = arith.constant 4 : index
    %c21_174 = arith.constant 21 : index
    %241 = vector.load %arg16[%c4_173, %c21_174] : memref<8x40xf32, #tpu.memory_space<vmem>>, vector<2x8xf32>
    tpu.vector_store %arg16[%c4_173, %c21_174], %240 {strides = array<i32>} : memref<8x40xf32, #tpu.memory_space<vmem>>, vector<2x8xf32>,
    %242 = vector.extract_strided_slice %219 {offsets = [0, 48], sizes = [2, 8], strides = [1, 1]} : vector<2x64xf32> to vector<2x8xf32>
    %c4_175 = arith.constant 4 : index
    %c31_176 = arith.constant 31 : index
    %243 = vector.load %arg16[%c4_175, %c31_176] : memref<8x40xf32, #tpu.memory_space<vmem>>, vector<2x8xf32>
    tpu.vector_store %arg16[%c4_175, %c31_176], %242 {strides = array<i32>} : memref<8x40xf32, #tpu.memory_space<vmem>>, vector<2x8xf32>,
    %244 = vector.extract_strided_slice %219 {offsets = [0, 40], sizes = [2, 8], strides = [1, 1]} : vector<2x64xf32> to vector<2x8xf32>
    %c6_177 = arith.constant 6 : index
    %c1_178 = arith.constant 1 : index
    %245 = vector.load %arg16[%c6_177, %c1_178] : memref<8x40xf32, #tpu.memory_space<vmem>>, vector<2x8xf32>
    tpu.vector_store %arg16[%c6_177, %c1_178], %244 {strides = array<i32>} : memref<8x40xf32, #tpu.memory_space<vmem>>, vector<2x8xf32>,
    %246 = vector.extract_strided_slice %219 {offsets = [0, 48], sizes = [2, 8], strides = [1, 1]} : vector<2x64xf32> to vector<2x8xf32>
    %c6_179 = arith.constant 6 : index
    %c11_180 = arith.constant 11 : index
    %247 = vector.load %arg16[%c6_179, %c11_180] : memref<8x40xf32, #tpu.memory_space<vmem>>, vector<2x8xf32>
    tpu.vector_store %arg16[%c6_179, %c11_180], %246 {strides = array<i32>} : memref<8x40xf32, #tpu.memory_space<vmem>>, vector<2x8xf32>,
    %248 = vector.extract_strided_slice %219 {offsets = [0, 56], sizes = [2, 8], strides = [1, 1]} : vector<2x64xf32> to vector<2x8xf32>
    %c6_181 = arith.constant 6 : index
    %c21_182 = arith.constant 21 : index
    %249 = vector.load %arg16[%c6_181, %c21_182] : memref<8x40xf32, #tpu.memory_space<vmem>>, vector<2x8xf32>
    tpu.vector_store %arg16[%c6_181, %c21_182], %248 {strides = array<i32>} : memref<8x40xf32, #tpu.memory_space<vmem>>, vector<2x8xf32>,
    %c0_183 = arith.constant 0 : index
    %c0_184 = arith.constant 0 : index
    %250 = vector.load %arg16[%c0_183, %c0_184] : memref<8x40xf32, #tpu.memory_space<vmem>>, vector<8x40xf32>
    %251 = arith.truncf %250 : vector<8x40xf32> to vector<8x40xbf16>
    %c0_185 = arith.constant 0 : index
    %c0_186 = arith.constant 0 : index
    %c0_187 = arith.constant 0 : index
    %252 = vector.load %arg10[%c0_185, %c0_186, %c0_187] : memref<4x40x20xbf16, #tpu.memory_space<vmem>>, vector<1x40x20xbf16>
    %253 = vector.shape_cast %252 : vector<1x40x20xbf16> to vector<40x20xbf16>
    %cst_188 = arith.constant dense<0.000000e+00> : vector<8x20xf32>
    %254 = tpu.matmul %251, %253, %cst_188 {dimension_numbers = #tpu.dot_dimension_numbers<[1], [0], [0], [1], [0, 0, 1, 1], [], []>} : vector<8x40xbf16>, vector<40x20xbf16>, vector<8x20xf32> -> vector<8x20xf32>
    %c1_189 = arith.constant 1 : index
    %c0_190 = arith.constant 0 : index
    %c0_191 = arith.constant 0 : index
    %255 = vector.load %arg10[%c1_189, %c0_190, %c0_191] : memref<4x40x20xbf16, #tpu.memory_space<vmem>>, vector<1x40x20xbf16>
    %256 = vector.shape_cast %255 : vector<1x40x20xbf16> to vector<40x20xbf16>
    %cst_192 = arith.constant dense<0.000000e+00> : vector<8x20xf32>
    %257 = tpu.matmul %251, %256, %cst_192 {dimension_numbers = #tpu.dot_dimension_numbers<[1], [0], [0], [1], [0, 0, 1, 1], [], []>} : vector<8x40xbf16>, vector<40x20xbf16>, vector<8x20xf32> -> vector<8x20xf32>
    %258 = arith.maximumf %254, %257 : vector<8x20xf32>
    %c2_193 = arith.constant 2 : index
    %c0_194 = arith.constant 0 : index
    %c0_195 = arith.constant 0 : index
    %259 = vector.load %arg10[%c2_193, %c0_194, %c0_195] : memref<4x40x20xbf16, #tpu.memory_space<vmem>>, vector<1x40x20xbf16>
    %260 = vector.shape_cast %259 : vector<1x40x20xbf16> to vector<40x20xbf16>
    %cst_196 = arith.constant dense<0.000000e+00> : vector<8x20xf32>
    %261 = tpu.matmul %251, %260, %cst_196 {dimension_numbers = #tpu.dot_dimension_numbers<[1], [0], [0], [1], [0, 0, 1, 1], [], []>} : vector<8x40xbf16>, vector<40x20xbf16>, vector<8x20xf32> -> vector<8x20xf32>
    %262 = arith.maximumf %258, %261 : vector<8x20xf32>
    %c3_197 = arith.constant 3 : index
    %c0_198 = arith.constant 0 : index
    %c0_199 = arith.constant 0 : index
    %263 = vector.load %arg10[%c3_197, %c0_198, %c0_199] : memref<4x40x20xbf16, #tpu.memory_space<vmem>>, vector<1x40x20xbf16>
    %264 = vector.shape_cast %263 : vector<1x40x20xbf16> to vector<40x20xbf16>
    %cst_200 = arith.constant dense<0.000000e+00> : vector<8x20xf32>
    %265 = tpu.matmul %251, %264, %cst_200 {dimension_numbers = #tpu.dot_dimension_numbers<[1], [0], [0], [1], [0, 0, 1, 1], [], []>} : vector<8x40xbf16>, vector<40x20xbf16>, vector<8x20xf32> -> vector<8x20xf32>
    %266 = arith.maximumf %262, %265 : vector<8x20xf32>
    %c0_201 = arith.constant 0 : index
    %c0_202 = arith.constant 0 : index
    %267 = vector.load %arg11[%c0_201, %c0_202] : memref<1x20xf32, #tpu.memory_space<vmem>>, vector<1x20xf32>
    %268 = vector.broadcast %267 : vector<1x20xf32> to vector<8x20xf32>
    %269 = arith.addf %266, %268 : vector<8x20xf32>
    %cst_203 = arith.constant 0.000000e+00 : f32
    %270 = vector.broadcast %cst_203 : f32 to vector<8x20xf32>
    %271 = arith.maximumf %269, %270 : vector<8x20xf32>
    %272 = arith.truncf %271 : vector<8x20xf32> to vector<8x20xbf16>
    %cst_204 = arith.constant 0.000000e+00 : f32
    %273 = vector.broadcast %cst_204 : f32 to vector<2x10xf32>
    %c0_205 = arith.constant 0 : index
    %c0_206 = arith.constant 0 : index
    %274 = vector.load %arg13[%c0_205, %c0_206] : memref<1x10xf32, #tpu.memory_space<vmem>>, vector<1x10xf32>
    %275 = vector.broadcast %274 : vector<1x10xf32> to vector<2x10xf32>
    %276 = arith.addf %273, %275 : vector<2x10xf32>
    %277 = vector.extract_strided_slice %272 {offsets = [0, 0], sizes = [2, 20], strides = [1, 1]} : vector<8x20xbf16> to vector<2x20xbf16>
    %c0_207 = arith.constant 0 : index
    %c0_208 = arith.constant 0 : index
    %278 = vector.load %arg12[%c0_207, %c0_208] : memref<80x10xbf16, #tpu.memory_space<vmem>>, vector<20x10xbf16>
    %cst_209 = arith.constant dense<0.000000e+00> : vector<2x10xf32>
    %279 = tpu.matmul %277, %278, %cst_209 {dimension_numbers = #tpu.dot_dimension_numbers<[1], [0], [0], [1], [0, 0, 1, 1], [], []>} : vector<2x20xbf16>, vector<20x10xbf16>, vector<2x10xf32> -> vector<2x10xf32>
    %280 = arith.addf %276, %279 : vector<2x10xf32>
    %281 = vector.extract_strided_slice %272 {offsets = [2, 0], sizes = [2, 20], strides = [1, 1]} : vector<8x20xbf16> to vector<2x20xbf16>
    %c20 = arith.constant 20 : index
    %c0_210 = arith.constant 0 : index
    %282 = vector.load %arg12[%c20, %c0_210] : memref<80x10xbf16, #tpu.memory_space<vmem>>, vector<20x10xbf16>
    %cst_211 = arith.constant dense<0.000000e+00> : vector<2x10xf32>
    %283 = tpu.matmul %281, %282, %cst_211 {dimension_numbers = #tpu.dot_dimension_numbers<[1], [0], [0], [1], [0, 0, 1, 1], [], []>} : vector<2x20xbf16>, vector<20x10xbf16>, vector<2x10xf32> -> vector<2x10xf32>
    %284 = arith.addf %280, %283 : vector<2x10xf32>
    %285 = vector.extract_strided_slice %272 {offsets = [4, 0], sizes = [2, 20], strides = [1, 1]} : vector<8x20xbf16> to vector<2x20xbf16>
    %c40 = arith.constant 40 : index
    %c0_212 = arith.constant 0 : index
    %286 = vector.load %arg12[%c40, %c0_212] : memref<80x10xbf16, #tpu.memory_space<vmem>>, vector<20x10xbf16>
    %cst_213 = arith.constant dense<0.000000e+00> : vector<2x10xf32>
    %287 = tpu.matmul %285, %286, %cst_213 {dimension_numbers = #tpu.dot_dimension_numbers<[1], [0], [0], [1], [0, 0, 1, 1], [], []>} : vector<2x20xbf16>, vector<20x10xbf16>, vector<2x10xf32> -> vector<2x10xf32>
    %288 = arith.addf %284, %287 : vector<2x10xf32>
    %289 = vector.extract_strided_slice %272 {offsets = [6, 0], sizes = [2, 20], strides = [1, 1]} : vector<8x20xbf16> to vector<2x20xbf16>
    %c60 = arith.constant 60 : index
    %c0_214 = arith.constant 0 : index
    %290 = vector.load %arg12[%c60, %c0_214] : memref<80x10xbf16, #tpu.memory_space<vmem>>, vector<20x10xbf16>
    %cst_215 = arith.constant dense<0.000000e+00> : vector<2x10xf32>
    %291 = tpu.matmul %289, %290, %cst_215 {dimension_numbers = #tpu.dot_dimension_numbers<[1], [0], [0], [1], [0, 0, 1, 1], [], []>} : vector<2x20xbf16>, vector<20x10xbf16>, vector<2x10xf32> -> vector<2x10xf32>
    %292 = arith.addf %288, %291 : vector<2x10xf32>
    %c0_216 = arith.constant 0 : index
    %c0_217 = arith.constant 0 : index
    %293 = vector.load %arg14[%c0_216, %c0_217] : memref<2x10xf32, #tpu.memory_space<vmem>>, vector<2x10xf32>
    tpu.vector_store %arg14[%c0_216, %c0_217], %292 {strides = array<i32>} : memref<2x10xf32, #tpu.memory_space<vmem>>, vector<2x10xf32>,
    return
  }
  func.func @transform_0(%arg0: i32) -> (i32, i32) {
    %c0_i32 = arith.constant 0 : i32
    %c0_i32_0 = arith.constant 0 : i32
    %c0_i32_1 = arith.constant 0 : i32
    return %c0_i32, %c0_i32_0 : i32, i32
  }
  func.func @transform_1(%arg0: i32) -> (i32, i32, i32) {
    %c0_i32 = arith.constant 0 : i32
    %c0_i32_0 = arith.constant 0 : i32
    %c0_i32_1 = arith.constant 0 : i32
    %c0_i32_2 = arith.constant 0 : i32
    return %c0_i32, %c0_i32_0, %c0_i32_1 : i32, i32, i32
  }
  func.func @transform_2(%arg0: i32) -> (i32, i32) {
    %c0_i32 = arith.constant 0 : i32
    %c0_i32_0 = arith.constant 0 : i32
    %c0_i32_1 = arith.constant 0 : i32
    return %c0_i32, %c0_i32_0 : i32, i32
  }
  func.func @transform_3(%arg0: i32) -> (i32, i32) {
    %c0_i32 = arith.constant 0 : i32
    %c0_i32_0 = arith.constant 0 : i32
    %c0_i32_1 = arith.constant 0 : i32
    return %c0_i32, %c0_i32_0 : i32, i32
  }
  func.func @transform_4(%arg0: i32) -> (i32, i32) {
    %c0_i32 = arith.constant 0 : i32
    %c0_i32_0 = arith.constant 0 : i32
    %c0_i32_1 = arith.constant 0 : i32
    return %c0_i32, %c0_i32_0 : i32, i32
  }
  func.func @transform_5(%arg0: i32) -> (i32, i32, i32) {
    %c0_i32 = arith.constant 0 : i32
    %c0_i32_0 = arith.constant 0 : i32
    %c0_i32_1 = arith.constant 0 : i32
    %c0_i32_2 = arith.constant 0 : i32
    return %c0_i32, %c0_i32_0, %c0_i32_1 : i32, i32, i32
  }
  func.func @transform_6(%arg0: i32) -> (i32, i32) {
    %c0_i32 = arith.constant 0 : i32
    %c0_i32_0 = arith.constant 0 : i32
    %c0_i32_1 = arith.constant 0 : i32
    return %c0_i32, %c0_i32_0 : i32, i32
  }
  func.func @transform_7(%arg0: i32) -> (i32, i32) {
    %c0_i32 = arith.constant 0 : i32
    %c0_i32_0 = arith.constant 0 : i32
    %c0_i32_1 = arith.constant 0 : i32
    return %c0_i32, %c0_i32_0 : i32, i32
  }
  func.func @transform_8(%arg0: i32) -> (i32, i32) {
    %c0_i32 = arith.constant 0 : i32
    %c0_i32_0 = arith.constant 0 : i32
    %c0_i32_1 = arith.constant 0 : i32
    return %c0_i32, %c0_i32_0 : i32, i32
  }
  func.func @transform_9(%arg0: i32) -> (i32, i32, i32) {
    %c0_i32 = arith.constant 0 : i32
    %c0_i32_0 = arith.constant 0 : i32
    %c0_i32_1 = arith.constant 0 : i32
    %c0_i32_2 = arith.constant 0 : i32
    return %c0_i32, %c0_i32_0, %c0_i32_1 : i32, i32, i32
  }
  func.func @transform_10(%arg0: i32) -> (i32, i32) {
    %c0_i32 = arith.constant 0 : i32
    %c0_i32_0 = arith.constant 0 : i32
    %c0_i32_1 = arith.constant 0 : i32
    return %c0_i32, %c0_i32_0 : i32, i32
  }
  func.func @transform_11(%arg0: i32) -> (i32, i32) {
    %c0_i32 = arith.constant 0 : i32
    %c0_i32_0 = arith.constant 0 : i32
    %c0_i32_1 = arith.constant 0 : i32
    return %c0_i32, %c0_i32_0 : i32, i32
  }
  func.func @transform_12(%arg0: i32) -> (i32, i32) {
    %c0_i32 = arith.constant 0 : i32
    %c0_i32_0 = arith.constant 0 : i32
    %c0_i32_1 = arith.constant 0 : i32
    return %c0_i32, %c0_i32_0 : i32, i32
  }
  func.func @transform_13(%arg0: i32) -> (i32, i32) {
    %c0_i32 = arith.constant 0 : i32
    %c0_i32_0 = arith.constant 0 : i32
    %c0_i32_1 = arith.constant 0 : i32
    return %c0_i32, %c0_i32_0 : i32, i32
  }
}

</mosaic_0001>

<llo_original>
// kernel: medium_model_forward.1
$region0: #{medium_model_forward.1}
  #allocation0 [shape = 'u32[]', space=smem, size = 0x4, offset = 0x4, fixed_abs, tag = 'smem constant byte address 0x4 - core index']
  #allocation1 [shape = 'u32[144,128]{1,0:T(1,128)}', space=vmem, size = 0x12000, scoped, tag = 'internal scratch']
  #allocation2 [shape = 'f32[18,80]{1,0:T(8,128)}', space=vmem, size = 0x3000, scoped, tag = 'scratch operand']
  #allocation3 [shape = 'f32[8,40]{1,0:T(8,128)}', space=vmem, size = 0x1000, scoped, tag = 'scratch operand']
  %s0 = inlined_call_operand.vmem [shape: f32[28,120], index: 0, kind: input, shape index: {}]
  %s1 = inlined_call_operand.vmem [shape: bf16[4,120,140], index: 1, kind: input, shape index: {}]
  %s2 = inlined_call_operand.vmem [shape: f32[1,140], index: 2, kind: input, shape index: {}]
  %s3 = inlined_call_operand.vmem [shape: bf16[1960,324], index: 3, kind: input, shape index: {}]
  %s4 = inlined_call_operand.vmem [shape: f32[1,324], index: 4, kind: input, shape index: {}]
  %s5 = inlined_call_operand.vmem [shape: bf16[4,80,90], index: 5, kind: input, shape index: {}]
  %s6 = inlined_call_operand.vmem [shape: f32[1,90], index: 6, kind: input, shape index: {}]
  %s7 = inlined_call_operand.vmem [shape: bf16[810,64], index: 7, kind: input, shape index: {}]
  %s8 = inlined_call_operand.vmem [shape: f32[1,64], index: 8, kind: input, shape index: {}]
  %s9 = inlined_call_operand.vmem [shape: bf16[4,40,20], index: 9, kind: input, shape index: {}]
  %s10 = inlined_call_operand.vmem [shape: f32[1,20], index: 10, kind: input, shape index: {}]
  %s11 = inlined_call_operand.vmem [shape: bf16[80,10], index: 11, kind: input, shape index: {}]
  %s12 = inlined_call_operand.vmem [shape: f32[1,10], index: 12, kind: input, shape index: {}]
  %s13 = inlined_call_operand.hbm [shape: f32[2,10], index: 13, kind: output, shape index: {}]
  %s14 = sld [smem:[#allocation0]]
  $region62: #{medium_model_forward.1} parent=0
    _
  %s16 = ssub.s32 1, %s14
  %s17 = scalar_select 0, %s16, %s14
  $region1: #{medium_model_forward.1} parent=0
    #allocation4 [shape = 'u8[1024]{0}', space=vmem, size = 0x400, scoped, tag = 'output window, operand 0, single buffered']
    #allocation5 [shape = 's32[1]{0}', space=sflag, size = 0x4, scoped, tag = 'scoped memory for medium_model_forward.1']
    %18 = vsyncpa [#allocation5], 0
    // Predicated region
    $region2: #{medium_model_forward.1} parent=1 // pred_check
      _
    $region3: #{medium_model_forward.1} parent=1 // pred_check_branch
      %20 = sbr.rel (0) target = $region5
    $region4: #{medium_model_forward.1} parent=1 // pred_region
      _
    $region5: #{medium_model_forward.1} parent=1 // pred_fallthru
      _
    // Predicated region
    $region6: #{medium_model_forward.1} parent=1 // pred_check
      _
    $region7: #{medium_model_forward.1} parent=1 // pred_check_branch
      %22 = sbr.rel (0) target = $region9
    $region8: #{medium_model_forward.1} parent=1 // pred_region
      _
    $region9: #{medium_model_forward.1} parent=1 // pred_fallthru
      _
    // Predicated region
    $region10: #{medium_model_forward.1} parent=1 // pred_check
      _
    $region11: #{medium_model_forward.1} parent=1 // pred_check_branch
      %24 = sbr.rel (0) target = $region13
    $region12: #{medium_model_forward.1} parent=1 // pred_region
      _
    $region13: #{medium_model_forward.1} parent=1 // pred_fallthru
      _
    // Predicated region
    $region14: #{medium_model_forward.1} parent=1 // pred_check
      _
    $region15: #{medium_model_forward.1} parent=1 // pred_check_branch
      %26 = sbr.rel (0) target = $region17
    $region16: #{medium_model_forward.1} parent=1 // pred_region
      _
    $region17: #{medium_model_forward.1} parent=1 // pred_fallthru
      _
    // Predicated region
    $region18: #{medium_model_forward.1} parent=1 // pred_check
      _
    $region19: #{medium_model_forward.1} parent=1 // pred_check_branch
      %28 = sbr.rel (0) target = $region21
    $region20: #{medium_model_forward.1} parent=1 // pred_region
      _
    $region21: #{medium_model_forward.1} parent=1 // pred_fallthru
      _
    // Predicated region
    $region22: #{medium_model_forward.1} parent=1 // pred_check
      _
    $region23: #{medium_model_forward.1} parent=1 // pred_check_branch
      %30 = sbr.rel (0) target = $region25
    $region24: #{medium_model_forward.1} parent=1 // pred_region
      _
    $region25: #{medium_model_forward.1} parent=1 // pred_fallthru
      _
    // Predicated region
    $region26: #{medium_model_forward.1} parent=1 // pred_check
      _
    $region27: #{medium_model_forward.1} parent=1 // pred_check_branch
      %32 = sbr.rel (0) target = $region29
    $region28: #{medium_model_forward.1} parent=1 // pred_region
      _
    $region29: #{medium_model_forward.1} parent=1 // pred_fallthru
      _
    // Predicated region
    $region30: #{medium_model_forward.1} parent=1 // pred_check
      _
    $region31: #{medium_model_forward.1} parent=1 // pred_check_branch
      %34 = sbr.rel (0) target = $region33
    $region32: #{medium_model_forward.1} parent=1 // pred_region
      _
    $region33: #{medium_model_forward.1} parent=1 // pred_fallthru
      _
    // Predicated region
    $region34: #{medium_model_forward.1} parent=1 // pred_check
      _
    $region35: #{medium_model_forward.1} parent=1 // pred_check_branch
      %36 = sbr.rel (0) target = $region37
    $region36: #{medium_model_forward.1} parent=1 // pred_region
      _
    $region37: #{medium_model_forward.1} parent=1 // pred_fallthru
      _
    // Predicated region
    $region38: #{medium_model_forward.1} parent=1 // pred_check
      _
    $region39: #{medium_model_forward.1} parent=1 // pred_check_branch
      %38 = sbr.rel (0) target = $region41
    $region40: #{medium_model_forward.1} parent=1 // pred_region
      _
    $region41: #{medium_model_forward.1} parent=1 // pred_fallthru
      _
    // Predicated region
    $region42: #{medium_model_forward.1} parent=1 // pred_check
      _
    $region43: #{medium_model_forward.1} parent=1 // pred_check_branch
      %40 = sbr.rel (0) target = $region45
    $region44: #{medium_model_forward.1} parent=1 // pred_region
      _
    $region45: #{medium_model_forward.1} parent=1 // pred_fallthru
      _
    // Predicated region
    $region46: #{medium_model_forward.1} parent=1 // pred_check
      _
    $region47: #{medium_model_forward.1} parent=1 // pred_check_branch
      %42 = sbr.rel (0) target = $region49
    $region48: #{medium_model_forward.1} parent=1 // pred_region
      _
    $region49: #{medium_model_forward.1} parent=1 // pred_fallthru
      _
    // Predicated region
    $region50: #{medium_model_forward.1} parent=1 // pred_check
      _
    $region51: #{medium_model_forward.1} parent=1 // pred_check_branch
      %44 = sbr.rel (0) target = $region53
    $region52: #{medium_model_forward.1} parent=1 // pred_region
      _
    $region53: #{medium_model_forward.1} parent=1 // pred_fallthru
      _
    %v46 = vld [vmem:[%s0] sm:$0xff]
    %v47 = vld [vmem:[%s0 + $0x8] sm:$0xff]
    %v48 = vld [vmem:[%s0 + $0x10] sm:$0xff]
    %v49 = vld [vmem:[%s0 + $0x18] sm:$0xf]
    %v50 = vpack.c.bf16 %v47, %v46
    %v51 = vpack.c.bf16 %v49, %v48
    %v52 = vld [vmem:[%s1] sm:$0xff]
    %v53 = vld [vmem:[%s1 + $0x8] sm:$0xff]
    %v54 = vld [vmem:[%s1 + $0x10] sm:$0xff]
    %v55 = vld [vmem:[%s1 + $0x18] sm:$0xff]
    %v56 = vld [vmem:[%s1 + $0x20] sm:$0xff]
    %v57 = vld [vmem:[%s1 + $0x28] sm:$0xff]
    %v58 = vld [vmem:[%s1 + $0x30] sm:$0xff]
    %v59 = vld [vmem:[%s1 + $0x38] sm:$0xff]
    %v60 = vld [vmem:[%s1 + $0x40] sm:$0xff]
    %v61 = vld [vmem:[%s1 + $0x48] sm:$0xff]
    %v62 = vld [vmem:[%s1 + $0x50] sm:$0xff]
    %v63 = vld [vmem:[%s1 + $0x58] sm:$0xff]
    %v64 = vld [vmem:[%s1 + $0x60] sm:$0xff]
    %v65 = vld [vmem:[%s1 + $0x68] sm:$0xff]
    %v66 = vld [vmem:[%s1 + $0x70] sm:$0xff]
    %v82 = vunpack.c.l.b16 %v52
    %v83 = vunpack.c.h.b16 %v52
    %v84 = vunpack.c.l.b16 %v53
    %v85 = vunpack.c.h.b16 %v53
    %v86 = vunpack.c.l.b16 %v54
    %v87 = vunpack.c.h.b16 %v54
    %v88 = vunpack.c.l.b16 %v55
    %v89 = vunpack.c.h.b16 %v55
    %v90 = vunpack.c.l.b16 %v56
    %v91 = vunpack.c.h.b16 %v56
    %v92 = vunpack.c.l.b16 %v57
    %v93 = vunpack.c.h.b16 %v57
    %v94 = vunpack.c.l.b16 %v58
    %v95 = vunpack.c.h.b16 %v58
    %v96 = vunpack.c.l.b16 %v59
    %v97 = vunpack.c.h.b16 %v59
    %v98 = vunpack.c.l.b16 %v60
    %v99 = vunpack.c.h.b16 %v60
    %v100 = vunpack.c.l.b16 %v61
    %v101 = vunpack.c.h.b16 %v61
    %v102 = vunpack.c.l.b16 %v62
    %v103 = vunpack.c.h.b16 %v62
    %v104 = vunpack.c.l.b16 %v63
    %v105 = vunpack.c.h.b16 %v63
    %v106 = vunpack.c.l.b16 %v64
    %v107 = vunpack.c.h.b16 %v64
    %v108 = vunpack.c.l.b16 %v65
    %v109 = vunpack.c.h.b16 %v65
    %v110 = vunpack.c.l.b16 %v66
    %v111 = vunpack.c.h.b16 %v66
    %v112 = vpack.c.b16 %v84, %v82
    %v113 = vpack.c.b16 %v85, %v83
    %v114 = vpack.c.b16 %v88, %v86
    %v115 = vpack.c.b16 %v89, %v87
    %v116 = vpack.c.b16 %v92, %v90
    %v117 = vpack.c.b16 %v93, %v91
    %v118 = vpack.c.b16 %v96, %v94
    %v119 = vpack.c.b16 %v97, %v95
    %v120 = vpack.c.b16 %v100, %v98
    %v121 = vpack.c.b16 %v101, %v99
    %v122 = vpack.c.b16 %v104, %v102
    %v123 = vpack.c.b16 %v105, %v103
    %v124 = vpack.c.b16 %v108, %v106
    %v125 = vpack.c.b16 %v109, %v107
    %v126 = vpack.c.b16 %v110, %v110
    %v127 = vpack.c.b16 %v111, %v111
    %vm142 = vcmask 982016
    %v144 = vsel %vm142, %v50, 0
    %v147 = vsel %vm142, %v51, 0
    %vm149 = vcmask 1043456
    %v151 = vsel %vm149, %v126, 0
    %v154 = vsel %vm149, %v127, 0
    %156 = vmatprep.subr.bf16.mxu0 %v113
    %157 = vmatpush1.bf16.msra.mxu0 %v112
    %158 = vmatprep.subr.bf16.mxu0 %v115
    %159 = vmatpush1.bf16.msra.mxu0 %v114
    %160 = vmatprep.subr.bf16.mxu0 %v117
    %161 = vmatpush1.bf16.msra.mxu0 %v116
    %162 = vmatprep.subr.bf16.mxu0 %v119
    %163 = vmatpush1.bf16.msra.mxu0 %v118
    %164 = vmatprep.subr.bf16.mxu0 %v121
    %165 = vmatpush1.bf16.msra.mxu0 %v120
    %166 = vmatprep.subr.bf16.mxu0 %v123
    %167 = vmatpush1.bf16.msra.mxu0 %v122
    %168 = vmatprep.subr.bf16.mxu0 %v125
    %169 = vmatpush1.bf16.msra.mxu0 %v124
    %170 = vmatprep.subr.bf16.mxu0 %v154
    %171 = vmatpush1.bf16.msra.mxu0 %v151
    %172 = vmatprep.subr.bf16.mxu0 0
    %173 = vmatpush1.bf16.msra.mxu0 0
    %174 = vmatprep.subr.bf16.mxu0 0
    %175 = vmatpush1.bf16.msra.mxu0 0
    %176 = vmatprep.subr.bf16.mxu0 0
    %177 = vmatpush1.bf16.msra.mxu0 0
    %178 = vmatprep.subr.bf16.mxu0 0
    %179 = vmatpush1.bf16.msra.mxu0 0
    %180 = vmatprep.subr.bf16.mxu0 0
    %181 = vmatpush1.bf16.msra.mxu0 0
    %182 = vmatprep.subr.bf16.mxu0 0
    %183 = vmatpush1.bf16.msra.mxu0 0
    %184 = vmatprep.subr.bf16.mxu0 0
    %185 = vmatpush1.bf16.msra.mxu0 0
    %186 = vmatprep.subr.bf16.mxu0 0
    %187 = vmatpush1.bf16.msra.mxu0 0
    %188 = vmatprep.mubr.bf16.mxu0 0
    %189 = vmatmul.mubr.bf16.gmra.mrb[0].mxu0 %v144
    %v190 = vpop.f32.mrb[0].mxu0
    %v191 = vadd.f32 0.0, %v190
    %v192 = vpop.f32.mrb[0].mxu0
    %v193 = vadd.f32 0.0, %v192
    %v194 = vpop.f32.mrb[0].mxu0
    %v195 = vadd.f32 0.0, %v194
    %v196 = vpop.f32.mrb[0].mxu0
    %v197 = vadd.f32 0.0, %v196
    %198 = vmatprep.mubr.bf16.mxu0 0
    %199 = vmatmul.mubr.bf16.gmra.mrb[0].mxu0 %v147
    %v200 = vpop.f32.mrb[0].mxu0
    %v201 = vadd.f32 0.0, %v200
    %v202 = vpop.f32.mrb[0].mxu0
    %v203 = vadd.f32 0.0, %v202
    %v204 = vpop.f32.mrb[0].mxu0
    %v205 = vadd.f32 0.0, %v204
    %v206 = vpop.f32.mrb[0].mxu0
    %v207 = vadd.f32 0.0, %v206
    %208 = vdwg.mxu0
    %s209 = scalar_lea.vmem %s1, 120
    %v210 = vld [vmem:[%s209] sm:$0xff]
    %v211 = vld [vmem:[%s209 + $0x8] sm:$0xff]
    %v212 = vld [vmem:[%s209 + $0x10] sm:$0xff]
    %v213 = vld [vmem:[%s209 + $0x18] sm:$0xff]
    %v214 = vld [vmem:[%s209 + $0x20] sm:$0xff]
    %v215 = vld [vmem:[%s209 + $0x28] sm:$0xff]
    %v216 = vld [vmem:[%s209 + $0x30] sm:$0xff]
    %v217 = vld [vmem:[%s209 + $0x38] sm:$0xff]
    %v218 = vld [vmem:[%s209 + $0x40] sm:$0xff]
    %v219 = vld [vmem:[%s209 + $0x48] sm:$0xff]
    %v220 = vld [vmem:[%s209 + $0x50] sm:$0xff]
    %v221 = vld [vmem:[%s209 + $0x58] sm:$0xff]
    %v222 = vld [vmem:[%s209 + $0x60] sm:$0xff]
    %v223 = vld [vmem:[%s209 + $0x68] sm:$0xff]
    %v224 = vld [vmem:[%s209 + $0x70] sm:$0xff]
    %v240 = vunpack.c.l.b16 %v210
    %v241 = vunpack.c.h.b16 %v210
    %v242 = vunpack.c.l.b16 %v211
    %v243 = vunpack.c.h.b16 %v211
    %v244 = vunpack.c.l.b16 %v212
    %v245 = vunpack.c.h.b16 %v212
    %v246 = vunpack.c.l.b16 %v213
    %v247 = vunpack.c.h.b16 %v213
    %v248 = vunpack.c.l.b16 %v214
    %v249 = vunpack.c.h.b16 %v214
    %v250 = vunpack.c.l.b16 %v215
    %v251 = vunpack.c.h.b16 %v215
    %v252 = vunpack.c.l.b16 %v216
    %v253 = vunpack.c.h.b16 %v216
    %v254 = vunpack.c.l.b16 %v217
    %v255 = vunpack.c.h.b16 %v217
    %v256 = vunpack.c.l.b16 %v218
    %v257 = vunpack.c.h.b16 %v218
    %v258 = vunpack.c.l.b16 %v219
    %v259 = vunpack.c.h.b16 %v219
    %v260 = vunpack.c.l.b16 %v220
    %v261 = vunpack.c.h.b16 %v220
    %v262 = vunpack.c.l.b16 %v221
    %v263 = vunpack.c.h.b16 %v221
    %v264 = vunpack.c.l.b16 %v222
    %v265 = vunpack.c.h.b16 %v222
    %v266 = vunpack.c.l.b16 %v223
    %v267 = vunpack.c.h.b16 %v223
    %v268 = vunpack.c.l.b16 %v224
    %v269 = vunpack.c.h.b16 %v224
    %v270 = vpack.c.b16 %v242, %v240
    %v271 = vpack.c.b16 %v243, %v241
    %v272 = vpack.c.b16 %v246, %v244
    %v273 = vpack.c.b16 %v247, %v245
    %v274 = vpack.c.b16 %v250, %v248
    %v275 = vpack.c.b16 %v251, %v249
    %v276 = vpack.c.b16 %v254, %v252
    %v277 = vpack.c.b16 %v255, %v253
    %v278 = vpack.c.b16 %v258, %v256
    %v279 = vpack.c.b16 %v259, %v257
    %v280 = vpack.c.b16 %v262, %v260
    %v281 = vpack.c.b16 %v263, %v261
    %v282 = vpack.c.b16 %v266, %v264
    %v283 = vpack.c.b16 %v267, %v265
    %v284 = vpack.c.b16 %v268, %v268
    %v285 = vpack.c.b16 %v269, %v269
    %v301 = vsel %vm149, %v284, 0
    %v304 = vsel %vm149, %v285, 0
    %306 = vmatprep.subr.bf16.mxu0 %v271
    %307 = vmatpush1.bf16.msra.mxu0 %v270
    %308 = vmatprep.subr.bf16.mxu0 %v273
    %309 = vmatpush1.bf16.msra.mxu0 %v272
    %310 = vmatprep.subr.bf16.mxu0 %v275
    %311 = vmatpush1.bf16.msra.mxu0 %v274
    %312 = vmatprep.subr.bf16.mxu0 %v277
    %313 = vmatpush1.bf16.msra.mxu0 %v276
    %314 = vmatprep.subr.bf16.mxu0 %v279
    %315 = vmatpush1.bf16.msra.mxu0 %v278
    %316 = vmatprep.subr.bf16.mxu0 %v281
    %317 = vmatpush1.bf16.msra.mxu0 %v280
    %318 = vmatprep.subr.bf16.mxu0 %v283
    %319 = vmatpush1.bf16.msra.mxu0 %v282
    %320 = vmatprep.subr.bf16.mxu0 %v304
    %321 = vmatpush1.bf16.msra.mxu0 %v301
    %322 = vmatprep.subr.bf16.mxu0 0
    %323 = vmatpush1.bf16.msra.mxu0 0
    %324 = vmatprep.subr.bf16.mxu0 0
    %325 = vmatpush1.bf16.msra.mxu0 0
    %326 = vmatprep.subr.bf16.mxu0 0
    %327 = vmatpush1.bf16.msra.mxu0 0
    %328 = vmatprep.subr.bf16.mxu0 0
    %329 = vmatpush1.bf16.msra.mxu0 0
    %330 = vmatprep.subr.bf16.mxu0 0
    %331 = vmatpush1.bf16.msra.mxu0 0
    %332 = vmatprep.subr.bf16.mxu0 0
    %333 = vmatpush1.bf16.msra.mxu0 0
    %334 = vmatprep.subr.bf16.mxu0 0
    %335 = vmatpush1.bf16.msra.mxu0 0
    %336 = vmatprep.subr.bf16.mxu0 0
    %337 = vmatpush1.bf16.msra.mxu0 0
    %338 = vmatprep.mubr.bf16.mxu0 0
    %339 = vmatmul.mubr.bf16.gmra.mrb[0].mxu0 %v144
    %v340 = vpop.f32.mrb[0].mxu0
    %v341 = vadd.f32 0.0, %v340
    %v342 = vpop.f32.mrb[0].mxu0
    %v343 = vadd.f32 0.0, %v342
    %v344 = vpop.f32.mrb[0].mxu0
    %v345 = vadd.f32 0.0, %v344
    %v346 = vpop.f32.mrb[0].mxu0
    %v347 = vadd.f32 0.0, %v346
    %348 = vmatprep.mubr.bf16.mxu0 0
    %349 = vmatmul.mubr.bf16.gmra.mrb[0].mxu0 %v147
    %v350 = vpop.f32.mrb[0].mxu0
    %v351 = vadd.f32 0.0, %v350
    %v352 = vpop.f32.mrb[0].mxu0
    %v353 = vadd.f32 0.0, %v352
    %v354 = vpop.f32.mrb[0].mxu0
    %v355 = vadd.f32 0.0, %v354
    %v356 = vpop.f32.mrb[0].mxu0
    %v357 = vadd.f32 0.0, %v356
    %358 = vdwg.mxu0
    %v359 = vmax.f32 %v191, %v341
    %v360 = vmax.f32 %v193, %v343
    %v361 = vmax.f32 %v195, %v345
    %v362 = vmax.f32 %v197, %v347
    %v363 = vmax.f32 %v201, %v351
    %v364 = vmax.f32 %v203, %v353
    %v365 = vmax.f32 %v205, %v355
    %v366 = vmax.f32 %v207, %v357
    %s367 = scalar_lea.vmem %s1, 240
    %v368 = vld [vmem:[%s367] sm:$0xff]
    %v369 = vld [vmem:[%s367 + $0x8] sm:$0xff]
    %v370 = vld [vmem:[%s367 + $0x10] sm:$0xff]
    %v371 = vld [vmem:[%s367 + $0x18] sm:$0xff]
    %v372 = vld [vmem:[%s367 + $0x20] sm:$0xff]
    %v373 = vld [vmem:[%s367 + $0x28] sm:$0xff]
    %v374 = vld [vmem:[%s367 + $0x30] sm:$0xff]
    %v375 = vld [vmem:[%s367 + $0x38] sm:$0xff]
    %v376 = vld [vmem:[%s367 + $0x40] sm:$0xff]
    %v377 = vld [vmem:[%s367 + $0x48] sm:$0xff]
    %v378 = vld [vmem:[%s367 + $0x50] sm:$0xff]
    %v379 = vld [vmem:[%s367 + $0x58] sm:$0xff]
    %v380 = vld [vmem:[%s367 + $0x60] sm:$0xff]
    %v381 = vld [vmem:[%s367 + $0x68] sm:$0xff]
    %v382 = vld [vmem:[%s367 + $0x70] sm:$0xff]
    %v398 = vunpack.c.l.b16 %v368
    %v399 = vunpack.c.h.b16 %v368
    %v400 = vunpack.c.l.b16 %v369
    %v401 = vunpack.c.h.b16 %v369
    %v402 = vunpack.c.l.b16 %v370
    %v403 = vunpack.c.h.b16 %v370
    %v404 = vunpack.c.l.b16 %v371
    %v405 = vunpack.c.h.b16 %v371
    %v406 = vunpack.c.l.b16 %v372
    %v407 = vunpack.c.h.b16 %v372
    %v408 = vunpack.c.l.b16 %v373
    %v409 = vunpack.c.h.b16 %v373
    %v410 = vunpack.c.l.b16 %v374
    %v411 = vunpack.c.h.b16 %v374
    %v412 = vunpack.c.l.b16 %v375
    %v413 = vunpack.c.h.b16 %v375
    %v414 = vunpack.c.l.b16 %v376
    %v415 = vunpack.c.h.b16 %v376
    %v416 = vunpack.c.l.b16 %v377
    %v417 = vunpack.c.h.b16 %v377
    %v418 = vunpack.c.l.b16 %v378
    %v419 = vunpack.c.h.b16 %v378
    %v420 = vunpack.c.l.b16 %v379
    %v421 = vunpack.c.h.b16 %v379
    %v422 = vunpack.c.l.b16 %v380
    %v423 = vunpack.c.h.b16 %v380
    %v424 = vunpack.c.l.b16 %v381
    %v425 = vunpack.c.h.b16 %v381
    %v426 = vunpack.c.l.b16 %v382
    %v427 = vunpack.c.h.b16 %v382
    %v428 = vpack.c.b16 %v400, %v398
    %v429 = vpack.c.b16 %v401, %v399
    %v430 = vpack.c.b16 %v404, %v402
    %v431 = vpack.c.b16 %v405, %v403
    %v432 = vpack.c.b16 %v408, %v406
    %v433 = vpack.c.b16 %v409, %v407
    %v434 = vpack.c.b16 %v412, %v410
    %v435 = vpack.c.b16 %v413, %v411
    %v436 = vpack.c.b16 %v416, %v414
    %v437 = vpack.c.b16 %v417, %v415
    %v438 = vpack.c.b16 %v420, %v418
    %v439 = vpack.c.b16 %v421, %v419
    %v440 = vpack.c.b16 %v424, %v422
    %v441 = vpack.c.b16 %v425, %v423
    %v442 = vpack.c.b16 %v426, %v426
    %v443 = vpack.c.b16 %v427, %v427
    %v459 = vsel %vm149, %v442, 0
    %v462 = vsel %vm149, %v443, 0
    %464 = vmatprep.subr.bf16.mxu0 %v429
    %465 = vmatpush1.bf16.msra.mxu0 %v428
    %466 = vmatprep.subr.bf16.mxu0 %v431
    %467 = vmatpush1.bf16.msra.mxu0 %v430
    %468 = vmatprep.subr.bf16.mxu0 %v433
    %469 = vmatpush1.bf16.msra.mxu0 %v432
    %470 = vmatprep.subr.bf16.mxu0 %v435
    %471 = vmatpush1.bf16.msra.mxu0 %v434
    %472 = vmatprep.subr.bf16.mxu0 %v437
    %473 = vmatpush1.bf16.msra.mxu0 %v436
    %474 = vmatprep.subr.bf16.mxu0 %v439
    %475 = vmatpush1.bf16.msra.mxu0 %v438
    %476 = vmatprep.subr.bf16.mxu0 %v441
    %477 = vmatpush1.bf16.msra.mxu0 %v440
    %478 = vmatprep.subr.bf16.mxu0 %v462
    %479 = vmatpush1.bf16.msra.mxu0 %v459
    %480 = vmatprep.subr.bf16.mxu0 0
    %481 = vmatpush1.bf16.msra.mxu0 0
    %482 = vmatprep.subr.bf16.mxu0 0
    %483 = vmatpush1.bf16.msra.mxu0 0
    %484 = vmatprep.subr.bf16.mxu0 0
    %485 = vmatpush1.bf16.msra.mxu0 0
    %486 = vmatprep.subr.bf16.mxu0 0
    %487 = vmatpush1.bf16.msra.mxu0 0
    %488 = vmatprep.subr.bf16.mxu0 0
    %489 = vmatpush1.bf16.msra.mxu0 0
    %490 = vmatprep.subr.bf16.mxu0 0
    %491 = vmatpush1.bf16.msra.mxu0 0
    %492 = vmatprep.subr.bf16.mxu0 0
    %493 = vmatpush1.bf16.msra.mxu0 0
    %494 = vmatprep.subr.bf16.mxu0 0
    %495 = vmatpush1.bf16.msra.mxu0 0
    %496 = vmatprep.mubr.bf16.mxu0 0
    %497 = vmatmul.mubr.bf16.gmra.mrb[0].mxu0 %v144
    %v498 = vpop.f32.mrb[0].mxu0
    %v499 = vadd.f32 0.0, %v498
    %v500 = vpop.f32.mrb[0].mxu0
    %v501 = vadd.f32 0.0, %v500
    %v502 = vpop.f32.mrb[0].mxu0
    %v503 = vadd.f32 0.0, %v502
    %v504 = vpop.f32.mrb[0].mxu0
    %v505 = vadd.f32 0.0, %v504
    %506 = vmatprep.mubr.bf16.mxu0 0
    %507 = vmatmul.mubr.bf16.gmra.mrb[0].mxu0 %v147
    %v508 = vpop.f32.mrb[0].mxu0
    %v509 = vadd.f32 0.0, %v508
    %v510 = vpop.f32.mrb[0].mxu0
    %v511 = vadd.f32 0.0, %v510
    %v512 = vpop.f32.mrb[0].mxu0
    %v513 = vadd.f32 0.0, %v512
    %v514 = vpop.f32.mrb[0].mxu0
    %v515 = vadd.f32 0.0, %v514
    %516 = vdwg.mxu0
    %v517 = vmax.f32 %v359, %v499
    %v518 = vmax.f32 %v360, %v501
    %v519 = vmax.f32 %v361, %v503
    %v520 = vmax.f32 %v362, %v505
    %v521 = vmax.f32 %v363, %v509
    %v522 = vmax.f32 %v364, %v511
    %v523 = vmax.f32 %v365, %v513
    %v524 = vmax.f32 %v366, %v515
    %s525 = scalar_lea.vmem %s1, 360
    %v526 = vld [vmem:[%s525] sm:$0xff]
    %v527 = vld [vmem:[%s525 + $0x8] sm:$0xff]
    %v528 = vld [vmem:[%s525 + $0x10] sm:$0xff]
    %v529 = vld [vmem:[%s525 + $0x18] sm:$0xff]
    %v530 = vld [vmem:[%s525 + $0x20] sm:$0xff]
    %v531 = vld [vmem:[%s525 + $0x28] sm:$0xff]
    %v532 = vld [vmem:[%s525 + $0x30] sm:$0xff]
    %v533 = vld [vmem:[%s525 + $0x38] sm:$0xff]
    %v534 = vld [vmem:[%s525 + $0x40] sm:$0xff]
    %v535 = vld [vmem:[%s525 + $0x48] sm:$0xff]
    %v536 = vld [vmem:[%s525 + $0x50] sm:$0xff]
    %v537 = vld [vmem:[%s525 + $0x58] sm:$0xff]
    %v538 = vld [vmem:[%s525 + $0x60] sm:$0xff]
    %v539 = vld [vmem:[%s525 + $0x68] sm:$0xff]
    %v540 = vld [vmem:[%s525 + $0x70] sm:$0xff]
    %v556 = vunpack.c.l.b16 %v526
    %v557 = vunpack.c.h.b16 %v526
    %v558 = vunpack.c.l.b16 %v527
    %v559 = vunpack.c.h.b16 %v527
    %v560 = vunpack.c.l.b16 %v528
    %v561 = vunpack.c.h.b16 %v528
    %v562 = vunpack.c.l.b16 %v529
    %v563 = vunpack.c.h.b16 %v529
    %v564 = vunpack.c.l.b16 %v530
    %v565 = vunpack.c.h.b16 %v530
    %v566 = vunpack.c.l.b16 %v531
    %v567 = vunpack.c.h.b16 %v531
    %v568 = vunpack.c.l.b16 %v532
    %v569 = vunpack.c.h.b16 %v532
    %v570 = vunpack.c.l.b16 %v533
    %v571 = vunpack.c.h.b16 %v533
    %v572 = vunpack.c.l.b16 %v534
    %v573 = vunpack.c.h.b16 %v534
    %v574 = vunpack.c.l.b16 %v535
    %v575 = vunpack.c.h.b16 %v535
    %v576 = vunpack.c.l.b16 %v536
    %v577 = vunpack.c.h.b16 %v536
    %v578 = vunpack.c.l.b16 %v537
    %v579 = vunpack.c.h.b16 %v537
    %v580 = vunpack.c.l.b16 %v538
    %v581 = vunpack.c.h.b16 %v538
    %v582 = vunpack.c.l.b16 %v539
    %v583 = vunpack.c.h.b16 %v539
    %v584 = vunpack.c.l.b16 %v540
    %v585 = vunpack.c.h.b16 %v540
    %v586 = vpack.c.b16 %v558, %v556
    %v587 = vpack.c.b16 %v559, %v557
    %v588 = vpack.c.b16 %v562, %v560
    %v589 = vpack.c.b16 %v563, %v561
    %v590 = vpack.c.b16 %v566, %v564
    %v591 = vpack.c.b16 %v567, %v565
    %v592 = vpack.c.b16 %v570, %v568
    %v593 = vpack.c.b16 %v571, %v569
    %v594 = vpack.c.b16 %v574, %v572
    %v595 = vpack.c.b16 %v575, %v573
    %v596 = vpack.c.b16 %v578, %v576
    %v597 = vpack.c.b16 %v579, %v577
    %v598 = vpack.c.b16 %v582, %v580
    %v599 = vpack.c.b16 %v583, %v581
    %v600 = vpack.c.b16 %v584, %v584
    %v601 = vpack.c.b16 %v585, %v585
    %v617 = vsel %vm149, %v600, 0
    %v620 = vsel %vm149, %v601, 0
    %622 = vmatprep.subr.bf16.mxu0 %v587
    %623 = vmatpush1.bf16.msra.mxu0 %v586
    %624 = vmatprep.subr.bf16.mxu0 %v589
    %625 = vmatpush1.bf16.msra.mxu0 %v588
    %626 = vmatprep.subr.bf16.mxu0 %v591
    %627 = vmatpush1.bf16.msra.mxu0 %v590
    %628 = vmatprep.subr.bf16.mxu0 %v593
    %629 = vmatpush1.bf16.msra.mxu0 %v592
    %630 = vmatprep.subr.bf16.mxu0 %v595
    %631 = vmatpush1.bf16.msra.mxu0 %v594
    %632 = vmatprep.subr.bf16.mxu0 %v597
    %633 = vmatpush1.bf16.msra.mxu0 %v596
    %634 = vmatprep.subr.bf16.mxu0 %v599
    %635 = vmatpush1.bf16.msra.mxu0 %v598
    %636 = vmatprep.subr.bf16.mxu0 %v620
    %637 = vmatpush1.bf16.msra.mxu0 %v617
    %638 = vmatprep.subr.bf16.mxu0 0
    %639 = vmatpush1.bf16.msra.mxu0 0
    %640 = vmatprep.subr.bf16.mxu0 0
    %641 = vmatpush1.bf16.msra.mxu0 0
    %642 = vmatprep.subr.bf16.mxu0 0
    %643 = vmatpush1.bf16.msra.mxu0 0
    %644 = vmatprep.subr.bf16.mxu0 0
    %645 = vmatpush1.bf16.msra.mxu0 0
    %646 = vmatprep.subr.bf16.mxu0 0
    %647 = vmatpush1.bf16.msra.mxu0 0
    %648 = vmatprep.subr.bf16.mxu0 0
    %649 = vmatpush1.bf16.msra.mxu0 0
    %650 = vmatprep.subr.bf16.mxu0 0
    %651 = vmatpush1.bf16.msra.mxu0 0
    %652 = vmatprep.subr.bf16.mxu0 0
    %653 = vmatpush1.bf16.msra.mxu0 0
    %654 = vmatprep.mubr.bf16.mxu0 0
    %655 = vmatmul.mubr.bf16.gmra.mrb[0].mxu0 %v144
    %v656 = vpop.f32.mrb[0].mxu0
    %v657 = vadd.f32 0.0, %v656
    %v658 = vpop.f32.mrb[0].mxu0
    %v659 = vadd.f32 0.0, %v658
    %v660 = vpop.f32.mrb[0].mxu0
    %v661 = vadd.f32 0.0, %v660
    %v662 = vpop.f32.mrb[0].mxu0
    %v663 = vadd.f32 0.0, %v662
    %664 = vmatprep.mubr.bf16.mxu0 0
    %665 = vmatmul.mubr.bf16.gmra.mrb[0].mxu0 %v147
    %v666 = vpop.f32.mrb[0].mxu0
    %v667 = vadd.f32 0.0, %v666
    %v668 = vpop.f32.mrb[0].mxu0
    %v669 = vadd.f32 0.0, %v668
    %v670 = vpop.f32.mrb[0].mxu0
    %v671 = vadd.f32 0.0, %v670
    %v672 = vpop.f32.mrb[0].mxu0
    %v673 = vadd.f32 0.0, %v672
    %674 = vdwg.mxu0
    %v675 = vmax.f32 %v517, %v657
    %v676 = vmax.f32 %v518, %v659
    %v677 = vmax.f32 %v519, %v661
    %v678 = vmax.f32 %v520, %v663
    %v679 = vmax.f32 %v521, %v667
    %v680 = vmax.f32 %v522, %v669
    %v681 = vmax.f32 %v523, %v671
    %v682 = vmax.f32 %v524, %v673
    %v683 = vld [vmem:[%s2] sm:$0x3]
    %v685 = vlaneseq
    %v686 = vshrl.u32 %v685, 7
    %v687 = vsub.s32 0, %v686
    %v688 = vrot.slane %v683, %v687
    %v689 = vlaneseq
    %v690 = vshrl.u32 %v689, 7
    %v691 = vsub.s32 1, %v690
    %v692 = vrot.slane %v683, %v691
    %v695 = vadd.f32 %v675, %v688
    %v696 = vadd.f32 %v676, %v692
    %v697 = vadd.f32 %v677, %v688
    %v698 = vadd.f32 %v678, %v692
    %v699 = vadd.f32 %v679, %v688
    %v700 = vadd.f32 %v680, %v692
    %v701 = vadd.f32 %v681, %v688
    %v702 = vadd.f32 %v682, %v692
    %v703 = vmax.f32 %v695, 0.0
    %v704 = vmax.f32 %v696, 0.0
    %v705 = vmax.f32 %v697, 0.0
    %v706 = vmax.f32 %v698, 0.0
    %v707 = vmax.f32 %v699, 0.0
    %v708 = vmax.f32 %v700, 0.0
    %v709 = vmax.f32 %v701, 0.0
    %v710 = vmax.f32 %v702, 0.0
    %v711 = vpack.c.bf16 %v705, %v703
    %v712 = vpack.c.bf16 %v706, %v704
    %v713 = vpack.c.bf16 %v709, %v707
    %v714 = vpack.c.bf16 %v710, %v708
    %v715 = vld [vmem:[%s4] sm:$0x7]
    %v717 = vlaneseq
    %v718 = vshrl.u32 %v717, 7
    %v719 = vsub.s32 0, %v718
    %v720 = vrot.slane %v715, %v719
    %v721 = vlaneseq
    %v722 = vshrl.u32 %v721, 7
    %v723 = vsub.s32 1, %v722
    %v724 = vrot.slane %v715, %v723
    %v725 = vlaneseq
    %v726 = vshrl.u32 %v725, 7
    %v727 = vsub.s32 2, %v726
    %v728 = vrot.slane %v715, %v727
    %v732 = vadd.f32 %v720, 0.0
    %v733 = vadd.f32 %v724, 0.0
    %v734 = vadd.f32 %v728, 0.0
    %v735 = vld [vmem:[%s3] sm:$0xff]
    %v736 = vld [vmem:[%s3 + $0x8] sm:$0xf]
    %v737 = vld [vmem:[%s3 + $0xc] sm:$0xff]
    %v738 = vld [vmem:[%s3 + $0x14] sm:$0xf]
    %v739 = vld [vmem:[%s3 + $0x18] sm:$0xff]
    %v740 = vld [vmem:[%s3 + $0x20] sm:$0xf]
    %v741 = vld [vmem:[%s3 + $0x24] sm:$0xff]
    %v742 = vld [vmem:[%s3 + $0x2c] sm:$0xf]
    %v743 = vld [vmem:[%s3 + $0x30] sm:$0xff]
    %v744 = vld [vmem:[%s3 + $0x38] sm:$0xf]
    %v745 = vld [vmem:[%s3 + $0x3c] sm:$0xff]
    %v746 = vld [vmem:[%s3 + $0x44] sm:$0xf]
    %v747 = vld [vmem:[%s3 + $0x48] sm:$0xff]
    %v748 = vld [vmem:[%s3 + $0x50] sm:$0xf]
    %v749 = vld [vmem:[%s3 + $0x54] sm:$0xff]
    %v750 = vld [vmem:[%s3 + $0x5c] sm:$0xf]
    %v751 = vld [vmem:[%s3 + $0x60] sm:$0xff]
    %v752 = vld [vmem:[%s3 + $0x68] sm:$0xf]
    %v753 = vld [vmem:[%s3 + $0x6c] sm:$0xff]
    %v754 = vld [vmem:[%s3 + $0x74] sm:$0xf]
    %v755 = vld [vmem:[%s3 + $0x78] sm:$0xff]
    %v756 = vld [vmem:[%s3 + $0x80] sm:$0xf]
    %v757 = vld [vmem:[%s3 + $0x84] sm:$0xff]
    %v758 = vld [vmem:[%s3 + $0x8c] sm:$0xf]
    %v759 = vld [vmem:[%s3 + $0x90] sm:$0xff]
    %v760 = vld [vmem:[%s3 + $0x98] sm:$0xf]
    %v761 = vld [vmem:[%s3 + $0x9c] sm:$0xff]
    %v762 = vld [vmem:[%s3 + $0xa4] sm:$0xf]
    %v763 = vld [vmem:[%s3 + $0xa8] sm:$0xff]
    %v764 = vld [vmem:[%s3 + $0xb0] sm:$0xf]
    %v765 = vld [vmem:[%s3 + $0xb4] sm:$0xff]
    %v766 = vld [vmem:[%s3 + $0xbc] sm:$0xf]
    %v767 = vld [vmem:[%s3 + $0xc0] sm:$0xff]
    %v768 = vld [vmem:[%s3 + $0xc8] sm:$0xf]
    %v769 = vld [vmem:[%s3 + $0xcc] sm:$0x33]
    %v770 = vld [vmem:[%s3 + $0xd4] sm:$0x3]
    %v807 = vunpack.c.l.b16 %v735
    %v808 = vunpack.c.h.b16 %v735
    %v809 = vunpack.c.l.b16 %v736
    %v810 = vunpack.c.l.b16 %v737
    %v811 = vunpack.c.h.b16 %v737
    %v812 = vunpack.c.l.b16 %v738
    %v813 = vunpack.c.l.b16 %v739
    %v814 = vunpack.c.h.b16 %v739
    %v815 = vunpack.c.l.b16 %v740
    %v816 = vunpack.c.l.b16 %v741
    %v817 = vunpack.c.h.b16 %v741
    %v818 = vunpack.c.l.b16 %v742
    %v819 = vunpack.c.l.b16 %v743
    %v820 = vunpack.c.h.b16 %v743
    %v821 = vunpack.c.l.b16 %v744
    %v822 = vunpack.c.l.b16 %v745
    %v823 = vunpack.c.h.b16 %v745
    %v824 = vunpack.c.l.b16 %v746
    %v825 = vunpack.c.l.b16 %v747
    %v826 = vunpack.c.h.b16 %v747
    %v827 = vunpack.c.l.b16 %v748
    %v828 = vunpack.c.l.b16 %v749
    %v829 = vunpack.c.h.b16 %v749
    %v830 = vunpack.c.l.b16 %v750
    %v831 = vunpack.c.l.b16 %v751
    %v832 = vunpack.c.h.b16 %v751
    %v833 = vunpack.c.l.b16 %v752
    %v834 = vunpack.c.l.b16 %v753
    %v835 = vunpack.c.h.b16 %v753
    %v836 = vunpack.c.l.b16 %v754
    %v837 = vunpack.c.l.b16 %v755
    %v838 = vunpack.c.h.b16 %v755
    %v839 = vunpack.c.l.b16 %v756
    %v840 = vunpack.c.l.b16 %v757
    %v841 = vunpack.c.h.b16 %v757
    %v842 = vunpack.c.l.b16 %v758
    %v843 = vunpack.c.l.b16 %v759
    %v844 = vunpack.c.h.b16 %v759
    %v845 = vunpack.c.l.b16 %v760
    %v846 = vunpack.c.l.b16 %v761
    %v847 = vunpack.c.h.b16 %v761
    %v848 = vunpack.c.l.b16 %v762
    %v849 = vunpack.c.l.b16 %v763
    %v850 = vunpack.c.h.b16 %v763
    %v851 = vunpack.c.l.b16 %v764
    %v852 = vunpack.c.l.b16 %v765
    %v853 = vunpack.c.h.b16 %v765
    %v854 = vunpack.c.l.b16 %v766
    %v855 = vunpack.c.l.b16 %v767
    %v856 = vunpack.c.h.b16 %v767
    %v857 = vunpack.c.l.b16 %v768
    %v858 = vunpack.c.l.b16 %v769
    %v859 = vunpack.c.h.b16 %v769
    %v860 = vunpack.c.l.b16 %v770
    %v861 = vpack.c.b16 %v810, %v807
    %v862 = vpack.c.b16 %v811, %v808
    %v863 = vpack.c.b16 %v812, %v809
    %v864 = vpack.c.b16 %v816, %v813
    %v865 = vpack.c.b16 %v817, %v814
    %v866 = vpack.c.b16 %v818, %v815
    %v867 = vpack.c.b16 %v822, %v819
    %v868 = vpack.c.b16 %v823, %v820
    %v869 = vpack.c.b16 %v824, %v821
    %v870 = vpack.c.b16 %v828, %v825
    %v871 = vpack.c.b16 %v829, %v826
    %v872 = vpack.c.b16 %v830, %v827
    %v873 = vpack.c.b16 %v834, %v831
    %v874 = vpack.c.b16 %v835, %v832
    %v875 = vpack.c.b16 %v836, %v833
    %v876 = vpack.c.b16 %v840, %v837
    %v877 = vpack.c.b16 %v841, %v838
    %v878 = vpack.c.b16 %v842, %v839
    %v879 = vpack.c.b16 %v846, %v843
    %v880 = vpack.c.b16 %v847, %v844
    %v881 = vpack.c.b16 %v848, %v845
    %v882 = vpack.c.b16 %v852, %v849
    %v883 = vpack.c.b16 %v853, %v850
    %v884 = vpack.c.b16 %v854, %v851
    %v885 = vpack.c.b16 %v858, %v855
    %v886 = vpack.c.b16 %v859, %v856
    %v887 = vpack.c.b16 %v860, %v857
    %vm912 = vcmask 97280
    %v914 = vsel %vm912, %v712, 0
    %vm916 = vcmask 1045504
    %v918 = vsel %vm916, %v885, 0
    %v921 = vsel %vm916, %v886, 0
    %v924 = vsel %vm916, %v887, 0
    %926 = vmatprep.subr.bf16.mxu0 %v862
    %927 = vmatpush1.bf16.msra.mxu0 %v861
    %928 = vmatprep.subr.bf16.mxu0 %v865
    %929 = vmatpush1.bf16.msra.mxu0 %v864
    %930 = vmatprep.subr.bf16.mxu0 %v868
    %931 = vmatpush1.bf16.msra.mxu0 %v867
    %932 = vmatprep.subr.bf16.mxu0 %v871
    %933 = vmatpush1.bf16.msra.mxu0 %v870
    %934 = vmatprep.subr.bf16.mxu0 %v874
    %935 = vmatpush1.bf16.msra.mxu0 %v873
    %936 = vmatprep.subr.bf16.mxu0 %v877
    %937 = vmatpush1.bf16.msra.mxu0 %v876
    %938 = vmatprep.subr.bf16.mxu0 %v880
    %939 = vmatpush1.bf16.msra.mxu0 %v879
    %940 = vmatprep.subr.bf16.mxu0 %v883
    %941 = vmatpush1.bf16.msra.mxu0 %v882
    %942 = vmatprep.subr.bf16.mxu0 %v921
    %943 = vmatpush1.bf16.msra.mxu0 %v918
    %944 = vmatprep.subr.bf16.mxu0 0
    %945 = vmatpush1.bf16.msra.mxu0 0
    %946 = vmatprep.subr.bf16.mxu0 0
    %947 = vmatpush1.bf16.msra.mxu0 0
    %948 = vmatprep.subr.bf16.mxu0 0
    %949 = vmatpush1.bf16.msra.mxu0 0
    %950 = vmatprep.subr.bf16.mxu0 0
    %951 = vmatpush1.bf16.msra.mxu0 0
    %952 = vmatprep.subr.bf16.mxu0 0
    %953 = vmatpush1.bf16.msra.mxu0 0
    %954 = vmatprep.subr.bf16.mxu0 0
    %955 = vmatpush1.bf16.msra.mxu0 0
    %956 = vmatprep.subr.bf16.mxu0 0
    %957 = vmatpush1.bf16.msra.mxu0 0
    %958 = vmatprep.mubr.bf16.mxu0 %v914
    %959 = vmatmul.mubr.bf16.gmra.mrb[0].mxu0 %v711
    %v960 = vpop.f32.mrb[0].mxu0
    %v961 = vadd.f32 0.0, %v960
    %v962 = vpop.f32.mrb[0].mxu0
    %v963 = vadd.f32 0.0, %v962
    %v964 = vpop.f32.mrb[0].mxu0
    %v965 = vpop.f32.mrb[0].mxu0
    %966 = vdwg.mxu0
    %967 = vmatprep.subr.bf16.mxu0 0
    %968 = vmatpush1.bf16.msra.mxu0 %v863
    %969 = vmatprep.subr.bf16.mxu0 0
    %970 = vmatpush1.bf16.msra.mxu0 %v866
    %971 = vmatprep.subr.bf16.mxu0 0
    %972 = vmatpush1.bf16.msra.mxu0 %v869
    %973 = vmatprep.subr.bf16.mxu0 0
    %974 = vmatpush1.bf16.msra.mxu0 %v872
    %975 = vmatprep.subr.bf16.mxu0 0
    %976 = vmatpush1.bf16.msra.mxu0 %v875
    %977 = vmatprep.subr.bf16.mxu0 0
    %978 = vmatpush1.bf16.msra.mxu0 %v878
    %979 = vmatprep.subr.bf16.mxu0 0
    %980 = vmatpush1.bf16.msra.mxu0 %v881
    %981 = vmatprep.subr.bf16.mxu0 0
    %982 = vmatpush1.bf16.msra.mxu0 %v884
    %983 = vmatprep.subr.bf16.mxu0 0
    %984 = vmatpush1.bf16.msra.mxu0 %v924
    %985 = vmatprep.subr.bf16.mxu0 0
    %986 = vmatpush1.bf16.msra.mxu0 0
    %987 = vmatprep.subr.bf16.mxu0 0
    %988 = vmatpush1.bf16.msra.mxu0 0
    %989 = vmatprep.subr.bf16.mxu0 0
    %990 = vmatpush1.bf16.msra.mxu0 0
    %991 = vmatprep.subr.bf16.mxu0 0
    %992 = vmatpush1.bf16.msra.mxu0 0
    %993 = vmatprep.subr.bf16.mxu0 0
    %994 = vmatpush1.bf16.msra.mxu0 0
    %995 = vmatprep.subr.bf16.mxu0 0
    %996 = vmatpush1.bf16.msra.mxu0 0
    %997 = vmatprep.subr.bf16.mxu0 0
    %998 = vmatpush1.bf16.msra.mxu0 0
    %999 = vmatprep.mubr.bf16.mxu0 %v914
    %1000 = vmatmul.mubr.bf16.gmra.mrb[0].mxu0 %v711
    %v1001 = vpop.f32.mrb[0].mxu0
    %v1002 = vadd.f32 0.0, %v1001
    %v1003 = vpop.f32.mrb[0].mxu0
    %v1004 = vpop.f32.mrb[0].mxu0
    %v1005 = vpop.f32.mrb[0].mxu0
    %1006 = vdwg.mxu0
    %v1007 = vadd.f32 %v732, %v961
    %v1008 = vadd.f32 %v733, %v963
    %v1009 = vadd.f32 %v734, %v1002
    %v1010 = vld [vmem:[%s3 + $0xcc] sm:$0xcc]
    %v1011 = vld [vmem:[%s3 + $0xd4] sm:$0xc]
    %v1012 = vld [vmem:[%s3 + $0xd8] sm:$0xff]
    %v1013 = vld [vmem:[%s3 + $0xe0] sm:$0xf]
    %v1014 = vld [vmem:[%s3 + $0xe4] sm:$0xff]
    %v1015 = vld [vmem:[%s3 + $0xec] sm:$0xf]
    %v1016 = vld [vmem:[%s3 + $0xf0] sm:$0xff]
    %v1017 = vld [vmem:[%s3 + $0xf8] sm:$0xf]
    %v1018 = vld [vmem:[%s3 + $0xfc] sm:$0xff]
    %v1019 = vld [vmem:[%s3 + $0x104] sm:$0xf]
    %v1020 = vld [vmem:[%s3 + $0x108] sm:$0xff]
    %v1021 = vld [vmem:[%s3 + $0x110] sm:$0xf]
    %v1022 = vld [vmem:[%s3 + $0x114] sm:$0xff]
    %v1023 = vld [vmem:[%s3 + $0x11c] sm:$0xf]
    %v1024 = vld [vmem:[%s3 + $0x120] sm:$0xff]
    %v1025 = vld [vmem:[%s3 + $0x128] sm:$0xf]
    %v1026 = vld [vmem:[%s3 + $0x12c] sm:$0xff]
    %v1027 = vld [vmem:[%s3 + $0x134] sm:$0xf]
    %v1028 = vld [vmem:[%s3 + $0x138] sm:$0xff]
    %v1029 = vld [vmem:[%s3 + $0x140] sm:$0xf]
    %v1030 = vld [vmem:[%s3 + $0x144] sm:$0xff]
    %v1031 = vld [vmem:[%s3 + $0x14c] sm:$0xf]
    %v1032 = vld [vmem:[%s3 + $0x150] sm:$0xff]
    %v1033 = vld [vmem:[%s3 + $0x158] sm:$0xf]
    %v1034 = vld [vmem:[%s3 + $0x15c] sm:$0xff]
    %v1035 = vld [vmem:[%s3 + $0x164] sm:$0xf]
    %v1036 = vld [vmem:[%s3 + $0x168] sm:$0xff]
    %v1037 = vld [vmem:[%s3 + $0x170] sm:$0xf]
    %v1038 = vld [vmem:[%s3 + $0x174] sm:$0xff]
    %v1039 = vld [vmem:[%s3 + $0x17c] sm:$0xf]
    %v1040 = vld [vmem:[%s3 + $0x180] sm:$0xff]
    %v1041 = vld [vmem:[%s3 + $0x188] sm:$0xf]
    %v1042 = vld [vmem:[%s3 + $0x18c] sm:$0xff]
    %v1043 = vld [vmem:[%s3 + $0x194] sm:$0xf]
    %v1044 = vld [vmem:[%s3 + $0x198] sm:$0xff]
    %v1045 = vld [vmem:[%s3 + $0x1a0] sm:$0xf]
    %v1048 = vrot.slane %v711, 1
    %v1049 = vrot.slane %v712, 1
    %v1087 = vunpack.c.l.b16 %v1010
    %v1088 = vunpack.c.h.b16 %v1010
    %v1089 = vunpack.c.l.b16 %v1011
    %v1090 = vunpack.c.l.b16 %v1012
    %v1091 = vunpack.c.h.b16 %v1012
    %v1092 = vunpack.c.l.b16 %v1013
    %v1093 = vunpack.c.l.b16 %v1014
    %v1094 = vunpack.c.h.b16 %v1014
    %v1095 = vunpack.c.l.b16 %v1015
    %v1096 = vunpack.c.l.b16 %v1016
    %v1097 = vunpack.c.h.b16 %v1016
    %v1098 = vunpack.c.l.b16 %v1017
    %v1099 = vunpack.c.l.b16 %v1018
    %v1100 = vunpack.c.h.b16 %v1018
    %v1101 = vunpack.c.l.b16 %v1019
    %v1102 = vunpack.c.l.b16 %v1020
    %v1103 = vunpack.c.h.b16 %v1020
    %v1104 = vunpack.c.l.b16 %v1021
    %v1105 = vunpack.c.l.b16 %v1022
    %v1106 = vunpack.c.h.b16 %v1022
    %v1107 = vunpack.c.l.b16 %v1023
    %v1108 = vunpack.c.l.b16 %v1024
    %v1109 = vunpack.c.h.b16 %v1024
    %v1110 = vunpack.c.l.b16 %v1025
    %v1111 = vunpack.c.l.b16 %v1026
    %v1112 = vunpack.c.h.b16 %v1026
    %v1113 = vunpack.c.l.b16 %v1027
    %v1114 = vunpack.c.l.b16 %v1028
    %v1115 = vunpack.c.h.b16 %v1028
    %v1116 = vunpack.c.l.b16 %v1029
    %v1117 = vunpack.c.l.b16 %v1030
    %v1118 = vunpack.c.h.b16 %v1030
    %v1119 = vunpack.c.l.b16 %v1031
    %v1120 = vunpack.c.l.b16 %v1032
    %v1121 = vunpack.c.h.b16 %v1032
    %v1122 = vunpack.c.l.b16 %v1033
    %v1123 = vunpack.c.l.b16 %v1034
    %v1124 = vunpack.c.h.b16 %v1034
    %v1125 = vunpack.c.l.b16 %v1035
    %v1126 = vunpack.c.l.b16 %v1036
    %v1127 = vunpack.c.h.b16 %v1036
    %v1128 = vunpack.c.l.b16 %v1037
    %v1129 = vunpack.c.l.b16 %v1038
    %v1130 = vunpack.c.h.b16 %v1038
    %v1131 = vunpack.c.l.b16 %v1039
    %v1132 = vunpack.c.l.b16 %v1040
    %v1133 = vunpack.c.h.b16 %v1040
    %v1134 = vunpack.c.l.b16 %v1041
    %v1135 = vunpack.c.l.b16 %v1042
    %v1136 = vunpack.c.h.b16 %v1042
    %v1137 = vunpack.c.l.b16 %v1043
    %v1138 = vunpack.c.l.b16 %v1044
    %v1139 = vunpack.c.h.b16 %v1044
    %v1140 = vunpack.c.l.b16 %v1045
    %v1141 = vpack.c.b16 %v1090, %v1087
    %v1142 = vpack.c.b16 %v1091, %v1088
    %v1143 = vpack.c.b16 %v1092, %v1089
    %v1144 = vpack.c.b16 %v1096, %v1093
    %v1145 = vpack.c.b16 %v1097, %v1094
    %v1146 = vpack.c.b16 %v1098, %v1095
    %v1147 = vpack.c.b16 %v1102, %v1099
    %v1148 = vpack.c.b16 %v1103, %v1100
    %v1149 = vpack.c.b16 %v1104, %v1101
    %v1150 = vpack.c.b16 %v1108, %v1105
    %v1151 = vpack.c.b16 %v1109, %v1106
    %v1152 = vpack.c.b16 %v1110, %v1107
    %v1153 = vpack.c.b16 %v1114, %v1111
    %v1154 = vpack.c.b16 %v1115, %v1112
    %v1155 = vpack.c.b16 %v1116, %v1113
    %v1156 = vpack.c.b16 %v1120, %v1117
    %v1157 = vpack.c.b16 %v1121, %v1118
    %v1158 = vpack.c.b16 %v1122, %v1119
    %v1159 = vpack.c.b16 %v1126, %v1123
    %v1160 = vpack.c.b16 %v1127, %v1124
    %v1161 = vpack.c.b16 %v1128, %v1125
    %v1162 = vpack.c.b16 %v1132, %v1129
    %v1163 = vpack.c.b16 %v1133, %v1130
    %v1164 = vpack.c.b16 %v1134, %v1131
    %v1165 = vpack.c.b16 %v1138, %v1135
    %v1166 = vpack.c.b16 %v1139, %v1136
    %v1167 = vpack.c.b16 %v1140, %v1137
    %vm1168 = vcmask 1045504
    %v1169 = vrot.slane %v1141, 2
    %v1170 = vrot.slane %v1144, 2
    %v1171 = vsel %vm1168, %v1169, %v1170
    %v1172 = vrot.slane %v1142, 2
    %v1173 = vrot.slane %v1145, 2
    %v1174 = vsel %vm1168, %v1172, %v1173
    %v1175 = vrot.slane %v1143, 2
    %v1176 = vrot.slane %v1146, 2
    %v1177 = vsel %vm1168, %v1175, %v1176
    %v1178 = vrot.slane %v1147, 2
    %v1179 = vsel %vm1168, %v1170, %v1178
    %v1180 = vrot.slane %v1148, 2
    %v1181 = vsel %vm1168, %v1173, %v1180
    %v1182 = vrot.slane %v1149, 2
    %v1183 = vsel %vm1168, %v1176, %v1182
    %v1184 = vrot.slane %v1150, 2
    %v1185 = vsel %vm1168, %v1178, %v1184
    %v1186 = vrot.slane %v1151, 2
    %v1187 = vsel %vm1168, %v1180, %v1186
    %v1188 = vrot.slane %v1152, 2
    %v1189 = vsel %vm1168, %v1182, %v1188
    %v1190 = vrot.slane %v1153, 2
    %v1191 = vsel %vm1168, %v1184, %v1190
    %v1192 = vrot.slane %v1154, 2
    %v1193 = vsel %vm1168, %v1186, %v1192
    %v1194 = vrot.slane %v1155, 2
    %v1195 = vsel %vm1168, %v1188, %v1194
    %v1196 = vrot.slane %v1156, 2
    %v1197 = vsel %vm1168, %v1190, %v1196
    %v1198 = vrot.slane %v1157, 2
    %v1199 = vsel %vm1168, %v1192, %v1198
    %v1200 = vrot.slane %v1158, 2
    %v1201 = vsel %vm1168, %v1194, %v1200
    %v1202 = vrot.slane %v1159, 2
    %v1203 = vsel %vm1168, %v1196, %v1202
    %v1204 = vrot.slane %v1160, 2
    %v1205 = vsel %vm1168, %v1198, %v1204
    %v1206 = vrot.slane %v1161, 2
    %v1207 = vsel %vm1168, %v1200, %v1206
    %v1208 = vrot.slane %v1162, 2
    %v1209 = vsel %vm1168, %v1202, %v1208
    %v1210 = vrot.slane %v1163, 2
    %v1211 = vsel %vm1168, %v1204, %v1210
    %v1212 = vrot.slane %v1164, 2
    %v1213 = vsel %vm1168, %v1206, %v1212
    %v1214 = vrot.slane %v1165, 2
    %v1215 = vsel %vm1168, %v1208, %v1214
    %v1216 = vrot.slane %v1166, 2
    %v1217 = vsel %vm1168, %v1210, %v1216
    %v1218 = vrot.slane %v1167, 2
    %v1219 = vsel %vm1168, %v1212, %v1218
    %v1245 = vsel %vm912, %v1049, 0
    %v1248 = vsel %vm916, %v1214, 0
    %v1251 = vsel %vm916, %v1216, 0
    %v1254 = vsel %vm916, %v1218, 0
    %1256 = vmatprep.subr.bf16.mxu0 %v1174
    %1257 = vmatpush1.bf16.msra.mxu0 %v1171
    %1258 = vmatprep.subr.bf16.mxu0 %v1181
    %1259 = vmatpush1.bf16.msra.mxu0 %v1179
    %1260 = vmatprep.subr.bf16.mxu0 %v1187
    %1261 = vmatpush1.bf16.msra.mxu0 %v1185
    %1262 = vmatprep.subr.bf16.mxu0 %v1193
    %1263 = vmatpush1.bf16.msra.mxu0 %v1191
    %1264 = vmatprep.subr.bf16.mxu0 %v1199
    %1265 = vmatpush1.bf16.msra.mxu0 %v1197
    %1266 = vmatprep.subr.bf16.mxu0 %v1205
    %1267 = vmatpush1.bf16.msra.mxu0 %v1203
    %1268 = vmatprep.subr.bf16.mxu0 %v1211
    %1269 = vmatpush1.bf16.msra.mxu0 %v1209
    %1270 = vmatprep.subr.bf16.mxu0 %v1217
    %1271 = vmatpush1.bf16.msra.mxu0 %v1215
    %1272 = vmatprep.subr.bf16.mxu0 %v1251
    %1273 = vmatpush1.bf16.msra.mxu0 %v1248
    %1274 = vmatprep.subr.bf16.mxu0 0
    %1275 = vmatpush1.bf16.msra.mxu0 0
    %1276 = vmatprep.subr.bf16.mxu0 0
    %1277 = vmatpush1.bf16.msra.mxu0 0
    %1278 = vmatprep.subr.bf16.mxu0 0
    %1279 = vmatpush1.bf16.msra.mxu0 0
    %1280 = vmatprep.subr.bf16.mxu0 0
    %1281 = vmatpush1.bf16.msra.mxu0 0
    %1282 = vmatprep.subr.bf16.mxu0 0
    %1283 = vmatpush1.bf16.msra.mxu0 0
    %1284 = vmatprep.subr.bf16.mxu0 0
    %1285 = vmatpush1.bf16.msra.mxu0 0
    %1286 = vmatprep.subr.bf16.mxu0 0
    %1287 = vmatpush1.bf16.msra.mxu0 0
    %1288 = vmatprep.mubr.bf16.mxu0 %v1245
    %1289 = vmatmul.mubr.bf16.gmra.mrb[0].mxu0 %v1048
    %v1290 = vpop.f32.mrb[0].mxu0
    %v1291 = vadd.f32 0.0, %v1290
    %v1292 = vpop.f32.mrb[0].mxu0
    %v1293 = vadd.f32 0.0, %v1292
    %v1294 = vpop.f32.mrb[0].mxu0
    %v1295 = vpop.f32.mrb[0].mxu0
    %1296 = vdwg.mxu0
    %1297 = vmatprep.subr.bf16.mxu0 0
    %1298 = vmatpush1.bf16.msra.mxu0 %v1177
    %1299 = vmatprep.subr.bf16.mxu0 0
    %1300 = vmatpush1.bf16.msra.mxu0 %v1183
    %1301 = vmatprep.subr.bf16.mxu0 0
    %1302 = vmatpush1.bf16.msra.mxu0 %v1189
    %1303 = vmatprep.subr.bf16.mxu0 0
    %1304 = vmatpush1.bf16.msra.mxu0 %v1195
    %1305 = vmatprep.subr.bf16.mxu0 0
    %1306 = vmatpush1.bf16.msra.mxu0 %v1201
    %1307 = vmatprep.subr.bf16.mxu0 0
    %1308 = vmatpush1.bf16.msra.mxu0 %v1207
    %1309 = vmatprep.subr.bf16.mxu0 0
    %1310 = vmatpush1.bf16.msra.mxu0 %v1213
    %1311 = vmatprep.subr.bf16.mxu0 0
    %1312 = vmatpush1.bf16.msra.mxu0 %v1219
    %1313 = vmatprep.subr.bf16.mxu0 0
    %1314 = vmatpush1.bf16.msra.mxu0 %v1254
    %1315 = vmatprep.subr.bf16.mxu0 0
    %1316 = vmatpush1.bf16.msra.mxu0 0
    %1317 = vmatprep.subr.bf16.mxu0 0
    %1318 = vmatpush1.bf16.msra.mxu0 0
    %1319 = vmatprep.subr.bf16.mxu0 0
    %1320 = vmatpush1.bf16.msra.mxu0 0
    %1321 = vmatprep.subr.bf16.mxu0 0
    %1322 = vmatpush1.bf16.msra.mxu0 0
    %1323 = vmatprep.subr.bf16.mxu0 0
    %1324 = vmatpush1.bf16.msra.mxu0 0
    %1325 = vmatprep.subr.bf16.mxu0 0
    %1326 = vmatpush1.bf16.msra.mxu0 0
    %1327 = vmatprep.subr.bf16.mxu0 0
    %1328 = vmatpush1.bf16.msra.mxu0 0
    %1329 = vmatprep.mubr.bf16.mxu0 %v1245
    %1330 = vmatmul.mubr.bf16.gmra.mrb[0].mxu0 %v1048
    %v1331 = vpop.f32.mrb[0].mxu0
    %v1332 = vadd.f32 0.0, %v1331
    %v1333 = vpop.f32.mrb[0].mxu0
    %v1334 = vpop.f32.mrb[0].mxu0
    %v1335 = vpop.f32.mrb[0].mxu0
    %1336 = vdwg.mxu0
    %v1337 = vadd.f32 %v1007, %v1291
    %v1338 = vadd.f32 %v1008, %v1293
    %v1339 = vadd.f32 %v1009, %v1332
    %v1340 = vld [vmem:[%s3 + $0x1a4] sm:$0xff]
    %v1341 = vld [vmem:[%s3 + $0x1ac] sm:$0xf]
    %v1342 = vld [vmem:[%s3 + $0x1b0] sm:$0xff]
    %v1343 = vld [vmem:[%s3 + $0x1b8] sm:$0xf]
    %v1344 = vld [vmem:[%s3 + $0x1bc] sm:$0xff]
    %v1345 = vld [vmem:[%s3 + $0x1c4] sm:$0xf]
    %v1346 = vld [vmem:[%s3 + $0x1c8] sm:$0xff]
    %v1347 = vld [vmem:[%s3 + $0x1d0] sm:$0xf]
    %v1348 = vld [vmem:[%s3 + $0x1d4] sm:$0xff]
    %v1349 = vld [vmem:[%s3 + $0x1dc] sm:$0xf]
    %v1350 = vld [vmem:[%s3 + $0x1e0] sm:$0xff]
    %v1351 = vld [vmem:[%s3 + $0x1e8] sm:$0xf]
    %v1352 = vld [vmem:[%s3 + $0x1ec] sm:$0xff]
    %v1353 = vld [vmem:[%s3 + $0x1f4] sm:$0xf]
    %v1354 = vld [vmem:[%s3 + $0x1f8] sm:$0xff]
    %v1355 = vld [vmem:[%s3 + $0x200] sm:$0xf]
    %v1356 = vld [vmem:[%s3 + $0x204] sm:$0xff]
    %v1357 = vld [vmem:[%s3 + $0x20c] sm:$0xf]
    %v1358 = vld [vmem:[%s3 + $0x210] sm:$0xff]
    %v1359 = vld [vmem:[%s3 + $0x218] sm:$0xf]
    %v1360 = vld [vmem:[%s3 + $0x21c] sm:$0xff]
    %v1361 = vld [vmem:[%s3 + $0x224] sm:$0xf]
    %v1362 = vld [vmem:[%s3 + $0x228] sm:$0xff]
    %v1363 = vld [vmem:[%s3 + $0x230] sm:$0xf]
    %v1364 = vld [vmem:[%s3 + $0x234] sm:$0xff]
    %v1365 = vld [vmem:[%s3 + $0x23c] sm:$0xf]
    %v1366 = vld [vmem:[%s3 + $0x240] sm:$0xff]
    %v1367 = vld [vmem:[%s3 + $0x248] sm:$0xf]
    %v1368 = vld [vmem:[%s3 + $0x24c] sm:$0xff]
    %v1369 = vld [vmem:[%s3 + $0x254] sm:$0xf]
    %v1370 = vld [vmem:[%s3 + $0x258] sm:$0xff]
    %v1371 = vld [vmem:[%s3 + $0x260] sm:$0xf]
    %v1372 = vld [vmem:[%s3 + $0x264] sm:$0xff]
    %v1373 = vld [vmem:[%s3 + $0x26c] sm:$0xf]
    %v1374 = vld [vmem:[%s3 + $0x270] sm:$0x33]
    %v1375 = vld [vmem:[%s3 + $0x278] sm:$0x3]
    %v1376 = vrot.slane %v711, 2
    %v1377 = vrot.slane %v712, 2
    %v1415 = vunpack.c.l.b16 %v1340
    %v1416 = vunpack.c.h.b16 %v1340
    %v1417 = vunpack.c.l.b16 %v1341
    %v1418 = vunpack.c.l.b16 %v1342
    %v1419 = vunpack.c.h.b16 %v1342
    %v1420 = vunpack.c.l.b16 %v1343
    %v1421 = vunpack.c.l.b16 %v1344
    %v1422 = vunpack.c.h.b16 %v1344
    %v1423 = vunpack.c.l.b16 %v1345
    %v1424 = vunpack.c.l.b16 %v1346
    %v1425 = vunpack.c.h.b16 %v1346
    %v1426 = vunpack.c.l.b16 %v1347
    %v1427 = vunpack.c.l.b16 %v1348
    %v1428 = vunpack.c.h.b16 %v1348
    %v1429 = vunpack.c.l.b16 %v1349
    %v1430 = vunpack.c.l.b16 %v1350
    %v1431 = vunpack.c.h.b16 %v1350
    %v1432 = vunpack.c.l.b16 %v1351
    %v1433 = vunpack.c.l.b16 %v1352
    %v1434 = vunpack.c.h.b16 %v1352
    %v1435 = vunpack.c.l.b16 %v1353
    %v1436 = vunpack.c.l.b16 %v1354
    %v1437 = vunpack.c.h.b16 %v1354
    %v1438 = vunpack.c.l.b16 %v1355
    %v1439 = vunpack.c.l.b16 %v1356
    %v1440 = vunpack.c.h.b16 %v1356
    %v1441 = vunpack.c.l.b16 %v1357
    %v1442 = vunpack.c.l.b16 %v1358
    %v1443 = vunpack.c.h.b16 %v1358
    %v1444 = vunpack.c.l.b16 %v1359
    %v1445 = vunpack.c.l.b16 %v1360
    %v1446 = vunpack.c.h.b16 %v1360
    %v1447 = vunpack.c.l.b16 %v1361
    %v1448 = vunpack.c.l.b16 %v1362
    %v1449 = vunpack.c.h.b16 %v1362
    %v1450 = vunpack.c.l.b16 %v1363
    %v1451 = vunpack.c.l.b16 %v1364
    %v1452 = vunpack.c.h.b16 %v1364
    %v1453 = vunpack.c.l.b16 %v1365
    %v1454 = vunpack.c.l.b16 %v1366
    %v1455 = vunpack.c.h.b16 %v1366
    %v1456 = vunpack.c.l.b16 %v1367
    %v1457 = vunpack.c.l.b16 %v1368
    %v1458 = vunpack.c.h.b16 %v1368
    %v1459 = vunpack.c.l.b16 %v1369
    %v1460 = vunpack.c.l.b16 %v1370
    %v1461 = vunpack.c.h.b16 %v1370
    %v1462 = vunpack.c.l.b16 %v1371
    %v1463 = vunpack.c.l.b16 %v1372
    %v1464 = vunpack.c.h.b16 %v1372
    %v1465 = vunpack.c.l.b16 %v1373
    %v1466 = vunpack.c.l.b16 %v1374
    %v1467 = vunpack.c.h.b16 %v1374
    %v1468 = vunpack.c.l.b16 %v1375
    %v1469 = vpack.c.b16 %v1418, %v1415
    %v1470 = vpack.c.b16 %v1419, %v1416
    %v1471 = vpack.c.b16 %v1420, %v1417
    %v1472 = vpack.c.b16 %v1424, %v1421
    %v1473 = vpack.c.b16 %v1425, %v1422
    %v1474 = vpack.c.b16 %v1426, %v1423
    %v1475 = vpack.c.b16 %v1430, %v1427
    %v1476 = vpack.c.b16 %v1431, %v1428
    %v1477 = vpack.c.b16 %v1432, %v1429
    %v1478 = vpack.c.b16 %v1436, %v1433
    %v1479 = vpack.c.b16 %v1437, %v1434
    %v1480 = vpack.c.b16 %v1438, %v1435
    %v1481 = vpack.c.b16 %v1442, %v1439
    %v1482 = vpack.c.b16 %v1443, %v1440
    %v1483 = vpack.c.b16 %v1444, %v1441
    %v1484 = vpack.c.b16 %v1448, %v1445
    %v1485 = vpack.c.b16 %v1449, %v1446
    %v1486 = vpack.c.b16 %v1450, %v1447
    %v1487 = vpack.c.b16 %v1454, %v1451
    %v1488 = vpack.c.b16 %v1455, %v1452
    %v1489 = vpack.c.b16 %v1456, %v1453
    %v1490 = vpack.c.b16 %v1460, %v1457
    %v1491 = vpack.c.b16 %v1461, %v1458
    %v1492 = vpack.c.b16 %v1462, %v1459
    %v1493 = vpack.c.b16 %v1466, %v1463
    %v1494 = vpack.c.b16 %v1467, %v1464
    %v1495 = vpack.c.b16 %v1468, %v1465
    %v1521 = vsel %vm912, %v1377, 0
    %v1524 = vsel %vm916, %v1493, 0
    %v1527 = vsel %vm916, %v1494, 0
    %v1530 = vsel %vm916, %v1495, 0
    %1532 = vmatprep.subr.bf16.mxu0 %v1470
    %1533 = vmatpush1.bf16.msra.mxu0 %v1469
    %1534 = vmatprep.subr.bf16.mxu0 %v1473
    %1535 = vmatpush1.bf16.msra.mxu0 %v1472
    %1536 = vmatprep.subr.bf16.mxu0 %v1476
    %1537 = vmatpush1.bf16.msra.mxu0 %v1475
    %1538 = vmatprep.subr.bf16.mxu0 %v1479
    %1539 = vmatpush1.bf16.msra.mxu0 %v1478
    %1540 = vmatprep.subr.bf16.mxu0 %v1482
    %1541 = vmatpush1.bf16.msra.mxu0 %v1481
    %1542 = vmatprep.subr.bf16.mxu0 %v1485
    %1543 = vmatpush1.bf16.msra.mxu0 %v1484
    %1544 = vmatprep.subr.bf16.mxu0 %v1488
    %1545 = vmatpush1.bf16.msra.mxu0 %v1487
    %1546 = vmatprep.subr.bf16.mxu0 %v1491
    %1547 = vmatpush1.bf16.msra.mxu0 %v1490
    %1548 = vmatprep.subr.bf16.mxu0 %v1527
    %1549 = vmatpush1.bf16.msra.mxu0 %v1524
    %1550 = vmatprep.subr.bf16.mxu0 0
    %1551 = vmatpush1.bf16.msra.mxu0 0
    %1552 = vmatprep.subr.bf16.mxu0 0
    %1553 = vmatpush1.bf16.msra.mxu0 0
    %1554 = vmatprep.subr.bf16.mxu0 0
    %1555 = vmatpush1.bf16.msra.mxu0 0
    %1556 = vmatprep.subr.bf16.mxu0 0
    %1557 = vmatpush1.bf16.msra.mxu0 0
    %1558 = vmatprep.subr.bf16.mxu0 0
    %1559 = vmatpush1.bf16.msra.mxu0 0
    %1560 = vmatprep.subr.bf16.mxu0 0
    %1561 = vmatpush1.bf16.msra.mxu0 0
    %1562 = vmatprep.subr.bf16.mxu0 0
    %1563 = vmatpush1.bf16.msra.mxu0 0
    %1564 = vmatprep.mubr.bf16.mxu0 %v1521
    %1565 = vmatmul.mubr.bf16.gmra.mrb[0].mxu0 %v1376
    %v1566 = vpop.f32.mrb[0].mxu0
    %v1567 = vadd.f32 0.0, %v1566
    %v1568 = vpop.f32.mrb[0].mxu0
    %v1569 = vadd.f32 0.0, %v1568
    %v1570 = vpop.f32.mrb[0].mxu0
    %v1571 = vpop.f32.mrb[0].mxu0
    %1572 = vdwg.mxu0
    %1573 = vmatprep.subr.bf16.mxu0 0
    %1574 = vmatpush1.bf16.msra.mxu0 %v1471
    %1575 = vmatprep.subr.bf16.mxu0 0
    %1576 = vmatpush1.bf16.msra.mxu0 %v1474
    %1577 = vmatprep.subr.bf16.mxu0 0
    %1578 = vmatpush1.bf16.msra.mxu0 %v1477
    %1579 = vmatprep.subr.bf16.mxu0 0
    %1580 = vmatpush1.bf16.msra.mxu0 %v1480
    %1581 = vmatprep.subr.bf16.mxu0 0
    %1582 = vmatpush1.bf16.msra.mxu0 %v1483
    %1583 = vmatprep.subr.bf16.mxu0 0
    %1584 = vmatpush1.bf16.msra.mxu0 %v1486
    %1585 = vmatprep.subr.bf16.mxu0 0
    %1586 = vmatpush1.bf16.msra.mxu0 %v1489
    %1587 = vmatprep.subr.bf16.mxu0 0
    %1588 = vmatpush1.bf16.msra.mxu0 %v1492
    %1589 = vmatprep.subr.bf16.mxu0 0
    %1590 = vmatpush1.bf16.msra.mxu0 %v1530
    %1591 = vmatprep.subr.bf16.mxu0 0
    %1592 = vmatpush1.bf16.msra.mxu0 0
    %1593 = vmatprep.subr.bf16.mxu0 0
    %1594 = vmatpush1.bf16.msra.mxu0 0
    %1595 = vmatprep.subr.bf16.mxu0 0
    %1596 = vmatpush1.bf16.msra.mxu0 0
    %1597 = vmatprep.subr.bf16.mxu0 0
    %1598 = vmatpush1.bf16.msra.mxu0 0
    %1599 = vmatprep.subr.bf16.mxu0 0
    %1600 = vmatpush1.bf16.msra.mxu0 0
    %1601 = vmatprep.subr.bf16.mxu0 0
    %1602 = vmatpush1.bf16.msra.mxu0 0
    %1603 = vmatprep.subr.bf16.mxu0 0
    %1604 = vmatpush1.bf16.msra.mxu0 0
    %1605 = vmatprep.mubr.bf16.mxu0 %v1521
    %1606 = vmatmul.mubr.bf16.gmra.mrb[0].mxu0 %v1376
    %v1607 = vpop.f32.mrb[0].mxu0
    %v1608 = vadd.f32 0.0, %v1607
    %v1609 = vpop.f32.mrb[0].mxu0
    %v1610 = vpop.f32.mrb[0].mxu0
    %v1611 = vpop.f32.mrb[0].mxu0
    %1612 = vdwg.mxu0
    %v1613 = vadd.f32 %v1337, %v1567
    %v1614 = vadd.f32 %v1338, %v1569
    %v1615 = vadd.f32 %v1339, %v1608
    %v1616 = vld [vmem:[%s3 + $0x270] sm:$0xcc]
    %v1617 = vld [vmem:[%s3 + $0x278] sm:$0xc]
    %v1618 = vld [vmem:[%s3 + $0x27c] sm:$0xff]
    %v1619 = vld [vmem:[%s3 + $0x284] sm:$0xf]
    %v1620 = vld [vmem:[%s3 + $0x288] sm:$0xff]
    %v1621 = vld [vmem:[%s3 + $0x290] sm:$0xf]
    %v1622 = vld [vmem:[%s3 + $0x294] sm:$0xff]
    %v1623 = vld [vmem:[%s3 + $0x29c] sm:$0xf]
    %v1624 = vld [vmem:[%s3 + $0x2a0] sm:$0xff]
    %v1625 = vld [vmem:[%s3 + $0x2a8] sm:$0xf]
    %v1626 = vld [vmem:[%s3 + $0x2ac] sm:$0xff]
    %v1627 = vld [vmem:[%s3 + $0x2b4] sm:$0xf]
    %v1628 = vld [vmem:[%s3 + $0x2b8] sm:$0xff]
    %v1629 = vld [vmem:[%s3 + $0x2c0] sm:$0xf]
    %v1630 = vld [vmem:[%s3 + $0x2c4] sm:$0xff]
    %v1631 = vld [vmem:[%s3 + $0x2cc] sm:$0xf]
    %v1632 = vld [vmem:[%s3 + $0x2d0] sm:$0xff]
    %v1633 = vld [vmem:[%s3 + $0x2d8] sm:$0xf]
    %v1634 = vld [vmem:[%s3 + $0x2dc] sm:$0xff]
    %v1635 = vld [vmem:[%s3 + $0x2e4] sm:$0xf]
    %v1636 = vld [vmem:[%s3 + $0x2e8] sm:$0xff]
    %v1637 = vld [vmem:[%s3 + $0x2f0] sm:$0xf]
    %v1638 = vld [vmem:[%s3 + $0x2f4] sm:$0xff]
    %v1639 = vld [vmem:[%s3 + $0x2fc] sm:$0xf]
    %v1640 = vld [vmem:[%s3 + $0x300] sm:$0xff]
    %v1641 = vld [vmem:[%s3 + $0x308] sm:$0xf]
    %v1642 = vld [vmem:[%s3 + $0x30c] sm:$0xff]
    %v1643 = vld [vmem:[%s3 + $0x314] sm:$0xf]
    %v1644 = vld [vmem:[%s3 + $0x318] sm:$0xff]
    %v1645 = vld [vmem:[%s3 + $0x320] sm:$0xf]
    %v1646 = vld [vmem:[%s3 + $0x324] sm:$0xff]
    %v1647 = vld [vmem:[%s3 + $0x32c] sm:$0xf]
    %v1648 = vld [vmem:[%s3 + $0x330] sm:$0xff]
    %v1649 = vld [vmem:[%s3 + $0x338] sm:$0xf]
    %v1650 = vld [vmem:[%s3 + $0x33c] sm:$0xff]
    %v1651 = vld [vmem:[%s3 + $0x344] sm:$0xf]
    %v1652 = vrot.slane %v711, 3
    %v1653 = vrot.slane %v712, 3
    %v1691 = vunpack.c.l.b16 %v1616
    %v1692 = vunpack.c.h.b16 %v1616
    %v1693 = vunpack.c.l.b16 %v1617
    %v1694 = vunpack.c.l.b16 %v1618
    %v1695 = vunpack.c.h.b16 %v1618
    %v1696 = vunpack.c.l.b16 %v1619
    %v1697 = vunpack.c.l.b16 %v1620
    %v1698 = vunpack.c.h.b16 %v1620
    %v1699 = vunpack.c.l.b16 %v1621
    %v1700 = vunpack.c.l.b16 %v1622
    %v1701 = vunpack.c.h.b16 %v1622
    %v1702 = vunpack.c.l.b16 %v1623
    %v1703 = vunpack.c.l.b16 %v1624
    %v1704 = vunpack.c.h.b16 %v1624
    %v1705 = vunpack.c.l.b16 %v1625
    %v1706 = vunpack.c.l.b16 %v1626
    %v1707 = vunpack.c.h.b16 %v1626
    %v1708 = vunpack.c.l.b16 %v1627
    %v1709 = vunpack.c.l.b16 %v1628
    %v1710 = vunpack.c.h.b16 %v1628
    %v1711 = vunpack.c.l.b16 %v1629
    %v1712 = vunpack.c.l.b16 %v1630
    %v1713 = vunpack.c.h.b16 %v1630
    %v1714 = vunpack.c.l.b16 %v1631
    %v1715 = vunpack.c.l.b16 %v1632
    %v1716 = vunpack.c.h.b16 %v1632
    %v1717 = vunpack.c.l.b16 %v1633
    %v1718 = vunpack.c.l.b16 %v1634
    %v1719 = vunpack.c.h.b16 %v1634
    %v1720 = vunpack.c.l.b16 %v1635
    %v1721 = vunpack.c.l.b16 %v1636
    %v1722 = vunpack.c.h.b16 %v1636
    %v1723 = vunpack.c.l.b16 %v1637
    %v1724 = vunpack.c.l.b16 %v1638
    %v1725 = vunpack.c.h.b16 %v1638
    %v1726 = vunpack.c.l.b16 %v1639
    %v1727 = vunpack.c.l.b16 %v1640
    %v1728 = vunpack.c.h.b16 %v1640
    %v1729 = vunpack.c.l.b16 %v1641
    %v1730 = vunpack.c.l.b16 %v1642
    %v1731 = vunpack.c.h.b16 %v1642
    %v1732 = vunpack.c.l.b16 %v1643
    %v1733 = vunpack.c.l.b16 %v1644
    %v1734 = vunpack.c.h.b16 %v1644
    %v1735 = vunpack.c.l.b16 %v1645
    %v1736 = vunpack.c.l.b16 %v1646
    %v1737 = vunpack.c.h.b16 %v1646
    %v1738 = vunpack.c.l.b16 %v1647
    %v1739 = vunpack.c.l.b16 %v1648
    %v1740 = vunpack.c.h.b16 %v1648
    %v1741 = vunpack.c.l.b16 %v1649
    %v1742 = vunpack.c.l.b16 %v1650
    %v1743 = vunpack.c.h.b16 %v1650
    %v1744 = vunpack.c.l.b16 %v1651
    %v1745 = vpack.c.b16 %v1694, %v1691
    %v1746 = vpack.c.b16 %v1695, %v1692
    %v1747 = vpack.c.b16 %v1696, %v1693
    %v1748 = vpack.c.b16 %v1700, %v1697
    %v1749 = vpack.c.b16 %v1701, %v1698
    %v1750 = vpack.c.b16 %v1702, %v1699
    %v1751 = vpack.c.b16 %v1706, %v1703
    %v1752 = vpack.c.b16 %v1707, %v1704
    %v1753 = vpack.c.b16 %v1708, %v1705
    %v1754 = vpack.c.b16 %v1712, %v1709
    %v1755 = vpack.c.b16 %v1713, %v1710
    %v1756 = vpack.c.b16 %v1714, %v1711
    %v1757 = vpack.c.b16 %v1718, %v1715
    %v1758 = vpack.c.b16 %v1719, %v1716
    %v1759 = vpack.c.b16 %v1720, %v1717
    %v1760 = vpack.c.b16 %v1724, %v1721
    %v1761 = vpack.c.b16 %v1725, %v1722
    %v1762 = vpack.c.b16 %v1726, %v1723
    %v1763 = vpack.c.b16 %v1730, %v1727
    %v1764 = vpack.c.b16 %v1731, %v1728
    %v1765 = vpack.c.b16 %v1732, %v1729
    %v1766 = vpack.c.b16 %v1736, %v1733
    %v1767 = vpack.c.b16 %v1737, %v1734
    %v1768 = vpack.c.b16 %v1738, %v1735
    %v1769 = vpack.c.b16 %v1742, %v1739
    %v1770 = vpack.c.b16 %v1743, %v1740
    %v1771 = vpack.c.b16 %v1744, %v1741
    %v1772 = vrot.slane %v1745, 2
    %v1773 = vrot.slane %v1748, 2
    %v1774 = vsel %vm1168, %v1772, %v1773
    %v1775 = vrot.slane %v1746, 2
    %v1776 = vrot.slane %v1749, 2
    %v1777 = vsel %vm1168, %v1775, %v1776
    %v1778 = vrot.slane %v1747, 2
    %v1779 = vrot.slane %v1750, 2
    %v1780 = vsel %vm1168, %v1778, %v1779
    %v1781 = vrot.slane %v1751, 2
    %v1782 = vsel %vm1168, %v1773, %v1781
    %v1783 = vrot.slane %v1752, 2
    %v1784 = vsel %vm1168, %v1776, %v1783
    %v1785 = vrot.slane %v1753, 2
    %v1786 = vsel %vm1168, %v1779, %v1785
    %v1787 = vrot.slane %v1754, 2
    %v1788 = vsel %vm1168, %v1781, %v1787
    %v1789 = vrot.slane %v1755, 2
    %v1790 = vsel %vm1168, %v1783, %v1789
    %v1791 = vrot.slane %v1756, 2
    %v1792 = vsel %vm1168, %v1785, %v1791
    %v1793 = vrot.slane %v1757, 2
    %v1794 = vsel %vm1168, %v1787, %v1793
    %v1795 = vrot.slane %v1758, 2
    %v1796 = vsel %vm1168, %v1789, %v1795
    %v1797 = vrot.slane %v1759, 2
    %v1798 = vsel %vm1168, %v1791, %v1797
    %v1799 = vrot.slane %v1760, 2
    %v1800 = vsel %vm1168, %v1793, %v1799
    %v1801 = vrot.slane %v1761, 2
    %v1802 = vsel %vm1168, %v1795, %v1801
    %v1803 = vrot.slane %v1762, 2
    %v1804 = vsel %vm1168, %v1797, %v1803
    %v1805 = vrot.slane %v1763, 2
    %v1806 = vsel %vm1168, %v1799, %v1805
    %v1807 = vrot.slane %v1764, 2
    %v1808 = vsel %vm1168, %v1801, %v1807
    %v1809 = vrot.slane %v1765, 2
    %v1810 = vsel %vm1168, %v1803, %v1809
    %v1811 = vrot.slane %v1766, 2
    %v1812 = vsel %vm1168, %v1805, %v1811
    %v1813 = vrot.slane %v1767, 2
    %v1814 = vsel %vm1168, %v1807, %v1813
    %v1815 = vrot.slane %v1768, 2
    %v1816 = vsel %vm1168, %v1809, %v1815
    %v1817 = vrot.slane %v1769, 2
    %v1818 = vsel %vm1168, %v1811, %v1817
    %v1819 = vrot.slane %v1770, 2
    %v1820 = vsel %vm1168, %v1813, %v1819
    %v1821 = vrot.slane %v1771, 2
    %v1822 = vsel %vm1168, %v1815, %v1821
    %v1848 = vsel %vm912, %v1653, 0
    %v1851 = vsel %vm916, %v1817, 0
    %v1854 = vsel %vm916, %v1819, 0
    %v1857 = vsel %vm916, %v1821, 0
    %1859 = vmatprep.subr.bf16.mxu0 %v1777
    %1860 = vmatpush1.bf16.msra.mxu0 %v1774
    %1861 = vmatprep.subr.bf16.mxu0 %v1784
    %1862 = vmatpush1.bf16.msra.mxu0 %v1782
    %1863 = vmatprep.subr.bf16.mxu0 %v1790
    %1864 = vmatpush1.bf16.msra.mxu0 %v1788
    %1865 = vmatprep.subr.bf16.mxu0 %v1796
    %1866 = vmatpush1.bf16.msra.mxu0 %v1794
    %1867 = vmatprep.subr.bf16.mxu0 %v1802
    %1868 = vmatpush1.bf16.msra.mxu0 %v1800
    %1869 = vmatprep.subr.bf16.mxu0 %v1808
    %1870 = vmatpush1.bf16.msra.mxu0 %v1806
    %1871 = vmatprep.subr.bf16.mxu0 %v1814
    %1872 = vmatpush1.bf16.msra.mxu0 %v1812
    %1873 = vmatprep.subr.bf16.mxu0 %v1820
    %1874 = vmatpush1.bf16.msra.mxu0 %v1818
    %1875 = vmatprep.subr.bf16.mxu0 %v1854
    %1876 = vmatpush1.bf16.msra.mxu0 %v1851
    %1877 = vmatprep.subr.bf16.mxu0 0
    %1878 = vmatpush1.bf16.msra.mxu0 0
    %1879 = vmatprep.subr.bf16.mxu0 0
    %1880 = vmatpush1.bf16.msra.mxu0 0
    %1881 = vmatprep.subr.bf16.mxu0 0
    %1882 = vmatpush1.bf16.msra.mxu0 0
    %1883 = vmatprep.subr.bf16.mxu0 0
    %1884 = vmatpush1.bf16.msra.mxu0 0
    %1885 = vmatprep.subr.bf16.mxu0 0
    %1886 = vmatpush1.bf16.msra.mxu0 0
    %1887 = vmatprep.subr.bf16.mxu0 0
    %1888 = vmatpush1.bf16.msra.mxu0 0
    %1889 = vmatprep.subr.bf16.mxu0 0
    %1890 = vmatpush1.bf16.msra.mxu0 0
    %1891 = vmatprep.mubr.bf16.mxu0 %v1848
    %1892 = vmatmul.mubr.bf16.gmra.mrb[0].mxu0 %v1652
    %v1893 = vpop.f32.mrb[0].mxu0
    %v1894 = vadd.f32 0.0, %v1893
    %v1895 = vpop.f32.mrb[0].mxu0
    %v1896 = vadd.f32 0.0, %v1895
    %v1897 = vpop.f32.mrb[0].mxu0
    %v1898 = vpop.f32.mrb[0].mxu0
    %1899 = vdwg.mxu0
    %1900 = vmatprep.subr.bf16.mxu0 0
    %1901 = vmatpush1.bf16.msra.mxu0 %v1780
    %1902 = vmatprep.subr.bf16.mxu0 0
    %1903 = vmatpush1.bf16.msra.mxu0 %v1786
    %1904 = vmatprep.subr.bf16.mxu0 0
    %1905 = vmatpush1.bf16.msra.mxu0 %v1792
    %1906 = vmatprep.subr.bf16.mxu0 0
    %1907 = vmatpush1.bf16.msra.mxu0 %v1798
    %1908 = vmatprep.subr.bf16.mxu0 0
    %1909 = vmatpush1.bf16.msra.mxu0 %v1804
    %1910 = vmatprep.subr.bf16.mxu0 0
    %1911 = vmatpush1.bf16.msra.mxu0 %v1810
    %1912 = vmatprep.subr.bf16.mxu0 0
    %1913 = vmatpush1.bf16.msra.mxu0 %v1816
    %1914 = vmatprep.subr.bf16.mxu0 0
    %1915 = vmatpush1.bf16.msra.mxu0 %v1822
    %1916 = vmatprep.subr.bf16.mxu0 0
    %1917 = vmatpush1.bf16.msra.mxu0 %v1857
    %1918 = vmatprep.subr.bf16.mxu0 0
    %1919 = vmatpush1.bf16.msra.mxu0 0
    %1920 = vmatprep.subr.bf16.mxu0 0
    %1921 = vmatpush1.bf16.msra.mxu0 0
    %1922 = vmatprep.subr.bf16.mxu0 0
    %1923 = vmatpush1.bf16.msra.mxu0 0
    %1924 = vmatprep.subr.bf16.mxu0 0
    %1925 = vmatpush1.bf16.msra.mxu0 0
    %1926 = vmatprep.subr.bf16.mxu0 0
    %1927 = vmatpush1.bf16.msra.mxu0 0
    %1928 = vmatprep.subr.bf16.mxu0 0
    %1929 = vmatpush1.bf16.msra.mxu0 0
    %1930 = vmatprep.subr.bf16.mxu0 0
    %1931 = vmatpush1.bf16.msra.mxu0 0
    %1932 = vmatprep.mubr.bf16.mxu0 %v1848
    %1933 = vmatmul.mubr.bf16.gmra.mrb[0].mxu0 %v1652
    %v1934 = vpop.f32.mrb[0].mxu0
    %v1935 = vadd.f32 0.0, %v1934
    %v1936 = vpop.f32.mrb[0].mxu0
    %v1937 = vpop.f32.mrb[0].mxu0
    %v1938 = vpop.f32.mrb[0].mxu0
    %1939 = vdwg.mxu0
    %v1940 = vadd.f32 %v1613, %v1894
    %v1941 = vadd.f32 %v1614, %v1896
    %v1942 = vadd.f32 %v1615, %v1935
    %v1943 = vld [vmem:[%s3 + $0x348] sm:$0xff]
    %v1944 = vld [vmem:[%s3 + $0x350] sm:$0xf]
    %v1945 = vld [vmem:[%s3 + $0x354] sm:$0xff]
    %v1946 = vld [vmem:[%s3 + $0x35c] sm:$0xf]
    %v1947 = vld [vmem:[%s3 + $0x360] sm:$0xff]
    %v1948 = vld [vmem:[%s3 + $0x368] sm:$0xf]
    %v1949 = vld [vmem:[%s3 + $0x36c] sm:$0xff]
    %v1950 = vld [vmem:[%s3 + $0x374] sm:$0xf]
    %v1951 = vld [vmem:[%s3 + $0x378] sm:$0xff]
    %v1952 = vld [vmem:[%s3 + $0x380] sm:$0xf]
    %v1953 = vld [vmem:[%s3 + $0x384] sm:$0xff]
    %v1954 = vld [vmem:[%s3 + $0x38c] sm:$0xf]
    %v1955 = vld [vmem:[%s3 + $0x390] sm:$0xff]
    %v1956 = vld [vmem:[%s3 + $0x398] sm:$0xf]
    %v1957 = vld [vmem:[%s3 + $0x39c] sm:$0xff]
    %v1958 = vld [vmem:[%s3 + $0x3a4] sm:$0xf]
    %v1959 = vld [vmem:[%s3 + $0x3a8] sm:$0xff]
    %v1960 = vld [vmem:[%s3 + $0x3b0] sm:$0xf]
    %v1961 = vld [vmem:[%s3 + $0x3b4] sm:$0xff]
    %v1962 = vld [vmem:[%s3 + $0x3bc] sm:$0xf]
    %v1963 = vld [vmem:[%s3 + $0x3c0] sm:$0xff]
    %v1964 = vld [vmem:[%s3 + $0x3c8] sm:$0xf]
    %v1965 = vld [vmem:[%s3 + $0x3cc] sm:$0xff]
    %v1966 = vld [vmem:[%s3 + $0x3d4] sm:$0xf]
    %v1967 = vld [vmem:[%s3 + $0x3d8] sm:$0xff]
    %v1968 = vld [vmem:[%s3 + $0x3e0] sm:$0xf]
    %v1969 = vld [vmem:[%s3 + $0x3e4] sm:$0xff]
    %v1970 = vld [vmem:[%s3 + $0x3ec] sm:$0xf]
    %v1971 = vld [vmem:[%s3 + $0x3f0] sm:$0xff]
    %v1972 = vld [vmem:[%s3 + $0x3f8] sm:$0xf]
    %v1973 = vld [vmem:[%s3 + $0x3fc] sm:$0xff]
    %v1974 = vld [vmem:[%s3 + $0x404] sm:$0xf]
    %v1975 = vld [vmem:[%s3 + $0x408] sm:$0xff]
    %v1976 = vld [vmem:[%s3 + $0x410] sm:$0xf]
    %v1977 = vld [vmem:[%s3 + $0x414] sm:$0x33]
    %v1978 = vld [vmem:[%s3 + $0x41c] sm:$0x3]
    %v1979 = vrot.slane %v711, 4
    %v1980 = vrot.slane %v712, 4
    %v2018 = vunpack.c.l.b16 %v1943
    %v2019 = vunpack.c.h.b16 %v1943
    %v2020 = vunpack.c.l.b16 %v1944
    %v2021 = vunpack.c.l.b16 %v1945
    %v2022 = vunpack.c.h.b16 %v1945
    %v2023 = vunpack.c.l.b16 %v1946
    %v2024 = vunpack.c.l.b16 %v1947
    %v2025 = vunpack.c.h.b16 %v1947
    %v2026 = vunpack.c.l.b16 %v1948
    %v2027 = vunpack.c.l.b16 %v1949
    %v2028 = vunpack.c.h.b16 %v1949
    %v2029 = vunpack.c.l.b16 %v1950
    %v2030 = vunpack.c.l.b16 %v1951
    %v2031 = vunpack.c.h.b16 %v1951
    %v2032 = vunpack.c.l.b16 %v1952
    %v2033 = vunpack.c.l.b16 %v1953
    %v2034 = vunpack.c.h.b16 %v1953
    %v2035 = vunpack.c.l.b16 %v1954
    %v2036 = vunpack.c.l.b16 %v1955
    %v2037 = vunpack.c.h.b16 %v1955
    %v2038 = vunpack.c.l.b16 %v1956
    %v2039 = vunpack.c.l.b16 %v1957
    %v2040 = vunpack.c.h.b16 %v1957
    %v2041 = vunpack.c.l.b16 %v1958
    %v2042 = vunpack.c.l.b16 %v1959
    %v2043 = vunpack.c.h.b16 %v1959
    %v2044 = vunpack.c.l.b16 %v1960
    %v2045 = vunpack.c.l.b16 %v1961
    %v2046 = vunpack.c.h.b16 %v1961
    %v2047 = vunpack.c.l.b16 %v1962
    %v2048 = vunpack.c.l.b16 %v1963
    %v2049 = vunpack.c.h.b16 %v1963
    %v2050 = vunpack.c.l.b16 %v1964
    %v2051 = vunpack.c.l.b16 %v1965
    %v2052 = vunpack.c.h.b16 %v1965
    %v2053 = vunpack.c.l.b16 %v1966
    %v2054 = vunpack.c.l.b16 %v1967
    %v2055 = vunpack.c.h.b16 %v1967
    %v2056 = vunpack.c.l.b16 %v1968
    %v2057 = vunpack.c.l.b16 %v1969
    %v2058 = vunpack.c.h.b16 %v1969
    %v2059 = vunpack.c.l.b16 %v1970
    %v2060 = vunpack.c.l.b16 %v1971
    %v2061 = vunpack.c.h.b16 %v1971
    %v2062 = vunpack.c.l.b16 %v1972
    %v2063 = vunpack.c.l.b16 %v1973
    %v2064 = vunpack.c.h.b16 %v1973
    %v2065 = vunpack.c.l.b16 %v1974
    %v2066 = vunpack.c.l.b16 %v1975
    %v2067 = vunpack.c.h.b16 %v1975
    %v2068 = vunpack.c.l.b16 %v1976
    %v2069 = vunpack.c.l.b16 %v1977
    %v2070 = vunpack.c.h.b16 %v1977
    %v2071 = vunpack.c.l.b16 %v1978
    %v2072 = vpack.c.b16 %v2021, %v2018
    %v2073 = vpack.c.b16 %v2022, %v2019
    %v2074 = vpack.c.b16 %v2023, %v2020
    %v2075 = vpack.c.b16 %v2027, %v2024
    %v2076 = vpack.c.b16 %v2028, %v2025
    %v2077 = vpack.c.b16 %v2029, %v2026
    %v2078 = vpack.c.b16 %v2033, %v2030
    %v2079 = vpack.c.b16 %v2034, %v2031
    %v2080 = vpack.c.b16 %v2035, %v2032
    %v2081 = vpack.c.b16 %v2039, %v2036
    %v2082 = vpack.c.b16 %v2040, %v2037
    %v2083 = vpack.c.b16 %v2041, %v2038
    %v2084 = vpack.c.b16 %v2045, %v2042
    %v2085 = vpack.c.b16 %v2046, %v2043
    %v2086 = vpack.c.b16 %v2047, %v2044
    %v2087 = vpack.c.b16 %v2051, %v2048
    %v2088 = vpack.c.b16 %v2052, %v2049
    %v2089 = vpack.c.b16 %v2053, %v2050
    %v2090 = vpack.c.b16 %v2057, %v2054
    %v2091 = vpack.c.b16 %v2058, %v2055
    %v2092 = vpack.c.b16 %v2059, %v2056
    %v2093 = vpack.c.b16 %v2063, %v2060
    %v2094 = vpack.c.b16 %v2064, %v2061
    %v2095 = vpack.c.b16 %v2065, %v2062
    %v2096 = vpack.c.b16 %v2069, %v2066
    %v2097 = vpack.c.b16 %v2070, %v2067
    %v2098 = vpack.c.b16 %v2071, %v2068
    %v2124 = vsel %vm912, %v1980, 0
    %v2127 = vsel %vm916, %v2096, 0
    %v2130 = vsel %vm916, %v2097, 0
    %v2133 = vsel %vm916, %v2098, 0
    %2135 = vmatprep.subr.bf16.mxu0 %v2073
    %2136 = vmatpush1.bf16.msra.mxu0 %v2072
    %2137 = vmatprep.subr.bf16.mxu0 %v2076
    %2138 = vmatpush1.bf16.msra.mxu0 %v2075
    %2139 = vmatprep.subr.bf16.mxu0 %v2079
    %2140 = vmatpush1.bf16.msra.mxu0 %v2078
    %2141 = vmatprep.subr.bf16.mxu0 %v2082
    %2142 = vmatpush1.bf16.msra.mxu0 %v2081
    %2143 = vmatprep.subr.bf16.mxu0 %v2085
    %2144 = vmatpush1.bf16.msra.mxu0 %v2084
    %2145 = vmatprep.subr.bf16.mxu0 %v2088
    %2146 = vmatpush1.bf16.msra.mxu0 %v2087
    %2147 = vmatprep.subr.bf16.mxu0 %v2091
    %2148 = vmatpush1.bf16.msra.mxu0 %v2090
    %2149 = vmatprep.subr.bf16.mxu0 %v2094
    %2150 = vmatpush1.bf16.msra.mxu0 %v2093
    %2151 = vmatprep.subr.bf16.mxu0 %v2130
    %2152 = vmatpush1.bf16.msra.mxu0 %v2127
    %2153 = vmatprep.subr.bf16.mxu0 0
    %2154 = vmatpush1.bf16.msra.mxu0 0
    %2155 = vmatprep.subr.bf16.mxu0 0
    %2156 = vmatpush1.bf16.msra.mxu0 0
    %2157 = vmatprep.subr.bf16.mxu0 0
    %2158 = vmatpush1.bf16.msra.mxu0 0
    %2159 = vmatprep.subr.bf16.mxu0 0
    %2160 = vmatpush1.bf16.msra.mxu0 0
    %2161 = vmatprep.subr.bf16.mxu0 0
    %2162 = vmatpush1.bf16.msra.mxu0 0
    %2163 = vmatprep.subr.bf16.mxu0 0
    %2164 = vmatpush1.bf16.msra.mxu0 0
    %2165 = vmatprep.subr.bf16.mxu0 0
    %2166 = vmatpush1.bf16.msra.mxu0 0
    %2167 = vmatprep.mubr.bf16.mxu0 %v2124
    %2168 = vmatmul.mubr.bf16.gmra.mrb[0].mxu0 %v1979
    %v2169 = vpop.f32.mrb[0].mxu0
    %v2170 = vadd.f32 0.0, %v2169
    %v2171 = vpop.f32.mrb[0].mxu0
    %v2172 = vadd.f32 0.0, %v2171
    %v2173 = vpop.f32.mrb[0].mxu0
    %v2174 = vpop.f32.mrb[0].mxu0
    %2175 = vdwg.mxu0
    %2176 = vmatprep.subr.bf16.mxu0 0
    %2177 = vmatpush1.bf16.msra.mxu0 %v2074
    %2178 = vmatprep.subr.bf16.mxu0 0
    %2179 = vmatpush1.bf16.msra.mxu0 %v2077
    %2180 = vmatprep.subr.bf16.mxu0 0
    %2181 = vmatpush1.bf16.msra.mxu0 %v2080
    %2182 = vmatprep.subr.bf16.mxu0 0
    %2183 = vmatpush1.bf16.msra.mxu0 %v2083
    %2184 = vmatprep.subr.bf16.mxu0 0
    %2185 = vmatpush1.bf16.msra.mxu0 %v2086
    %2186 = vmatprep.subr.bf16.mxu0 0
    %2187 = vmatpush1.bf16.msra.mxu0 %v2089
    %2188 = vmatprep.subr.bf16.mxu0 0
    %2189 = vmatpush1.bf16.msra.mxu0 %v2092
    %2190 = vmatprep.subr.bf16.mxu0 0
    %2191 = vmatpush1.bf16.msra.mxu0 %v2095
    %2192 = vmatprep.subr.bf16.mxu0 0
    %2193 = vmatpush1.bf16.msra.mxu0 %v2133
    %2194 = vmatprep.subr.bf16.mxu0 0
    %2195 = vmatpush1.bf16.msra.mxu0 0
    %2196 = vmatprep.subr.bf16.mxu0 0
    %2197 = vmatpush1.bf16.msra.mxu0 0
    %2198 = vmatprep.subr.bf16.mxu0 0
    %2199 = vmatpush1.bf16.msra.mxu0 0
    %2200 = vmatprep.subr.bf16.mxu0 0
    %2201 = vmatpush1.bf16.msra.mxu0 0
    %2202 = vmatprep.subr.bf16.mxu0 0
    %2203 = vmatpush1.bf16.msra.mxu0 0
    %2204 = vmatprep.subr.bf16.mxu0 0
    %2205 = vmatpush1.bf16.msra.mxu0 0
    %2206 = vmatprep.subr.bf16.mxu0 0
    %2207 = vmatpush1.bf16.msra.mxu0 0
    %2208 = vmatprep.mubr.bf16.mxu0 %v2124
    %2209 = vmatmul.mubr.bf16.gmra.mrb[0].mxu0 %v1979
    %v2210 = vpop.f32.mrb[0].mxu0
    %v2211 = vadd.f32 0.0, %v2210
    %v2212 = vpop.f32.mrb[0].mxu0
    %v2213 = vpop.f32.mrb[0].mxu0
    %v2214 = vpop.f32.mrb[0].mxu0
    %2215 = vdwg.mxu0
    %v2216 = vadd.f32 %v1940, %v2170
    %v2217 = vadd.f32 %v1941, %v2172
    %v2218 = vadd.f32 %v1942, %v2211
    %v2219 = vld [vmem:[%s3 + $0x414] sm:$0xcc]
    %v2220 = vld [vmem:[%s3 + $0x41c] sm:$0xc]
    %v2221 = vld [vmem:[%s3 + $0x420] sm:$0xff]
    %v2222 = vld [vmem:[%s3 + $0x428] sm:$0xf]
    %v2223 = vld [vmem:[%s3 + $0x42c] sm:$0xff]
    %v2224 = vld [vmem:[%s3 + $0x434] sm:$0xf]
    %v2225 = vld [vmem:[%s3 + $0x438] sm:$0xff]
    %v2226 = vld [vmem:[%s3 + $0x440] sm:$0xf]
    %v2227 = vld [vmem:[%s3 + $0x444] sm:$0xff]
    %v2228 = vld [vmem:[%s3 + $0x44c] sm:$0xf]
    %v2229 = vld [vmem:[%s3 + $0x450] sm:$0xff]
    %v2230 = vld [vmem:[%s3 + $0x458] sm:$0xf]
    %v2231 = vld [vmem:[%s3 + $0x45c] sm:$0xff]
    %v2232 = vld [vmem:[%s3 + $0x464] sm:$0xf]
    %v2233 = vld [vmem:[%s3 + $0x468] sm:$0xff]
    %v2234 = vld [vmem:[%s3 + $0x470] sm:$0xf]
    %v2235 = vld [vmem:[%s3 + $0x474] sm:$0xff]
    %v2236 = vld [vmem:[%s3 + $0x47c] sm:$0xf]
    %v2237 = vld [vmem:[%s3 + $0x480] sm:$0xff]
    %v2238 = vld [vmem:[%s3 + $0x488] sm:$0xf]
    %v2239 = vld [vmem:[%s3 + $0x48c] sm:$0xff]
    %v2240 = vld [vmem:[%s3 + $0x494] sm:$0xf]
    %v2241 = vld [vmem:[%s3 + $0x498] sm:$0xff]
    %v2242 = vld [vmem:[%s3 + $0x4a0] sm:$0xf]
    %v2243 = vld [vmem:[%s3 + $0x4a4] sm:$0xff]
    %v2244 = vld [vmem:[%s3 + $0x4ac] sm:$0xf]
    %v2245 = vld [vmem:[%s3 + $0x4b0] sm:$0xff]
    %v2246 = vld [vmem:[%s3 + $0x4b8] sm:$0xf]
    %v2247 = vld [vmem:[%s3 + $0x4bc] sm:$0xff]
    %v2248 = vld [vmem:[%s3 + $0x4c4] sm:$0xf]
    %v2249 = vld [vmem:[%s3 + $0x4c8] sm:$0xff]
    %v2250 = vld [vmem:[%s3 + $0x4d0] sm:$0xf]
    %v2251 = vld [vmem:[%s3 + $0x4d4] sm:$0xff]
    %v2252 = vld [vmem:[%s3 + $0x4dc] sm:$0xf]
    %v2253 = vld [vmem:[%s3 + $0x4e0] sm:$0xff]
    %v2254 = vld [vmem:[%s3 + $0x4e8] sm:$0xf]
    %v2255 = vrot.slane %v711, 5
    %v2256 = vrot.slane %v712, 5
    %v2294 = vunpack.c.l.b16 %v2219
    %v2295 = vunpack.c.h.b16 %v2219
    %v2296 = vunpack.c.l.b16 %v2220
    %v2297 = vunpack.c.l.b16 %v2221
    %v2298 = vunpack.c.h.b16 %v2221
    %v2299 = vunpack.c.l.b16 %v2222
    %v2300 = vunpack.c.l.b16 %v2223
    %v2301 = vunpack.c.h.b16 %v2223
    %v2302 = vunpack.c.l.b16 %v2224
    %v2303 = vunpack.c.l.b16 %v2225
    %v2304 = vunpack.c.h.b16 %v2225
    %v2305 = vunpack.c.l.b16 %v2226
    %v2306 = vunpack.c.l.b16 %v2227
    %v2307 = vunpack.c.h.b16 %v2227
    %v2308 = vunpack.c.l.b16 %v2228
    %v2309 = vunpack.c.l.b16 %v2229
    %v2310 = vunpack.c.h.b16 %v2229
    %v2311 = vunpack.c.l.b16 %v2230
    %v2312 = vunpack.c.l.b16 %v2231
    %v2313 = vunpack.c.h.b16 %v2231
    %v2314 = vunpack.c.l.b16 %v2232
    %v2315 = vunpack.c.l.b16 %v2233
    %v2316 = vunpack.c.h.b16 %v2233
    %v2317 = vunpack.c.l.b16 %v2234
    %v2318 = vunpack.c.l.b16 %v2235
    %v2319 = vunpack.c.h.b16 %v2235
    %v2320 = vunpack.c.l.b16 %v2236
    %v2321 = vunpack.c.l.b16 %v2237
    %v2322 = vunpack.c.h.b16 %v2237
    %v2323 = vunpack.c.l.b16 %v2238
    %v2324 = vunpack.c.l.b16 %v2239
    %v2325 = vunpack.c.h.b16 %v2239
    %v2326 = vunpack.c.l.b16 %v2240
    %v2327 = vunpack.c.l.b16 %v2241
    %v2328 = vunpack.c.h.b16 %v2241
    %v2329 = vunpack.c.l.b16 %v2242
    %v2330 = vunpack.c.l.b16 %v2243
    %v2331 = vunpack.c.h.b16 %v2243
    %v2332 = vunpack.c.l.b16 %v2244
    %v2333 = vunpack.c.l.b16 %v2245
    %v2334 = vunpack.c.h.b16 %v2245
    %v2335 = vunpack.c.l.b16 %v2246
    %v2336 = vunpack.c.l.b16 %v2247
    %v2337 = vunpack.c.h.b16 %v2247
    %v2338 = vunpack.c.l.b16 %v2248
    %v2339 = vunpack.c.l.b16 %v2249
    %v2340 = vunpack.c.h.b16 %v2249
    %v2341 = vunpack.c.l.b16 %v2250
    %v2342 = vunpack.c.l.b16 %v2251
    %v2343 = vunpack.c.h.b16 %v2251
    %v2344 = vunpack.c.l.b16 %v2252
    %v2345 = vunpack.c.l.b16 %v2253
    %v2346 = vunpack.c.h.b16 %v2253
    %v2347 = vunpack.c.l.b16 %v2254
    %v2348 = vpack.c.b16 %v2297, %v2294
    %v2349 = vpack.c.b16 %v2298, %v2295
    %v2350 = vpack.c.b16 %v2299, %v2296
    %v2351 = vpack.c.b16 %v2303, %v2300
    %v2352 = vpack.c.b16 %v2304, %v2301
    %v2353 = vpack.c.b16 %v2305, %v2302
    %v2354 = vpack.c.b16 %v2309, %v2306
    %v2355 = vpack.c.b16 %v2310, %v2307
    %v2356 = vpack.c.b16 %v2311, %v2308
    %v2357 = vpack.c.b16 %v2315, %v2312
    %v2358 = vpack.c.b16 %v2316, %v2313
    %v2359 = vpack.c.b16 %v2317, %v2314
    %v2360 = vpack.c.b16 %v2321, %v2318
    %v2361 = vpack.c.b16 %v2322, %v2319
    %v2362 = vpack.c.b16 %v2323, %v2320
    %v2363 = vpack.c.b16 %v2327, %v2324
    %v2364 = vpack.c.b16 %v2328, %v2325
    %v2365 = vpack.c.b16 %v2329, %v2326
    %v2366 = vpack.c.b16 %v2333, %v2330
    %v2367 = vpack.c.b16 %v2334, %v2331
    %v2368 = vpack.c.b16 %v2335, %v2332
    %v2369 = vpack.c.b16 %v2339, %v2336
    %v2370 = vpack.c.b16 %v2340, %v2337
    %v2371 = vpack.c.b16 %v2341, %v2338
    %v2372 = vpack.c.b16 %v2345, %v2342
    %v2373 = vpack.c.b16 %v2346, %v2343
    %v2374 = vpack.c.b16 %v2347, %v2344
    %v2375 = vrot.slane %v2348, 2
    %v2376 = vrot.slane %v2351, 2
    %v2377 = vsel %vm1168, %v2375, %v2376
    %v2378 = vrot.slane %v2349, 2
    %v2379 = vrot.slane %v2352, 2
    %v2380 = vsel %vm1168, %v2378, %v2379
    %v2381 = vrot.slane %v2350, 2
    %v2382 = vrot.slane %v2353, 2
    %v2383 = vsel %vm1168, %v2381, %v2382
    %v2384 = vrot.slane %v2354, 2
    %v2385 = vsel %vm1168, %v2376, %v2384
    %v2386 = vrot.slane %v2355, 2
    %v2387 = vsel %vm1168, %v2379, %v2386
    %v2388 = vrot.slane %v2356, 2
    %v2389 = vsel %vm1168, %v2382, %v2388
    %v2390 = vrot.slane %v2357, 2
    %v2391 = vsel %vm1168, %v2384, %v2390
    %v2392 = vrot.slane %v2358, 2
    %v2393 = vsel %vm1168, %v2386, %v2392
    %v2394 = vrot.slane %v2359, 2
    %v2395 = vsel %vm1168, %v2388, %v2394
    %v2396 = vrot.slane %v2360, 2
    %v2397 = vsel %vm1168, %v2390, %v2396
    %v2398 = vrot.slane %v2361, 2
    %v2399 = vsel %vm1168, %v2392, %v2398
    %v2400 = vrot.slane %v2362, 2
    %v2401 = vsel %vm1168, %v2394, %v2400
    %v2402 = vrot.slane %v2363, 2
    %v2403 = vsel %vm1168, %v2396, %v2402
    %v2404 = vrot.slane %v2364, 2
    %v2405 = vsel %vm1168, %v2398, %v2404
    %v2406 = vrot.slane %v2365, 2
    %v2407 = vsel %vm1168, %v2400, %v2406
    %v2408 = vrot.slane %v2366, 2
    %v2409 = vsel %vm1168, %v2402, %v2408
    %v2410 = vrot.slane %v2367, 2
    %v2411 = vsel %vm1168, %v2404, %v2410
    %v2412 = vrot.slane %v2368, 2
    %v2413 = vsel %vm1168, %v2406, %v2412
    %v2414 = vrot.slane %v2369, 2
    %v2415 = vsel %vm1168, %v2408, %v2414
    %v2416 = vrot.slane %v2370, 2
    %v2417 = vsel %vm1168, %v2410, %v2416
    %v2418 = vrot.slane %v2371, 2
    %v2419 = vsel %vm1168, %v2412, %v2418
    %v2420 = vrot.slane %v2372, 2
    %v2421 = vsel %vm1168, %v2414, %v2420
    %v2422 = vrot.slane %v2373, 2
    %v2423 = vsel %vm1168, %v2416, %v2422
    %v2424 = vrot.slane %v2374, 2
    %v2425 = vsel %vm1168, %v2418, %v2424
    %v2451 = vsel %vm912, %v2256, 0
    %v2454 = vsel %vm916, %v2420, 0
    %v2457 = vsel %vm916, %v2422, 0
    %v2460 = vsel %vm916, %v2424, 0
    %2462 = vmatprep.subr.bf16.mxu0 %v2380
    %2463 = vmatpush1.bf16.msra.mxu0 %v2377
    %2464 = vmatprep.subr.bf16.mxu0 %v2387
    %2465 = vmatpush1.bf16.msra.mxu0 %v2385
    %2466 = vmatprep.subr.bf16.mxu0 %v2393
    %2467 = vmatpush1.bf16.msra.mxu0 %v2391
    %2468 = vmatprep.subr.bf16.mxu0 %v2399
    %2469 = vmatpush1.bf16.msra.mxu0 %v2397
    %2470 = vmatprep.subr.bf16.mxu0 %v2405
    %2471 = vmatpush1.bf16.msra.mxu0 %v2403
    %2472 = vmatprep.subr.bf16.mxu0 %v2411
    %2473 = vmatpush1.bf16.msra.mxu0 %v2409
    %2474 = vmatprep.subr.bf16.mxu0 %v2417
    %2475 = vmatpush1.bf16.msra.mxu0 %v2415
    %2476 = vmatprep.subr.bf16.mxu0 %v2423
    %2477 = vmatpush1.bf16.msra.mxu0 %v2421
    %2478 = vmatprep.subr.bf16.mxu0 %v2457
    %2479 = vmatpush1.bf16.msra.mxu0 %v2454
    %2480 = vmatprep.subr.bf16.mxu0 0
    %2481 = vmatpush1.bf16.msra.mxu0 0
    %2482 = vmatprep.subr.bf16.mxu0 0
    %2483 = vmatpush1.bf16.msra.mxu0 0
    %2484 = vmatprep.subr.bf16.mxu0 0
    %2485 = vmatpush1.bf16.msra.mxu0 0
    %2486 = vmatprep.subr.bf16.mxu0 0
    %2487 = vmatpush1.bf16.msra.mxu0 0
    %2488 = vmatprep.subr.bf16.mxu0 0
    %2489 = vmatpush1.bf16.msra.mxu0 0
    %2490 = vmatprep.subr.bf16.mxu0 0
    %2491 = vmatpush1.bf16.msra.mxu0 0
    %2492 = vmatprep.subr.bf16.mxu0 0
    %2493 = vmatpush1.bf16.msra.mxu0 0
    %2494 = vmatprep.mubr.bf16.mxu0 %v2451
    %2495 = vmatmul.mubr.bf16.gmra.mrb[0].mxu0 %v2255
    %v2496 = vpop.f32.mrb[0].mxu0
    %v2497 = vadd.f32 0.0, %v2496
    %v2498 = vpop.f32.mrb[0].mxu0
    %v2499 = vadd.f32 0.0, %v2498
    %v2500 = vpop.f32.mrb[0].mxu0
    %v2501 = vpop.f32.mrb[0].mxu0
    %2502 = vdwg.mxu0
    %2503 = vmatprep.subr.bf16.mxu0 0
    %2504 = vmatpush1.bf16.msra.mxu0 %v2383
    %2505 = vmatprep.subr.bf16.mxu0 0
    %2506 = vmatpush1.bf16.msra.mxu0 %v2389
    %2507 = vmatprep.subr.bf16.mxu0 0
    %2508 = vmatpush1.bf16.msra.mxu0 %v2395
    %2509 = vmatprep.subr.bf16.mxu0 0
    %2510 = vmatpush1.bf16.msra.mxu0 %v2401
    %2511 = vmatprep.subr.bf16.mxu0 0
    %2512 = vmatpush1.bf16.msra.mxu0 %v2407
    %2513 = vmatprep.subr.bf16.mxu0 0
    %2514 = vmatpush1.bf16.msra.mxu0 %v2413
    %2515 = vmatprep.subr.bf16.mxu0 0
    %2516 = vmatpush1.bf16.msra.mxu0 %v2419
    %2517 = vmatprep.subr.bf16.mxu0 0
    %2518 = vmatpush1.bf16.msra.mxu0 %v2425
    %2519 = vmatprep.subr.bf16.mxu0 0
    %2520 = vmatpush1.bf16.msra.mxu0 %v2460
    %2521 = vmatprep.subr.bf16.mxu0 0
    %2522 = vmatpush1.bf16.msra.mxu0 0
    %2523 = vmatprep.subr.bf16.mxu0 0
    %2524 = vmatpush1.bf16.msra.mxu0 0
    %2525 = vmatprep.subr.bf16.mxu0 0
    %2526 = vmatpush1.bf16.msra.mxu0 0
    %2527 = vmatprep.subr.bf16.mxu0 0
    %2528 = vmatpush1.bf16.msra.mxu0 0
    %2529 = vmatprep.subr.bf16.mxu0 0
    %2530 = vmatpush1.bf16.msra.mxu0 0
    %2531 = vmatprep.subr.bf16.mxu0 0
    %2532 = vmatpush1.bf16.msra.mxu0 0
    %2533 = vmatprep.subr.bf16.mxu0 0
    %2534 = vmatpush1.bf16.msra.mxu0 0
    %2535 = vmatprep.mubr.bf16.mxu0 %v2451
    %2536 = vmatmul.mubr.bf16.gmra.mrb[0].mxu0 %v2255
    %v2537 = vpop.f32.mrb[0].mxu0
    %v2538 = vadd.f32 0.0, %v2537
    %v2539 = vpop.f32.mrb[0].mxu0
    %v2540 = vpop.f32.mrb[0].mxu0
    %v2541 = vpop.f32.mrb[0].mxu0
    %2542 = vdwg.mxu0
    %v2543 = vadd.f32 %v2216, %v2497
    %v2544 = vadd.f32 %v2217, %v2499
    %v2545 = vadd.f32 %v2218, %v2538
    %v2546 = vld [vmem:[%s3 + $0x4ec] sm:$0xff]
    %v2547 = vld [vmem:[%s3 + $0x4f4] sm:$0xf]
    %v2548 = vld [vmem:[%s3 + $0x4f8] sm:$0xff]
    %v2549 = vld [vmem:[%s3 + $0x500] sm:$0xf]
    %v2550 = vld [vmem:[%s3 + $0x504] sm:$0xff]
    %v2551 = vld [vmem:[%s3 + $0x50c] sm:$0xf]
    %v2552 = vld [vmem:[%s3 + $0x510] sm:$0xff]
    %v2553 = vld [vmem:[%s3 + $0x518] sm:$0xf]
    %v2554 = vld [vmem:[%s3 + $0x51c] sm:$0xff]
    %v2555 = vld [vmem:[%s3 + $0x524] sm:$0xf]
    %v2556 = vld [vmem:[%s3 + $0x528] sm:$0xff]
    %v2557 = vld [vmem:[%s3 + $0x530] sm:$0xf]
    %v2558 = vld [vmem:[%s3 + $0x534] sm:$0xff]
    %v2559 = vld [vmem:[%s3 + $0x53c] sm:$0xf]
    %v2560 = vld [vmem:[%s3 + $0x540] sm:$0xff]
    %v2561 = vld [vmem:[%s3 + $0x548] sm:$0xf]
    %v2562 = vld [vmem:[%s3 + $0x54c] sm:$0xff]
    %v2563 = vld [vmem:[%s3 + $0x554] sm:$0xf]
    %v2564 = vld [vmem:[%s3 + $0x558] sm:$0xff]
    %v2565 = vld [vmem:[%s3 + $0x560] sm:$0xf]
    %v2566 = vld [vmem:[%s3 + $0x564] sm:$0xff]
    %v2567 = vld [vmem:[%s3 + $0x56c] sm:$0xf]
    %v2568 = vld [vmem:[%s3 + $0x570] sm:$0xff]
    %v2569 = vld [vmem:[%s3 + $0x578] sm:$0xf]
    %v2570 = vld [vmem:[%s3 + $0x57c] sm:$0xff]
    %v2571 = vld [vmem:[%s3 + $0x584] sm:$0xf]
    %v2572 = vld [vmem:[%s3 + $0x588] sm:$0xff]
    %v2573 = vld [vmem:[%s3 + $0x590] sm:$0xf]
    %v2574 = vld [vmem:[%s3 + $0x594] sm:$0xff]
    %v2575 = vld [vmem:[%s3 + $0x59c] sm:$0xf]
    %v2576 = vld [vmem:[%s3 + $0x5a0] sm:$0xff]
    %v2577 = vld [vmem:[%s3 + $0x5a8] sm:$0xf]
    %v2578 = vld [vmem:[%s3 + $0x5ac] sm:$0xff]
    %v2579 = vld [vmem:[%s3 + $0x5b4] sm:$0xf]
    %v2580 = vld [vmem:[%s3 + $0x5b8] sm:$0x33]
    %v2581 = vld [vmem:[%s3 + $0x5c0] sm:$0x3]
    %v2582 = vrot.slane %v711, 6
    %v2583 = vrot.slane %v712, 6
    %v2621 = vunpack.c.l.b16 %v2546
    %v2622 = vunpack.c.h.b16 %v2546
    %v2623 = vunpack.c.l.b16 %v2547
    %v2624 = vunpack.c.l.b16 %v2548
    %v2625 = vunpack.c.h.b16 %v2548
    %v2626 = vunpack.c.l.b16 %v2549
    %v2627 = vunpack.c.l.b16 %v2550
    %v2628 = vunpack.c.h.b16 %v2550
    %v2629 = vunpack.c.l.b16 %v2551
    %v2630 = vunpack.c.l.b16 %v2552
    %v2631 = vunpack.c.h.b16 %v2552
    %v2632 = vunpack.c.l.b16 %v2553
    %v2633 = vunpack.c.l.b16 %v2554
    %v2634 = vunpack.c.h.b16 %v2554
    %v2635 = vunpack.c.l.b16 %v2555
    %v2636 = vunpack.c.l.b16 %v2556
    %v2637 = vunpack.c.h.b16 %v2556
    %v2638 = vunpack.c.l.b16 %v2557
    %v2639 = vunpack.c.l.b16 %v2558
    %v2640 = vunpack.c.h.b16 %v2558
    %v2641 = vunpack.c.l.b16 %v2559
    %v2642 = vunpack.c.l.b16 %v2560
    %v2643 = vunpack.c.h.b16 %v2560
    %v2644 = vunpack.c.l.b16 %v2561
    %v2645 = vunpack.c.l.b16 %v2562
    %v2646 = vunpack.c.h.b16 %v2562
    %v2647 = vunpack.c.l.b16 %v2563
    %v2648 = vunpack.c.l.b16 %v2564
    %v2649 = vunpack.c.h.b16 %v2564
    %v2650 = vunpack.c.l.b16 %v2565
    %v2651 = vunpack.c.l.b16 %v2566
    %v2652 = vunpack.c.h.b16 %v2566
    %v2653 = vunpack.c.l.b16 %v2567
    %v2654 = vunpack.c.l.b16 %v2568
    %v2655 = vunpack.c.h.b16 %v2568
    %v2656 = vunpack.c.l.b16 %v2569
    %v2657 = vunpack.c.l.b16 %v2570
    %v2658 = vunpack.c.h.b16 %v2570
    %v2659 = vunpack.c.l.b16 %v2571
    %v2660 = vunpack.c.l.b16 %v2572
    %v2661 = vunpack.c.h.b16 %v2572
    %v2662 = vunpack.c.l.b16 %v2573
    %v2663 = vunpack.c.l.b16 %v2574
    %v2664 = vunpack.c.h.b16 %v2574
    %v2665 = vunpack.c.l.b16 %v2575
    %v2666 = vunpack.c.l.b16 %v2576
    %v2667 = vunpack.c.h.b16 %v2576
    %v2668 = vunpack.c.l.b16 %v2577
    %v2669 = vunpack.c.l.b16 %v2578
    %v2670 = vunpack.c.h.b16 %v2578
    %v2671 = vunpack.c.l.b16 %v2579
    %v2672 = vunpack.c.l.b16 %v2580
    %v2673 = vunpack.c.h.b16 %v2580
    %v2674 = vunpack.c.l.b16 %v2581
    %v2675 = vpack.c.b16 %v2624, %v2621
    %v2676 = vpack.c.b16 %v2625, %v2622
    %v2677 = vpack.c.b16 %v2626, %v2623
    %v2678 = vpack.c.b16 %v2630, %v2627
    %v2679 = vpack.c.b16 %v2631, %v2628
    %v2680 = vpack.c.b16 %v2632, %v2629
    %v2681 = vpack.c.b16 %v2636, %v2633
    %v2682 = vpack.c.b16 %v2637, %v2634
    %v2683 = vpack.c.b16 %v2638, %v2635
    %v2684 = vpack.c.b16 %v2642, %v2639
    %v2685 = vpack.c.b16 %v2643, %v2640
    %v2686 = vpack.c.b16 %v2644, %v2641
    %v2687 = vpack.c.b16 %v2648, %v2645
    %v2688 = vpack.c.b16 %v2649, %v2646
    %v2689 = vpack.c.b16 %v2650, %v2647
    %v2690 = vpack.c.b16 %v2654, %v2651
    %v2691 = vpack.c.b16 %v2655, %v2652
    %v2692 = vpack.c.b16 %v2656, %v2653
    %v2693 = vpack.c.b16 %v2660, %v2657
    %v2694 = vpack.c.b16 %v2661, %v2658
    %v2695 = vpack.c.b16 %v2662, %v2659
    %v2696 = vpack.c.b16 %v2666, %v2663
    %v2697 = vpack.c.b16 %v2667, %v2664
    %v2698 = vpack.c.b16 %v2668, %v2665
    %v2699 = vpack.c.b16 %v2672, %v2669
    %v2700 = vpack.c.b16 %v2673, %v2670
    %v2701 = vpack.c.b16 %v2674, %v2671
    %v2727 = vsel %vm912, %v2583, 0
    %v2730 = vsel %vm916, %v2699, 0
    %v2733 = vsel %vm916, %v2700, 0
    %v2736 = vsel %vm916, %v2701, 0
    %2738 = vmatprep.subr.bf16.mxu0 %v2676
    %2739 = vmatpush1.bf16.msra.mxu0 %v2675
    %2740 = vmatprep.subr.bf16.mxu0 %v2679
    %2741 = vmatpush1.bf16.msra.mxu0 %v2678
    %2742 = vmatprep.subr.bf16.mxu0 %v2682
    %2743 = vmatpush1.bf16.msra.mxu0 %v2681
    %2744 = vmatprep.subr.bf16.mxu0 %v2685
    %2745 = vmatpush1.bf16.msra.mxu0 %v2684
    %2746 = vmatprep.subr.bf16.mxu0 %v2688
    %2747 = vmatpush1.bf16.msra.mxu0 %v2687
    %2748 = vmatprep.subr.bf16.mxu0 %v2691
    %2749 = vmatpush1.bf16.msra.mxu0 %v2690
    %2750 = vmatprep.subr.bf16.mxu0 %v2694
    %2751 = vmatpush1.bf16.msra.mxu0 %v2693
    %2752 = vmatprep.subr.bf16.mxu0 %v2697
    %2753 = vmatpush1.bf16.msra.mxu0 %v2696
    %2754 = vmatprep.subr.bf16.mxu0 %v2733
    %2755 = vmatpush1.bf16.msra.mxu0 %v2730
    %2756 = vmatprep.subr.bf16.mxu0 0
    %2757 = vmatpush1.bf16.msra.mxu0 0
    %2758 = vmatprep.subr.bf16.mxu0 0
    %2759 = vmatpush1.bf16.msra.mxu0 0
    %2760 = vmatprep.subr.bf16.mxu0 0
    %2761 = vmatpush1.bf16.msra.mxu0 0
    %2762 = vmatprep.subr.bf16.mxu0 0
    %2763 = vmatpush1.bf16.msra.mxu0 0
    %2764 = vmatprep.subr.bf16.mxu0 0
    %2765 = vmatpush1.bf16.msra.mxu0 0
    %2766 = vmatprep.subr.bf16.mxu0 0
    %2767 = vmatpush1.bf16.msra.mxu0 0
    %2768 = vmatprep.subr.bf16.mxu0 0
    %2769 = vmatpush1.bf16.msra.mxu0 0
    %2770 = vmatprep.mubr.bf16.mxu0 %v2727
    %2771 = vmatmul.mubr.bf16.gmra.mrb[0].mxu0 %v2582
    %v2772 = vpop.f32.mrb[0].mxu0
    %v2773 = vadd.f32 0.0, %v2772
    %v2774 = vpop.f32.mrb[0].mxu0
    %v2775 = vadd.f32 0.0, %v2774
    %v2776 = vpop.f32.mrb[0].mxu0
    %v2777 = vpop.f32.mrb[0].mxu0
    %2778 = vdwg.mxu0
    %2779 = vmatprep.subr.bf16.mxu0 0
    %2780 = vmatpush1.bf16.msra.mxu0 %v2677
    %2781 = vmatprep.subr.bf16.mxu0 0
    %2782 = vmatpush1.bf16.msra.mxu0 %v2680
    %2783 = vmatprep.subr.bf16.mxu0 0
    %2784 = vmatpush1.bf16.msra.mxu0 %v2683
    %2785 = vmatprep.subr.bf16.mxu0 0
    %2786 = vmatpush1.bf16.msra.mxu0 %v2686
    %2787 = vmatprep.subr.bf16.mxu0 0
    %2788 = vmatpush1.bf16.msra.mxu0 %v2689
    %2789 = vmatprep.subr.bf16.mxu0 0
    %2790 = vmatpush1.bf16.msra.mxu0 %v2692
    %2791 = vmatprep.subr.bf16.mxu0 0
    %2792 = vmatpush1.bf16.msra.mxu0 %v2695
    %2793 = vmatprep.subr.bf16.mxu0 0
    %2794 = vmatpush1.bf16.msra.mxu0 %v2698
    %2795 = vmatprep.subr.bf16.mxu0 0
    %2796 = vmatpush1.bf16.msra.mxu0 %v2736
    %2797 = vmatprep.subr.bf16.mxu0 0
    %2798 = vmatpush1.bf16.msra.mxu0 0
    %2799 = vmatprep.subr.bf16.mxu0 0
    %2800 = vmatpush1.bf16.msra.mxu0 0
    %2801 = vmatprep.subr.bf16.mxu0 0
    %2802 = vmatpush1.bf16.msra.mxu0 0
    %2803 = vmatprep.subr.bf16.mxu0 0
    %2804 = vmatpush1.bf16.msra.mxu0 0
    %2805 = vmatprep.subr.bf16.mxu0 0
    %2806 = vmatpush1.bf16.msra.mxu0 0
    %2807 = vmatprep.subr.bf16.mxu0 0
    %2808 = vmatpush1.bf16.msra.mxu0 0
    %2809 = vmatprep.subr.bf16.mxu0 0
    %2810 = vmatpush1.bf16.msra.mxu0 0
    %2811 = vmatprep.mubr.bf16.mxu0 %v2727
    %2812 = vmatmul.mubr.bf16.gmra.mrb[0].mxu0 %v2582
    %v2813 = vpop.f32.mrb[0].mxu0
    %v2814 = vadd.f32 0.0, %v2813
    %v2815 = vpop.f32.mrb[0].mxu0
    %v2816 = vpop.f32.mrb[0].mxu0
    %v2817 = vpop.f32.mrb[0].mxu0
    %2818 = vdwg.mxu0
    %v2819 = vadd.f32 %v2543, %v2773
    %v2820 = vadd.f32 %v2544, %v2775
    %v2821 = vadd.f32 %v2545, %v2814
    %v2822 = vld [vmem:[%s3 + $0x5b8] sm:$0xcc]
    %v2823 = vld [vmem:[%s3 + $0x5c0] sm:$0xc]
    %v2824 = vld [vmem:[%s3 + $0x5c4] sm:$0xff]
    %v2825 = vld [vmem:[%s3 + $0x5cc] sm:$0xf]
    %v2826 = vld [vmem:[%s3 + $0x5d0] sm:$0xff]
    %v2827 = vld [vmem:[%s3 + $0x5d8] sm:$0xf]
    %v2828 = vld [vmem:[%s3 + $0x5dc] sm:$0xff]
    %v2829 = vld [vmem:[%s3 + $0x5e4] sm:$0xf]
    %v2830 = vld [vmem:[%s3 + $0x5e8] sm:$0xff]
    %v2831 = vld [vmem:[%s3 + $0x5f0] sm:$0xf]
    %v2832 = vld [vmem:[%s3 + $0x5f4] sm:$0xff]
    %v2833 = vld [vmem:[%s3 + $0x5fc] sm:$0xf]
    %v2834 = vld [vmem:[%s3 + $0x600] sm:$0xff]
    %v2835 = vld [vmem:[%s3 + $0x608] sm:$0xf]
    %v2836 = vld [vmem:[%s3 + $0x60c] sm:$0xff]
    %v2837 = vld [vmem:[%s3 + $0x614] sm:$0xf]
    %v2838 = vld [vmem:[%s3 + $0x618] sm:$0xff]
    %v2839 = vld [vmem:[%s3 + $0x620] sm:$0xf]
    %v2840 = vld [vmem:[%s3 + $0x624] sm:$0xff]
    %v2841 = vld [vmem:[%s3 + $0x62c] sm:$0xf]
    %v2842 = vld [vmem:[%s3 + $0x630] sm:$0xff]
    %v2843 = vld [vmem:[%s3 + $0x638] sm:$0xf]
    %v2844 = vld [vmem:[%s3 + $0x63c] sm:$0xff]
    %v2845 = vld [vmem:[%s3 + $0x644] sm:$0xf]
    %v2846 = vld [vmem:[%s3 + $0x648] sm:$0xff]
    %v2847 = vld [vmem:[%s3 + $0x650] sm:$0xf]
    %v2848 = vld [vmem:[%s3 + $0x654] sm:$0xff]
    %v2849 = vld [vmem:[%s3 + $0x65c] sm:$0xf]
    %v2850 = vld [vmem:[%s3 + $0x660] sm:$0xff]
    %v2851 = vld [vmem:[%s3 + $0x668] sm:$0xf]
    %v2852 = vld [vmem:[%s3 + $0x66c] sm:$0xff]
    %v2853 = vld [vmem:[%s3 + $0x674] sm:$0xf]
    %v2854 = vld [vmem:[%s3 + $0x678] sm:$0xff]
    %v2855 = vld [vmem:[%s3 + $0x680] sm:$0xf]
    %v2856 = vld [vmem:[%s3 + $0x684] sm:$0xff]
    %v2857 = vld [vmem:[%s3 + $0x68c] sm:$0xf]
    %v2858 = vrot.slane %v711, 7
    %v2859 = vrot.slane %v712, 7
    %v2897 = vunpack.c.l.b16 %v2822
    %v2898 = vunpack.c.h.b16 %v2822
    %v2899 = vunpack.c.l.b16 %v2823
    %v2900 = vunpack.c.l.b16 %v2824
    %v2901 = vunpack.c.h.b16 %v2824
    %v2902 = vunpack.c.l.b16 %v2825
    %v2903 = vunpack.c.l.b16 %v2826
    %v2904 = vunpack.c.h.b16 %v2826
    %v2905 = vunpack.c.l.b16 %v2827
    %v2906 = vunpack.c.l.b16 %v2828
    %v2907 = vunpack.c.h.b16 %v2828
    %v2908 = vunpack.c.l.b16 %v2829
    %v2909 = vunpack.c.l.b16 %v2830
    %v2910 = vunpack.c.h.b16 %v2830
    %v2911 = vunpack.c.l.b16 %v2831
    %v2912 = vunpack.c.l.b16 %v2832
    %v2913 = vunpack.c.h.b16 %v2832
    %v2914 = vunpack.c.l.b16 %v2833
    %v2915 = vunpack.c.l.b16 %v2834
    %v2916 = vunpack.c.h.b16 %v2834
    %v2917 = vunpack.c.l.b16 %v2835
    %v2918 = vunpack.c.l.b16 %v2836
    %v2919 = vunpack.c.h.b16 %v2836
    %v2920 = vunpack.c.l.b16 %v2837
    %v2921 = vunpack.c.l.b16 %v2838
    %v2922 = vunpack.c.h.b16 %v2838
    %v2923 = vunpack.c.l.b16 %v2839
    %v2924 = vunpack.c.l.b16 %v2840
    %v2925 = vunpack.c.h.b16 %v2840
    %v2926 = vunpack.c.l.b16 %v2841
    %v2927 = vunpack.c.l.b16 %v2842
    %v2928 = vunpack.c.h.b16 %v2842
    %v2929 = vunpack.c.l.b16 %v2843
    %v2930 = vunpack.c.l.b16 %v2844
    %v2931 = vunpack.c.h.b16 %v2844
    %v2932 = vunpack.c.l.b16 %v2845
    %v2933 = vunpack.c.l.b16 %v2846
    %v2934 = vunpack.c.h.b16 %v2846
    %v2935 = vunpack.c.l.b16 %v2847
    %v2936 = vunpack.c.l.b16 %v2848
    %v2937 = vunpack.c.h.b16 %v2848
    %v2938 = vunpack.c.l.b16 %v2849
    %v2939 = vunpack.c.l.b16 %v2850
    %v2940 = vunpack.c.h.b16 %v2850
    %v2941 = vunpack.c.l.b16 %v2851
    %v2942 = vunpack.c.l.b16 %v2852
    %v2943 = vunpack.c.h.b16 %v2852
    %v2944 = vunpack.c.l.b16 %v2853
    %v2945 = vunpack.c.l.b16 %v2854
    %v2946 = vunpack.c.h.b16 %v2854
    %v2947 = vunpack.c.l.b16 %v2855
    %v2948 = vunpack.c.l.b16 %v2856
    %v2949 = vunpack.c.h.b16 %v2856
    %v2950 = vunpack.c.l.b16 %v2857
    %v2951 = vpack.c.b16 %v2900, %v2897
    %v2952 = vpack.c.b16 %v2901, %v2898
    %v2953 = vpack.c.b16 %v2902, %v2899
    %v2954 = vpack.c.b16 %v2906, %v2903
    %v2955 = vpack.c.b16 %v2907, %v2904
    %v2956 = vpack.c.b16 %v2908, %v2905
    %v2957 = vpack.c.b16 %v2912, %v2909
    %v2958 = vpack.c.b16 %v2913, %v2910
    %v2959 = vpack.c.b16 %v2914, %v2911
    %v2960 = vpack.c.b16 %v2918, %v2915
    %v2961 = vpack.c.b16 %v2919, %v2916
    %v2962 = vpack.c.b16 %v2920, %v2917
    %v2963 = vpack.c.b16 %v2924, %v2921
    %v2964 = vpack.c.b16 %v2925, %v2922
    %v2965 = vpack.c.b16 %v2926, %v2923
    %v2966 = vpack.c.b16 %v2930, %v2927
    %v2967 = vpack.c.b16 %v2931, %v2928
    %v2968 = vpack.c.b16 %v2932, %v2929
    %v2969 = vpack.c.b16 %v2936, %v2933
    %v2970 = vpack.c.b16 %v2937, %v2934
    %v2971 = vpack.c.b16 %v2938, %v2935
    %v2972 = vpack.c.b16 %v2942, %v2939
    %v2973 = vpack.c.b16 %v2943, %v2940
    %v2974 = vpack.c.b16 %v2944, %v2941
    %v2975 = vpack.c.b16 %v2948, %v2945
    %v2976 = vpack.c.b16 %v2949, %v2946
    %v2977 = vpack.c.b16 %v2950, %v2947
    %v2978 = vrot.slane %v2951, 2
    %v2979 = vrot.slane %v2954, 2
    %v2980 = vsel %vm1168, %v2978, %v2979
    %v2981 = vrot.slane %v2952, 2
    %v2982 = vrot.slane %v2955, 2
    %v2983 = vsel %vm1168, %v2981, %v2982
    %v2984 = vrot.slane %v2953, 2
    %v2985 = vrot.slane %v2956, 2
    %v2986 = vsel %vm1168, %v2984, %v2985
    %v2987 = vrot.slane %v2957, 2
    %v2988 = vsel %vm1168, %v2979, %v2987
    %v2989 = vrot.slane %v2958, 2
    %v2990 = vsel %vm1168, %v2982, %v2989
    %v2991 = vrot.slane %v2959, 2
    %v2992 = vsel %vm1168, %v2985, %v2991
    %v2993 = vrot.slane %v2960, 2
    %v2994 = vsel %vm1168, %v2987, %v2993
    %v2995 = vrot.slane %v2961, 2
    %v2996 = vsel %vm1168, %v2989, %v2995
    %v2997 = vrot.slane %v2962, 2
    %v2998 = vsel %vm1168, %v2991, %v2997
    %v2999 = vrot.slane %v2963, 2
    %v3000 = vsel %vm1168, %v2993, %v2999
    %v3001 = vrot.slane %v2964, 2
    %v3002 = vsel %vm1168, %v2995, %v3001
    %v3003 = vrot.slane %v2965, 2
    %v3004 = vsel %vm1168, %v2997, %v3003
    %v3005 = vrot.slane %v2966, 2
    %v3006 = vsel %vm1168, %v2999, %v3005
    %v3007 = vrot.slane %v2967, 2
    %v3008 = vsel %vm1168, %v3001, %v3007
    %v3009 = vrot.slane %v2968, 2
    %v3010 = vsel %vm1168, %v3003, %v3009
    %v3011 = vrot.slane %v2969, 2
    %v3012 = vsel %vm1168, %v3005, %v3011
    %v3013 = vrot.slane %v2970, 2
    %v3014 = vsel %vm1168, %v3007, %v3013
    %v3015 = vrot.slane %v2971, 2
    %v3016 = vsel %vm1168, %v3009, %v3015
    %v3017 = vrot.slane %v2972, 2
    %v3018 = vsel %vm1168, %v3011, %v3017
    %v3019 = vrot.slane %v2973, 2
    %v3020 = vsel %vm1168, %v3013, %v3019
    %v3021 = vrot.slane %v2974, 2
    %v3022 = vsel %vm1168, %v3015, %v3021
    %v3023 = vrot.slane %v2975, 2
    %v3024 = vsel %vm1168, %v3017, %v3023
    %v3025 = vrot.slane %v2976, 2
    %v3026 = vsel %vm1168, %v3019, %v3025
    %v3027 = vrot.slane %v2977, 2
    %v3028 = vsel %vm1168, %v3021, %v3027
    %v3054 = vsel %vm912, %v2859, 0
    %v3057 = vsel %vm916, %v3023, 0
    %v3060 = vsel %vm916, %v3025, 0
    %v3063 = vsel %vm916, %v3027, 0
    %3065 = vmatprep.subr.bf16.mxu0 %v2983
    %3066 = vmatpush1.bf16.msra.mxu0 %v2980
    %3067 = vmatprep.subr.bf16.mxu0 %v2990
    %3068 = vmatpush1.bf16.msra.mxu0 %v2988
    %3069 = vmatprep.subr.bf16.mxu0 %v2996
    %3070 = vmatpush1.bf16.msra.mxu0 %v2994
    %3071 = vmatprep.subr.bf16.mxu0 %v3002
    %3072 = vmatpush1.bf16.msra.mxu0 %v3000
    %3073 = vmatprep.subr.bf16.mxu0 %v3008
    %3074 = vmatpush1.bf16.msra.mxu0 %v3006
    %3075 = vmatprep.subr.bf16.mxu0 %v3014
    %3076 = vmatpush1.bf16.msra.mxu0 %v3012
    %3077 = vmatprep.subr.bf16.mxu0 %v3020
    %3078 = vmatpush1.bf16.msra.mxu0 %v3018
    %3079 = vmatprep.subr.bf16.mxu0 %v3026
    %3080 = vmatpush1.bf16.msra.mxu0 %v3024
    %3081 = vmatprep.subr.bf16.mxu0 %v3060
    %3082 = vmatpush1.bf16.msra.mxu0 %v3057
    %3083 = vmatprep.subr.bf16.mxu0 0
    %3084 = vmatpush1.bf16.msra.mxu0 0
    %3085 = vmatprep.subr.bf16.mxu0 0
    %3086 = vmatpush1.bf16.msra.mxu0 0
    %3087 = vmatprep.subr.bf16.mxu0 0
    %3088 = vmatpush1.bf16.msra.mxu0 0
    %3089 = vmatprep.subr.bf16.mxu0 0
    %3090 = vmatpush1.bf16.msra.mxu0 0
    %3091 = vmatprep.subr.bf16.mxu0 0
    %3092 = vmatpush1.bf16.msra.mxu0 0
    %3093 = vmatprep.subr.bf16.mxu0 0
    %3094 = vmatpush1.bf16.msra.mxu0 0
    %3095 = vmatprep.subr.bf16.mxu0 0
    %3096 = vmatpush1.bf16.msra.mxu0 0
    %3097 = vmatprep.mubr.bf16.mxu0 %v3054
    %3098 = vmatmul.mubr.bf16.gmra.mrb[0].mxu0 %v2858
    %v3099 = vpop.f32.mrb[0].mxu0
    %v3100 = vadd.f32 0.0, %v3099
    %v3101 = vpop.f32.mrb[0].mxu0
    %v3102 = vadd.f32 0.0, %v3101
    %v3103 = vpop.f32.mrb[0].mxu0
    %v3104 = vpop.f32.mrb[0].mxu0
    %3105 = vdwg.mxu0
    %3106 = vmatprep.subr.bf16.mxu0 0
    %3107 = vmatpush1.bf16.msra.mxu0 %v2986
    %3108 = vmatprep.subr.bf16.mxu0 0
    %3109 = vmatpush1.bf16.msra.mxu0 %v2992
    %3110 = vmatprep.subr.bf16.mxu0 0
    %3111 = vmatpush1.bf16.msra.mxu0 %v2998
    %3112 = vmatprep.subr.bf16.mxu0 0
    %3113 = vmatpush1.bf16.msra.mxu0 %v3004
    %3114 = vmatprep.subr.bf16.mxu0 0
    %3115 = vmatpush1.bf16.msra.mxu0 %v3010
    %3116 = vmatprep.subr.bf16.mxu0 0
    %3117 = vmatpush1.bf16.msra.mxu0 %v3016
    %3118 = vmatprep.subr.bf16.mxu0 0
    %3119 = vmatpush1.bf16.msra.mxu0 %v3022
    %3120 = vmatprep.subr.bf16.mxu0 0
    %3121 = vmatpush1.bf16.msra.mxu0 %v3028
    %3122 = vmatprep.subr.bf16.mxu0 0
    %3123 = vmatpush1.bf16.msra.mxu0 %v3063
    %3124 = vmatprep.subr.bf16.mxu0 0
    %3125 = vmatpush1.bf16.msra.mxu0 0
    %3126 = vmatprep.subr.bf16.mxu0 0
    %3127 = vmatpush1.bf16.msra.mxu0 0
    %3128 = vmatprep.subr.bf16.mxu0 0
    %3129 = vmatpush1.bf16.msra.mxu0 0
    %3130 = vmatprep.subr.bf16.mxu0 0
    %3131 = vmatpush1.bf16.msra.mxu0 0
    %3132 = vmatprep.subr.bf16.mxu0 0
    %3133 = vmatpush1.bf16.msra.mxu0 0
    %3134 = vmatprep.subr.bf16.mxu0 0
    %3135 = vmatpush1.bf16.msra.mxu0 0
    %3136 = vmatprep.subr.bf16.mxu0 0
    %3137 = vmatpush1.bf16.msra.mxu0 0
    %3138 = vmatprep.mubr.bf16.mxu0 %v3054
    %3139 = vmatmul.mubr.bf16.gmra.mrb[0].mxu0 %v2858
    %v3140 = vpop.f32.mrb[0].mxu0
    %v3141 = vadd.f32 0.0, %v3140
    %v3142 = vpop.f32.mrb[0].mxu0
    %v3143 = vpop.f32.mrb[0].mxu0
    %v3144 = vpop.f32.mrb[0].mxu0
    %3145 = vdwg.mxu0
    %v3146 = vadd.f32 %v2819, %v3100
    %v3147 = vadd.f32 %v2820, %v3102
    %v3148 = vadd.f32 %v2821, %v3141
    %v3149 = vld [vmem:[%s3 + $0x690] sm:$0xff]
    %v3150 = vld [vmem:[%s3 + $0x698] sm:$0xf]
    %v3151 = vld [vmem:[%s3 + $0x69c] sm:$0xff]
    %v3152 = vld [vmem:[%s3 + $0x6a4] sm:$0xf]
    %v3153 = vld [vmem:[%s3 + $0x6a8] sm:$0xff]
    %v3154 = vld [vmem:[%s3 + $0x6b0] sm:$0xf]
    %v3155 = vld [vmem:[%s3 + $0x6b4] sm:$0xff]
    %v3156 = vld [vmem:[%s3 + $0x6bc] sm:$0xf]
    %v3157 = vld [vmem:[%s3 + $0x6c0] sm:$0xff]
    %v3158 = vld [vmem:[%s3 + $0x6c8] sm:$0xf]
    %v3159 = vld [vmem:[%s3 + $0x6cc] sm:$0xff]
    %v3160 = vld [vmem:[%s3 + $0x6d4] sm:$0xf]
    %v3161 = vld [vmem:[%s3 + $0x6d8] sm:$0xff]
    %v3162 = vld [vmem:[%s3 + $0x6e0] sm:$0xf]
    %v3163 = vld [vmem:[%s3 + $0x6e4] sm:$0xff]
    %v3164 = vld [vmem:[%s3 + $0x6ec] sm:$0xf]
    %v3165 = vld [vmem:[%s3 + $0x6f0] sm:$0xff]
    %v3166 = vld [vmem:[%s3 + $0x6f8] sm:$0xf]
    %v3167 = vld [vmem:[%s3 + $0x6fc] sm:$0xff]
    %v3168 = vld [vmem:[%s3 + $0x704] sm:$0xf]
    %v3169 = vld [vmem:[%s3 + $0x708] sm:$0xff]
    %v3170 = vld [vmem:[%s3 + $0x710] sm:$0xf]
    %v3171 = vld [vmem:[%s3 + $0x714] sm:$0xff]
    %v3172 = vld [vmem:[%s3 + $0x71c] sm:$0xf]
    %v3173 = vld [vmem:[%s3 + $0x720] sm:$0xff]
    %v3174 = vld [vmem:[%s3 + $0x728] sm:$0xf]
    %v3175 = vld [vmem:[%s3 + $0x72c] sm:$0xff]
    %v3176 = vld [vmem:[%s3 + $0x734] sm:$0xf]
    %v3177 = vld [vmem:[%s3 + $0x738] sm:$0xff]
    %v3178 = vld [vmem:[%s3 + $0x740] sm:$0xf]
    %v3179 = vld [vmem:[%s3 + $0x744] sm:$0xff]
    %v3180 = vld [vmem:[%s3 + $0x74c] sm:$0xf]
    %v3181 = vld [vmem:[%s3 + $0x750] sm:$0xff]
    %v3182 = vld [vmem:[%s3 + $0x758] sm:$0xf]
    %v3183 = vld [vmem:[%s3 + $0x75c] sm:$0x33]
    %v3184 = vld [vmem:[%s3 + $0x764] sm:$0x3]
    %v3221 = vunpack.c.l.b16 %v3149
    %v3222 = vunpack.c.h.b16 %v3149
    %v3223 = vunpack.c.l.b16 %v3150
    %v3224 = vunpack.c.l.b16 %v3151
    %v3225 = vunpack.c.h.b16 %v3151
    %v3226 = vunpack.c.l.b16 %v3152
    %v3227 = vunpack.c.l.b16 %v3153
    %v3228 = vunpack.c.h.b16 %v3153
    %v3229 = vunpack.c.l.b16 %v3154
    %v3230 = vunpack.c.l.b16 %v3155
    %v3231 = vunpack.c.h.b16 %v3155
    %v3232 = vunpack.c.l.b16 %v3156
    %v3233 = vunpack.c.l.b16 %v3157
    %v3234 = vunpack.c.h.b16 %v3157
    %v3235 = vunpack.c.l.b16 %v3158
    %v3236 = vunpack.c.l.b16 %v3159
    %v3237 = vunpack.c.h.b16 %v3159
    %v3238 = vunpack.c.l.b16 %v3160
    %v3239 = vunpack.c.l.b16 %v3161
    %v3240 = vunpack.c.h.b16 %v3161
    %v3241 = vunpack.c.l.b16 %v3162
    %v3242 = vunpack.c.l.b16 %v3163
    %v3243 = vunpack.c.h.b16 %v3163
    %v3244 = vunpack.c.l.b16 %v3164
    %v3245 = vunpack.c.l.b16 %v3165
    %v3246 = vunpack.c.h.b16 %v3165
    %v3247 = vunpack.c.l.b16 %v3166
    %v3248 = vunpack.c.l.b16 %v3167
    %v3249 = vunpack.c.h.b16 %v3167
    %v3250 = vunpack.c.l.b16 %v3168
    %v3251 = vunpack.c.l.b16 %v3169
    %v3252 = vunpack.c.h.b16 %v3169
    %v3253 = vunpack.c.l.b16 %v3170
    %v3254 = vunpack.c.l.b16 %v3171
    %v3255 = vunpack.c.h.b16 %v3171
    %v3256 = vunpack.c.l.b16 %v3172
    %v3257 = vunpack.c.l.b16 %v3173
    %v3258 = vunpack.c.h.b16 %v3173
    %v3259 = vunpack.c.l.b16 %v3174
    %v3260 = vunpack.c.l.b16 %v3175
    %v3261 = vunpack.c.h.b16 %v3175
    %v3262 = vunpack.c.l.b16 %v3176
    %v3263 = vunpack.c.l.b16 %v3177
    %v3264 = vunpack.c.h.b16 %v3177
    %v3265 = vunpack.c.l.b16 %v3178
    %v3266 = vunpack.c.l.b16 %v3179
    %v3267 = vunpack.c.h.b16 %v3179
    %v3268 = vunpack.c.l.b16 %v3180
    %v3269 = vunpack.c.l.b16 %v3181
    %v3270 = vunpack.c.h.b16 %v3181
    %v3271 = vunpack.c.l.b16 %v3182
    %v3272 = vunpack.c.l.b16 %v3183
    %v3273 = vunpack.c.h.b16 %v3183
    %v3274 = vunpack.c.l.b16 %v3184
    %v3275 = vpack.c.b16 %v3224, %v3221
    %v3276 = vpack.c.b16 %v3225, %v3222
    %v3277 = vpack.c.b16 %v3226, %v3223
    %v3278 = vpack.c.b16 %v3230, %v3227
    %v3279 = vpack.c.b16 %v3231, %v3228
    %v3280 = vpack.c.b16 %v3232, %v3229
    %v3281 = vpack.c.b16 %v3236, %v3233
    %v3282 = vpack.c.b16 %v3237, %v3234
    %v3283 = vpack.c.b16 %v3238, %v3235
    %v3284 = vpack.c.b16 %v3242, %v3239
    %v3285 = vpack.c.b16 %v3243, %v3240
    %v3286 = vpack.c.b16 %v3244, %v3241
    %v3287 = vpack.c.b16 %v3248, %v3245
    %v3288 = vpack.c.b16 %v3249, %v3246
    %v3289 = vpack.c.b16 %v3250, %v3247
    %v3290 = vpack.c.b16 %v3254, %v3251
    %v3291 = vpack.c.b16 %v3255, %v3252
    %v3292 = vpack.c.b16 %v3256, %v3253
    %v3293 = vpack.c.b16 %v3260, %v3257
    %v3294 = vpack.c.b16 %v3261, %v3258
    %v3295 = vpack.c.b16 %v3262, %v3259
    %v3296 = vpack.c.b16 %v3266, %v3263
    %v3297 = vpack.c.b16 %v3267, %v3264
    %v3298 = vpack.c.b16 %v3268, %v3265
    %v3299 = vpack.c.b16 %v3272, %v3269
    %v3300 = vpack.c.b16 %v3273, %v3270
    %v3301 = vpack.c.b16 %v3274, %v3271
    %v3327 = vsel %vm912, %v714, 0
    %v3330 = vsel %vm916, %v3299, 0
    %v3333 = vsel %vm916, %v3300, 0
    %v3336 = vsel %vm916, %v3301, 0
    %3338 = vmatprep.subr.bf16.mxu0 %v3276
    %3339 = vmatpush1.bf16.msra.mxu0 %v3275
    %3340 = vmatprep.subr.bf16.mxu0 %v3279
    %3341 = vmatpush1.bf16.msra.mxu0 %v3278
    %3342 = vmatprep.subr.bf16.mxu0 %v3282
    %3343 = vmatpush1.bf16.msra.mxu0 %v3281
    %3344 = vmatprep.subr.bf16.mxu0 %v3285
    %3345 = vmatpush1.bf16.msra.mxu0 %v3284
    %3346 = vmatprep.subr.bf16.mxu0 %v3288
    %3347 = vmatpush1.bf16.msra.mxu0 %v3287
    %3348 = vmatprep.subr.bf16.mxu0 %v3291
    %3349 = vmatpush1.bf16.msra.mxu0 %v3290
    %3350 = vmatprep.subr.bf16.mxu0 %v3294
    %3351 = vmatpush1.bf16.msra.mxu0 %v3293
    %3352 = vmatprep.subr.bf16.mxu0 %v3297
    %3353 = vmatpush1.bf16.msra.mxu0 %v3296
    %3354 = vmatprep.subr.bf16.mxu0 %v3333
    %3355 = vmatpush1.bf16.msra.mxu0 %v3330
    %3356 = vmatprep.subr.bf16.mxu0 0
    %3357 = vmatpush1.bf16.msra.mxu0 0
    %3358 = vmatprep.subr.bf16.mxu0 0
    %3359 = vmatpush1.bf16.msra.mxu0 0
    %3360 = vmatprep.subr.bf16.mxu0 0
    %3361 = vmatpush1.bf16.msra.mxu0 0
    %3362 = vmatprep.subr.bf16.mxu0 0
    %3363 = vmatpush1.bf16.msra.mxu0 0
    %3364 = vmatprep.subr.bf16.mxu0 0
    %3365 = vmatpush1.bf16.msra.mxu0 0
    %3366 = vmatprep.subr.bf16.mxu0 0
    %3367 = vmatpush1.bf16.msra.mxu0 0
    %3368 = vmatprep.subr.bf16.mxu0 0
    %3369 = vmatpush1.bf16.msra.mxu0 0
    %3370 = vmatprep.mubr.bf16.mxu0 %v3327
    %3371 = vmatmul.mubr.bf16.gmra.mrb[0].mxu0 %v713
    %v3372 = vpop.f32.mrb[0].mxu0
    %v3373 = vadd.f32 0.0, %v3372
    %v3374 = vpop.f32.mrb[0].mxu0
    %v3375 = vadd.f32 0.0, %v3374
    %v3376 = vpop.f32.mrb[0].mxu0
    %v3377 = vpop.f32.mrb[0].mxu0
    %3378 = vdwg.mxu0
    %3379 = vmatprep.subr.bf16.mxu0 0
    %3380 = vmatpush1.bf16.msra.mxu0 %v3277
    %3381 = vmatprep.subr.bf16.mxu0 0
    %3382 = vmatpush1.bf16.msra.mxu0 %v3280
    %3383 = vmatprep.subr.bf16.mxu0 0
    %3384 = vmatpush1.bf16.msra.mxu0 %v3283
    %3385 = vmatprep.subr.bf16.mxu0 0
    %3386 = vmatpush1.bf16.msra.mxu0 %v3286
    %3387 = vmatprep.subr.bf16.mxu0 0
    %3388 = vmatpush1.bf16.msra.mxu0 %v3289
    %3389 = vmatprep.subr.bf16.mxu0 0
    %3390 = vmatpush1.bf16.msra.mxu0 %v3292
    %3391 = vmatprep.subr.bf16.mxu0 0
    %3392 = vmatpush1.bf16.msra.mxu0 %v3295
    %3393 = vmatprep.subr.bf16.mxu0 0
    %3394 = vmatpush1.bf16.msra.mxu0 %v3298
    %3395 = vmatprep.subr.bf16.mxu0 0
    %3396 = vmatpush1.bf16.msra.mxu0 %v3336
    %3397 = vmatprep.subr.bf16.mxu0 0
    %3398 = vmatpush1.bf16.msra.mxu0 0
    %3399 = vmatprep.subr.bf16.mxu0 0
    %3400 = vmatpush1.bf16.msra.mxu0 0
    %3401 = vmatprep.subr.bf16.mxu0 0
    %3402 = vmatpush1.bf16.msra.mxu0 0
    %3403 = vmatprep.subr.bf16.mxu0 0
    %3404 = vmatpush1.bf16.msra.mxu0 0
    %3405 = vmatprep.subr.bf16.mxu0 0
    %3406 = vmatpush1.bf16.msra.mxu0 0
    %3407 = vmatprep.subr.bf16.mxu0 0
    %3408 = vmatpush1.bf16.msra.mxu0 0
    %3409 = vmatprep.subr.bf16.mxu0 0
    %3410 = vmatpush1.bf16.msra.mxu0 0
    %3411 = vmatprep.mubr.bf16.mxu0 %v3327
    %3412 = vmatmul.mubr.bf16.gmra.mrb[0].mxu0 %v713
    %v3413 = vpop.f32.mrb[0].mxu0
    %v3414 = vadd.f32 0.0, %v3413
    %v3415 = vpop.f32.mrb[0].mxu0
    %v3416 = vpop.f32.mrb[0].mxu0
    %v3417 = vpop.f32.mrb[0].mxu0
    %3418 = vdwg.mxu0
    %v3419 = vadd.f32 %v3146, %v3373
    %v3420 = vadd.f32 %v3147, %v3375
    %v3421 = vadd.f32 %v3148, %v3414
    %v3422 = vld [vmem:[%s3 + $0x75c] sm:$0xcc]
    %v3423 = vld [vmem:[%s3 + $0x764] sm:$0xc]
    %v3424 = vld [vmem:[%s3 + $0x768] sm:$0xff]
    %v3425 = vld [vmem:[%s3 + $0x770] sm:$0xf]
    %v3426 = vld [vmem:[%s3 + $0x774] sm:$0xff]
    %v3427 = vld [vmem:[%s3 + $0x77c] sm:$0xf]
    %v3428 = vld [vmem:[%s3 + $0x780] sm:$0xff]
    %v3429 = vld [vmem:[%s3 + $0x788] sm:$0xf]
    %v3430 = vld [vmem:[%s3 + $0x78c] sm:$0xff]
    %v3431 = vld [vmem:[%s3 + $0x794] sm:$0xf]
    %v3432 = vld [vmem:[%s3 + $0x798] sm:$0xff]
    %v3433 = vld [vmem:[%s3 + $0x7a0] sm:$0xf]
    %v3434 = vld [vmem:[%s3 + $0x7a4] sm:$0xff]
    %v3435 = vld [vmem:[%s3 + $0x7ac] sm:$0xf]
    %v3436 = vld [vmem:[%s3 + $0x7b0] sm:$0xff]
    %v3437 = vld [vmem:[%s3 + $0x7b8] sm:$0xf]
    %v3438 = vld [vmem:[%s3 + $0x7bc] sm:$0xff]
    %v3439 = vld [vmem:[%s3 + $0x7c4] sm:$0xf]
    %v3440 = vld [vmem:[%s3 + $0x7c8] sm:$0xff]
    %v3441 = vld [vmem:[%s3 + $0x7d0] sm:$0xf]
    %v3442 = vld [vmem:[%s3 + $0x7d4] sm:$0xff]
    %v3443 = vld [vmem:[%s3 + $0x7dc] sm:$0xf]
    %v3444 = vld [vmem:[%s3 + $0x7e0] sm:$0xff]
    %v3445 = vld [vmem:[%s3 + $0x7e8] sm:$0xf]
    %v3446 = vld [vmem:[%s3 + $0x7ec] sm:$0xff]
    %v3447 = vld [vmem:[%s3 + $0x7f4] sm:$0xf]
    %v3448 = vld [vmem:[%s3 + $0x7f8] sm:$0xff]
    %v3449 = vld [vmem:[%s3 + $0x800] sm:$0xf]
    %v3450 = vld [vmem:[%s3 + $0x804] sm:$0xff]
    %v3451 = vld [vmem:[%s3 + $0x80c] sm:$0xf]
    %v3452 = vld [vmem:[%s3 + $0x810] sm:$0xff]
    %v3453 = vld [vmem:[%s3 + $0x818] sm:$0xf]
    %v3454 = vld [vmem:[%s3 + $0x81c] sm:$0xff]
    %v3455 = vld [vmem:[%s3 + $0x824] sm:$0xf]
    %v3456 = vld [vmem:[%s3 + $0x828] sm:$0xff]
    %v3457 = vld [vmem:[%s3 + $0x830] sm:$0xf]
    %v3460 = vrot.slane %v713, 1
    %v3461 = vrot.slane %v714, 1
    %v3499 = vunpack.c.l.b16 %v3422
    %v3500 = vunpack.c.h.b16 %v3422
    %v3501 = vunpack.c.l.b16 %v3423
    %v3502 = vunpack.c.l.b16 %v3424
    %v3503 = vunpack.c.h.b16 %v3424
    %v3504 = vunpack.c.l.b16 %v3425
    %v3505 = vunpack.c.l.b16 %v3426
    %v3506 = vunpack.c.h.b16 %v3426
    %v3507 = vunpack.c.l.b16 %v3427
    %v3508 = vunpack.c.l.b16 %v3428
    %v3509 = vunpack.c.h.b16 %v3428
    %v3510 = vunpack.c.l.b16 %v3429
    %v3511 = vunpack.c.l.b16 %v3430
    %v3512 = vunpack.c.h.b16 %v3430
    %v3513 = vunpack.c.l.b16 %v3431
    %v3514 = vunpack.c.l.b16 %v3432
    %v3515 = vunpack.c.h.b16 %v3432
    %v3516 = vunpack.c.l.b16 %v3433
    %v3517 = vunpack.c.l.b16 %v3434
    %v3518 = vunpack.c.h.b16 %v3434
    %v3519 = vunpack.c.l.b16 %v3435
    %v3520 = vunpack.c.l.b16 %v3436
    %v3521 = vunpack.c.h.b16 %v3436
    %v3522 = vunpack.c.l.b16 %v3437
    %v3523 = vunpack.c.l.b16 %v3438
    %v3524 = vunpack.c.h.b16 %v3438
    %v3525 = vunpack.c.l.b16 %v3439
    %v3526 = vunpack.c.l.b16 %v3440
    %v3527 = vunpack.c.h.b16 %v3440
    %v3528 = vunpack.c.l.b16 %v3441
    %v3529 = vunpack.c.l.b16 %v3442
    %v3530 = vunpack.c.h.b16 %v3442
    %v3531 = vunpack.c.l.b16 %v3443
    %v3532 = vunpack.c.l.b16 %v3444
    %v3533 = vunpack.c.h.b16 %v3444
    %v3534 = vunpack.c.l.b16 %v3445
    %v3535 = vunpack.c.l.b16 %v3446
    %v3536 = vunpack.c.h.b16 %v3446
    %v3537 = vunpack.c.l.b16 %v3447
    %v3538 = vunpack.c.l.b16 %v3448
    %v3539 = vunpack.c.h.b16 %v3448
    %v3540 = vunpack.c.l.b16 %v3449
    %v3541 = vunpack.c.l.b16 %v3450
    %v3542 = vunpack.c.h.b16 %v3450
    %v3543 = vunpack.c.l.b16 %v3451
    %v3544 = vunpack.c.l.b16 %v3452
    %v3545 = vunpack.c.h.b16 %v3452
    %v3546 = vunpack.c.l.b16 %v3453
    %v3547 = vunpack.c.l.b16 %v3454
    %v3548 = vunpack.c.h.b16 %v3454
    %v3549 = vunpack.c.l.b16 %v3455
    %v3550 = vunpack.c.l.b16 %v3456
    %v3551 = vunpack.c.h.b16 %v3456
    %v3552 = vunpack.c.l.b16 %v3457
    %v3553 = vpack.c.b16 %v3502, %v3499
    %v3554 = vpack.c.b16 %v3503, %v3500
    %v3555 = vpack.c.b16 %v3504, %v3501
    %v3556 = vpack.c.b16 %v3508, %v3505
    %v3557 = vpack.c.b16 %v3509, %v3506
    %v3558 = vpack.c.b16 %v3510, %v3507
    %v3559 = vpack.c.b16 %v3514, %v3511
    %v3560 = vpack.c.b16 %v3515, %v3512
    %v3561 = vpack.c.b16 %v3516, %v3513
    %v3562 = vpack.c.b16 %v3520, %v3517
    %v3563 = vpack.c.b16 %v3521, %v3518
    %v3564 = vpack.c.b16 %v3522, %v3519
    %v3565 = vpack.c.b16 %v3526, %v3523
    %v3566 = vpack.c.b16 %v3527, %v3524
    %v3567 = vpack.c.b16 %v3528, %v3525
    %v3568 = vpack.c.b16 %v3532, %v3529
    %v3569 = vpack.c.b16 %v3533, %v3530
    %v3570 = vpack.c.b16 %v3534, %v3531
    %v3571 = vpack.c.b16 %v3538, %v3535
    %v3572 = vpack.c.b16 %v3539, %v3536
    %v3573 = vpack.c.b16 %v3540, %v3537
    %v3574 = vpack.c.b16 %v3544, %v3541
    %v3575 = vpack.c.b16 %v3545, %v3542
    %v3576 = vpack.c.b16 %v3546, %v3543
    %v3577 = vpack.c.b16 %v3550, %v3547
    %v3578 = vpack.c.b16 %v3551, %v3548
    %v3579 = vpack.c.b16 %v3552, %v3549
    %v3580 = vrot.slane %v3553, 2
    %v3581 = vrot.slane %v3556, 2
    %v3582 = vsel %vm1168, %v3580, %v3581
    %v3583 = vrot.slane %v3554, 2
    %v3584 = vrot.slane %v3557, 2
    %v3585 = vsel %vm1168, %v3583, %v3584
    %v3586 = vrot.slane %v3555, 2
    %v3587 = vrot.slane %v3558, 2
    %v3588 = vsel %vm1168, %v3586, %v3587
    %v3589 = vrot.slane %v3559, 2
    %v3590 = vsel %vm1168, %v3581, %v3589
    %v3591 = vrot.slane %v3560, 2
    %v3592 = vsel %vm1168, %v3584, %v3591
    %v3593 = vrot.slane %v3561, 2
    %v3594 = vsel %vm1168, %v3587, %v3593
    %v3595 = vrot.slane %v3562, 2
    %v3596 = vsel %vm1168, %v3589, %v3595
    %v3597 = vrot.slane %v3563, 2
    %v3598 = vsel %vm1168, %v3591, %v3597
    %v3599 = vrot.slane %v3564, 2
    %v3600 = vsel %vm1168, %v3593, %v3599
    %v3601 = vrot.slane %v3565, 2
    %v3602 = vsel %vm1168, %v3595, %v3601
    %v3603 = vrot.slane %v3566, 2
    %v3604 = vsel %vm1168, %v3597, %v3603
    %v3605 = vrot.slane %v3567, 2
    %v3606 = vsel %vm1168, %v3599, %v3605
    %v3607 = vrot.slane %v3568, 2
    %v3608 = vsel %vm1168, %v3601, %v3607
    %v3609 = vrot.slane %v3569, 2
    %v3610 = vsel %vm1168, %v3603, %v3609
    %v3611 = vrot.slane %v3570, 2
    %v3612 = vsel %vm1168, %v3605, %v3611
    %v3613 = vrot.slane %v3571, 2
    %v3614 = vsel %vm1168, %v3607, %v3613
    %v3615 = vrot.slane %v3572, 2
    %v3616 = vsel %vm1168, %v3609, %v3615
    %v3617 = vrot.slane %v3573, 2
    %v3618 = vsel %vm1168, %v3611, %v3617
    %v3619 = vrot.slane %v3574, 2
    %v3620 = vsel %vm1168, %v3613, %v3619
    %v3621 = vrot.slane %v3575, 2
    %v3622 = vsel %vm1168, %v3615, %v3621
    %v3623 = vrot.slane %v3576, 2
    %v3624 = vsel %vm1168, %v3617, %v3623
    %v3625 = vrot.slane %v3577, 2
    %v3626 = vsel %vm1168, %v3619, %v3625
    %v3627 = vrot.slane %v3578, 2
    %v3628 = vsel %vm1168, %v3621, %v3627
    %v3629 = vrot.slane %v3579, 2
    %v3630 = vsel %vm1168, %v3623, %v3629
    %v3656 = vsel %vm912, %v3461, 0
    %v3659 = vsel %vm916, %v3625, 0
    %v3662 = vsel %vm916, %v3627, 0
    %v3665 = vsel %vm916, %v3629, 0
    %3667 = vmatprep.subr.bf16.mxu0 %v3585
    %3668 = vmatpush1.bf16.msra.mxu0 %v3582
    %3669 = vmatprep.subr.bf16.mxu0 %v3592
    %3670 = vmatpush1.bf16.msra.mxu0 %v3590
    %3671 = vmatprep.subr.bf16.mxu0 %v3598
    %3672 = vmatpush1.bf16.msra.mxu0 %v3596
    %3673 = vmatprep.subr.bf16.mxu0 %v3604
    %3674 = vmatpush1.bf16.msra.mxu0 %v3602
    %3675 = vmatprep.subr.bf16.mxu0 %v3610
    %3676 = vmatpush1.bf16.msra.mxu0 %v3608
    %3677 = vmatprep.subr.bf16.mxu0 %v3616
    %3678 = vmatpush1.bf16.msra.mxu0 %v3614
    %3679 = vmatprep.subr.bf16.mxu0 %v3622
    %3680 = vmatpush1.bf16.msra.mxu0 %v3620
    %3681 = vmatprep.subr.bf16.mxu0 %v3628
    %3682 = vmatpush1.bf16.msra.mxu0 %v3626
    %3683 = vmatprep.subr.bf16.mxu0 %v3662
    %3684 = vmatpush1.bf16.msra.mxu0 %v3659
    %3685 = vmatprep.subr.bf16.mxu0 0
    %3686 = vmatpush1.bf16.msra.mxu0 0
    %3687 = vmatprep.subr.bf16.mxu0 0
    %3688 = vmatpush1.bf16.msra.mxu0 0
    %3689 = vmatprep.subr.bf16.mxu0 0
    %3690 = vmatpush1.bf16.msra.mxu0 0
    %3691 = vmatprep.subr.bf16.mxu0 0
    %3692 = vmatpush1.bf16.msra.mxu0 0
    %3693 = vmatprep.subr.bf16.mxu0 0
    %3694 = vmatpush1.bf16.msra.mxu0 0
    %3695 = vmatprep.subr.bf16.mxu0 0
    %3696 = vmatpush1.bf16.msra.mxu0 0
    %3697 = vmatprep.subr.bf16.mxu0 0
    %3698 = vmatpush1.bf16.msra.mxu0 0
    %3699 = vmatprep.mubr.bf16.mxu0 %v3656
    %3700 = vmatmul.mubr.bf16.gmra.mrb[0].mxu0 %v3460
    %v3701 = vpop.f32.mrb[0].mxu0
    %v3702 = vadd.f32 0.0, %v3701
    %v3703 = vpop.f32.mrb[0].mxu0
    %v3704 = vadd.f32 0.0, %v3703
    %v3705 = vpop.f32.mrb[0].mxu0
    %v3706 = vpop.f32.mrb[0].mxu0
    %3707 = vdwg.mxu0
    %3708 = vmatprep.subr.bf16.mxu0 0
    %3709 = vmatpush1.bf16.msra.mxu0 %v3588
    %3710 = vmatprep.subr.bf16.mxu0 0
    %3711 = vmatpush1.bf16.msra.mxu0 %v3594
    %3712 = vmatprep.subr.bf16.mxu0 0
    %3713 = vmatpush1.bf16.msra.mxu0 %v3600
    %3714 = vmatprep.subr.bf16.mxu0 0
    %3715 = vmatpush1.bf16.msra.mxu0 %v3606
    %3716 = vmatprep.subr.bf16.mxu0 0
    %3717 = vmatpush1.bf16.msra.mxu0 %v3612
    %3718 = vmatprep.subr.bf16.mxu0 0
    %3719 = vmatpush1.bf16.msra.mxu0 %v3618
    %3720 = vmatprep.subr.bf16.mxu0 0
    %3721 = vmatpush1.bf16.msra.mxu0 %v3624
    %3722 = vmatprep.subr.bf16.mxu0 0
    %3723 = vmatpush1.bf16.msra.mxu0 %v3630
    %3724 = vmatprep.subr.bf16.mxu0 0
    %3725 = vmatpush1.bf16.msra.mxu0 %v3665
    %3726 = vmatprep.subr.bf16.mxu0 0
    %3727 = vmatpush1.bf16.msra.mxu0 0
    %3728 = vmatprep.subr.bf16.mxu0 0
    %3729 = vmatpush1.bf16.msra.mxu0 0
    %3730 = vmatprep.subr.bf16.mxu0 0
    %3731 = vmatpush1.bf16.msra.mxu0 0
    %3732 = vmatprep.subr.bf16.mxu0 0
    %3733 = vmatpush1.bf16.msra.mxu0 0
    %3734 = vmatprep.subr.bf16.mxu0 0
    %3735 = vmatpush1.bf16.msra.mxu0 0
    %3736 = vmatprep.subr.bf16.mxu0 0
    %3737 = vmatpush1.bf16.msra.mxu0 0
    %3738 = vmatprep.subr.bf16.mxu0 0
    %3739 = vmatpush1.bf16.msra.mxu0 0
    %3740 = vmatprep.mubr.bf16.mxu0 %v3656
    %3741 = vmatmul.mubr.bf16.gmra.mrb[0].mxu0 %v3460
    %v3742 = vpop.f32.mrb[0].mxu0
    %v3743 = vadd.f32 0.0, %v3742
    %v3744 = vpop.f32.mrb[0].mxu0
    %v3745 = vpop.f32.mrb[0].mxu0
    %v3746 = vpop.f32.mrb[0].mxu0
    %3747 = vdwg.mxu0
    %v3748 = vadd.f32 %v3419, %v3702
    %v3749 = vadd.f32 %v3420, %v3704
    %v3750 = vadd.f32 %v3421, %v3743
    %v3751 = vld [vmem:[%s3 + $0x834] sm:$0xff]
    %v3752 = vld [vmem:[%s3 + $0x83c] sm:$0xf]
    %v3753 = vld [vmem:[%s3 + $0x840] sm:$0xff]
    %v3754 = vld [vmem:[%s3 + $0x848] sm:$0xf]
    %v3755 = vld [vmem:[%s3 + $0x84c] sm:$0xff]
    %v3756 = vld [vmem:[%s3 + $0x854] sm:$0xf]
    %v3757 = vld [vmem:[%s3 + $0x858] sm:$0xff]
    %v3758 = vld [vmem:[%s3 + $0x860] sm:$0xf]
    %v3759 = vld [vmem:[%s3 + $0x864] sm:$0xff]
    %v3760 = vld [vmem:[%s3 + $0x86c] sm:$0xf]
    %v3761 = vld [vmem:[%s3 + $0x870] sm:$0xff]
    %v3762 = vld [vmem:[%s3 + $0x878] sm:$0xf]
    %v3763 = vld [vmem:[%s3 + $0x87c] sm:$0xff]
    %v3764 = vld [vmem:[%s3 + $0x884] sm:$0xf]
    %v3765 = vld [vmem:[%s3 + $0x888] sm:$0xff]
    %v3766 = vld [vmem:[%s3 + $0x890] sm:$0xf]
    %v3767 = vld [vmem:[%s3 + $0x894] sm:$0xff]
    %v3768 = vld [vmem:[%s3 + $0x89c] sm:$0xf]
    %v3769 = vld [vmem:[%s3 + $0x8a0] sm:$0xff]
    %v3770 = vld [vmem:[%s3 + $0x8a8] sm:$0xf]
    %v3771 = vld [vmem:[%s3 + $0x8ac] sm:$0xff]
    %v3772 = vld [vmem:[%s3 + $0x8b4] sm:$0xf]
    %v3773 = vld [vmem:[%s3 + $0x8b8] sm:$0xff]
    %v3774 = vld [vmem:[%s3 + $0x8c0] sm:$0xf]
    %v3775 = vld [vmem:[%s3 + $0x8c4] sm:$0xff]
    %v3776 = vld [vmem:[%s3 + $0x8cc] sm:$0xf]
    %v3777 = vld [vmem:[%s3 + $0x8d0] sm:$0xff]
    %v3778 = vld [vmem:[%s3 + $0x8d8] sm:$0xf]
    %v3779 = vld [vmem:[%s3 + $0x8dc] sm:$0xff]
    %v3780 = vld [vmem:[%s3 + $0x8e4] sm:$0xf]
    %v3781 = vld [vmem:[%s3 + $0x8e8] sm:$0xff]
    %v3782 = vld [vmem:[%s3 + $0x8f0] sm:$0xf]
    %v3783 = vld [vmem:[%s3 + $0x8f4] sm:$0xff]
    %v3784 = vld [vmem:[%s3 + $0x8fc] sm:$0xf]
    %v3785 = vld [vmem:[%s3 + $0x900] sm:$0x33]
    %v3786 = vld [vmem:[%s3 + $0x908] sm:$0x3]
    %v3787 = vrot.slane %v713, 2
    %v3788 = vrot.slane %v714, 2
    %v3826 = vunpack.c.l.b16 %v3751
    %v3827 = vunpack.c.h.b16 %v3751
    %v3828 = vunpack.c.l.b16 %v3752
    %v3829 = vunpack.c.l.b16 %v3753
    %v3830 = vunpack.c.h.b16 %v3753
    %v3831 = vunpack.c.l.b16 %v3754
    %v3832 = vunpack.c.l.b16 %v3755
    %v3833 = vunpack.c.h.b16 %v3755
    %v3834 = vunpack.c.l.b16 %v3756
    %v3835 = vunpack.c.l.b16 %v3757
    %v3836 = vunpack.c.h.b16 %v3757
    %v3837 = vunpack.c.l.b16 %v3758
    %v3838 = vunpack.c.l.b16 %v3759
    %v3839 = vunpack.c.h.b16 %v3759
    %v3840 = vunpack.c.l.b16 %v3760
    %v3841 = vunpack.c.l.b16 %v3761
    %v3842 = vunpack.c.h.b16 %v3761
    %v3843 = vunpack.c.l.b16 %v3762
    %v3844 = vunpack.c.l.b16 %v3763
    %v3845 = vunpack.c.h.b16 %v3763
    %v3846 = vunpack.c.l.b16 %v3764
    %v3847 = vunpack.c.l.b16 %v3765
    %v3848 = vunpack.c.h.b16 %v3765
    %v3849 = vunpack.c.l.b16 %v3766
    %v3850 = vunpack.c.l.b16 %v3767
    %v3851 = vunpack.c.h.b16 %v3767
    %v3852 = vunpack.c.l.b16 %v3768
    %v3853 = vunpack.c.l.b16 %v3769
    %v3854 = vunpack.c.h.b16 %v3769
    %v3855 = vunpack.c.l.b16 %v3770
    %v3856 = vunpack.c.l.b16 %v3771
    %v3857 = vunpack.c.h.b16 %v3771
    %v3858 = vunpack.c.l.b16 %v3772
    %v3859 = vunpack.c.l.b16 %v3773
    %v3860 = vunpack.c.h.b16 %v3773
    %v3861 = vunpack.c.l.b16 %v3774
    %v3862 = vunpack.c.l.b16 %v3775
    %v3863 = vunpack.c.h.b16 %v3775
    %v3864 = vunpack.c.l.b16 %v3776
    %v3865 = vunpack.c.l.b16 %v3777
    %v3866 = vunpack.c.h.b16 %v3777
    %v3867 = vunpack.c.l.b16 %v3778
    %v3868 = vunpack.c.l.b16 %v3779
    %v3869 = vunpack.c.h.b16 %v3779
    %v3870 = vunpack.c.l.b16 %v3780
    %v3871 = vunpack.c.l.b16 %v3781
    %v3872 = vunpack.c.h.b16 %v3781
    %v3873 = vunpack.c.l.b16 %v3782
    %v3874 = vunpack.c.l.b16 %v3783
    %v3875 = vunpack.c.h.b16 %v3783
    %v3876 = vunpack.c.l.b16 %v3784
    %v3877 = vunpack.c.l.b16 %v3785
    %v3878 = vunpack.c.h.b16 %v3785
    %v3879 = vunpack.c.l.b16 %v3786
    %v3880 = vpack.c.b16 %v3829, %v3826
    %v3881 = vpack.c.b16 %v3830, %v3827
    %v3882 = vpack.c.b16 %v3831, %v3828
    %v3883 = vpack.c.b16 %v3835, %v3832
    %v3884 = vpack.c.b16 %v3836, %v3833
    %v3885 = vpack.c.b16 %v3837, %v3834
    %v3886 = vpack.c.b16 %v3841, %v3838
    %v3887 = vpack.c.b16 %v3842, %v3839
    %v3888 = vpack.c.b16 %v3843, %v3840
    %v3889 = vpack.c.b16 %v3847, %v3844
    %v3890 = vpack.c.b16 %v3848, %v3845
    %v3891 = vpack.c.b16 %v3849, %v3846
    %v3892 = vpack.c.b16 %v3853, %v3850
    %v3893 = vpack.c.b16 %v3854, %v3851
    %v3894 = vpack.c.b16 %v3855, %v3852
    %v3895 = vpack.c.b16 %v3859, %v3856
    %v3896 = vpack.c.b16 %v3860, %v3857
    %v3897 = vpack.c.b16 %v3861, %v3858
    %v3898 = vpack.c.b16 %v3865, %v3862
    %v3899 = vpack.c.b16 %v3866, %v3863
    %v3900 = vpack.c.b16 %v3867, %v3864
    %v3901 = vpack.c.b16 %v3871, %v3868
    %v3902 = vpack.c.b16 %v3872, %v3869
    %v3903 = vpack.c.b16 %v3873, %v3870
    %v3904 = vpack.c.b16 %v3877, %v3874
    %v3905 = vpack.c.b16 %v3878, %v3875
    %v3906 = vpack.c.b16 %v3879, %v3876
    %v3932 = vsel %vm912, %v3788, 0
    %v3935 = vsel %vm916, %v3904, 0
    %v3938 = vsel %vm916, %v3905, 0
    %v3941 = vsel %vm916, %v3906, 0
    %3943 = vmatprep.subr.bf16.mxu0 %v3881
    %3944 = vmatpush1.bf16.msra.mxu0 %v3880
    %3945 = vmatprep.subr.bf16.mxu0 %v3884
    %3946 = vmatpush1.bf16.msra.mxu0 %v3883
    %3947 = vmatprep.subr.bf16.mxu0 %v3887
    %3948 = vmatpush1.bf16.msra.mxu0 %v3886
    %3949 = vmatprep.subr.bf16.mxu0 %v3890
    %3950 = vmatpush1.bf16.msra.mxu0 %v3889
    %3951 = vmatprep.subr.bf16.mxu0 %v3893
    %3952 = vmatpush1.bf16.msra.mxu0 %v3892
    %3953 = vmatprep.subr.bf16.mxu0 %v3896
    %3954 = vmatpush1.bf16.msra.mxu0 %v3895
    %3955 = vmatprep.subr.bf16.mxu0 %v3899
    %3956 = vmatpush1.bf16.msra.mxu0 %v3898
    %3957 = vmatprep.subr.bf16.mxu0 %v3902
    %3958 = vmatpush1.bf16.msra.mxu0 %v3901
    %3959 = vmatprep.subr.bf16.mxu0 %v3938
    %3960 = vmatpush1.bf16.msra.mxu0 %v3935
    %3961 = vmatprep.subr.bf16.mxu0 0
    %3962 = vmatpush1.bf16.msra.mxu0 0
    %3963 = vmatprep.subr.bf16.mxu0 0
    %3964 = vmatpush1.bf16.msra.mxu0 0
    %3965 = vmatprep.subr.bf16.mxu0 0
    %3966 = vmatpush1.bf16.msra.mxu0 0
    %3967 = vmatprep.subr.bf16.mxu0 0
    %3968 = vmatpush1.bf16.msra.mxu0 0
    %3969 = vmatprep.subr.bf16.mxu0 0
    %3970 = vmatpush1.bf16.msra.mxu0 0
    %3971 = vmatprep.subr.bf16.mxu0 0
    %3972 = vmatpush1.bf16.msra.mxu0 0
    %3973 = vmatprep.subr.bf16.mxu0 0
    %3974 = vmatpush1.bf16.msra.mxu0 0
    %3975 = vmatprep.mubr.bf16.mxu0 %v3932
    %3976 = vmatmul.mubr.bf16.gmra.mrb[0].mxu0 %v3787
    %v3977 = vpop.f32.mrb[0].mxu0
    %v3978 = vadd.f32 0.0, %v3977
    %v3979 = vpop.f32.mrb[0].mxu0
    %v3980 = vadd.f32 0.0, %v3979
    %v3981 = vpop.f32.mrb[0].mxu0
    %v3982 = vpop.f32.mrb[0].mxu0
    %3983 = vdwg.mxu0
    %3984 = vmatprep.subr.bf16.mxu0 0
    %3985 = vmatpush1.bf16.msra.mxu0 %v3882
    %3986 = vmatprep.subr.bf16.mxu0 0
    %3987 = vmatpush1.bf16.msra.mxu0 %v3885
    %3988 = vmatprep.subr.bf16.mxu0 0
    %3989 = vmatpush1.bf16.msra.mxu0 %v3888
    %3990 = vmatprep.subr.bf16.mxu0 0
    %3991 = vmatpush1.bf16.msra.mxu0 %v3891
    %3992 = vmatprep.subr.bf16.mxu0 0
    %3993 = vmatpush1.bf16.msra.mxu0 %v3894
    %3994 = vmatprep.subr.bf16.mxu0 0
    %3995 = vmatpush1.bf16.msra.mxu0 %v3897
    %3996 = vmatprep.subr.bf16.mxu0 0
    %3997 = vmatpush1.bf16.msra.mxu0 %v3900
    %3998 = vmatprep.subr.bf16.mxu0 0
    %3999 = vmatpush1.bf16.msra.mxu0 %v3903
    %4000 = vmatprep.subr.bf16.mxu0 0
    %4001 = vmatpush1.bf16.msra.mxu0 %v3941
    %4002 = vmatprep.subr.bf16.mxu0 0
    %4003 = vmatpush1.bf16.msra.mxu0 0
    %4004 = vmatprep.subr.bf16.mxu0 0
    %4005 = vmatpush1.bf16.msra.mxu0 0
    %4006 = vmatprep.subr.bf16.mxu0 0
    %4007 = vmatpush1.bf16.msra.mxu0 0
    %4008 = vmatprep.subr.bf16.mxu0 0
    %4009 = vmatpush1.bf16.msra.mxu0 0
    %4010 = vmatprep.subr.bf16.mxu0 0
    %4011 = vmatpush1.bf16.msra.mxu0 0
    %4012 = vmatprep.subr.bf16.mxu0 0
    %4013 = vmatpush1.bf16.msra.mxu0 0
    %4014 = vmatprep.subr.bf16.mxu0 0
    %4015 = vmatpush1.bf16.msra.mxu0 0
    %4016 = vmatprep.mubr.bf16.mxu0 %v3932
    %4017 = vmatmul.mubr.bf16.gmra.mrb[0].mxu0 %v3787
    %v4018 = vpop.f32.mrb[0].mxu0
    %v4019 = vadd.f32 0.0, %v4018
    %v4020 = vpop.f32.mrb[0].mxu0
    %v4021 = vpop.f32.mrb[0].mxu0
    %v4022 = vpop.f32.mrb[0].mxu0
    %4023 = vdwg.mxu0
    %v4024 = vadd.f32 %v3748, %v3978
    %v4025 = vadd.f32 %v3749, %v3980
    %v4026 = vadd.f32 %v3750, %v4019
    %v4027 = vld [vmem:[%s3 + $0x900] sm:$0xcc]
    %v4028 = vld [vmem:[%s3 + $0x908] sm:$0xc]
    %v4029 = vld [vmem:[%s3 + $0x90c] sm:$0xff]
    %v4030 = vld [vmem:[%s3 + $0x914] sm:$0xf]
    %v4031 = vld [vmem:[%s3 + $0x918] sm:$0xff]
    %v4032 = vld [vmem:[%s3 + $0x920] sm:$0xf]
    %v4033 = vld [vmem:[%s3 + $0x924] sm:$0xff]
    %v4034 = vld [vmem:[%s3 + $0x92c] sm:$0xf]
    %v4035 = vld [vmem:[%s3 + $0x930] sm:$0xff]
    %v4036 = vld [vmem:[%s3 + $0x938] sm:$0xf]
    %v4037 = vld [vmem:[%s3 + $0x93c] sm:$0xff]
    %v4038 = vld [vmem:[%s3 + $0x944] sm:$0xf]
    %v4039 = vld [vmem:[%s3 + $0x948] sm:$0xff]
    %v4040 = vld [vmem:[%s3 + $0x950] sm:$0xf]
    %v4041 = vld [vmem:[%s3 + $0x954] sm:$0xff]
    %v4042 = vld [vmem:[%s3 + $0x95c] sm:$0xf]
    %v4043 = vld [vmem:[%s3 + $0x960] sm:$0xff]
    %v4044 = vld [vmem:[%s3 + $0x968] sm:$0xf]
    %v4045 = vld [vmem:[%s3 + $0x96c] sm:$0xff]
    %v4046 = vld [vmem:[%s3 + $0x974] sm:$0xf]
    %v4047 = vld [vmem:[%s3 + $0x978] sm:$0xff]
    %v4048 = vld [vmem:[%s3 + $0x980] sm:$0xf]
    %v4049 = vld [vmem:[%s3 + $0x984] sm:$0xff]
    %v4050 = vld [vmem:[%s3 + $0x98c] sm:$0xf]
    %v4051 = vld [vmem:[%s3 + $0x990] sm:$0xff]
    %v4052 = vld [vmem:[%s3 + $0x998] sm:$0xf]
    %v4053 = vld [vmem:[%s3 + $0x99c] sm:$0xff]
    %v4054 = vld [vmem:[%s3 + $0x9a4] sm:$0xf]
    %v4055 = vld [vmem:[%s3 + $0x9a8] sm:$0xff]
    %v4056 = vld [vmem:[%s3 + $0x9b0] sm:$0xf]
    %v4057 = vld [vmem:[%s3 + $0x9b4] sm:$0xff]
    %v4058 = vld [vmem:[%s3 + $0x9bc] sm:$0xf]
    %v4059 = vld [vmem:[%s3 + $0x9c0] sm:$0xff]
    %v4060 = vld [vmem:[%s3 + $0x9c8] sm:$0xf]
    %v4061 = vld [vmem:[%s3 + $0x9cc] sm:$0xff]
    %v4062 = vld [vmem:[%s3 + $0x9d4] sm:$0xf]
    %v4063 = vrot.slane %v713, 3
    %v4064 = vrot.slane %v714, 3
    %v4102 = vunpack.c.l.b16 %v4027
    %v4103 = vunpack.c.h.b16 %v4027
    %v4104 = vunpack.c.l.b16 %v4028
    %v4105 = vunpack.c.l.b16 %v4029
    %v4106 = vunpack.c.h.b16 %v4029
    %v4107 = vunpack.c.l.b16 %v4030
    %v4108 = vunpack.c.l.b16 %v4031
    %v4109 = vunpack.c.h.b16 %v4031
    %v4110 = vunpack.c.l.b16 %v4032
    %v4111 = vunpack.c.l.b16 %v4033
    %v4112 = vunpack.c.h.b16 %v4033
    %v4113 = vunpack.c.l.b16 %v4034
    %v4114 = vunpack.c.l.b16 %v4035
    %v4115 = vunpack.c.h.b16 %v4035
    %v4116 = vunpack.c.l.b16 %v4036
    %v4117 = vunpack.c.l.b16 %v4037
    %v4118 = vunpack.c.h.b16 %v4037
    %v4119 = vunpack.c.l.b16 %v4038
    %v4120 = vunpack.c.l.b16 %v4039
    %v4121 = vunpack.c.h.b16 %v4039
    %v4122 = vunpack.c.l.b16 %v4040
    %v4123 = vunpack.c.l.b16 %v4041
    %v4124 = vunpack.c.h.b16 %v4041
    %v4125 = vunpack.c.l.b16 %v4042
    %v4126 = vunpack.c.l.b16 %v4043
    %v4127 = vunpack.c.h.b16 %v4043
    %v4128 = vunpack.c.l.b16 %v4044
    %v4129 = vunpack.c.l.b16 %v4045
    %v4130 = vunpack.c.h.b16 %v4045
    %v4131 = vunpack.c.l.b16 %v4046
    %v4132 = vunpack.c.l.b16 %v4047
    %v4133 = vunpack.c.h.b16 %v4047
    %v4134 = vunpack.c.l.b16 %v4048
    %v4135 = vunpack.c.l.b16 %v4049
    %v4136 = vunpack.c.h.b16 %v4049
    %v4137 = vunpack.c.l.b16 %v4050
    %v4138 = vunpack.c.l.b16 %v4051
    %v4139 = vunpack.c.h.b16 %v4051
    %v4140 = vunpack.c.l.b16 %v4052
    %v4141 = vunpack.c.l.b16 %v4053
    %v4142 = vunpack.c.h.b16 %v4053
    %v4143 = vunpack.c.l.b16 %v4054
    %v4144 = vunpack.c.l.b16 %v4055
    %v4145 = vunpack.c.h.b16 %v4055
    %v4146 = vunpack.c.l.b16 %v4056
    %v4147 = vunpack.c.l.b16 %v4057
    %v4148 = vunpack.c.h.b16 %v4057
    %v4149 = vunpack.c.l.b16 %v4058
    %v4150 = vunpack.c.l.b16 %v4059
    %v4151 = vunpack.c.h.b16 %v4059
    %v4152 = vunpack.c.l.b16 %v4060
    %v4153 = vunpack.c.l.b16 %v4061
    %v4154 = vunpack.c.h.b16 %v4061
    %v4155 = vunpack.c.l.b16 %v4062
    %v4156 = vpack.c.b16 %v4105, %v4102
    %v4157 = vpack.c.b16 %v4106, %v4103
    %v4158 = vpack.c.b16 %v4107, %v4104
    %v4159 = vpack.c.b16 %v4111, %v4108
    %v4160 = vpack.c.b16 %v4112, %v4109
    %v4161 = vpack.c.b16 %v4113, %v4110
    %v4162 = vpack.c.b16 %v4117, %v4114
    %v4163 = vpack.c.b16 %v4118, %v4115
    %v4164 = vpack.c.b16 %v4119, %v4116
    %v4165 = vpack.c.b16 %v4123, %v4120
    %v4166 = vpack.c.b16 %v4124, %v4121
    %v4167 = vpack.c.b16 %v4125, %v4122
    %v4168 = vpack.c.b16 %v4129, %v4126
    %v4169 = vpack.c.b16 %v4130, %v4127
    %v4170 = vpack.c.b16 %v4131, %v4128
    %v4171 = vpack.c.b16 %v4135, %v4132
    %v4172 = vpack.c.b16 %v4136, %v4133
    %v4173 = vpack.c.b16 %v4137, %v4134
    %v4174 = vpack.c.b16 %v4141, %v4138
    %v4175 = vpack.c.b16 %v4142, %v4139
    %v4176 = vpack.c.b16 %v4143, %v4140
    %v4177 = vpack.c.b16 %v4147, %v4144
    %v4178 = vpack.c.b16 %v4148, %v4145
    %v4179 = vpack.c.b16 %v4149, %v4146
    %v4180 = vpack.c.b16 %v4153, %v4150
    %v4181 = vpack.c.b16 %v4154, %v4151
    %v4182 = vpack.c.b16 %v4155, %v4152
    %v4183 = vrot.slane %v4156, 2
    %v4184 = vrot.slane %v4159, 2
    %v4185 = vsel %vm1168, %v4183, %v4184
    %v4186 = vrot.slane %v4157, 2
    %v4187 = vrot.slane %v4160, 2
    %v4188 = vsel %vm1168, %v4186, %v4187
    %v4189 = vrot.slane %v4158, 2
    %v4190 = vrot.slane %v4161, 2
    %v4191 = vsel %vm1168, %v4189, %v4190
    %v4192 = vrot.slane %v4162, 2
    %v4193 = vsel %vm1168, %v4184, %v4192
    %v4194 = vrot.slane %v4163, 2
    %v4195 = vsel %vm1168, %v4187, %v4194
    %v4196 = vrot.slane %v4164, 2
    %v4197 = vsel %vm1168, %v4190, %v4196
    %v4198 = vrot.slane %v4165, 2
    %v4199 = vsel %vm1168, %v4192, %v4198
    %v4200 = vrot.slane %v4166, 2
    %v4201 = vsel %vm1168, %v4194, %v4200
    %v4202 = vrot.slane %v4167, 2
    %v4203 = vsel %vm1168, %v4196, %v4202
    %v4204 = vrot.slane %v4168, 2
    %v4205 = vsel %vm1168, %v4198, %v4204
    %v4206 = vrot.slane %v4169, 2
    %v4207 = vsel %vm1168, %v4200, %v4206
    %v4208 = vrot.slane %v4170, 2
    %v4209 = vsel %vm1168, %v4202, %v4208
    %v4210 = vrot.slane %v4171, 2
    %v4211 = vsel %vm1168, %v4204, %v4210
    %v4212 = vrot.slane %v4172, 2
    %v4213 = vsel %vm1168, %v4206, %v4212
    %v4214 = vrot.slane %v4173, 2
    %v4215 = vsel %vm1168, %v4208, %v4214
    %v4216 = vrot.slane %v4174, 2
    %v4217 = vsel %vm1168, %v4210, %v4216
    %v4218 = vrot.slane %v4175, 2
    %v4219 = vsel %vm1168, %v4212, %v4218
    %v4220 = vrot.slane %v4176, 2
    %v4221 = vsel %vm1168, %v4214, %v4220
    %v4222 = vrot.slane %v4177, 2
    %v4223 = vsel %vm1168, %v4216, %v4222
    %v4224 = vrot.slane %v4178, 2
    %v4225 = vsel %vm1168, %v4218, %v4224
    %v4226 = vrot.slane %v4179, 2
    %v4227 = vsel %vm1168, %v4220, %v4226
    %v4228 = vrot.slane %v4180, 2
    %v4229 = vsel %vm1168, %v4222, %v4228
    %v4230 = vrot.slane %v4181, 2
    %v4231 = vsel %vm1168, %v4224, %v4230
    %v4232 = vrot.slane %v4182, 2
    %v4233 = vsel %vm1168, %v4226, %v4232
    %v4259 = vsel %vm912, %v4064, 0
    %v4262 = vsel %vm916, %v4228, 0
    %v4265 = vsel %vm916, %v4230, 0
    %v4268 = vsel %vm916, %v4232, 0
    %4270 = vmatprep.subr.bf16.mxu0 %v4188
    %4271 = vmatpush1.bf16.msra.mxu0 %v4185
    %4272 = vmatprep.subr.bf16.mxu0 %v4195
    %4273 = vmatpush1.bf16.msra.mxu0 %v4193
    %4274 = vmatprep.subr.bf16.mxu0 %v4201
    %4275 = vmatpush1.bf16.msra.mxu0 %v4199
    %4276 = vmatprep.subr.bf16.mxu0 %v4207
    %4277 = vmatpush1.bf16.msra.mxu0 %v4205
    %4278 = vmatprep.subr.bf16.mxu0 %v4213
    %4279 = vmatpush1.bf16.msra.mxu0 %v4211
    %4280 = vmatprep.subr.bf16.mxu0 %v4219
    %4281 = vmatpush1.bf16.msra.mxu0 %v4217
    %4282 = vmatprep.subr.bf16.mxu0 %v4225
    %4283 = vmatpush1.bf16.msra.mxu0 %v4223
    %4284 = vmatprep.subr.bf16.mxu0 %v4231
    %4285 = vmatpush1.bf16.msra.mxu0 %v4229
    %4286 = vmatprep.subr.bf16.mxu0 %v4265
    %4287 = vmatpush1.bf16.msra.mxu0 %v4262
    %4288 = vmatprep.subr.bf16.mxu0 0
    %4289 = vmatpush1.bf16.msra.mxu0 0
    %4290 = vmatprep.subr.bf16.mxu0 0
    %4291 = vmatpush1.bf16.msra.mxu0 0
    %4292 = vmatprep.subr.bf16.mxu0 0
    %4293 = vmatpush1.bf16.msra.mxu0 0
    %4294 = vmatprep.subr.bf16.mxu0 0
    %4295 = vmatpush1.bf16.msra.mxu0 0
    %4296 = vmatprep.subr.bf16.mxu0 0
    %4297 = vmatpush1.bf16.msra.mxu0 0
    %4298 = vmatprep.subr.bf16.mxu0 0
    %4299 = vmatpush1.bf16.msra.mxu0 0
    %4300 = vmatprep.subr.bf16.mxu0 0
    %4301 = vmatpush1.bf16.msra.mxu0 0
    %4302 = vmatprep.mubr.bf16.mxu0 %v4259
    %4303 = vmatmul.mubr.bf16.gmra.mrb[0].mxu0 %v4063
    %v4304 = vpop.f32.mrb[0].mxu0
    %v4305 = vadd.f32 0.0, %v4304
    %v4306 = vpop.f32.mrb[0].mxu0
    %v4307 = vadd.f32 0.0, %v4306
    %v4308 = vpop.f32.mrb[0].mxu0
    %v4309 = vpop.f32.mrb[0].mxu0
    %4310 = vdwg.mxu0
    %4311 = vmatprep.subr.bf16.mxu0 0
    %4312 = vmatpush1.bf16.msra.mxu0 %v4191
    %4313 = vmatprep.subr.bf16.mxu0 0
    %4314 = vmatpush1.bf16.msra.mxu0 %v4197
    %4315 = vmatprep.subr.bf16.mxu0 0
    %4316 = vmatpush1.bf16.msra.mxu0 %v4203
    %4317 = vmatprep.subr.bf16.mxu0 0
    %4318 = vmatpush1.bf16.msra.mxu0 %v4209
    %4319 = vmatprep.subr.bf16.mxu0 0
    %4320 = vmatpush1.bf16.msra.mxu0 %v4215
    %4321 = vmatprep.subr.bf16.mxu0 0
    %4322 = vmatpush1.bf16.msra.mxu0 %v4221
    %4323 = vmatprep.subr.bf16.mxu0 0
    %4324 = vmatpush1.bf16.msra.mxu0 %v4227
    %4325 = vmatprep.subr.bf16.mxu0 0
    %4326 = vmatpush1.bf16.msra.mxu0 %v4233
    %4327 = vmatprep.subr.bf16.mxu0 0
    %4328 = vmatpush1.bf16.msra.mxu0 %v4268
    %4329 = vmatprep.subr.bf16.mxu0 0
    %4330 = vmatpush1.bf16.msra.mxu0 0
    %4331 = vmatprep.subr.bf16.mxu0 0
    %4332 = vmatpush1.bf16.msra.mxu0 0
    %4333 = vmatprep.subr.bf16.mxu0 0
    %4334 = vmatpush1.bf16.msra.mxu0 0
    %4335 = vmatprep.subr.bf16.mxu0 0
    %4336 = vmatpush1.bf16.msra.mxu0 0
    %4337 = vmatprep.subr.bf16.mxu0 0
    %4338 = vmatpush1.bf16.msra.mxu0 0
    %4339 = vmatprep.subr.bf16.mxu0 0
    %4340 = vmatpush1.bf16.msra.mxu0 0
    %4341 = vmatprep.subr.bf16.mxu0 0
    %4342 = vmatpush1.bf16.msra.mxu0 0
    %4343 = vmatprep.mubr.bf16.mxu0 %v4259
    %4344 = vmatmul.mubr.bf16.gmra.mrb[0].mxu0 %v4063
    %v4345 = vpop.f32.mrb[0].mxu0
    %v4346 = vadd.f32 0.0, %v4345
    %v4347 = vpop.f32.mrb[0].mxu0
    %v4348 = vpop.f32.mrb[0].mxu0
    %v4349 = vpop.f32.mrb[0].mxu0
    %4350 = vdwg.mxu0
    %v4351 = vadd.f32 %v4024, %v4305
    %v4352 = vadd.f32 %v4025, %v4307
    %v4353 = vadd.f32 %v4026, %v4346
    %v4354 = vld [vmem:[%s3 + $0x9d8] sm:$0xff]
    %v4355 = vld [vmem:[%s3 + $0x9e0] sm:$0xf]
    %v4356 = vld [vmem:[%s3 + $0x9e4] sm:$0xff]
    %v4357 = vld [vmem:[%s3 + $0x9ec] sm:$0xf]
    %v4358 = vld [vmem:[%s3 + $0x9f0] sm:$0xff]
    %v4359 = vld [vmem:[%s3 + $0x9f8] sm:$0xf]
    %v4360 = vld [vmem:[%s3 + $0x9fc] sm:$0xff]
    %v4361 = vld [vmem:[%s3 + $0xa04] sm:$0xf]
    %v4362 = vld [vmem:[%s3 + $0xa08] sm:$0xff]
    %v4363 = vld [vmem:[%s3 + $0xa10] sm:$0xf]
    %v4364 = vld [vmem:[%s3 + $0xa14] sm:$0xff]
    %v4365 = vld [vmem:[%s3 + $0xa1c] sm:$0xf]
    %v4366 = vld [vmem:[%s3 + $0xa20] sm:$0xff]
    %v4367 = vld [vmem:[%s3 + $0xa28] sm:$0xf]
    %v4368 = vld [vmem:[%s3 + $0xa2c] sm:$0xff]
    %v4369 = vld [vmem:[%s3 + $0xa34] sm:$0xf]
    %v4370 = vld [vmem:[%s3 + $0xa38] sm:$0xff]
    %v4371 = vld [vmem:[%s3 + $0xa40] sm:$0xf]
    %v4372 = vld [vmem:[%s3 + $0xa44] sm:$0xff]
    %v4373 = vld [vmem:[%s3 + $0xa4c] sm:$0xf]
    %v4374 = vld [vmem:[%s3 + $0xa50] sm:$0xff]
    %v4375 = vld [vmem:[%s3 + $0xa58] sm:$0xf]
    %v4376 = vld [vmem:[%s3 + $0xa5c] sm:$0xff]
    %v4377 = vld [vmem:[%s3 + $0xa64] sm:$0xf]
    %v4378 = vld [vmem:[%s3 + $0xa68] sm:$0xff]
    %v4379 = vld [vmem:[%s3 + $0xa70] sm:$0xf]
    %v4380 = vld [vmem:[%s3 + $0xa74] sm:$0xff]
    %v4381 = vld [vmem:[%s3 + $0xa7c] sm:$0xf]
    %v4382 = vld [vmem:[%s3 + $0xa80] sm:$0xff]
    %v4383 = vld [vmem:[%s3 + $0xa88] sm:$0xf]
    %v4384 = vld [vmem:[%s3 + $0xa8c] sm:$0xff]
    %v4385 = vld [vmem:[%s3 + $0xa94] sm:$0xf]
    %v4386 = vld [vmem:[%s3 + $0xa98] sm:$0xff]
    %v4387 = vld [vmem:[%s3 + $0xaa0] sm:$0xf]
    %v4388 = vld [vmem:[%s3 + $0xaa4] sm:$0x33]
    %v4389 = vld [vmem:[%s3 + $0xaac] sm:$0x3]
    %v4390 = vrot.slane %v713, 4
    %v4391 = vrot.slane %v714, 4
    %v4429 = vunpack.c.l.b16 %v4354
    %v4430 = vunpack.c.h.b16 %v4354
    %v4431 = vunpack.c.l.b16 %v4355
    %v4432 = vunpack.c.l.b16 %v4356
    %v4433 = vunpack.c.h.b16 %v4356
    %v4434 = vunpack.c.l.b16 %v4357
    %v4435 = vunpack.c.l.b16 %v4358
    %v4436 = vunpack.c.h.b16 %v4358
    %v4437 = vunpack.c.l.b16 %v4359
    %v4438 = vunpack.c.l.b16 %v4360
    %v4439 = vunpack.c.h.b16 %v4360
    %v4440 = vunpack.c.l.b16 %v4361
    %v4441 = vunpack.c.l.b16 %v4362
    %v4442 = vunpack.c.h.b16 %v4362
    %v4443 = vunpack.c.l.b16 %v4363
    %v4444 = vunpack.c.l.b16 %v4364
    %v4445 = vunpack.c.h.b16 %v4364
    %v4446 = vunpack.c.l.b16 %v4365
    %v4447 = vunpack.c.l.b16 %v4366
    %v4448 = vunpack.c.h.b16 %v4366
    %v4449 = vunpack.c.l.b16 %v4367
    %v4450 = vunpack.c.l.b16 %v4368
    %v4451 = vunpack.c.h.b16 %v4368
    %v4452 = vunpack.c.l.b16 %v4369
    %v4453 = vunpack.c.l.b16 %v4370
    %v4454 = vunpack.c.h.b16 %v4370
    %v4455 = vunpack.c.l.b16 %v4371
    %v4456 = vunpack.c.l.b16 %v4372
    %v4457 = vunpack.c.h.b16 %v4372
    %v4458 = vunpack.c.l.b16 %v4373
    %v4459 = vunpack.c.l.b16 %v4374
    %v4460 = vunpack.c.h.b16 %v4374
    %v4461 = vunpack.c.l.b16 %v4375
    %v4462 = vunpack.c.l.b16 %v4376
    %v4463 = vunpack.c.h.b16 %v4376
    %v4464 = vunpack.c.l.b16 %v4377
    %v4465 = vunpack.c.l.b16 %v4378
    %v4466 = vunpack.c.h.b16 %v4378
    %v4467 = vunpack.c.l.b16 %v4379
    %v4468 = vunpack.c.l.b16 %v4380
    %v4469 = vunpack.c.h.b16 %v4380
    %v4470 = vunpack.c.l.b16 %v4381
    %v4471 = vunpack.c.l.b16 %v4382
    %v4472 = vunpack.c.h.b16 %v4382
    %v4473 = vunpack.c.l.b16 %v4383
    %v4474 = vunpack.c.l.b16 %v4384
    %v4475 = vunpack.c.h.b16 %v4384
    %v4476 = vunpack.c.l.b16 %v4385
    %v4477 = vunpack.c.l.b16 %v4386
    %v4478 = vunpack.c.h.b16 %v4386
    %v4479 = vunpack.c.l.b16 %v4387
    %v4480 = vunpack.c.l.b16 %v4388
    %v4481 = vunpack.c.h.b16 %v4388
    %v4482 = vunpack.c.l.b16 %v4389
    %v4483 = vpack.c.b16 %v4432, %v4429
    %v4484 = vpack.c.b16 %v4433, %v4430
    %v4485 = vpack.c.b16 %v4434, %v4431
    %v4486 = vpack.c.b16 %v4438, %v4435
    %v4487 = vpack.c.b16 %v4439, %v4436
    %v4488 = vpack.c.b16 %v4440, %v4437
    %v4489 = vpack.c.b16 %v4444, %v4441
    %v4490 = vpack.c.b16 %v4445, %v4442
    %v4491 = vpack.c.b16 %v4446, %v4443
    %v4492 = vpack.c.b16 %v4450, %v4447
    %v4493 = vpack.c.b16 %v4451, %v4448
    %v4494 = vpack.c.b16 %v4452, %v4449
    %v4495 = vpack.c.b16 %v4456, %v4453
    %v4496 = vpack.c.b16 %v4457, %v4454
    %v4497 = vpack.c.b16 %v4458, %v4455
    %v4498 = vpack.c.b16 %v4462, %v4459
    %v4499 = vpack.c.b16 %v4463, %v4460
    %v4500 = vpack.c.b16 %v4464, %v4461
    %v4501 = vpack.c.b16 %v4468, %v4465
    %v4502 = vpack.c.b16 %v4469, %v4466
    %v4503 = vpack.c.b16 %v4470, %v4467
    %v4504 = vpack.c.b16 %v4474, %v4471
    %v4505 = vpack.c.b16 %v4475, %v4472
    %v4506 = vpack.c.b16 %v4476, %v4473
    %v4507 = vpack.c.b16 %v4480, %v4477
    %v4508 = vpack.c.b16 %v4481, %v4478
    %v4509 = vpack.c.b16 %v4482, %v4479
    %v4535 = vsel %vm912, %v4391, 0
    %v4538 = vsel %vm916, %v4507, 0
    %v4541 = vsel %vm916, %v4508, 0
    %v4544 = vsel %vm916, %v4509, 0
    %4546 = vmatprep.subr.bf16.mxu0 %v4484
    %4547 = vmatpush1.bf16.msra.mxu0 %v4483
    %4548 = vmatprep.subr.bf16.mxu0 %v4487
    %4549 = vmatpush1.bf16.msra.mxu0 %v4486
    %4550 = vmatprep.subr.bf16.mxu0 %v4490
    %4551 = vmatpush1.bf16.msra.mxu0 %v4489
    %4552 = vmatprep.subr.bf16.mxu0 %v4493
    %4553 = vmatpush1.bf16.msra.mxu0 %v4492
    %4554 = vmatprep.subr.bf16.mxu0 %v4496
    %4555 = vmatpush1.bf16.msra.mxu0 %v4495
    %4556 = vmatprep.subr.bf16.mxu0 %v4499
    %4557 = vmatpush1.bf16.msra.mxu0 %v4498
    %4558 = vmatprep.subr.bf16.mxu0 %v4502
    %4559 = vmatpush1.bf16.msra.mxu0 %v4501
    %4560 = vmatprep.subr.bf16.mxu0 %v4505
    %4561 = vmatpush1.bf16.msra.mxu0 %v4504
    %4562 = vmatprep.subr.bf16.mxu0 %v4541
    %4563 = vmatpush1.bf16.msra.mxu0 %v4538
    %4564 = vmatprep.subr.bf16.mxu0 0
    %4565 = vmatpush1.bf16.msra.mxu0 0
    %4566 = vmatprep.subr.bf16.mxu0 0
    %4567 = vmatpush1.bf16.msra.mxu0 0
    %4568 = vmatprep.subr.bf16.mxu0 0
    %4569 = vmatpush1.bf16.msra.mxu0 0
    %4570 = vmatprep.subr.bf16.mxu0 0
    %4571 = vmatpush1.bf16.msra.mxu0 0
    %4572 = vmatprep.subr.bf16.mxu0 0
    %4573 = vmatpush1.bf16.msra.mxu0 0
    %4574 = vmatprep.subr.bf16.mxu0 0
    %4575 = vmatpush1.bf16.msra.mxu0 0
    %4576 = vmatprep.subr.bf16.mxu0 0
    %4577 = vmatpush1.bf16.msra.mxu0 0
    %4578 = vmatprep.mubr.bf16.mxu0 %v4535
    %4579 = vmatmul.mubr.bf16.gmra.mrb[0].mxu0 %v4390
    %v4580 = vpop.f32.mrb[0].mxu0
    %v4581 = vadd.f32 0.0, %v4580
    %v4582 = vpop.f32.mrb[0].mxu0
    %v4583 = vadd.f32 0.0, %v4582
    %v4584 = vpop.f32.mrb[0].mxu0
    %v4585 = vpop.f32.mrb[0].mxu0
    %4586 = vdwg.mxu0
    %4587 = vmatprep.subr.bf16.mxu0 0
    %4588 = vmatpush1.bf16.msra.mxu0 %v4485
    %4589 = vmatprep.subr.bf16.mxu0 0
    %4590 = vmatpush1.bf16.msra.mxu0 %v4488
    %4591 = vmatprep.subr.bf16.mxu0 0
    %4592 = vmatpush1.bf16.msra.mxu0 %v4491
    %4593 = vmatprep.subr.bf16.mxu0 0
    %4594 = vmatpush1.bf16.msra.mxu0 %v4494
    %4595 = vmatprep.subr.bf16.mxu0 0
    %4596 = vmatpush1.bf16.msra.mxu0 %v4497
    %4597 = vmatprep.subr.bf16.mxu0 0
    %4598 = vmatpush1.bf16.msra.mxu0 %v4500
    %4599 = vmatprep.subr.bf16.mxu0 0
    %4600 = vmatpush1.bf16.msra.mxu0 %v4503
    %4601 = vmatprep.subr.bf16.mxu0 0
    %4602 = vmatpush1.bf16.msra.mxu0 %v4506
    %4603 = vmatprep.subr.bf16.mxu0 0
    %4604 = vmatpush1.bf16.msra.mxu0 %v4544
    %4605 = vmatprep.subr.bf16.mxu0 0
    %4606 = vmatpush1.bf16.msra.mxu0 0
    %4607 = vmatprep.subr.bf16.mxu0 0
    %4608 = vmatpush1.bf16.msra.mxu0 0
    %4609 = vmatprep.subr.bf16.mxu0 0
    %4610 = vmatpush1.bf16.msra.mxu0 0
    %4611 = vmatprep.subr.bf16.mxu0 0
    %4612 = vmatpush1.bf16.msra.mxu0 0
    %4613 = vmatprep.subr.bf16.mxu0 0
    %4614 = vmatpush1.bf16.msra.mxu0 0
    %4615 = vmatprep.subr.bf16.mxu0 0
    %4616 = vmatpush1.bf16.msra.mxu0 0
    %4617 = vmatprep.subr.bf16.mxu0 0
    %4618 = vmatpush1.bf16.msra.mxu0 0
    %4619 = vmatprep.mubr.bf16.mxu0 %v4535
    %4620 = vmatmul.mubr.bf16.gmra.mrb[0].mxu0 %v4390
    %v4621 = vpop.f32.mrb[0].mxu0
    %v4622 = vadd.f32 0.0, %v4621
    %v4623 = vpop.f32.mrb[0].mxu0
    %v4624 = vpop.f32.mrb[0].mxu0
    %v4625 = vpop.f32.mrb[0].mxu0
    %4626 = vdwg.mxu0
    %v4627 = vadd.f32 %v4351, %v4581
    %v4628 = vadd.f32 %v4352, %v4583
    %v4629 = vadd.f32 %v4353, %v4622
    %v4630 = vld [vmem:[%s3 + $0xaa4] sm:$0xcc]
    %v4631 = vld [vmem:[%s3 + $0xaac] sm:$0xc]
    %v4632 = vld [vmem:[%s3 + $0xab0] sm:$0xff]
    %v4633 = vld [vmem:[%s3 + $0xab8] sm:$0xf]
    %v4634 = vld [vmem:[%s3 + $0xabc] sm:$0xff]
    %v4635 = vld [vmem:[%s3 + $0xac4] sm:$0xf]
    %v4636 = vld [vmem:[%s3 + $0xac8] sm:$0xff]
    %v4637 = vld [vmem:[%s3 + $0xad0] sm:$0xf]
    %v4638 = vld [vmem:[%s3 + $0xad4] sm:$0xff]
    %v4639 = vld [vmem:[%s3 + $0xadc] sm:$0xf]
    %v4640 = vld [vmem:[%s3 + $0xae0] sm:$0xff]
    %v4641 = vld [vmem:[%s3 + $0xae8] sm:$0xf]
    %v4642 = vld [vmem:[%s3 + $0xaec] sm:$0xff]
    %v4643 = vld [vmem:[%s3 + $0xaf4] sm:$0xf]
    %v4644 = vld [vmem:[%s3 + $0xaf8] sm:$0xff]
    %v4645 = vld [vmem:[%s3 + $0xb00] sm:$0xf]
    %v4646 = vld [vmem:[%s3 + $0xb04] sm:$0xff]
    %v4647 = vld [vmem:[%s3 + $0xb0c] sm:$0xf]
    %v4648 = vld [vmem:[%s3 + $0xb10] sm:$0xff]
    %v4649 = vld [vmem:[%s3 + $0xb18] sm:$0xf]
    %v4650 = vld [vmem:[%s3 + $0xb1c] sm:$0xff]
    %v4651 = vld [vmem:[%s3 + $0xb24] sm:$0xf]
    %v4652 = vld [vmem:[%s3 + $0xb28] sm:$0xff]
    %v4653 = vld [vmem:[%s3 + $0xb30] sm:$0xf]
    %v4654 = vld [vmem:[%s3 + $0xb34] sm:$0xff]
    %v4655 = vld [vmem:[%s3 + $0xb3c] sm:$0xf]
    %v4656 = vld [vmem:[%s3 + $0xb40] sm:$0xff]
    %v4657 = vld [vmem:[%s3 + $0xb48] sm:$0xf]
    %v4658 = vld [vmem:[%s3 + $0xb4c] sm:$0xff]
    %v4659 = vld [vmem:[%s3 + $0xb54] sm:$0xf]
    %v4660 = vld [vmem:[%s3 + $0xb58] sm:$0xff]
    %v4661 = vld [vmem:[%s3 + $0xb60] sm:$0xf]
    %v4662 = vld [vmem:[%s3 + $0xb64] sm:$0xff]
    %v4663 = vld [vmem:[%s3 + $0xb6c] sm:$0xf]
    %v4664 = vld [vmem:[%s3 + $0xb70] sm:$0xff]
    %v4665 = vld [vmem:[%s3 + $0xb78] sm:$0xf]
    %v4666 = vrot.slane %v713, 5
    %v4667 = vrot.slane %v714, 5
    %v4705 = vunpack.c.l.b16 %v4630
    %v4706 = vunpack.c.h.b16 %v4630
    %v4707 = vunpack.c.l.b16 %v4631
    %v4708 = vunpack.c.l.b16 %v4632
    %v4709 = vunpack.c.h.b16 %v4632
    %v4710 = vunpack.c.l.b16 %v4633
    %v4711 = vunpack.c.l.b16 %v4634
    %v4712 = vunpack.c.h.b16 %v4634
    %v4713 = vunpack.c.l.b16 %v4635
    %v4714 = vunpack.c.l.b16 %v4636
    %v4715 = vunpack.c.h.b16 %v4636
    %v4716 = vunpack.c.l.b16 %v4637
    %v4717 = vunpack.c.l.b16 %v4638
    %v4718 = vunpack.c.h.b16 %v4638
    %v4719 = vunpack.c.l.b16 %v4639
    %v4720 = vunpack.c.l.b16 %v4640
    %v4721 = vunpack.c.h.b16 %v4640
    %v4722 = vunpack.c.l.b16 %v4641
    %v4723 = vunpack.c.l.b16 %v4642
    %v4724 = vunpack.c.h.b16 %v4642
    %v4725 = vunpack.c.l.b16 %v4643
    %v4726 = vunpack.c.l.b16 %v4644
    %v4727 = vunpack.c.h.b16 %v4644
    %v4728 = vunpack.c.l.b16 %v4645
    %v4729 = vunpack.c.l.b16 %v4646
    %v4730 = vunpack.c.h.b16 %v4646
    %v4731 = vunpack.c.l.b16 %v4647
    %v4732 = vunpack.c.l.b16 %v4648
    %v4733 = vunpack.c.h.b16 %v4648
    %v4734 = vunpack.c.l.b16 %v4649
    %v4735 = vunpack.c.l.b16 %v4650
    %v4736 = vunpack.c.h.b16 %v4650
    %v4737 = vunpack.c.l.b16 %v4651
    %v4738 = vunpack.c.l.b16 %v4652
    %v4739 = vunpack.c.h.b16 %v4652
    %v4740 = vunpack.c.l.b16 %v4653
    %v4741 = vunpack.c.l.b16 %v4654
    %v4742 = vunpack.c.h.b16 %v4654
    %v4743 = vunpack.c.l.b16 %v4655
    %v4744 = vunpack.c.l.b16 %v4656
    %v4745 = vunpack.c.h.b16 %v4656
    %v4746 = vunpack.c.l.b16 %v4657
    %v4747 = vunpack.c.l.b16 %v4658
    %v4748 = vunpack.c.h.b16 %v4658
    %v4749 = vunpack.c.l.b16 %v4659
    %v4750 = vunpack.c.l.b16 %v4660
    %v4751 = vunpack.c.h.b16 %v4660
    %v4752 = vunpack.c.l.b16 %v4661
    %v4753 = vunpack.c.l.b16 %v4662
    %v4754 = vunpack.c.h.b16 %v4662
    %v4755 = vunpack.c.l.b16 %v4663
    %v4756 = vunpack.c.l.b16 %v4664
    %v4757 = vunpack.c.h.b16 %v4664
    %v4758 = vunpack.c.l.b16 %v4665
    %v4759 = vpack.c.b16 %v4708, %v4705
    %v4760 = vpack.c.b16 %v4709, %v4706
    %v4761 = vpack.c.b16 %v4710, %v4707
    %v4762 = vpack.c.b16 %v4714, %v4711
    %v4763 = vpack.c.b16 %v4715, %v4712
    %v4764 = vpack.c.b16 %v4716, %v4713
    %v4765 = vpack.c.b16 %v4720, %v4717
    %v4766 = vpack.c.b16 %v4721, %v4718
    %v4767 = vpack.c.b16 %v4722, %v4719
    %v4768 = vpack.c.b16 %v4726, %v4723
    %v4769 = vpack.c.b16 %v4727, %v4724
    %v4770 = vpack.c.b16 %v4728, %v4725
    %v4771 = vpack.c.b16 %v4732, %v4729
    %v4772 = vpack.c.b16 %v4733, %v4730
    %v4773 = vpack.c.b16 %v4734, %v4731
    %v4774 = vpack.c.b16 %v4738, %v4735
    %v4775 = vpack.c.b16 %v4739, %v4736
    %v4776 = vpack.c.b16 %v4740, %v4737
    %v4777 = vpack.c.b16 %v4744, %v4741
    %v4778 = vpack.c.b16 %v4745, %v4742
    %v4779 = vpack.c.b16 %v4746, %v4743
    %v4780 = vpack.c.b16 %v4750, %v4747
    %v4781 = vpack.c.b16 %v4751, %v4748
    %v4782 = vpack.c.b16 %v4752, %v4749
    %v4783 = vpack.c.b16 %v4756, %v4753
    %v4784 = vpack.c.b16 %v4757, %v4754
    %v4785 = vpack.c.b16 %v4758, %v4755
    %v4786 = vrot.slane %v4759, 2
    %v4787 = vrot.slane %v4762, 2
    %v4788 = vsel %vm1168, %v4786, %v4787
    %v4789 = vrot.slane %v4760, 2
    %v4790 = vrot.slane %v4763, 2
    %v4791 = vsel %vm1168, %v4789, %v4790
    %v4792 = vrot.slane %v4761, 2
    %v4793 = vrot.slane %v4764, 2
    %v4794 = vsel %vm1168, %v4792, %v4793
    %v4795 = vrot.slane %v4765, 2
    %v4796 = vsel %vm1168, %v4787, %v4795
    %v4797 = vrot.slane %v4766, 2
    %v4798 = vsel %vm1168, %v4790, %v4797
    %v4799 = vrot.slane %v4767, 2
    %v4800 = vsel %vm1168, %v4793, %v4799
    %v4801 = vrot.slane %v4768, 2
    %v4802 = vsel %vm1168, %v4795, %v4801
    %v4803 = vrot.slane %v4769, 2
    %v4804 = vsel %vm1168, %v4797, %v4803
    %v4805 = vrot.slane %v4770, 2
    %v4806 = vsel %vm1168, %v4799, %v4805
    %v4807 = vrot.slane %v4771, 2
    %v4808 = vsel %vm1168, %v4801, %v4807
    %v4809 = vrot.slane %v4772, 2
    %v4810 = vsel %vm1168, %v4803, %v4809
    %v4811 = vrot.slane %v4773, 2
    %v4812 = vsel %vm1168, %v4805, %v4811
    %v4813 = vrot.slane %v4774, 2
    %v4814 = vsel %vm1168, %v4807, %v4813
    %v4815 = vrot.slane %v4775, 2
    %v4816 = vsel %vm1168, %v4809, %v4815
    %v4817 = vrot.slane %v4776, 2
    %v4818 = vsel %vm1168, %v4811, %v4817
    %v4819 = vrot.slane %v4777, 2
    %v4820 = vsel %vm1168, %v4813, %v4819
    %v4821 = vrot.slane %v4778, 2
    %v4822 = vsel %vm1168, %v4815, %v4821
    %v4823 = vrot.slane %v4779, 2
    %v4824 = vsel %vm1168, %v4817, %v4823
    %v4825 = vrot.slane %v4780, 2
    %v4826 = vsel %vm1168, %v4819, %v4825
    %v4827 = vrot.slane %v4781, 2
    %v4828 = vsel %vm1168, %v4821, %v4827
    %v4829 = vrot.slane %v4782, 2
    %v4830 = vsel %vm1168, %v4823, %v4829
    %v4831 = vrot.slane %v4783, 2
    %v4832 = vsel %vm1168, %v4825, %v4831
    %v4833 = vrot.slane %v4784, 2
    %v4834 = vsel %vm1168, %v4827, %v4833
    %v4835 = vrot.slane %v4785, 2
    %v4836 = vsel %vm1168, %v4829, %v4835
    %v4862 = vsel %vm912, %v4667, 0
    %v4865 = vsel %vm916, %v4831, 0
    %v4868 = vsel %vm916, %v4833, 0
    %v4871 = vsel %vm916, %v4835, 0
    %4873 = vmatprep.subr.bf16.mxu0 %v4791
    %4874 = vmatpush1.bf16.msra.mxu0 %v4788
    %4875 = vmatprep.subr.bf16.mxu0 %v4798
    %4876 = vmatpush1.bf16.msra.mxu0 %v4796
    %4877 = vmatprep.subr.bf16.mxu0 %v4804
    %4878 = vmatpush1.bf16.msra.mxu0 %v4802
    %4879 = vmatprep.subr.bf16.mxu0 %v4810
    %4880 = vmatpush1.bf16.msra.mxu0 %v4808
    %4881 = vmatprep.subr.bf16.mxu0 %v4816
    %4882 = vmatpush1.bf16.msra.mxu0 %v4814
    %4883 = vmatprep.subr.bf16.mxu0 %v4822
    %4884 = vmatpush1.bf16.msra.mxu0 %v4820
    %4885 = vmatprep.subr.bf16.mxu0 %v4828
    %4886 = vmatpush1.bf16.msra.mxu0 %v4826
    %4887 = vmatprep.subr.bf16.mxu0 %v4834
    %4888 = vmatpush1.bf16.msra.mxu0 %v4832
    %4889 = vmatprep.subr.bf16.mxu0 %v4868
    %4890 = vmatpush1.bf16.msra.mxu0 %v4865
    %4891 = vmatprep.subr.bf16.mxu0 0
    %4892 = vmatpush1.bf16.msra.mxu0 0
    %4893 = vmatprep.subr.bf16.mxu0 0
    %4894 = vmatpush1.bf16.msra.mxu0 0
    %4895 = vmatprep.subr.bf16.mxu0 0
    %4896 = vmatpush1.bf16.msra.mxu0 0
    %4897 = vmatprep.subr.bf16.mxu0 0
    %4898 = vmatpush1.bf16.msra.mxu0 0
    %4899 = vmatprep.subr.bf16.mxu0 0
    %4900 = vmatpush1.bf16.msra.mxu0 0
    %4901 = vmatprep.subr.bf16.mxu0 0
    %4902 = vmatpush1.bf16.msra.mxu0 0
    %4903 = vmatprep.subr.bf16.mxu0 0
    %4904 = vmatpush1.bf16.msra.mxu0 0
    %4905 = vmatprep.mubr.bf16.mxu0 %v4862
    %4906 = vmatmul.mubr.bf16.gmra.mrb[0].mxu0 %v4666
    %v4907 = vpop.f32.mrb[0].mxu0
    %v4908 = vadd.f32 0.0, %v4907
    %v4909 = vpop.f32.mrb[0].mxu0
    %v4910 = vadd.f32 0.0, %v4909
    %v4911 = vpop.f32.mrb[0].mxu0
    %v4912 = vpop.f32.mrb[0].mxu0
    %4913 = vdwg.mxu0
    %4914 = vmatprep.subr.bf16.mxu0 0
    %4915 = vmatpush1.bf16.msra.mxu0 %v4794
    %4916 = vmatprep.subr.bf16.mxu0 0
    %4917 = vmatpush1.bf16.msra.mxu0 %v4800
    %4918 = vmatprep.subr.bf16.mxu0 0
    %4919 = vmatpush1.bf16.msra.mxu0 %v4806
    %4920 = vmatprep.subr.bf16.mxu0 0
    %4921 = vmatpush1.bf16.msra.mxu0 %v4812
    %4922 = vmatprep.subr.bf16.mxu0 0
    %4923 = vmatpush1.bf16.msra.mxu0 %v4818
    %4924 = vmatprep.subr.bf16.mxu0 0
    %4925 = vmatpush1.bf16.msra.mxu0 %v4824
    %4926 = vmatprep.subr.bf16.mxu0 0
    %4927 = vmatpush1.bf16.msra.mxu0 %v4830
    %4928 = vmatprep.subr.bf16.mxu0 0
    %4929 = vmatpush1.bf16.msra.mxu0 %v4836
    %4930 = vmatprep.subr.bf16.mxu0 0
    %4931 = vmatpush1.bf16.msra.mxu0 %v4871
    %4932 = vmatprep.subr.bf16.mxu0 0
    %4933 = vmatpush1.bf16.msra.mxu0 0
    %4934 = vmatprep.subr.bf16.mxu0 0
    %4935 = vmatpush1.bf16.msra.mxu0 0
    %4936 = vmatprep.subr.bf16.mxu0 0
    %4937 = vmatpush1.bf16.msra.mxu0 0
    %4938 = vmatprep.subr.bf16.mxu0 0
    %4939 = vmatpush1.bf16.msra.mxu0 0
    %4940 = vmatprep.subr.bf16.mxu0 0
    %4941 = vmatpush1.bf16.msra.mxu0 0
    %4942 = vmatprep.subr.bf16.mxu0 0
    %4943 = vmatpush1.bf16.msra.mxu0 0
    %4944 = vmatprep.subr.bf16.mxu0 0
    %4945 = vmatpush1.bf16.msra.mxu0 0
    %4946 = vmatprep.mubr.bf16.mxu0 %v4862
    %4947 = vmatmul.mubr.bf16.gmra.mrb[0].mxu0 %v4666
    %v4948 = vpop.f32.mrb[0].mxu0
    %v4949 = vadd.f32 0.0, %v4948
    %v4950 = vpop.f32.mrb[0].mxu0
    %v4951 = vpop.f32.mrb[0].mxu0
    %v4952 = vpop.f32.mrb[0].mxu0
    %4953 = vdwg.mxu0
    %v4954 = vadd.f32 %v4627, %v4908
    %v4955 = vadd.f32 %v4628, %v4910
    %v4956 = vadd.f32 %v4629, %v4949
    %v4957 = vmax.f32 %v4954, 0.0
    %v4958 = vmax.f32 %v4955, 0.0
    %v4959 = vmax.f32 %v4956, 0.0
    %vm4960 = vcmask 654336
    %4961 = vst.msk [vmem:[#allocation2] sm:$0xff] %vm4960, 0.0
    %4962 = vst.msk [vmem:[#allocation2 + $0x8] sm:$0xff] %vm4960, 0.0
    %vm4963 = vcmask 648192
    %4964 = vst.msk [vmem:[#allocation2 + $0x10] sm:$0x3] %vm4963, 0.0
    %4966 = vrot.lane.b32.xlu0 %v4957, 21
    %v4967 = vpop.permute.xlu0 %4966
    %vm4969 = vcmask 312488
    %4970 = vst.msk [vmem:[#allocation2] sm:$0x3] %vm4969, %v4967
    %4971 = vrot.lane.b32.xlu0 %v4957, 23
    %v4972 = vpop.permute.xlu0 %4971
    %vm4974 = vcmask 476488
    %4975 = vst.msk [vmem:[#allocation2] sm:$0x3] %vm4974, %v4972
    %4976 = vrot.lane.b32.xlu0 %v4957, 25
    %v4977 = vpop.permute.xlu0 %4976
    %vm4979 = vcmask 640488
    %4980 = vst.msk [vmem:[#allocation2] sm:$0x3] %vm4979, %v4977
    %4981 = vrot.lane.b32.xlu0 %v4957, 111
    %v4982 = vpop.permute.xlu0 %4981
    %vm4984 = vcmask 148488
    %4985 = vst.msk [vmem:[#allocation2 + $0x2] sm:$0x3] %vm4984, %v4982
    %4986 = vrot.lane.b32.xlu0 %v4957, 113
    %v4987 = vpop.permute.xlu0 %4986
    %4989 = vst.msk [vmem:[#allocation2 + $0x2] sm:$0x3] %vm4969, %v4987
    %4990 = vrot.lane.b32.xlu0 %v4957, 115
    %v4991 = vpop.permute.xlu0 %4990
    %4993 = vst.msk [vmem:[#allocation2 + $0x2] sm:$0x3] %vm4974, %v4991
    %4994 = vrot.lane.b32.xlu0 %v4957, 117
    %v4995 = vpop.permute.xlu0 %4994
    %4997 = vst.msk [vmem:[#allocation2 + $0x2] sm:$0x3] %vm4979, %v4995
    %4998 = vrot.lane.b32.xlu0 %v4957, 75
    %v4999 = vpop.permute.xlu0 %4998
    %5001 = vst.msk [vmem:[#allocation2 + $0x4] sm:$0x3] %vm4984, %v4999
    %5002 = vrot.lane.b32.xlu0 %v4957, 77
    %v5003 = vpop.permute.xlu0 %5002
    %5005 = vst.msk [vmem:[#allocation2 + $0x4] sm:$0x3] %vm4969, %v5003
    %5006 = vrot.lane.b32.xlu0 %v4957, 79
    %v5007 = vpop.permute.xlu0 %5006
    %5009 = vst.msk [vmem:[#allocation2 + $0x4] sm:$0x3] %vm4974, %v5007
    %5010 = vrot.lane.b32.xlu0 %v4957, 81
    %v5011 = vpop.permute.xlu0 %5010
    %5013 = vst.msk [vmem:[#allocation2 + $0x4] sm:$0x3] %vm4979, %v5011
    %5014 = vrot.lane.b32.xlu0 %v4957, 39
    %v5015 = vpop.permute.xlu0 %5014
    %5017 = vst.msk [vmem:[#allocation2 + $0x6] sm:$0x3] %vm4984, %v5015
    %5018 = vrot.lane.b32.xlu0 %v4957, 41
    %v5019 = vpop.permute.xlu0 %5018
    %5021 = vst.msk [vmem:[#allocation2 + $0x6] sm:$0x3] %vm4969, %v5019
    %5023 = vrot.lane.b32.xlu0 %v4957, 43
    %v5024 = vpop.permute.xlu0 %5023
    %5025 = vrot.lane.b32.xlu0 %v4958, 43
    %v5026 = vpop.permute.xlu0 %5025
    %vm5027 = vcmask 351232
    %v5028 = vsel %vm5027, %v5024, %v5026
    %5030 = vst.msk [vmem:[#allocation2 + $0x6] sm:$0x3] %vm4974, %v5028
    %5031 = vrot.lane.b32.xlu0 %v4958, 45
    %v5032 = vpop.permute.xlu0 %5031
    %5034 = vst.msk [vmem:[#allocation2 + $0x6] sm:$0x3] %vm4979, %v5032
    %5035 = vrot.lane.b32.xlu0 %v4957, 3
    %v5036 = vpop.permute.xlu0 %5035
    %5037 = vrot.lane.b32.xlu0 %v4958, 3
    %v5038 = vpop.permute.xlu0 %5037
    %vm5039 = vcmask 23552
    %v5040 = vsel %vm5039, %v5036, %v5038
    %5042 = vst.msk [vmem:[#allocation2 + $0x8] sm:$0x3] %vm4984, %v5040
    %5043 = vrot.lane.b32.xlu0 %v4958, 5
    %v5044 = vpop.permute.xlu0 %5043
    %5046 = vst.msk [vmem:[#allocation2 + $0x8] sm:$0x3] %vm4969, %v5044
    %5047 = vrot.lane.b32.xlu0 %v4958, 7
    %v5048 = vpop.permute.xlu0 %5047
    %5050 = vst.msk [vmem:[#allocation2 + $0x8] sm:$0x3] %vm4974, %v5048
    %5051 = vrot.lane.b32.xlu0 %v4958, 9
    %v5052 = vpop.permute.xlu0 %5051
    %5054 = vst.msk [vmem:[#allocation2 + $0x8] sm:$0x3] %vm4979, %v5052
    %5055 = vrot.lane.b32.xlu0 %v4958, 95
    %v5056 = vpop.permute.xlu0 %5055
    %5058 = vst.msk [vmem:[#allocation2 + $0xa] sm:$0x3] %vm4984, %v5056
    %5059 = vrot.lane.b32.xlu0 %v4958, 97
    %v5060 = vpop.permute.xlu0 %5059
    %5062 = vst.msk [vmem:[#allocation2 + $0xa] sm:$0x3] %vm4969, %v5060
    %5063 = vrot.lane.b32.xlu0 %v4958, 99
    %v5064 = vpop.permute.xlu0 %5063
    %5066 = vst.msk [vmem:[#allocation2 + $0xa] sm:$0x3] %vm4974, %v5064
    %5067 = vrot.lane.b32.xlu0 %v4958, 101
    %v5068 = vpop.permute.xlu0 %5067
    %5070 = vst.msk [vmem:[#allocation2 + $0xa] sm:$0x3] %vm4979, %v5068
    %5071 = vrot.lane.b32.xlu0 %v4958, 59
    %v5072 = vpop.permute.xlu0 %5071
    %5074 = vst.msk [vmem:[#allocation2 + $0xc] sm:$0x3] %vm4984, %v5072
    %5075 = vrot.lane.b32.xlu0 %v4958, 61
    %v5076 = vpop.permute.xlu0 %5075
    %5078 = vst.msk [vmem:[#allocation2 + $0xc] sm:$0x3] %vm4969, %v5076
    %5079 = vrot.lane.b32.xlu0 %v4958, 63
    %v5080 = vpop.permute.xlu0 %5079
    %5082 = vst.msk [vmem:[#allocation2 + $0xc] sm:$0x3] %vm4974, %v5080
    %5084 = vrot.lane.b32.xlu0 %v4958, 65
    %v5085 = vpop.permute.xlu0 %5084
    %5086 = vrot.lane.b32.xlu0 %v4959, 65
    %v5087 = vpop.permute.xlu0 %5086
    %vm5088 = vcmask 531456
    %v5089 = vsel %vm5088, %v5085, %v5087
    %5091 = vst.msk [vmem:[#allocation2 + $0xc] sm:$0x3] %vm4979, %v5089
    %5092 = vrot.lane.b32.xlu0 %v4958, 23
    %v5093 = vpop.permute.xlu0 %5092
    %5095 = vst.msk [vmem:[#allocation2 + $0xe] sm:$0x3] %vm4984, %v5093
    %5096 = vrot.lane.b32.xlu0 %v4958, 25
    %v5097 = vpop.permute.xlu0 %5096
    %5098 = vrot.lane.b32.xlu0 %v4959, 25
    %v5099 = vpop.permute.xlu0 %5098
    %vm5100 = vcmask 203776
    %v5101 = vsel %vm5100, %v5097, %v5099
    %5103 = vst.msk [vmem:[#allocation2 + $0xe] sm:$0x3] %vm4969, %v5101
    %5104 = vrot.lane.b32.xlu0 %v4959, 27
    %v5105 = vpop.permute.xlu0 %5104
    %5107 = vst.msk [vmem:[#allocation2 + $0xe] sm:$0x3] %vm4974, %v5105
    %5108 = vrot.lane.b32.xlu0 %v4959, 29
    %v5109 = vpop.permute.xlu0 %5108
    %5111 = vst.msk [vmem:[#allocation2 + $0xe] sm:$0x3] %vm4979, %v5109
    %5112 = vrot.lane.b32.xlu0 %v4959, 115
    %v5113 = vpop.permute.xlu0 %5112
    %5115 = vst.msk [vmem:[#allocation2 + $0x10] sm:$0x3] %vm4984, %v5113
    %5116 = vrot.lane.b32.xlu0 %v4959, 117
    %v5117 = vpop.permute.xlu0 %5116
    %5119 = vst.msk [vmem:[#allocation2 + $0x10] sm:$0x3] %vm4969, %v5117
    %5120 = vrot.lane.b32.xlu0 %v4959, 119
    %v5121 = vpop.permute.xlu0 %5120
    %5123 = vst.msk [vmem:[#allocation2 + $0x10] sm:$0x3] %vm4974, %v5121
    %v5124 = vld [vmem:[#allocation2] sm:$0xff]
    %v5125 = vld [vmem:[#allocation2 + $0x8] sm:$0xff]
    %v5126 = vld [vmem:[#allocation2 + $0x10] sm:$0x3]
    %v5127 = vpack.c.bf16 %v5125, %v5124
    %v5128 = vpack.c.bf16 %v5126, %v5126
    %v5129 = vld [vmem:[%s5] sm:$0xf]
    %v5130 = vld [vmem:[%s5 + $0x4] sm:$0xf]
    %v5131 = vld [vmem:[%s5 + $0x8] sm:$0xf]
    %v5132 = vld [vmem:[%s5 + $0xc] sm:$0xf]
    %v5133 = vld [vmem:[%s5 + $0x10] sm:$0xf]
    %v5134 = vld [vmem:[%s5 + $0x14] sm:$0xf]
    %v5135 = vld [vmem:[%s5 + $0x18] sm:$0xf]
    %v5136 = vld [vmem:[%s5 + $0x1c] sm:$0xf]
    %v5137 = vld [vmem:[%s5 + $0x20] sm:$0xf]
    %v5138 = vld [vmem:[%s5 + $0x24] sm:$0xf]
    %v5149 = vunpack.c.l.b16 %v5129
    %v5150 = vunpack.c.l.b16 %v5130
    %v5151 = vunpack.c.l.b16 %v5131
    %v5152 = vunpack.c.l.b16 %v5132
    %v5153 = vunpack.c.l.b16 %v5133
    %v5154 = vunpack.c.l.b16 %v5134
    %v5155 = vunpack.c.l.b16 %v5135
    %v5156 = vunpack.c.l.b16 %v5136
    %v5157 = vunpack.c.l.b16 %v5137
    %v5158 = vunpack.c.l.b16 %v5138
    %v5159 = vpack.c.b16 %v5150, %v5149
    %v5160 = vpack.c.b16 %v5152, %v5151
    %v5161 = vpack.c.b16 %v5154, %v5153
    %v5162 = vpack.c.b16 %v5156, %v5155
    %v5163 = vpack.c.b16 %v5158, %v5157
    %v5170 = vsel %vm4960, %v5127, 0
    %v5173 = vsel %vm4960, %v5128, 0
    %5175 = vmatprep.subr.bf16.mxu0 0
    %5176 = vmatpush1.bf16.msra.mxu0 %v5159
    %5177 = vmatprep.subr.bf16.mxu0 0
    %5178 = vmatpush1.bf16.msra.mxu0 %v5160
    %5179 = vmatprep.subr.bf16.mxu0 0
    %5180 = vmatpush1.bf16.msra.mxu0 %v5161
    %5181 = vmatprep.subr.bf16.mxu0 0
    %5182 = vmatpush1.bf16.msra.mxu0 %v5162
    %5183 = vmatprep.subr.bf16.mxu0 0
    %5184 = vmatpush1.bf16.msra.mxu0 %v5163
    %5185 = vmatprep.subr.bf16.mxu0 0
    %5186 = vmatpush1.bf16.msra.mxu0 0
    %5187 = vmatprep.subr.bf16.mxu0 0
    %5188 = vmatpush1.bf16.msra.mxu0 0
    %5189 = vmatprep.subr.bf16.mxu0 0
    %5190 = vmatpush1.bf16.msra.mxu0 0
    %5191 = vmatprep.subr.bf16.mxu0 0
    %5192 = vmatpush1.bf16.msra.mxu0 0
    %5193 = vmatprep.subr.bf16.mxu0 0
    %5194 = vmatpush1.bf16.msra.mxu0 0
    %5195 = vmatprep.subr.bf16.mxu0 0
    %5196 = vmatpush1.bf16.msra.mxu0 0
    %5197 = vmatprep.subr.bf16.mxu0 0
    %5198 = vmatpush1.bf16.msra.mxu0 0
    %5199 = vmatprep.subr.bf16.mxu0 0
    %5200 = vmatpush1.bf16.msra.mxu0 0
    %5201 = vmatprep.subr.bf16.mxu0 0
    %5202 = vmatpush1.bf16.msra.mxu0 0
    %5203 = vmatprep.subr.bf16.mxu0 0
    %5204 = vmatpush1.bf16.msra.mxu0 0
    %5205 = vmatprep.subr.bf16.mxu0 0
    %5206 = vmatpush1.bf16.msra.mxu0 0
    %5207 = vmatprep.mubr.bf16.mxu0 0
    %5208 = vmatmul.mubr.bf16.gmra.mrb[0].mxu0 %v5170
    %v5209 = vpop.f32.mrb[0].mxu0
    %v5210 = vadd.f32 0.0, %v5209
    %v5211 = vpop.f32.mrb[0].mxu0
    %v5212 = vpop.f32.mrb[0].mxu0
    %v5213 = vadd.f32 0.0, %v5212
    %v5214 = vpop.f32.mrb[0].mxu0
    %5215 = vmatprep.mubr.bf16.mxu0 0
    %5216 = vmatmul.mubr.bf16.gmra.mrb[0].mxu0 %v5173
    %v5217 = vpop.f32.mrb[0].mxu0
    %v5218 = vadd.f32 0.0, %v5217
    %v5219 = vpop.f32.mrb[0].mxu0
    %v5220 = vpop.f32.mrb[0].mxu0
    %v5221 = vpop.f32.mrb[0].mxu0
    %5222 = vdwg.mxu0
    %s5223 = scalar_lea.vmem %s5, 40
    %v5224 = vld [vmem:[%s5223] sm:$0xf]
    %v5225 = vld [vmem:[%s5223 + $0x4] sm:$0xf]
    %v5226 = vld [vmem:[%s5223 + $0x8] sm:$0xf]
    %v5227 = vld [vmem:[%s5223 + $0xc] sm:$0xf]
    %v5228 = vld [vmem:[%s5223 + $0x10] sm:$0xf]
    %v5229 = vld [vmem:[%s5223 + $0x14] sm:$0xf]
    %v5230 = vld [vmem:[%s5223 + $0x18] sm:$0xf]
    %v5231 = vld [vmem:[%s5223 + $0x1c] sm:$0xf]
    %v5232 = vld [vmem:[%s5223 + $0x20] sm:$0xf]
    %v5233 = vld [vmem:[%s5223 + $0x24] sm:$0xf]
    %v5244 = vunpack.c.l.b16 %v5224
    %v5245 = vunpack.c.l.b16 %v5225
    %v5246 = vunpack.c.l.b16 %v5226
    %v5247 = vunpack.c.l.b16 %v5227
    %v5248 = vunpack.c.l.b16 %v5228
    %v5249 = vunpack.c.l.b16 %v5229
    %v5250 = vunpack.c.l.b16 %v5230
    %v5251 = vunpack.c.l.b16 %v5231
    %v5252 = vunpack.c.l.b16 %v5232
    %v5253 = vunpack.c.l.b16 %v5233
    %v5254 = vpack.c.b16 %v5245, %v5244
    %v5255 = vpack.c.b16 %v5247, %v5246
    %v5256 = vpack.c.b16 %v5249, %v5248
    %v5257 = vpack.c.b16 %v5251, %v5250
    %v5258 = vpack.c.b16 %v5253, %v5252
    %5264 = vmatprep.subr.bf16.mxu0 0
    %5265 = vmatpush1.bf16.msra.mxu0 %v5254
    %5266 = vmatprep.subr.bf16.mxu0 0
    %5267 = vmatpush1.bf16.msra.mxu0 %v5255
    %5268 = vmatprep.subr.bf16.mxu0 0
    %5269 = vmatpush1.bf16.msra.mxu0 %v5256
    %5270 = vmatprep.subr.bf16.mxu0 0
    %5271 = vmatpush1.bf16.msra.mxu0 %v5257
    %5272 = vmatprep.subr.bf16.mxu0 0
    %5273 = vmatpush1.bf16.msra.mxu0 %v5258
    %5274 = vmatprep.subr.bf16.mxu0 0
    %5275 = vmatpush1.bf16.msra.mxu0 0
    %5276 = vmatprep.subr.bf16.mxu0 0
    %5277 = vmatpush1.bf16.msra.mxu0 0
    %5278 = vmatprep.subr.bf16.mxu0 0
    %5279 = vmatpush1.bf16.msra.mxu0 0
    %5280 = vmatprep.subr.bf16.mxu0 0
    %5281 = vmatpush1.bf16.msra.mxu0 0
    %5282 = vmatprep.subr.bf16.mxu0 0
    %5283 = vmatpush1.bf16.msra.mxu0 0
    %5284 = vmatprep.subr.bf16.mxu0 0
    %5285 = vmatpush1.bf16.msra.mxu0 0
    %5286 = vmatprep.subr.bf16.mxu0 0
    %5287 = vmatpush1.bf16.msra.mxu0 0
    %5288 = vmatprep.subr.bf16.mxu0 0
    %5289 = vmatpush1.bf16.msra.mxu0 0
    %5290 = vmatprep.subr.bf16.mxu0 0
    %5291 = vmatpush1.bf16.msra.mxu0 0
    %5292 = vmatprep.subr.bf16.mxu0 0
    %5293 = vmatpush1.bf16.msra.mxu0 0
    %5294 = vmatprep.subr.bf16.mxu0 0
    %5295 = vmatpush1.bf16.msra.mxu0 0
    %5296 = vmatprep.mubr.bf16.mxu0 0
    %5297 = vmatmul.mubr.bf16.gmra.mrb[0].mxu0 %v5170
    %v5298 = vpop.f32.mrb[0].mxu0
    %v5299 = vadd.f32 0.0, %v5298
    %v5300 = vpop.f32.mrb[0].mxu0
    %v5301 = vpop.f32.mrb[0].mxu0
    %v5302 = vadd.f32 0.0, %v5301
    %v5303 = vpop.f32.mrb[0].mxu0
    %5304 = vmatprep.mubr.bf16.mxu0 0
    %5305 = vmatmul.mubr.bf16.gmra.mrb[0].mxu0 %v5173
    %v5306 = vpop.f32.mrb[0].mxu0
    %v5307 = vadd.f32 0.0, %v5306
    %v5308 = vpop.f32.mrb[0].mxu0
    %v5309 = vpop.f32.mrb[0].mxu0
    %v5310 = vpop.f32.mrb[0].mxu0
    %5311 = vdwg.mxu0
    %v5312 = vmax.f32 %v5210, %v5299
    %v5313 = vmax.f32 %v5213, %v5302
    %v5314 = vmax.f32 %v5218, %v5307
    %s5315 = scalar_lea.vmem %s5, 80
    %v5316 = vld [vmem:[%s5315] sm:$0xf]
    %v5317 = vld [vmem:[%s5315 + $0x4] sm:$0xf]
    %v5318 = vld [vmem:[%s5315 + $0x8] sm:$0xf]
    %v5319 = vld [vmem:[%s5315 + $0xc] sm:$0xf]
    %v5320 = vld [vmem:[%s5315 + $0x10] sm:$0xf]
    %v5321 = vld [vmem:[%s5315 + $0x14] sm:$0xf]
    %v5322 = vld [vmem:[%s5315 + $0x18] sm:$0xf]
    %v5323 = vld [vmem:[%s5315 + $0x1c] sm:$0xf]
    %v5324 = vld [vmem:[%s5315 + $0x20] sm:$0xf]
    %v5325 = vld [vmem:[%s5315 + $0x24] sm:$0xf]
    %v5336 = vunpack.c.l.b16 %v5316
    %v5337 = vunpack.c.l.b16 %v5317
    %v5338 = vunpack.c.l.b16 %v5318
    %v5339 = vunpack.c.l.b16 %v5319
    %v5340 = vunpack.c.l.b16 %v5320
    %v5341 = vunpack.c.l.b16 %v5321
    %v5342 = vunpack.c.l.b16 %v5322
    %v5343 = vunpack.c.l.b16 %v5323
    %v5344 = vunpack.c.l.b16 %v5324
    %v5345 = vunpack.c.l.b16 %v5325
    %v5346 = vpack.c.b16 %v5337, %v5336
    %v5347 = vpack.c.b16 %v5339, %v5338
    %v5348 = vpack.c.b16 %v5341, %v5340
    %v5349 = vpack.c.b16 %v5343, %v5342
    %v5350 = vpack.c.b16 %v5345, %v5344
    %5356 = vmatprep.subr.bf16.mxu0 0
    %5357 = vmatpush1.bf16.msra.mxu0 %v5346
    %5358 = vmatprep.subr.bf16.mxu0 0
    %5359 = vmatpush1.bf16.msra.mxu0 %v5347
    %5360 = vmatprep.subr.bf16.mxu0 0
    %5361 = vmatpush1.bf16.msra.mxu0 %v5348
    %5362 = vmatprep.subr.bf16.mxu0 0
    %5363 = vmatpush1.bf16.msra.mxu0 %v5349
    %5364 = vmatprep.subr.bf16.mxu0 0
    %5365 = vmatpush1.bf16.msra.mxu0 %v5350
    %5366 = vmatprep.subr.bf16.mxu0 0
    %5367 = vmatpush1.bf16.msra.mxu0 0
    %5368 = vmatprep.subr.bf16.mxu0 0
    %5369 = vmatpush1.bf16.msra.mxu0 0
    %5370 = vmatprep.subr.bf16.mxu0 0
    %5371 = vmatpush1.bf16.msra.mxu0 0
    %5372 = vmatprep.subr.bf16.mxu0 0
    %5373 = vmatpush1.bf16.msra.mxu0 0
    %5374 = vmatprep.subr.bf16.mxu0 0
    %5375 = vmatpush1.bf16.msra.mxu0 0
    %5376 = vmatprep.subr.bf16.mxu0 0
    %5377 = vmatpush1.bf16.msra.mxu0 0
    %5378 = vmatprep.subr.bf16.mxu0 0
    %5379 = vmatpush1.bf16.msra.mxu0 0
    %5380 = vmatprep.subr.bf16.mxu0 0
    %5381 = vmatpush1.bf16.msra.mxu0 0
    %5382 = vmatprep.subr.bf16.mxu0 0
    %5383 = vmatpush1.bf16.msra.mxu0 0
    %5384 = vmatprep.subr.bf16.mxu0 0
    %5385 = vmatpush1.bf16.msra.mxu0 0
    %5386 = vmatprep.subr.bf16.mxu0 0
    %5387 = vmatpush1.bf16.msra.mxu0 0
    %5388 = vmatprep.mubr.bf16.mxu0 0
    %5389 = vmatmul.mubr.bf16.gmra.mrb[0].mxu0 %v5170
    %v5390 = vpop.f32.mrb[0].mxu0
    %v5391 = vadd.f32 0.0, %v5390
    %v5392 = vpop.f32.mrb[0].mxu0
    %v5393 = vpop.f32.mrb[0].mxu0
    %v5394 = vadd.f32 0.0, %v5393
    %v5395 = vpop.f32.mrb[0].mxu0
    %5396 = vmatprep.mubr.bf16.mxu0 0
    %5397 = vmatmul.mubr.bf16.gmra.mrb[0].mxu0 %v5173
    %v5398 = vpop.f32.mrb[0].mxu0
    %v5399 = vadd.f32 0.0, %v5398
    %v5400 = vpop.f32.mrb[0].mxu0
    %v5401 = vpop.f32.mrb[0].mxu0
    %v5402 = vpop.f32.mrb[0].mxu0
    %5403 = vdwg.mxu0
    %v5404 = vmax.f32 %v5312, %v5391
    %v5405 = vmax.f32 %v5313, %v5394
    %v5406 = vmax.f32 %v5314, %v5399
    %s5407 = scalar_lea.vmem %s5, 120
    %v5408 = vld [vmem:[%s5407] sm:$0xf]
    %v5409 = vld [vmem:[%s5407 + $0x4] sm:$0xf]
    %v5410 = vld [vmem:[%s5407 + $0x8] sm:$0xf]
    %v5411 = vld [vmem:[%s5407 + $0xc] sm:$0xf]
    %v5412 = vld [vmem:[%s5407 + $0x10] sm:$0xf]
    %v5413 = vld [vmem:[%s5407 + $0x14] sm:$0xf]
    %v5414 = vld [vmem:[%s5407 + $0x18] sm:$0xf]
    %v5415 = vld [vmem:[%s5407 + $0x1c] sm:$0xf]
    %v5416 = vld [vmem:[%s5407 + $0x20] sm:$0xf]
    %v5417 = vld [vmem:[%s5407 + $0x24] sm:$0xf]
    %v5428 = vunpack.c.l.b16 %v5408
    %v5429 = vunpack.c.l.b16 %v5409
    %v5430 = vunpack.c.l.b16 %v5410
    %v5431 = vunpack.c.l.b16 %v5411
    %v5432 = vunpack.c.l.b16 %v5412
    %v5433 = vunpack.c.l.b16 %v5413
    %v5434 = vunpack.c.l.b16 %v5414
    %v5435 = vunpack.c.l.b16 %v5415
    %v5436 = vunpack.c.l.b16 %v5416
    %v5437 = vunpack.c.l.b16 %v5417
    %v5438 = vpack.c.b16 %v5429, %v5428
    %v5439 = vpack.c.b16 %v5431, %v5430
    %v5440 = vpack.c.b16 %v5433, %v5432
    %v5441 = vpack.c.b16 %v5435, %v5434
    %v5442 = vpack.c.b16 %v5437, %v5436
    %5448 = vmatprep.subr.bf16.mxu0 0
    %5449 = vmatpush1.bf16.msra.mxu0 %v5438
    %5450 = vmatprep.subr.bf16.mxu0 0
    %5451 = vmatpush1.bf16.msra.mxu0 %v5439
    %5452 = vmatprep.subr.bf16.mxu0 0
    %5453 = vmatpush1.bf16.msra.mxu0 %v5440
    %5454 = vmatprep.subr.bf16.mxu0 0
    %5455 = vmatpush1.bf16.msra.mxu0 %v5441
    %5456 = vmatprep.subr.bf16.mxu0 0
    %5457 = vmatpush1.bf16.msra.mxu0 %v5442
    %5458 = vmatprep.subr.bf16.mxu0 0
    %5459 = vmatpush1.bf16.msra.mxu0 0
    %5460 = vmatprep.subr.bf16.mxu0 0
    %5461 = vmatpush1.bf16.msra.mxu0 0
    %5462 = vmatprep.subr.bf16.mxu0 0
    %5463 = vmatpush1.bf16.msra.mxu0 0
    %5464 = vmatprep.subr.bf16.mxu0 0
    %5465 = vmatpush1.bf16.msra.mxu0 0
    %5466 = vmatprep.subr.bf16.mxu0 0
    %5467 = vmatpush1.bf16.msra.mxu0 0
    %5468 = vmatprep.subr.bf16.mxu0 0
    %5469 = vmatpush1.bf16.msra.mxu0 0
    %5470 = vmatprep.subr.bf16.mxu0 0
    %5471 = vmatpush1.bf16.msra.mxu0 0
    %5472 = vmatprep.subr.bf16.mxu0 0
    %5473 = vmatpush1.bf16.msra.mxu0 0
    %5474 = vmatprep.subr.bf16.mxu0 0
    %5475 = vmatpush1.bf16.msra.mxu0 0
    %5476 = vmatprep.subr.bf16.mxu0 0
    %5477 = vmatpush1.bf16.msra.mxu0 0
    %5478 = vmatprep.subr.bf16.mxu0 0
    %5479 = vmatpush1.bf16.msra.mxu0 0
    %5480 = vmatprep.mubr.bf16.mxu0 0
    %5481 = vmatmul.mubr.bf16.gmra.mrb[0].mxu0 %v5170
    %v5482 = vpop.f32.mrb[0].mxu0
    %v5483 = vadd.f32 0.0, %v5482
    %v5484 = vpop.f32.mrb[0].mxu0
    %v5485 = vpop.f32.mrb[0].mxu0
    %v5486 = vadd.f32 0.0, %v5485
    %v5487 = vpop.f32.mrb[0].mxu0
    %5488 = vmatprep.mubr.bf16.mxu0 0
    %5489 = vmatmul.mubr.bf16.gmra.mrb[0].mxu0 %v5173
    %v5490 = vpop.f32.mrb[0].mxu0
    %v5491 = vadd.f32 0.0, %v5490
    %v5492 = vpop.f32.mrb[0].mxu0
    %v5493 = vpop.f32.mrb[0].mxu0
    %v5494 = vpop.f32.mrb[0].mxu0
    %5495 = vdwg.mxu0
    %v5496 = vmax.f32 %v5404, %v5483
    %v5497 = vmax.f32 %v5405, %v5486
    %v5498 = vmax.f32 %v5406, %v5491
    %v5499 = vld [vmem:[%s6] sm:$0x1]
    %v5501 = vlaneseq
    %v5502 = vshrl.u32 %v5501, 7
    %v5503 = vsub.s32 0, %v5502
    %v5504 = vrot.slane %v5499, %v5503
    %v5506 = vadd.f32 %v5496, %v5504
    %v5507 = vadd.f32 %v5497, %v5504
    %v5508 = vadd.f32 %v5498, %v5504
    %v5509 = vmax.f32 %v5506, 0.0
    %v5510 = vmax.f32 %v5507, 0.0
    %v5511 = vmax.f32 %v5508, 0.0
    %v5512 = vpack.c.bf16 %v5510, %v5509
    %v5513 = vpack.c.bf16 %v5511, %v5511
    %v5514 = vld [vmem:[%s8] sm:$0x1]
    %v5516 = vlaneseq
    %v5517 = vshrl.u32 %v5516, 7
    %v5518 = vsub.s32 0, %v5517
    %v5519 = vrot.slane %v5514, %v5518
    %v5521 = vadd.f32 %v5519, 0.0
    %v5522 = vld [vmem:[%s7] sm:$0xf]
    %v5523 = vld [vmem:[%s7 + $0x4] sm:$0xf]
    %v5524 = vld [vmem:[%s7 + $0x8] sm:$0xf]
    %v5525 = vld [vmem:[%s7 + $0xc] sm:$0xf]
    %v5526 = vld [vmem:[%s7 + $0x10] sm:$0xf]
    %v5527 = vld [vmem:[%s7 + $0x14] sm:$0xf]
    %v5528 = vld [vmem:[%s7 + $0x18] sm:$0xf]
    %v5529 = vld [vmem:[%s7 + $0x1c] sm:$0xf]
    %v5530 = vld [vmem:[%s7 + $0x20] sm:$0xf]
    %v5531 = vld [vmem:[%s7 + $0x24] sm:$0xf]
    %v5532 = vld [vmem:[%s7 + $0x28] sm:$0xf]
    %v5533 = vld [vmem:[%s7 + $0x2c] sm:$0x1]
    %v5546 = vunpack.c.l.b16 %v5522
    %v5547 = vunpack.c.l.b16 %v5523
    %v5548 = vunpack.c.l.b16 %v5524
    %v5549 = vunpack.c.l.b16 %v5525
    %v5550 = vunpack.c.l.b16 %v5526
    %v5551 = vunpack.c.l.b16 %v5527
    %v5552 = vunpack.c.l.b16 %v5528
    %v5553 = vunpack.c.l.b16 %v5529
    %v5554 = vunpack.c.l.b16 %v5530
    %v5555 = vunpack.c.l.b16 %v5531
    %v5556 = vunpack.c.l.b16 %v5532
    %v5557 = vunpack.c.l.b16 %v5533
    %v5558 = vpack.c.b16 %v5547, %v5546
    %v5559 = vpack.c.b16 %v5549, %v5548
    %v5560 = vpack.c.b16 %v5551, %v5550
    %v5561 = vpack.c.b16 %v5553, %v5552
    %v5562 = vpack.c.b16 %v5555, %v5554
    %v5563 = vpack.c.b16 %v5557, %v5556
    %vm5569 = vcmask 736256
    %v5571 = vsel %vm5569, %v5512, 0
    %vm5573 = vcmask 1044480
    %v5575 = vsel %vm5573, %v5563, 0
    %5577 = vmatprep.subr.bf16.mxu0 0
    %5578 = vmatpush1.bf16.msra.mxu0 %v5558
    %5579 = vmatprep.subr.bf16.mxu0 0
    %5580 = vmatpush1.bf16.msra.mxu0 %v5559
    %5581 = vmatprep.subr.bf16.mxu0 0
    %5582 = vmatpush1.bf16.msra.mxu0 %v5560
    %5583 = vmatprep.subr.bf16.mxu0 0
    %5584 = vmatpush1.bf16.msra.mxu0 %v5561
    %5585 = vmatprep.subr.bf16.mxu0 0
    %5586 = vmatpush1.bf16.msra.mxu0 %v5562
    %5587 = vmatprep.subr.bf16.mxu0 0
    %5588 = vmatpush1.bf16.msra.mxu0 %v5575
    %5589 = vmatprep.subr.bf16.mxu0 0
    %5590 = vmatpush1.bf16.msra.mxu0 0
    %5591 = vmatprep.subr.bf16.mxu0 0
    %5592 = vmatpush1.bf16.msra.mxu0 0
    %5593 = vmatprep.subr.bf16.mxu0 0
    %5594 = vmatpush1.bf16.msra.mxu0 0
    %5595 = vmatprep.subr.bf16.mxu0 0
    %5596 = vmatpush1.bf16.msra.mxu0 0
    %5597 = vmatprep.subr.bf16.mxu0 0
    %5598 = vmatpush1.bf16.msra.mxu0 0
    %5599 = vmatprep.subr.bf16.mxu0 0
    %5600 = vmatpush1.bf16.msra.mxu0 0
    %5601 = vmatprep.subr.bf16.mxu0 0
    %5602 = vmatpush1.bf16.msra.mxu0 0
    %5603 = vmatprep.subr.bf16.mxu0 0
    %5604 = vmatpush1.bf16.msra.mxu0 0
    %5605 = vmatprep.subr.bf16.mxu0 0
    %5606 = vmatpush1.bf16.msra.mxu0 0
    %5607 = vmatprep.subr.bf16.mxu0 0
    %5608 = vmatpush1.bf16.msra.mxu0 0
    %5609 = vmatprep.mubr.bf16.mxu0 0
    %5610 = vmatmul.mubr.bf16.gmra.mrb[0].mxu0 %v5571
    %v5611 = vpop.f32.mrb[0].mxu0
    %v5612 = vadd.f32 0.0, %v5611
    %v5613 = vpop.f32.mrb[0].mxu0
    %v5614 = vpop.f32.mrb[0].mxu0
    %v5615 = vpop.f32.mrb[0].mxu0
    %5616 = vdwg.mxu0
    %v5617 = vadd.f32 %v5521, %v5612
    %v5618 = vld [vmem:[%s7 + $0x2c] sm:$0xe]
    %v5619 = vld [vmem:[%s7 + $0x30] sm:$0xf]
    %v5620 = vld [vmem:[%s7 + $0x34] sm:$0xf]
    %v5621 = vld [vmem:[%s7 + $0x38] sm:$0xf]
    %v5622 = vld [vmem:[%s7 + $0x3c] sm:$0xf]
    %v5623 = vld [vmem:[%s7 + $0x40] sm:$0xf]
    %v5624 = vld [vmem:[%s7 + $0x44] sm:$0xf]
    %v5625 = vld [vmem:[%s7 + $0x48] sm:$0xf]
    %v5626 = vld [vmem:[%s7 + $0x4c] sm:$0xf]
    %v5627 = vld [vmem:[%s7 + $0x50] sm:$0xf]
    %v5628 = vld [vmem:[%s7 + $0x54] sm:$0xf]
    %v5629 = vld [vmem:[%s7 + $0x58] sm:$0x3]
    %v5631 = vrot.slane %v5512, 1
    %v5644 = vunpack.c.l.b16 %v5618
    %v5645 = vunpack.c.l.b16 %v5619
    %v5646 = vunpack.c.l.b16 %v5620
    %v5647 = vunpack.c.l.b16 %v5621
    %v5648 = vunpack.c.l.b16 %v5622
    %v5649 = vunpack.c.l.b16 %v5623
    %v5650 = vunpack.c.l.b16 %v5624
    %v5651 = vunpack.c.l.b16 %v5625
    %v5652 = vunpack.c.l.b16 %v5626
    %v5653 = vunpack.c.l.b16 %v5627
    %v5654 = vunpack.c.l.b16 %v5628
    %v5655 = vunpack.c.l.b16 %v5629
    %v5656 = vpack.c.b16 %v5645, %v5644
    %v5657 = vpack.c.b16 %v5647, %v5646
    %v5658 = vpack.c.b16 %v5649, %v5648
    %v5659 = vpack.c.b16 %v5651, %v5650
    %v5660 = vpack.c.b16 %v5653, %v5652
    %v5661 = vpack.c.b16 %v5655, %v5654
    %vm5662 = vcmask 1046528
    %v5663 = vrot.slane %v5656, 1
    %v5664 = vrot.slane %v5657, 1
    %v5665 = vsel %vm5662, %v5663, %v5664
    %v5666 = vrot.slane %v5658, 1
    %v5667 = vsel %vm5662, %v5664, %v5666
    %v5668 = vrot.slane %v5659, 1
    %v5669 = vsel %vm5662, %v5666, %v5668
    %v5670 = vrot.slane %v5660, 1
    %v5671 = vsel %vm5662, %v5668, %v5670
    %v5672 = vrot.slane %v5661, 1
    %v5673 = vsel %vm5662, %v5670, %v5672
    %v5680 = vsel %vm5569, %v5631, 0
    %v5683 = vsel %vm5573, %v5672, 0
    %5685 = vmatprep.subr.bf16.mxu0 0
    %5686 = vmatpush1.bf16.msra.mxu0 %v5665
    %5687 = vmatprep.subr.bf16.mxu0 0
    %5688 = vmatpush1.bf16.msra.mxu0 %v5667
    %5689 = vmatprep.subr.bf16.mxu0 0
    %5690 = vmatpush1.bf16.msra.mxu0 %v5669
    %5691 = vmatprep.subr.bf16.mxu0 0
    %5692 = vmatpush1.bf16.msra.mxu0 %v5671
    %5693 = vmatprep.subr.bf16.mxu0 0
    %5694 = vmatpush1.bf16.msra.mxu0 %v5673
    %5695 = vmatprep.subr.bf16.mxu0 0
    %5696 = vmatpush1.bf16.msra.mxu0 %v5683
    %5697 = vmatprep.subr.bf16.mxu0 0
    %5698 = vmatpush1.bf16.msra.mxu0 0
    %5699 = vmatprep.subr.bf16.mxu0 0
    %5700 = vmatpush1.bf16.msra.mxu0 0
    %5701 = vmatprep.subr.bf16.mxu0 0
    %5702 = vmatpush1.bf16.msra.mxu0 0
    %5703 = vmatprep.subr.bf16.mxu0 0
    %5704 = vmatpush1.bf16.msra.mxu0 0
    %5705 = vmatprep.subr.bf16.mxu0 0
    %5706 = vmatpush1.bf16.msra.mxu0 0
    %5707 = vmatprep.subr.bf16.mxu0 0
    %5708 = vmatpush1.bf16.msra.mxu0 0
    %5709 = vmatprep.subr.bf16.mxu0 0
    %5710 = vmatpush1.bf16.msra.mxu0 0
    %5711 = vmatprep.subr.bf16.mxu0 0
    %5712 = vmatpush1.bf16.msra.mxu0 0
    %5713 = vmatprep.subr.bf16.mxu0 0
    %5714 = vmatpush1.bf16.msra.mxu0 0
    %5715 = vmatprep.subr.bf16.mxu0 0
    %5716 = vmatpush1.bf16.msra.mxu0 0
    %5717 = vmatprep.mubr.bf16.mxu0 0
    %5718 = vmatmul.mubr.bf16.gmra.mrb[0].mxu0 %v5680
    %v5719 = vpop.f32.mrb[0].mxu0
    %v5720 = vadd.f32 0.0, %v5719
    %v5721 = vpop.f32.mrb[0].mxu0
    %v5722 = vpop.f32.mrb[0].mxu0
    %v5723 = vpop.f32.mrb[0].mxu0
    %5724 = vdwg.mxu0
    %v5725 = vadd.f32 %v5617, %v5720
    %v5726 = vld [vmem:[%s7 + $0x58] sm:$0xc]
    %v5727 = vld [vmem:[%s7 + $0x5c] sm:$0xf]
    %v5728 = vld [vmem:[%s7 + $0x60] sm:$0xf]
    %v5729 = vld [vmem:[%s7 + $0x64] sm:$0xf]
    %v5730 = vld [vmem:[%s7 + $0x68] sm:$0xf]
    %v5731 = vld [vmem:[%s7 + $0x6c] sm:$0xf]
    %v5732 = vld [vmem:[%s7 + $0x70] sm:$0xf]
    %v5733 = vld [vmem:[%s7 + $0x74] sm:$0xf]
    %v5734 = vld [vmem:[%s7 + $0x78] sm:$0xf]
    %v5735 = vld [vmem:[%s7 + $0x7c] sm:$0xf]
    %v5736 = vld [vmem:[%s7 + $0x80] sm:$0xf]
    %v5737 = vld [vmem:[%s7 + $0x84] sm:$0x7]
    %v5738 = vrot.slane %v5512, 2
    %v5751 = vunpack.c.l.b16 %v5726
    %v5752 = vunpack.c.l.b16 %v5727
    %v5753 = vunpack.c.l.b16 %v5728
    %v5754 = vunpack.c.l.b16 %v5729
    %v5755 = vunpack.c.l.b16 %v5730
    %v5756 = vunpack.c.l.b16 %v5731
    %v5757 = vunpack.c.l.b16 %v5732
    %v5758 = vunpack.c.l.b16 %v5733
    %v5759 = vunpack.c.l.b16 %v5734
    %v5760 = vunpack.c.l.b16 %v5735
    %v5761 = vunpack.c.l.b16 %v5736
    %v5762 = vunpack.c.l.b16 %v5737
    %v5763 = vpack.c.b16 %v5752, %v5751
    %v5764 = vpack.c.b16 %v5754, %v5753
    %v5765 = vpack.c.b16 %v5756, %v5755
    %v5766 = vpack.c.b16 %v5758, %v5757
    %v5767 = vpack.c.b16 %v5760, %v5759
    %v5768 = vpack.c.b16 %v5762, %v5761
    %v5769 = vrot.slane %v5763, 2
    %v5770 = vrot.slane %v5764, 2
    %v5771 = vsel %vm1168, %v5769, %v5770
    %v5772 = vrot.slane %v5765, 2
    %v5773 = vsel %vm1168, %v5770, %v5772
    %v5774 = vrot.slane %v5766, 2
    %v5775 = vsel %vm1168, %v5772, %v5774
    %v5776 = vrot.slane %v5767, 2
    %v5777 = vsel %vm1168, %v5774, %v5776
    %v5778 = vrot.slane %v5768, 2
    %v5779 = vsel %vm1168, %v5776, %v5778
    %v5786 = vsel %vm5569, %v5738, 0
    %v5789 = vsel %vm5573, %v5778, 0
    %5791 = vmatprep.subr.bf16.mxu0 0
    %5792 = vmatpush1.bf16.msra.mxu0 %v5771
    %5793 = vmatprep.subr.bf16.mxu0 0
    %5794 = vmatpush1.bf16.msra.mxu0 %v5773
    %5795 = vmatprep.subr.bf16.mxu0 0
    %5796 = vmatpush1.bf16.msra.mxu0 %v5775
    %5797 = vmatprep.subr.bf16.mxu0 0
    %5798 = vmatpush1.bf16.msra.mxu0 %v5777
    %5799 = vmatprep.subr.bf16.mxu0 0
    %5800 = vmatpush1.bf16.msra.mxu0 %v5779
    %5801 = vmatprep.subr.bf16.mxu0 0
    %5802 = vmatpush1.bf16.msra.mxu0 %v5789
    %5803 = vmatprep.subr.bf16.mxu0 0
    %5804 = vmatpush1.bf16.msra.mxu0 0
    %5805 = vmatprep.subr.bf16.mxu0 0
    %5806 = vmatpush1.bf16.msra.mxu0 0
    %5807 = vmatprep.subr.bf16.mxu0 0
    %5808 = vmatpush1.bf16.msra.mxu0 0
    %5809 = vmatprep.subr.bf16.mxu0 0
    %5810 = vmatpush1.bf16.msra.mxu0 0
    %5811 = vmatprep.subr.bf16.mxu0 0
    %5812 = vmatpush1.bf16.msra.mxu0 0
    %5813 = vmatprep.subr.bf16.mxu0 0
    %5814 = vmatpush1.bf16.msra.mxu0 0
    %5815 = vmatprep.subr.bf16.mxu0 0
    %5816 = vmatpush1.bf16.msra.mxu0 0
    %5817 = vmatprep.subr.bf16.mxu0 0
    %5818 = vmatpush1.bf16.msra.mxu0 0
    %5819 = vmatprep.subr.bf16.mxu0 0
    %5820 = vmatpush1.bf16.msra.mxu0 0
    %5821 = vmatprep.subr.bf16.mxu0 0
    %5822 = vmatpush1.bf16.msra.mxu0 0
    %5823 = vmatprep.mubr.bf16.mxu0 0
    %5824 = vmatmul.mubr.bf16.gmra.mrb[0].mxu0 %v5786
    %v5825 = vpop.f32.mrb[0].mxu0
    %v5826 = vadd.f32 0.0, %v5825
    %v5827 = vpop.f32.mrb[0].mxu0
    %v5828 = vpop.f32.mrb[0].mxu0
    %v5829 = vpop.f32.mrb[0].mxu0
    %5830 = vdwg.mxu0
    %v5831 = vadd.f32 %v5725, %v5826
    %v5832 = vld [vmem:[%s7 + $0x84] sm:$0x8]
    %v5833 = vld [vmem:[%s7 + $0x88] sm:$0xf]
    %v5834 = vld [vmem:[%s7 + $0x8c] sm:$0xf]
    %v5835 = vld [vmem:[%s7 + $0x90] sm:$0xf]
    %v5836 = vld [vmem:[%s7 + $0x94] sm:$0xf]
    %v5837 = vld [vmem:[%s7 + $0x98] sm:$0xf]
    %v5838 = vld [vmem:[%s7 + $0x9c] sm:$0xf]
    %v5839 = vld [vmem:[%s7 + $0xa0] sm:$0xf]
    %v5840 = vld [vmem:[%s7 + $0xa4] sm:$0xf]
    %v5841 = vld [vmem:[%s7 + $0xa8] sm:$0xf]
    %v5842 = vld [vmem:[%s7 + $0xac] sm:$0xf]
    %v5843 = vld [vmem:[%s7 + $0xb0] sm:$0xf]
    %v5844 = vrot.slane %v5512, 3
    %v5857 = vunpack.c.l.b16 %v5832
    %v5858 = vunpack.c.l.b16 %v5833
    %v5859 = vunpack.c.l.b16 %v5834
    %v5860 = vunpack.c.l.b16 %v5835
    %v5861 = vunpack.c.l.b16 %v5836
    %v5862 = vunpack.c.l.b16 %v5837
    %v5863 = vunpack.c.l.b16 %v5838
    %v5864 = vunpack.c.l.b16 %v5839
    %v5865 = vunpack.c.l.b16 %v5840
    %v5866 = vunpack.c.l.b16 %v5841
    %v5867 = vunpack.c.l.b16 %v5842
    %v5868 = vunpack.c.l.b16 %v5843
    %v5869 = vpack.c.b16 %v5858, %v5857
    %v5870 = vpack.c.b16 %v5860, %v5859
    %v5871 = vpack.c.b16 %v5862, %v5861
    %v5872 = vpack.c.b16 %v5864, %v5863
    %v5873 = vpack.c.b16 %v5866, %v5865
    %v5874 = vpack.c.b16 %v5868, %v5867
    %vm5875 = vcmask 1044480
    %v5876 = vrot.slane %v5869, 3
    %v5877 = vrot.slane %v5870, 3
    %v5878 = vsel %vm5875, %v5876, %v5877
    %v5879 = vrot.slane %v5871, 3
    %v5880 = vsel %vm5875, %v5877, %v5879
    %v5881 = vrot.slane %v5872, 3
    %v5882 = vsel %vm5875, %v5879, %v5881
    %v5883 = vrot.slane %v5873, 3
    %v5884 = vsel %vm5875, %v5881, %v5883
    %v5885 = vrot.slane %v5874, 3
    %v5886 = vsel %vm5875, %v5883, %v5885
    %v5893 = vsel %vm5569, %v5844, 0
    %v5896 = vsel %vm5573, %v5885, 0
    %5898 = vmatprep.subr.bf16.mxu0 0
    %5899 = vmatpush1.bf16.msra.mxu0 %v5878
    %5900 = vmatprep.subr.bf16.mxu0 0
    %5901 = vmatpush1.bf16.msra.mxu0 %v5880
    %5902 = vmatprep.subr.bf16.mxu0 0
    %5903 = vmatpush1.bf16.msra.mxu0 %v5882
    %5904 = vmatprep.subr.bf16.mxu0 0
    %5905 = vmatpush1.bf16.msra.mxu0 %v5884
    %5906 = vmatprep.subr.bf16.mxu0 0
    %5907 = vmatpush1.bf16.msra.mxu0 %v5886
    %5908 = vmatprep.subr.bf16.mxu0 0
    %5909 = vmatpush1.bf16.msra.mxu0 %v5896
    %5910 = vmatprep.subr.bf16.mxu0 0
    %5911 = vmatpush1.bf16.msra.mxu0 0
    %5912 = vmatprep.subr.bf16.mxu0 0
    %5913 = vmatpush1.bf16.msra.mxu0 0
    %5914 = vmatprep.subr.bf16.mxu0 0
    %5915 = vmatpush1.bf16.msra.mxu0 0
    %5916 = vmatprep.subr.bf16.mxu0 0
    %5917 = vmatpush1.bf16.msra.mxu0 0
    %5918 = vmatprep.subr.bf16.mxu0 0
    %5919 = vmatpush1.bf16.msra.mxu0 0
    %5920 = vmatprep.subr.bf16.mxu0 0
    %5921 = vmatpush1.bf16.msra.mxu0 0
    %5922 = vmatprep.subr.bf16.mxu0 0
    %5923 = vmatpush1.bf16.msra.mxu0 0
    %5924 = vmatprep.subr.bf16.mxu0 0
    %5925 = vmatpush1.bf16.msra.mxu0 0
    %5926 = vmatprep.subr.bf16.mxu0 0
    %5927 = vmatpush1.bf16.msra.mxu0 0
    %5928 = vmatprep.subr.bf16.mxu0 0
    %5929 = vmatpush1.bf16.msra.mxu0 0
    %5930 = vmatprep.mubr.bf16.mxu0 0
    %5931 = vmatmul.mubr.bf16.gmra.mrb[0].mxu0 %v5893
    %v5932 = vpop.f32.mrb[0].mxu0
    %v5933 = vadd.f32 0.0, %v5932
    %v5934 = vpop.f32.mrb[0].mxu0
    %v5935 = vpop.f32.mrb[0].mxu0
    %v5936 = vpop.f32.mrb[0].mxu0
    %5937 = vdwg.mxu0
    %v5938 = vadd.f32 %v5831, %v5933
    %v5939 = vld [vmem:[%s7 + $0xb4] sm:$0xf]
    %v5940 = vld [vmem:[%s7 + $0xb8] sm:$0xf]
    %v5941 = vld [vmem:[%s7 + $0xbc] sm:$0xf]
    %v5942 = vld [vmem:[%s7 + $0xc0] sm:$0xf]
    %v5943 = vld [vmem:[%s7 + $0xc4] sm:$0xf]
    %v5944 = vld [vmem:[%s7 + $0xc8] sm:$0xf]
    %v5945 = vld [vmem:[%s7 + $0xcc] sm:$0xf]
    %v5946 = vld [vmem:[%s7 + $0xd0] sm:$0xf]
    %v5947 = vld [vmem:[%s7 + $0xd4] sm:$0xf]
    %v5948 = vld [vmem:[%s7 + $0xd8] sm:$0xf]
    %v5949 = vld [vmem:[%s7 + $0xdc] sm:$0xf]
    %v5950 = vld [vmem:[%s7 + $0xe0] sm:$0x1]
    %v5951 = vrot.slane %v5512, 4
    %v5964 = vunpack.c.l.b16 %v5939
    %v5965 = vunpack.c.l.b16 %v5940
    %v5966 = vunpack.c.l.b16 %v5941
    %v5967 = vunpack.c.l.b16 %v5942
    %v5968 = vunpack.c.l.b16 %v5943
    %v5969 = vunpack.c.l.b16 %v5944
    %v5970 = vunpack.c.l.b16 %v5945
    %v5971 = vunpack.c.l.b16 %v5946
    %v5972 = vunpack.c.l.b16 %v5947
    %v5973 = vunpack.c.l.b16 %v5948
    %v5974 = vunpack.c.l.b16 %v5949
    %v5975 = vunpack.c.l.b16 %v5950
    %v5976 = vpack.c.b16 %v5965, %v5964
    %v5977 = vpack.c.b16 %v5967, %v5966
    %v5978 = vpack.c.b16 %v5969, %v5968
    %v5979 = vpack.c.b16 %v5971, %v5970
    %v5980 = vpack.c.b16 %v5973, %v5972
    %v5981 = vpack.c.b16 %v5975, %v5974
    %v5988 = vsel %vm5569, %v5951, 0
    %v5991 = vsel %vm5573, %v5981, 0
    %5993 = vmatprep.subr.bf16.mxu0 0
    %5994 = vmatpush1.bf16.msra.mxu0 %v5976
    %5995 = vmatprep.subr.bf16.mxu0 0
    %5996 = vmatpush1.bf16.msra.mxu0 %v5977
    %5997 = vmatprep.subr.bf16.mxu0 0
    %5998 = vmatpush1.bf16.msra.mxu0 %v5978
    %5999 = vmatprep.subr.bf16.mxu0 0
    %6000 = vmatpush1.bf16.msra.mxu0 %v5979
    %6001 = vmatprep.subr.bf16.mxu0 0
    %6002 = vmatpush1.bf16.msra.mxu0 %v5980
    %6003 = vmatprep.subr.bf16.mxu0 0
    %6004 = vmatpush1.bf16.msra.mxu0 %v5991
    %6005 = vmatprep.subr.bf16.mxu0 0
    %6006 = vmatpush1.bf16.msra.mxu0 0
    %6007 = vmatprep.subr.bf16.mxu0 0
    %6008 = vmatpush1.bf16.msra.mxu0 0
    %6009 = vmatprep.subr.bf16.mxu0 0
    %6010 = vmatpush1.bf16.msra.mxu0 0
    %6011 = vmatprep.subr.bf16.mxu0 0
    %6012 = vmatpush1.bf16.msra.mxu0 0
    %6013 = vmatprep.subr.bf16.mxu0 0
    %6014 = vmatpush1.bf16.msra.mxu0 0
    %6015 = vmatprep.subr.bf16.mxu0 0
    %6016 = vmatpush1.bf16.msra.mxu0 0
    %6017 = vmatprep.subr.bf16.mxu0 0
    %6018 = vmatpush1.bf16.msra.mxu0 0
    %6019 = vmatprep.subr.bf16.mxu0 0
    %6020 = vmatpush1.bf16.msra.mxu0 0
    %6021 = vmatprep.subr.bf16.mxu0 0
    %6022 = vmatpush1.bf16.msra.mxu0 0
    %6023 = vmatprep.subr.bf16.mxu0 0
    %6024 = vmatpush1.bf16.msra.mxu0 0
    %6025 = vmatprep.mubr.bf16.mxu0 0
    %6026 = vmatmul.mubr.bf16.gmra.mrb[0].mxu0 %v5988
    %v6027 = vpop.f32.mrb[0].mxu0
    %v6028 = vadd.f32 0.0, %v6027
    %v6029 = vpop.f32.mrb[0].mxu0
    %v6030 = vpop.f32.mrb[0].mxu0
    %v6031 = vpop.f32.mrb[0].mxu0
    %6032 = vdwg.mxu0
    %v6033 = vadd.f32 %v5938, %v6028
    %v6034 = vld [vmem:[%s7 + $0xe0] sm:$0xe]
    %v6035 = vld [vmem:[%s7 + $0xe4] sm:$0xf]
    %v6036 = vld [vmem:[%s7 + $0xe8] sm:$0xf]
    %v6037 = vld [vmem:[%s7 + $0xec] sm:$0xf]
    %v6038 = vld [vmem:[%s7 + $0xf0] sm:$0xf]
    %v6039 = vld [vmem:[%s7 + $0xf4] sm:$0xf]
    %v6040 = vld [vmem:[%s7 + $0xf8] sm:$0xf]
    %v6041 = vld [vmem:[%s7 + $0xfc] sm:$0xf]
    %v6042 = vld [vmem:[%s7 + $0x100] sm:$0xf]
    %v6043 = vld [vmem:[%s7 + $0x104] sm:$0xf]
    %v6044 = vld [vmem:[%s7 + $0x108] sm:$0xf]
    %v6045 = vld [vmem:[%s7 + $0x10c] sm:$0x3]
    %v6046 = vrot.slane %v5512, 5
    %v6059 = vunpack.c.l.b16 %v6034
    %v6060 = vunpack.c.l.b16 %v6035
    %v6061 = vunpack.c.l.b16 %v6036
    %v6062 = vunpack.c.l.b16 %v6037
    %v6063 = vunpack.c.l.b16 %v6038
    %v6064 = vunpack.c.l.b16 %v6039
    %v6065 = vunpack.c.l.b16 %v6040
    %v6066 = vunpack.c.l.b16 %v6041
    %v6067 = vunpack.c.l.b16 %v6042
    %v6068 = vunpack.c.l.b16 %v6043
    %v6069 = vunpack.c.l.b16 %v6044
    %v6070 = vunpack.c.l.b16 %v6045
    %v6071 = vpack.c.b16 %v6060, %v6059
    %v6072 = vpack.c.b16 %v6062, %v6061
    %v6073 = vpack.c.b16 %v6064, %v6063
    %v6074 = vpack.c.b16 %v6066, %v6065
    %v6075 = vpack.c.b16 %v6068, %v6067
    %v6076 = vpack.c.b16 %v6070, %v6069
    %v6077 = vrot.slane %v6071, 1
    %v6078 = vrot.slane %v6072, 1
    %v6079 = vsel %vm5662, %v6077, %v6078
    %v6080 = vrot.slane %v6073, 1
    %v6081 = vsel %vm5662, %v6078, %v6080
    %v6082 = vrot.slane %v6074, 1
    %v6083 = vsel %vm5662, %v6080, %v6082
    %v6084 = vrot.slane %v6075, 1
    %v6085 = vsel %vm5662, %v6082, %v6084
    %v6086 = vrot.slane %v6076, 1
    %v6087 = vsel %vm5662, %v6084, %v6086
    %v6094 = vsel %vm5569, %v6046, 0
    %v6097 = vsel %vm5573, %v6086, 0
    %6099 = vmatprep.subr.bf16.mxu0 0
    %6100 = vmatpush1.bf16.msra.mxu0 %v6079
    %6101 = vmatprep.subr.bf16.mxu0 0
    %6102 = vmatpush1.bf16.msra.mxu0 %v6081
    %6103 = vmatprep.subr.bf16.mxu0 0
    %6104 = vmatpush1.bf16.msra.mxu0 %v6083
    %6105 = vmatprep.subr.bf16.mxu0 0
    %6106 = vmatpush1.bf16.msra.mxu0 %v6085
    %6107 = vmatprep.subr.bf16.mxu0 0
    %6108 = vmatpush1.bf16.msra.mxu0 %v6087
    %6109 = vmatprep.subr.bf16.mxu0 0
    %6110 = vmatpush1.bf16.msra.mxu0 %v6097
    %6111 = vmatprep.subr.bf16.mxu0 0
    %6112 = vmatpush1.bf16.msra.mxu0 0
    %6113 = vmatprep.subr.bf16.mxu0 0
    %6114 = vmatpush1.bf16.msra.mxu0 0
    %6115 = vmatprep.subr.bf16.mxu0 0
    %6116 = vmatpush1.bf16.msra.mxu0 0
    %6117 = vmatprep.subr.bf16.mxu0 0
    %6118 = vmatpush1.bf16.msra.mxu0 0
    %6119 = vmatprep.subr.bf16.mxu0 0
    %6120 = vmatpush1.bf16.msra.mxu0 0
    %6121 = vmatprep.subr.bf16.mxu0 0
    %6122 = vmatpush1.bf16.msra.mxu0 0
    %6123 = vmatprep.subr.bf16.mxu0 0
    %6124 = vmatpush1.bf16.msra.mxu0 0
    %6125 = vmatprep.subr.bf16.mxu0 0
    %6126 = vmatpush1.bf16.msra.mxu0 0
    %6127 = vmatprep.subr.bf16.mxu0 0
    %6128 = vmatpush1.bf16.msra.mxu0 0
    %6129 = vmatprep.subr.bf16.mxu0 0
    %6130 = vmatpush1.bf16.msra.mxu0 0
    %6131 = vmatprep.mubr.bf16.mxu0 0
    %6132 = vmatmul.mubr.bf16.gmra.mrb[0].mxu0 %v6094
    %v6133 = vpop.f32.mrb[0].mxu0
    %v6134 = vadd.f32 0.0, %v6133
    %v6135 = vpop.f32.mrb[0].mxu0
    %v6136 = vpop.f32.mrb[0].mxu0
    %v6137 = vpop.f32.mrb[0].mxu0
    %6138 = vdwg.mxu0
    %v6139 = vadd.f32 %v6033, %v6134
    %v6140 = vld [vmem:[%s7 + $0x10c] sm:$0xc]
    %v6141 = vld [vmem:[%s7 + $0x110] sm:$0xf]
    %v6142 = vld [vmem:[%s7 + $0x114] sm:$0xf]
    %v6143 = vld [vmem:[%s7 + $0x118] sm:$0xf]
    %v6144 = vld [vmem:[%s7 + $0x11c] sm:$0xf]
    %v6145 = vld [vmem:[%s7 + $0x120] sm:$0xf]
    %v6146 = vld [vmem:[%s7 + $0x124] sm:$0xf]
    %v6147 = vld [vmem:[%s7 + $0x128] sm:$0xf]
    %v6148 = vld [vmem:[%s7 + $0x12c] sm:$0xf]
    %v6149 = vld [vmem:[%s7 + $0x130] sm:$0xf]
    %v6150 = vld [vmem:[%s7 + $0x134] sm:$0xf]
    %v6151 = vld [vmem:[%s7 + $0x138] sm:$0x7]
    %v6152 = vrot.slane %v5512, 6
    %v6165 = vunpack.c.l.b16 %v6140
    %v6166 = vunpack.c.l.b16 %v6141
    %v6167 = vunpack.c.l.b16 %v6142
    %v6168 = vunpack.c.l.b16 %v6143
    %v6169 = vunpack.c.l.b16 %v6144
    %v6170 = vunpack.c.l.b16 %v6145
    %v6171 = vunpack.c.l.b16 %v6146
    %v6172 = vunpack.c.l.b16 %v6147
    %v6173 = vunpack.c.l.b16 %v6148
    %v6174 = vunpack.c.l.b16 %v6149
    %v6175 = vunpack.c.l.b16 %v6150
    %v6176 = vunpack.c.l.b16 %v6151
    %v6177 = vpack.c.b16 %v6166, %v6165
    %v6178 = vpack.c.b16 %v6168, %v6167
    %v6179 = vpack.c.b16 %v6170, %v6169
    %v6180 = vpack.c.b16 %v6172, %v6171
    %v6181 = vpack.c.b16 %v6174, %v6173
    %v6182 = vpack.c.b16 %v6176, %v6175
    %v6183 = vrot.slane %v6177, 2
    %v6184 = vrot.slane %v6178, 2
    %v6185 = vsel %vm1168, %v6183, %v6184
    %v6186 = vrot.slane %v6179, 2
    %v6187 = vsel %vm1168, %v6184, %v6186
    %v6188 = vrot.slane %v6180, 2
    %v6189 = vsel %vm1168, %v6186, %v6188
    %v6190 = vrot.slane %v6181, 2
    %v6191 = vsel %vm1168, %v6188, %v6190
    %v6192 = vrot.slane %v6182, 2
    %v6193 = vsel %vm1168, %v6190, %v6192
    %v6200 = vsel %vm5569, %v6152, 0
    %v6203 = vsel %vm5573, %v6192, 0
    %6205 = vmatprep.subr.bf16.mxu0 0
    %6206 = vmatpush1.bf16.msra.mxu0 %v6185
    %6207 = vmatprep.subr.bf16.mxu0 0
    %6208 = vmatpush1.bf16.msra.mxu0 %v6187
    %6209 = vmatprep.subr.bf16.mxu0 0
    %6210 = vmatpush1.bf16.msra.mxu0 %v6189
    %6211 = vmatprep.subr.bf16.mxu0 0
    %6212 = vmatpush1.bf16.msra.mxu0 %v6191
    %6213 = vmatprep.subr.bf16.mxu0 0
    %6214 = vmatpush1.bf16.msra.mxu0 %v6193
    %6215 = vmatprep.subr.bf16.mxu0 0
    %6216 = vmatpush1.bf16.msra.mxu0 %v6203
    %6217 = vmatprep.subr.bf16.mxu0 0
    %6218 = vmatpush1.bf16.msra.mxu0 0
    %6219 = vmatprep.subr.bf16.mxu0 0
    %6220 = vmatpush1.bf16.msra.mxu0 0
    %6221 = vmatprep.subr.bf16.mxu0 0
    %6222 = vmatpush1.bf16.msra.mxu0 0
    %6223 = vmatprep.subr.bf16.mxu0 0
    %6224 = vmatpush1.bf16.msra.mxu0 0
    %6225 = vmatprep.subr.bf16.mxu0 0
    %6226 = vmatpush1.bf16.msra.mxu0 0
    %6227 = vmatprep.subr.bf16.mxu0 0
    %6228 = vmatpush1.bf16.msra.mxu0 0
    %6229 = vmatprep.subr.bf16.mxu0 0
    %6230 = vmatpush1.bf16.msra.mxu0 0
    %6231 = vmatprep.subr.bf16.mxu0 0
    %6232 = vmatpush1.bf16.msra.mxu0 0
    %6233 = vmatprep.subr.bf16.mxu0 0
    %6234 = vmatpush1.bf16.msra.mxu0 0
    %6235 = vmatprep.subr.bf16.mxu0 0
    %6236 = vmatpush1.bf16.msra.mxu0 0
    %6237 = vmatprep.mubr.bf16.mxu0 0
    %6238 = vmatmul.mubr.bf16.gmra.mrb[0].mxu0 %v6200
    %v6239 = vpop.f32.mrb[0].mxu0
    %v6240 = vadd.f32 0.0, %v6239
    %v6241 = vpop.f32.mrb[0].mxu0
    %v6242 = vpop.f32.mrb[0].mxu0
    %v6243 = vpop.f32.mrb[0].mxu0
    %6244 = vdwg.mxu0
    %v6245 = vadd.f32 %v6139, %v6240
    %v6246 = vld [vmem:[%s7 + $0x138] sm:$0x8]
    %v6247 = vld [vmem:[%s7 + $0x13c] sm:$0xf]
    %v6248 = vld [vmem:[%s7 + $0x140] sm:$0xf]
    %v6249 = vld [vmem:[%s7 + $0x144] sm:$0xf]
    %v6250 = vld [vmem:[%s7 + $0x148] sm:$0xf]
    %v6251 = vld [vmem:[%s7 + $0x14c] sm:$0xf]
    %v6252 = vld [vmem:[%s7 + $0x150] sm:$0xf]
    %v6253 = vld [vmem:[%s7 + $0x154] sm:$0xf]
    %v6254 = vld [vmem:[%s7 + $0x158] sm:$0xf]
    %v6255 = vld [vmem:[%s7 + $0x15c] sm:$0xf]
    %v6256 = vld [vmem:[%s7 + $0x160] sm:$0xf]
    %v6257 = vld [vmem:[%s7 + $0x164] sm:$0xf]
    %v6258 = vrot.slane %v5512, 7
    %v6271 = vunpack.c.l.b16 %v6246
    %v6272 = vunpack.c.l.b16 %v6247
    %v6273 = vunpack.c.l.b16 %v6248
    %v6274 = vunpack.c.l.b16 %v6249
    %v6275 = vunpack.c.l.b16 %v6250
    %v6276 = vunpack.c.l.b16 %v6251
    %v6277 = vunpack.c.l.b16 %v6252
    %v6278 = vunpack.c.l.b16 %v6253
    %v6279 = vunpack.c.l.b16 %v6254
    %v6280 = vunpack.c.l.b16 %v6255
    %v6281 = vunpack.c.l.b16 %v6256
    %v6282 = vunpack.c.l.b16 %v6257
    %v6283 = vpack.c.b16 %v6272, %v6271
    %v6284 = vpack.c.b16 %v6274, %v6273
    %v6285 = vpack.c.b16 %v6276, %v6275
    %v6286 = vpack.c.b16 %v6278, %v6277
    %v6287 = vpack.c.b16 %v6280, %v6279
    %v6288 = vpack.c.b16 %v6282, %v6281
    %v6289 = vrot.slane %v6283, 3
    %v6290 = vrot.slane %v6284, 3
    %v6291 = vsel %vm5875, %v6289, %v6290
    %v6292 = vrot.slane %v6285, 3
    %v6293 = vsel %vm5875, %v6290, %v6292
    %v6294 = vrot.slane %v6286, 3
    %v6295 = vsel %vm5875, %v6292, %v6294
    %v6296 = vrot.slane %v6287, 3
    %v6297 = vsel %vm5875, %v6294, %v6296
    %v6298 = vrot.slane %v6288, 3
    %v6299 = vsel %vm5875, %v6296, %v6298
    %v6306 = vsel %vm5569, %v6258, 0
    %v6309 = vsel %vm5573, %v6298, 0
    %6311 = vmatprep.subr.bf16.mxu0 0
    %6312 = vmatpush1.bf16.msra.mxu0 %v6291
    %6313 = vmatprep.subr.bf16.mxu0 0
    %6314 = vmatpush1.bf16.msra.mxu0 %v6293
    %6315 = vmatprep.subr.bf16.mxu0 0
    %6316 = vmatpush1.bf16.msra.mxu0 %v6295
    %6317 = vmatprep.subr.bf16.mxu0 0
    %6318 = vmatpush1.bf16.msra.mxu0 %v6297
    %6319 = vmatprep.subr.bf16.mxu0 0
    %6320 = vmatpush1.bf16.msra.mxu0 %v6299
    %6321 = vmatprep.subr.bf16.mxu0 0
    %6322 = vmatpush1.bf16.msra.mxu0 %v6309
    %6323 = vmatprep.subr.bf16.mxu0 0
    %6324 = vmatpush1.bf16.msra.mxu0 0
    %6325 = vmatprep.subr.bf16.mxu0 0
    %6326 = vmatpush1.bf16.msra.mxu0 0
    %6327 = vmatprep.subr.bf16.mxu0 0
    %6328 = vmatpush1.bf16.msra.mxu0 0
    %6329 = vmatprep.subr.bf16.mxu0 0
    %6330 = vmatpush1.bf16.msra.mxu0 0
    %6331 = vmatprep.subr.bf16.mxu0 0
    %6332 = vmatpush1.bf16.msra.mxu0 0
    %6333 = vmatprep.subr.bf16.mxu0 0
    %6334 = vmatpush1.bf16.msra.mxu0 0
    %6335 = vmatprep.subr.bf16.mxu0 0
    %6336 = vmatpush1.bf16.msra.mxu0 0
    %6337 = vmatprep.subr.bf16.mxu0 0
    %6338 = vmatpush1.bf16.msra.mxu0 0
    %6339 = vmatprep.subr.bf16.mxu0 0
    %6340 = vmatpush1.bf16.msra.mxu0 0
    %6341 = vmatprep.subr.bf16.mxu0 0
    %6342 = vmatpush1.bf16.msra.mxu0 0
    %6343 = vmatprep.mubr.bf16.mxu0 0
    %6344 = vmatmul.mubr.bf16.gmra.mrb[0].mxu0 %v6306
    %v6345 = vpop.f32.mrb[0].mxu0
    %v6346 = vadd.f32 0.0, %v6345
    %v6347 = vpop.f32.mrb[0].mxu0
    %v6348 = vpop.f32.mrb[0].mxu0
    %v6349 = vpop.f32.mrb[0].mxu0
    %6350 = vdwg.mxu0
    %v6351 = vadd.f32 %v6245, %v6346
    %v6352 = vld [vmem:[%s7 + $0x168] sm:$0xf]
    %v6353 = vld [vmem:[%s7 + $0x16c] sm:$0xf]
    %v6354 = vld [vmem:[%s7 + $0x170] sm:$0xf]
    %v6355 = vld [vmem:[%s7 + $0x174] sm:$0xf]
    %v6356 = vld [vmem:[%s7 + $0x178] sm:$0xf]
    %v6357 = vld [vmem:[%s7 + $0x17c] sm:$0xf]
    %v6358 = vld [vmem:[%s7 + $0x180] sm:$0xf]
    %v6359 = vld [vmem:[%s7 + $0x184] sm:$0xf]
    %v6360 = vld [vmem:[%s7 + $0x188] sm:$0xf]
    %v6361 = vld [vmem:[%s7 + $0x18c] sm:$0xf]
    %v6362 = vld [vmem:[%s7 + $0x190] sm:$0xf]
    %v6363 = vld [vmem:[%s7 + $0x194] sm:$0x1]
    %v6376 = vunpack.c.l.b16 %v6352
    %v6377 = vunpack.c.l.b16 %v6353
    %v6378 = vunpack.c.l.b16 %v6354
    %v6379 = vunpack.c.l.b16 %v6355
    %v6380 = vunpack.c.l.b16 %v6356
    %v6381 = vunpack.c.l.b16 %v6357
    %v6382 = vunpack.c.l.b16 %v6358
    %v6383 = vunpack.c.l.b16 %v6359
    %v6384 = vunpack.c.l.b16 %v6360
    %v6385 = vunpack.c.l.b16 %v6361
    %v6386 = vunpack.c.l.b16 %v6362
    %v6387 = vunpack.c.l.b16 %v6363
    %v6388 = vpack.c.b16 %v6377, %v6376
    %v6389 = vpack.c.b16 %v6379, %v6378
    %v6390 = vpack.c.b16 %v6381, %v6380
    %v6391 = vpack.c.b16 %v6383, %v6382
    %v6392 = vpack.c.b16 %v6385, %v6384
    %v6393 = vpack.c.b16 %v6387, %v6386
    %v6400 = vsel %vm5569, %v5513, 0
    %v6403 = vsel %vm5573, %v6393, 0
    %6405 = vmatprep.subr.bf16.mxu0 0
    %6406 = vmatpush1.bf16.msra.mxu0 %v6388
    %6407 = vmatprep.subr.bf16.mxu0 0
    %6408 = vmatpush1.bf16.msra.mxu0 %v6389
    %6409 = vmatprep.subr.bf16.mxu0 0
    %6410 = vmatpush1.bf16.msra.mxu0 %v6390
    %6411 = vmatprep.subr.bf16.mxu0 0
    %6412 = vmatpush1.bf16.msra.mxu0 %v6391
    %6413 = vmatprep.subr.bf16.mxu0 0
    %6414 = vmatpush1.bf16.msra.mxu0 %v6392
    %6415 = vmatprep.subr.bf16.mxu0 0
    %6416 = vmatpush1.bf16.msra.mxu0 %v6403
    %6417 = vmatprep.subr.bf16.mxu0 0
    %6418 = vmatpush1.bf16.msra.mxu0 0
    %6419 = vmatprep.subr.bf16.mxu0 0
    %6420 = vmatpush1.bf16.msra.mxu0 0
    %6421 = vmatprep.subr.bf16.mxu0 0
    %6422 = vmatpush1.bf16.msra.mxu0 0
    %6423 = vmatprep.subr.bf16.mxu0 0
    %6424 = vmatpush1.bf16.msra.mxu0 0
    %6425 = vmatprep.subr.bf16.mxu0 0
    %6426 = vmatpush1.bf16.msra.mxu0 0
    %6427 = vmatprep.subr.bf16.mxu0 0
    %6428 = vmatpush1.bf16.msra.mxu0 0
    %6429 = vmatprep.subr.bf16.mxu0 0
    %6430 = vmatpush1.bf16.msra.mxu0 0
    %6431 = vmatprep.subr.bf16.mxu0 0
    %6432 = vmatpush1.bf16.msra.mxu0 0
    %6433 = vmatprep.subr.bf16.mxu0 0
    %6434 = vmatpush1.bf16.msra.mxu0 0
    %6435 = vmatprep.subr.bf16.mxu0 0
    %6436 = vmatpush1.bf16.msra.mxu0 0
    %6437 = vmatprep.mubr.bf16.mxu0 0
    %6438 = vmatmul.mubr.bf16.gmra.mrb[0].mxu0 %v6400
    %v6439 = vpop.f32.mrb[0].mxu0
    %v6440 = vadd.f32 0.0, %v6439
    %v6441 = vpop.f32.mrb[0].mxu0
    %v6442 = vpop.f32.mrb[0].mxu0
    %v6443 = vpop.f32.mrb[0].mxu0
    %6444 = vdwg.mxu0
    %v6445 = vadd.f32 %v6351, %v6440
    %v6446 = vmax.f32 %v6445, 0.0
    %vm6447 = vcmask 326656
    %6448 = vst.msk [vmem:[#allocation3] sm:$0xff] %vm6447, 0.0
    %6450 = vrot.lane.b32.xlu0 %v6446, 11
    %v6451 = vpop.permute.xlu0 %6450
    %vm6453 = vcmask 148568
    %6454 = vst.msk [vmem:[#allocation3] sm:$0x3] %vm6453, %v6451
    %6455 = vrot.lane.b32.xlu0 %v6446, 13
    %v6456 = vpop.permute.xlu0 %6455
    %vm6458 = vcmask 230568
    %6459 = vst.msk [vmem:[#allocation3] sm:$0x3] %vm6458, %v6456
    %6460 = vrot.lane.b32.xlu0 %v6446, 15
    %v6461 = vpop.permute.xlu0 %6460
    %vm6463 = vcmask 312568
    %6464 = vst.msk [vmem:[#allocation3] sm:$0x3] %vm6463, %v6461
    %6465 = vrot.lane.b32.xlu0 %v6446, 121
    %v6466 = vpop.permute.xlu0 %6465
    %vm6468 = vcmask 66568
    %6469 = vst.msk [vmem:[#allocation3 + $0x2] sm:$0x3] %vm6468, %v6466
    %6470 = vrot.lane.b32.xlu0 %v6446, 123
    %v6471 = vpop.permute.xlu0 %6470
    %6473 = vst.msk [vmem:[#allocation3 + $0x2] sm:$0x3] %vm6453, %v6471
    %6474 = vrot.lane.b32.xlu0 %v6446, 125
    %v6475 = vpop.permute.xlu0 %6474
    %6477 = vst.msk [vmem:[#allocation3 + $0x2] sm:$0x3] %vm6458, %v6475
    %6478 = vrot.lane.b32.xlu0 %v6446, 127
    %v6479 = vpop.permute.xlu0 %6478
    %6481 = vst.msk [vmem:[#allocation3 + $0x2] sm:$0x3] %vm6463, %v6479
    %6482 = vrot.lane.b32.xlu0 %v6446, 105
    %v6483 = vpop.permute.xlu0 %6482
    %6485 = vst.msk [vmem:[#allocation3 + $0x4] sm:$0x3] %vm6468, %v6483
    %6486 = vrot.lane.b32.xlu0 %v6446, 107
    %v6487 = vpop.permute.xlu0 %6486
    %6489 = vst.msk [vmem:[#allocation3 + $0x4] sm:$0x3] %vm6453, %v6487
    %6490 = vrot.lane.b32.xlu0 %v6446, 109
    %v6491 = vpop.permute.xlu0 %6490
    %6493 = vst.msk [vmem:[#allocation3 + $0x4] sm:$0x3] %vm6458, %v6491
    %6494 = vrot.lane.b32.xlu0 %v6446, 111
    %v6495 = vpop.permute.xlu0 %6494
    %6497 = vst.msk [vmem:[#allocation3 + $0x4] sm:$0x3] %vm6463, %v6495
    %6498 = vrot.lane.b32.xlu0 %v6446, 89
    %v6499 = vpop.permute.xlu0 %6498
    %6501 = vst.msk [vmem:[#allocation3 + $0x6] sm:$0x3] %vm6468, %v6499
    %6502 = vrot.lane.b32.xlu0 %v6446, 91
    %v6503 = vpop.permute.xlu0 %6502
    %6505 = vst.msk [vmem:[#allocation3 + $0x6] sm:$0x3] %vm6453, %v6503
    %6506 = vrot.lane.b32.xlu0 %v6446, 93
    %v6507 = vpop.permute.xlu0 %6506
    %6509 = vst.msk [vmem:[#allocation3 + $0x6] sm:$0x3] %vm6458, %v6507
    %v6510 = vld [vmem:[#allocation3] sm:$0xff]
    %v6511 = vpack.c.bf16 %v6510, %v6510
    %v6512 = vld [vmem:[%s9] sm:$0xf]
    %v6513 = vld [vmem:[%s9 + $0x4] sm:$0xf]
    %v6514 = vld [vmem:[%s9 + $0x8] sm:$0xf]
    %v6515 = vld [vmem:[%s9 + $0xc] sm:$0xf]
    %v6516 = vld [vmem:[%s9 + $0x10] sm:$0xf]
    %v6522 = vunpack.c.l.b16 %v6512
    %v6523 = vunpack.c.l.b16 %v6513
    %v6524 = vunpack.c.l.b16 %v6514
    %v6525 = vunpack.c.l.b16 %v6515
    %v6526 = vunpack.c.l.b16 %v6516
    %v6527 = vpack.c.b16 %v6523, %v6522
    %v6528 = vpack.c.b16 %v6525, %v6524
    %v6529 = vpack.c.b16 %v6526, %v6526
    %v6533 = vsel %vm6447, %v6511, 0
    %v6536 = vsel %vm149, %v6529, 0
    %6538 = vmatprep.subr.bf16.mxu0 0
    %6539 = vmatpush1.bf16.msra.mxu0 %v6527
    %6540 = vmatprep.subr.bf16.mxu0 0
    %6541 = vmatpush1.bf16.msra.mxu0 %v6528
    %6542 = vmatprep.subr.bf16.mxu0 0
    %6543 = vmatpush1.bf16.msra.mxu0 %v6536
    %6544 = vmatprep.subr.bf16.mxu0 0
    %6545 = vmatpush1.bf16.msra.mxu0 0
    %6546 = vmatprep.subr.bf16.mxu0 0
    %6547 = vmatpush1.bf16.msra.mxu0 0
    %6548 = vmatprep.subr.bf16.mxu0 0
    %6549 = vmatpush1.bf16.msra.mxu0 0
    %6550 = vmatprep.subr.bf16.mxu0 0
    %6551 = vmatpush1.bf16.msra.mxu0 0
    %6552 = vmatprep.subr.bf16.mxu0 0
    %6553 = vmatpush1.bf16.msra.mxu0 0
    %6554 = vmatprep.subr.bf16.mxu0 0
    %6555 = vmatpush1.bf16.msra.mxu0 0
    %6556 = vmatprep.subr.bf16.mxu0 0
    %6557 = vmatpush1.bf16.msra.mxu0 0
    %6558 = vmatprep.subr.bf16.mxu0 0
    %6559 = vmatpush1.bf16.msra.mxu0 0
    %6560 = vmatprep.subr.bf16.mxu0 0
    %6561 = vmatpush1.bf16.msra.mxu0 0
    %6562 = vmatprep.subr.bf16.mxu0 0
    %6563 = vmatpush1.bf16.msra.mxu0 0
    %6564 = vmatprep.subr.bf16.mxu0 0
    %6565 = vmatpush1.bf16.msra.mxu0 0
    %6566 = vmatprep.subr.bf16.mxu0 0
    %6567 = vmatpush1.bf16.msra.mxu0 0
    %6568 = vmatprep.subr.bf16.mxu0 0
    %6569 = vmatpush1.bf16.msra.mxu0 0
    %6570 = vmatprep.mubr.bf16.mxu0 0
    %6571 = vmatmul.mubr.bf16.gmra.mrb[0].mxu0 %v6533
    %v6572 = vpop.f32.mrb[0].mxu0
    %v6573 = vadd.f32 0.0, %v6572
    %v6574 = vpop.f32.mrb[0].mxu0
    %v6575 = vpop.f32.mrb[0].mxu0
    %v6576 = vpop.f32.mrb[0].mxu0
    %6577 = vdwg.mxu0
    %s6578 = scalar_lea.vmem %s9, 20
    %v6579 = vld [vmem:[%s6578] sm:$0xf]
    %v6580 = vld [vmem:[%s6578 + $0x4] sm:$0xf]
    %v6581 = vld [vmem:[%s6578 + $0x8] sm:$0xf]
    %v6582 = vld [vmem:[%s6578 + $0xc] sm:$0xf]
    %v6583 = vld [vmem:[%s6578 + $0x10] sm:$0xf]
    %v6589 = vunpack.c.l.b16 %v6579
    %v6590 = vunpack.c.l.b16 %v6580
    %v6591 = vunpack.c.l.b16 %v6581
    %v6592 = vunpack.c.l.b16 %v6582
    %v6593 = vunpack.c.l.b16 %v6583
    %v6594 = vpack.c.b16 %v6590, %v6589
    %v6595 = vpack.c.b16 %v6592, %v6591
    %v6596 = vpack.c.b16 %v6593, %v6593
    %v6600 = vsel %vm149, %v6596, 0
    %6602 = vmatprep.subr.bf16.mxu0 0
    %6603 = vmatpush1.bf16.msra.mxu0 %v6594
    %6604 = vmatprep.subr.bf16.mxu0 0
    %6605 = vmatpush1.bf16.msra.mxu0 %v6595
    %6606 = vmatprep.subr.bf16.mxu0 0
    %6607 = vmatpush1.bf16.msra.mxu0 %v6600
    %6608 = vmatprep.subr.bf16.mxu0 0
    %6609 = vmatpush1.bf16.msra.mxu0 0
    %6610 = vmatprep.subr.bf16.mxu0 0
    %6611 = vmatpush1.bf16.msra.mxu0 0
    %6612 = vmatprep.subr.bf16.mxu0 0
    %6613 = vmatpush1.bf16.msra.mxu0 0
    %6614 = vmatprep.subr.bf16.mxu0 0
    %6615 = vmatpush1.bf16.msra.mxu0 0
    %6616 = vmatprep.subr.bf16.mxu0 0
    %6617 = vmatpush1.bf16.msra.mxu0 0
    %6618 = vmatprep.subr.bf16.mxu0 0
    %6619 = vmatpush1.bf16.msra.mxu0 0
    %6620 = vmatprep.subr.bf16.mxu0 0
    %6621 = vmatpush1.bf16.msra.mxu0 0
    %6622 = vmatprep.subr.bf16.mxu0 0
    %6623 = vmatpush1.bf16.msra.mxu0 0
    %6624 = vmatprep.subr.bf16.mxu0 0
    %6625 = vmatpush1.bf16.msra.mxu0 0
    %6626 = vmatprep.subr.bf16.mxu0 0
    %6627 = vmatpush1.bf16.msra.mxu0 0
    %6628 = vmatprep.subr.bf16.mxu0 0
    %6629 = vmatpush1.bf16.msra.mxu0 0
    %6630 = vmatprep.subr.bf16.mxu0 0
    %6631 = vmatpush1.bf16.msra.mxu0 0
    %6632 = vmatprep.subr.bf16.mxu0 0
    %6633 = vmatpush1.bf16.msra.mxu0 0
    %6634 = vmatprep.mubr.bf16.mxu0 0
    %6635 = vmatmul.mubr.bf16.gmra.mrb[0].mxu0 %v6533
    %v6636 = vpop.f32.mrb[0].mxu0
    %v6637 = vadd.f32 0.0, %v6636
    %v6638 = vpop.f32.mrb[0].mxu0
    %v6639 = vpop.f32.mrb[0].mxu0
    %v6640 = vpop.f32.mrb[0].mxu0
    %6641 = vdwg.mxu0
    %v6642 = vmax.f32 %v6573, %v6637
    %s6643 = scalar_lea.vmem %s9, 40
    %v6644 = vld [vmem:[%s6643] sm:$0xf]
    %v6645 = vld [vmem:[%s6643 + $0x4] sm:$0xf]
    %v6646 = vld [vmem:[%s6643 + $0x8] sm:$0xf]
    %v6647 = vld [vmem:[%s6643 + $0xc] sm:$0xf]
    %v6648 = vld [vmem:[%s6643 + $0x10] sm:$0xf]
    %v6654 = vunpack.c.l.b16 %v6644
    %v6655 = vunpack.c.l.b16 %v6645
    %v6656 = vunpack.c.l.b16 %v6646
    %v6657 = vunpack.c.l.b16 %v6647
    %v6658 = vunpack.c.l.b16 %v6648
    %v6659 = vpack.c.b16 %v6655, %v6654
    %v6660 = vpack.c.b16 %v6657, %v6656
    %v6661 = vpack.c.b16 %v6658, %v6658
    %v6665 = vsel %vm149, %v6661, 0
    %6667 = vmatprep.subr.bf16.mxu0 0
    %6668 = vmatpush1.bf16.msra.mxu0 %v6659
    %6669 = vmatprep.subr.bf16.mxu0 0
    %6670 = vmatpush1.bf16.msra.mxu0 %v6660
    %6671 = vmatprep.subr.bf16.mxu0 0
    %6672 = vmatpush1.bf16.msra.mxu0 %v6665
    %6673 = vmatprep.subr.bf16.mxu0 0
    %6674 = vmatpush1.bf16.msra.mxu0 0
    %6675 = vmatprep.subr.bf16.mxu0 0
    %6676 = vmatpush1.bf16.msra.mxu0 0
    %6677 = vmatprep.subr.bf16.mxu0 0
    %6678 = vmatpush1.bf16.msra.mxu0 0
    %6679 = vmatprep.subr.bf16.mxu0 0
    %6680 = vmatpush1.bf16.msra.mxu0 0
    %6681 = vmatprep.subr.bf16.mxu0 0
    %6682 = vmatpush1.bf16.msra.mxu0 0
    %6683 = vmatprep.subr.bf16.mxu0 0
    %6684 = vmatpush1.bf16.msra.mxu0 0
    %6685 = vmatprep.subr.bf16.mxu0 0
    %6686 = vmatpush1.bf16.msra.mxu0 0
    %6687 = vmatprep.subr.bf16.mxu0 0
    %6688 = vmatpush1.bf16.msra.mxu0 0
    %6689 = vmatprep.subr.bf16.mxu0 0
    %6690 = vmatpush1.bf16.msra.mxu0 0
    %6691 = vmatprep.subr.bf16.mxu0 0
    %6692 = vmatpush1.bf16.msra.mxu0 0
    %6693 = vmatprep.subr.bf16.mxu0 0
    %6694 = vmatpush1.bf16.msra.mxu0 0
    %6695 = vmatprep.subr.bf16.mxu0 0
    %6696 = vmatpush1.bf16.msra.mxu0 0
    %6697 = vmatprep.subr.bf16.mxu0 0
    %6698 = vmatpush1.bf16.msra.mxu0 0
    %6699 = vmatprep.mubr.bf16.mxu0 0
    %6700 = vmatmul.mubr.bf16.gmra.mrb[0].mxu0 %v6533
    %v6701 = vpop.f32.mrb[0].mxu0
    %v6702 = vadd.f32 0.0, %v6701
    %v6703 = vpop.f32.mrb[0].mxu0
    %v6704 = vpop.f32.mrb[0].mxu0
    %v6705 = vpop.f32.mrb[0].mxu0
    %6706 = vdwg.mxu0
    %v6707 = vmax.f32 %v6642, %v6702
    %s6708 = scalar_lea.vmem %s9, 60
    %v6709 = vld [vmem:[%s6708] sm:$0xf]
    %v6710 = vld [vmem:[%s6708 + $0x4] sm:$0xf]
    %v6711 = vld [vmem:[%s6708 + $0x8] sm:$0xf]
    %v6712 = vld [vmem:[%s6708 + $0xc] sm:$0xf]
    %v6713 = vld [vmem:[%s6708 + $0x10] sm:$0xf]
    %v6719 = vunpack.c.l.b16 %v6709
    %v6720 = vunpack.c.l.b16 %v6710
    %v6721 = vunpack.c.l.b16 %v6711
    %v6722 = vunpack.c.l.b16 %v6712
    %v6723 = vunpack.c.l.b16 %v6713
    %v6724 = vpack.c.b16 %v6720, %v6719
    %v6725 = vpack.c.b16 %v6722, %v6721
    %v6726 = vpack.c.b16 %v6723, %v6723
    %v6730 = vsel %vm149, %v6726, 0
    %6732 = vmatprep.subr.bf16.mxu0 0
    %6733 = vmatpush1.bf16.msra.mxu0 %v6724
    %6734 = vmatprep.subr.bf16.mxu0 0
    %6735 = vmatpush1.bf16.msra.mxu0 %v6725
    %6736 = vmatprep.subr.bf16.mxu0 0
    %6737 = vmatpush1.bf16.msra.mxu0 %v6730
    %6738 = vmatprep.subr.bf16.mxu0 0
    %6739 = vmatpush1.bf16.msra.mxu0 0
    %6740 = vmatprep.subr.bf16.mxu0 0
    %6741 = vmatpush1.bf16.msra.mxu0 0
    %6742 = vmatprep.subr.bf16.mxu0 0
    %6743 = vmatpush1.bf16.msra.mxu0 0
    %6744 = vmatprep.subr.bf16.mxu0 0
    %6745 = vmatpush1.bf16.msra.mxu0 0
    %6746 = vmatprep.subr.bf16.mxu0 0
    %6747 = vmatpush1.bf16.msra.mxu0 0
    %6748 = vmatprep.subr.bf16.mxu0 0
    %6749 = vmatpush1.bf16.msra.mxu0 0
    %6750 = vmatprep.subr.bf16.mxu0 0
    %6751 = vmatpush1.bf16.msra.mxu0 0
    %6752 = vmatprep.subr.bf16.mxu0 0
    %6753 = vmatpush1.bf16.msra.mxu0 0
    %6754 = vmatprep.subr.bf16.mxu0 0
    %6755 = vmatpush1.bf16.msra.mxu0 0
    %6756 = vmatprep.subr.bf16.mxu0 0
    %6757 = vmatpush1.bf16.msra.mxu0 0
    %6758 = vmatprep.subr.bf16.mxu0 0
    %6759 = vmatpush1.bf16.msra.mxu0 0
    %6760 = vmatprep.subr.bf16.mxu0 0
    %6761 = vmatpush1.bf16.msra.mxu0 0
    %6762 = vmatprep.subr.bf16.mxu0 0
    %6763 = vmatpush1.bf16.msra.mxu0 0
    %6764 = vmatprep.mubr.bf16.mxu0 0
    %6765 = vmatmul.mubr.bf16.gmra.mrb[0].mxu0 %v6533
    %v6766 = vpop.f32.mrb[0].mxu0
    %v6767 = vadd.f32 0.0, %v6766
    %v6768 = vpop.f32.mrb[0].mxu0
    %v6769 = vpop.f32.mrb[0].mxu0
    %v6770 = vpop.f32.mrb[0].mxu0
    %6771 = vdwg.mxu0
    %v6772 = vmax.f32 %v6707, %v6767
    %v6773 = vld [vmem:[%s10] sm:$0x1]
    %v6775 = vlaneseq
    %v6776 = vshrl.u32 %v6775, 7
    %v6777 = vsub.s32 0, %v6776
    %v6778 = vrot.slane %v6773, %v6777
    %v6780 = vadd.f32 %v6772, %v6778
    %v6781 = vmax.f32 %v6780, 0.0
    %v6782 = vpack.c.bf16 %v6781, %v6781
    %v6783 = vld [vmem:[%s12] sm:$0x1]
    %v6785 = vlaneseq
    %v6786 = vshrl.u32 %v6785, 7
    %v6787 = vsub.s32 0, %v6786
    %v6788 = vrot.slane %v6783, %v6787
    %v6790 = vadd.f32 %v6788, 0.0
    %v6791 = vld [vmem:[%s11] sm:$0xf]
    %v6792 = vld [vmem:[%s11 + $0x4] sm:$0xf]
    %v6793 = vld [vmem:[%s11 + $0x8] sm:$0x3]
    %v6797 = vunpack.c.l.b16 %v6791
    %v6798 = vunpack.c.l.b16 %v6792
    %v6799 = vunpack.c.l.b16 %v6793
    %v6800 = vpack.c.b16 %v6798, %v6797
    %v6801 = vpack.c.b16 %v6799, %v6799
    %vm6803 = vcmask 162816
    %v6805 = vsel %vm6803, %v6782, 0
    %vm6807 = vcmask 1041408
    %v6809 = vsel %vm6807, %v6801, 0
    %6811 = vmatprep.subr.bf16.mxu0 0
    %6812 = vmatpush1.bf16.msra.mxu0 %v6800
    %6813 = vmatprep.subr.bf16.mxu0 0
    %6814 = vmatpush1.bf16.msra.mxu0 %v6809
    %6815 = vmatprep.subr.bf16.mxu0 0
    %6816 = vmatpush1.bf16.msra.mxu0 0
    %6817 = vmatprep.subr.bf16.mxu0 0
    %6818 = vmatpush1.bf16.msra.mxu0 0
    %6819 = vmatprep.subr.bf16.mxu0 0
    %6820 = vmatpush1.bf16.msra.mxu0 0
    %6821 = vmatprep.subr.bf16.mxu0 0
    %6822 = vmatpush1.bf16.msra.mxu0 0
    %6823 = vmatprep.subr.bf16.mxu0 0
    %6824 = vmatpush1.bf16.msra.mxu0 0
    %6825 = vmatprep.subr.bf16.mxu0 0
    %6826 = vmatpush1.bf16.msra.mxu0 0
    %6827 = vmatprep.subr.bf16.mxu0 0
    %6828 = vmatpush1.bf16.msra.mxu0 0
    %6829 = vmatprep.subr.bf16.mxu0 0
    %6830 = vmatpush1.bf16.msra.mxu0 0
    %6831 = vmatprep.subr.bf16.mxu0 0
    %6832 = vmatpush1.bf16.msra.mxu0 0
    %6833 = vmatprep.subr.bf16.mxu0 0
    %6834 = vmatpush1.bf16.msra.mxu0 0
    %6835 = vmatprep.subr.bf16.mxu0 0
    %6836 = vmatpush1.bf16.msra.mxu0 0
    %6837 = vmatprep.subr.bf16.mxu0 0
    %6838 = vmatpush1.bf16.msra.mxu0 0
    %6839 = vmatprep.subr.bf16.mxu0 0
    %6840 = vmatpush1.bf16.msra.mxu0 0
    %6841 = vmatprep.subr.bf16.mxu0 0
    %6842 = vmatpush1.bf16.msra.mxu0 0
    %6843 = vmatprep.mubr.bf16.mxu0 0
    %6844 = vmatmul.mubr.bf16.gmra.mrb[0].mxu0 %v6805
    %v6845 = vpop.f32.mrb[0].mxu0
    %v6846 = vadd.f32 0.0, %v6845
    %v6847 = vpop.f32.mrb[0].mxu0
    %v6848 = vpop.f32.mrb[0].mxu0
    %v6849 = vpop.f32.mrb[0].mxu0
    %6850 = vdwg.mxu0
    %v6851 = vadd.f32 %v6790, %v6846
    %v6852 = vld [vmem:[%s11 + $0x8] sm:$0xc]
    %v6853 = vld [vmem:[%s11 + $0xc] sm:$0xf]
    %v6854 = vld [vmem:[%s11 + $0x10] sm:$0xf]
    %v6856 = vrot.slane %v6782, 1
    %v6860 = vunpack.c.l.b16 %v6852
    %v6861 = vunpack.c.l.b16 %v6853
    %v6862 = vunpack.c.l.b16 %v6854
    %v6863 = vpack.c.b16 %v6861, %v6860
    %v6864 = vpack.c.b16 %v6862, %v6862
    %v6865 = vrot.slane %v6863, 2
    %v6866 = vrot.slane %v6864, 2
    %v6867 = vsel %vm1168, %v6865, %v6866
    %v6870 = vsel %vm6803, %v6856, 0
    %v6873 = vsel %vm6807, %v6866, 0
    %6875 = vmatprep.subr.bf16.mxu0 0
    %6876 = vmatpush1.bf16.msra.mxu0 %v6867
    %6877 = vmatprep.subr.bf16.mxu0 0
    %6878 = vmatpush1.bf16.msra.mxu0 %v6873
    %6879 = vmatprep.subr.bf16.mxu0 0
    %6880 = vmatpush1.bf16.msra.mxu0 0
    %6881 = vmatprep.subr.bf16.mxu0 0
    %6882 = vmatpush1.bf16.msra.mxu0 0
    %6883 = vmatprep.subr.bf16.mxu0 0
    %6884 = vmatpush1.bf16.msra.mxu0 0
    %6885 = vmatprep.subr.bf16.mxu0 0
    %6886 = vmatpush1.bf16.msra.mxu0 0
    %6887 = vmatprep.subr.bf16.mxu0 0
    %6888 = vmatpush1.bf16.msra.mxu0 0
    %6889 = vmatprep.subr.bf16.mxu0 0
    %6890 = vmatpush1.bf16.msra.mxu0 0
    %6891 = vmatprep.subr.bf16.mxu0 0
    %6892 = vmatpush1.bf16.msra.mxu0 0
    %6893 = vmatprep.subr.bf16.mxu0 0
    %6894 = vmatpush1.bf16.msra.mxu0 0
    %6895 = vmatprep.subr.bf16.mxu0 0
    %6896 = vmatpush1.bf16.msra.mxu0 0
    %6897 = vmatprep.subr.bf16.mxu0 0
    %6898 = vmatpush1.bf16.msra.mxu0 0
    %6899 = vmatprep.subr.bf16.mxu0 0
    %6900 = vmatpush1.bf16.msra.mxu0 0
    %6901 = vmatprep.subr.bf16.mxu0 0
    %6902 = vmatpush1.bf16.msra.mxu0 0
    %6903 = vmatprep.subr.bf16.mxu0 0
    %6904 = vmatpush1.bf16.msra.mxu0 0
    %6905 = vmatprep.subr.bf16.mxu0 0
    %6906 = vmatpush1.bf16.msra.mxu0 0
    %6907 = vmatprep.mubr.bf16.mxu0 0
    %6908 = vmatmul.mubr.bf16.gmra.mrb[0].mxu0 %v6870
    %v6909 = vpop.f32.mrb[0].mxu0
    %v6910 = vadd.f32 0.0, %v6909
    %v6911 = vpop.f32.mrb[0].mxu0
    %v6912 = vpop.f32.mrb[0].mxu0
    %v6913 = vpop.f32.mrb[0].mxu0
    %6914 = vdwg.mxu0
    %v6915 = vadd.f32 %v6851, %v6910
    %v6916 = vld [vmem:[%s11 + $0x14] sm:$0xf]
    %v6917 = vld [vmem:[%s11 + $0x18] sm:$0xf]
    %v6918 = vld [vmem:[%s11 + $0x1c] sm:$0x3]
    %v6919 = vrot.slane %v6782, 2
    %v6923 = vunpack.c.l.b16 %v6916
    %v6924 = vunpack.c.l.b16 %v6917
    %v6925 = vunpack.c.l.b16 %v6918
    %v6926 = vpack.c.b16 %v6924, %v6923
    %v6927 = vpack.c.b16 %v6925, %v6925
    %v6930 = vsel %vm6803, %v6919, 0
    %v6933 = vsel %vm6807, %v6927, 0
    %6935 = vmatprep.subr.bf16.mxu0 0
    %6936 = vmatpush1.bf16.msra.mxu0 %v6926
    %6937 = vmatprep.subr.bf16.mxu0 0
    %6938 = vmatpush1.bf16.msra.mxu0 %v6933
    %6939 = vmatprep.subr.bf16.mxu0 0
    %6940 = vmatpush1.bf16.msra.mxu0 0
    %6941 = vmatprep.subr.bf16.mxu0 0
    %6942 = vmatpush1.bf16.msra.mxu0 0
    %6943 = vmatprep.subr.bf16.mxu0 0
    %6944 = vmatpush1.bf16.msra.mxu0 0
    %6945 = vmatprep.subr.bf16.mxu0 0
    %6946 = vmatpush1.bf16.msra.mxu0 0
    %6947 = vmatprep.subr.bf16.mxu0 0
    %6948 = vmatpush1.bf16.msra.mxu0 0
    %6949 = vmatprep.subr.bf16.mxu0 0
    %6950 = vmatpush1.bf16.msra.mxu0 0
    %6951 = vmatprep.subr.bf16.mxu0 0
    %6952 = vmatpush1.bf16.msra.mxu0 0
    %6953 = vmatprep.subr.bf16.mxu0 0
    %6954 = vmatpush1.bf16.msra.mxu0 0
    %6955 = vmatprep.subr.bf16.mxu0 0
    %6956 = vmatpush1.bf16.msra.mxu0 0
    %6957 = vmatprep.subr.bf16.mxu0 0
    %6958 = vmatpush1.bf16.msra.mxu0 0
    %6959 = vmatprep.subr.bf16.mxu0 0
    %6960 = vmatpush1.bf16.msra.mxu0 0
    %6961 = vmatprep.subr.bf16.mxu0 0
    %6962 = vmatpush1.bf16.msra.mxu0 0
    %6963 = vmatprep.subr.bf16.mxu0 0
    %6964 = vmatpush1.bf16.msra.mxu0 0
    %6965 = vmatprep.subr.bf16.mxu0 0
    %6966 = vmatpush1.bf16.msra.mxu0 0
    %6967 = vmatprep.mubr.bf16.mxu0 0
    %6968 = vmatmul.mubr.bf16.gmra.mrb[0].mxu0 %v6930
    %v6969 = vpop.f32.mrb[0].mxu0
    %v6970 = vadd.f32 0.0, %v6969
    %v6971 = vpop.f32.mrb[0].mxu0
    %v6972 = vpop.f32.mrb[0].mxu0
    %v6973 = vpop.f32.mrb[0].mxu0
    %6974 = vdwg.mxu0
    %v6975 = vadd.f32 %v6915, %v6970
    %v6976 = vld [vmem:[%s11 + $0x1c] sm:$0xc]
    %v6977 = vld [vmem:[%s11 + $0x20] sm:$0xf]
    %v6978 = vld [vmem:[%s11 + $0x24] sm:$0xf]
    %v6979 = vrot.slane %v6782, 3
    %v6983 = vunpack.c.l.b16 %v6976
    %v6984 = vunpack.c.l.b16 %v6977
    %v6985 = vunpack.c.l.b16 %v6978
    %v6986 = vpack.c.b16 %v6984, %v6983
    %v6987 = vpack.c.b16 %v6985, %v6985
    %v6988 = vrot.slane %v6986, 2
    %v6989 = vrot.slane %v6987, 2
    %v6990 = vsel %vm1168, %v6988, %v6989
    %v6993 = vsel %vm6803, %v6979, 0
    %v6996 = vsel %vm6807, %v6989, 0
    %6998 = vmatprep.subr.bf16.mxu0 0
    %6999 = vmatpush1.bf16.msra.mxu0 %v6990
    %7000 = vmatprep.subr.bf16.mxu0 0
    %7001 = vmatpush1.bf16.msra.mxu0 %v6996
    %7002 = vmatprep.subr.bf16.mxu0 0
    %7003 = vmatpush1.bf16.msra.mxu0 0
    %7004 = vmatprep.subr.bf16.mxu0 0
    %7005 = vmatpush1.bf16.msra.mxu0 0
    %7006 = vmatprep.subr.bf16.mxu0 0
    %7007 = vmatpush1.bf16.msra.mxu0 0
    %7008 = vmatprep.subr.bf16.mxu0 0
    %7009 = vmatpush1.bf16.msra.mxu0 0
    %7010 = vmatprep.subr.bf16.mxu0 0
    %7011 = vmatpush1.bf16.msra.mxu0 0
    %7012 = vmatprep.subr.bf16.mxu0 0
    %7013 = vmatpush1.bf16.msra.mxu0 0
    %7014 = vmatprep.subr.bf16.mxu0 0
    %7015 = vmatpush1.bf16.msra.mxu0 0
    %7016 = vmatprep.subr.bf16.mxu0 0
    %7017 = vmatpush1.bf16.msra.mxu0 0
    %7018 = vmatprep.subr.bf16.mxu0 0
    %7019 = vmatpush1.bf16.msra.mxu0 0
    %7020 = vmatprep.subr.bf16.mxu0 0
    %7021 = vmatpush1.bf16.msra.mxu0 0
    %7022 = vmatprep.subr.bf16.mxu0 0
    %7023 = vmatpush1.bf16.msra.mxu0 0
    %7024 = vmatprep.subr.bf16.mxu0 0
    %7025 = vmatpush1.bf16.msra.mxu0 0
    %7026 = vmatprep.subr.bf16.mxu0 0
    %7027 = vmatpush1.bf16.msra.mxu0 0
    %7028 = vmatprep.subr.bf16.mxu0 0
    %7029 = vmatpush1.bf16.msra.mxu0 0
    %7030 = vmatprep.mubr.bf16.mxu0 0
    %7031 = vmatmul.mubr.bf16.gmra.mrb[0].mxu0 %v6993
    %v7032 = vpop.f32.mrb[0].mxu0
    %v7033 = vadd.f32 0.0, %v7032
    %v7034 = vpop.f32.mrb[0].mxu0
    %v7035 = vpop.f32.mrb[0].mxu0
    %v7036 = vpop.f32.mrb[0].mxu0
    %7037 = vdwg.mxu0
    %v7038 = vadd.f32 %v6975, %v7033
    %vm7039 = vcmask 74752
    %7040 = vst.msk [vmem:[#allocation4] sm:$0x3] %vm7039, %v7038
    // Predicated region
    $region54: #{medium_model_forward.1} parent=1 // pred_check
      _
    $region55: #{medium_model_forward.1} parent=1 // pred_check_branch
      %7042 = sbr.rel (0) target = $region57
    $region56: #{medium_model_forward.1} parent=1 // pred_region
      %s7044 = ssub.s32 32, 32
      %7045 = vsyncadd [#allocation5], %s7044
      %s7047 = sshll.u32 [#allocation4], 4
      %s7048 = int_to_ptr.vmem [resolvable:$true] %s7047
      %7050 = dma.vmem_to_hbm [thread:$0]  %s7048, 32, %s13, [#allocation5]
    $region57: #{medium_model_forward.1} parent=1 // pred_fallthru
      _
    // Predicated region
    $region58: #{medium_model_forward.1} parent=1 // pred_check
      _
    $region59: #{medium_model_forward.1} parent=1 // pred_check_branch
      %7052 = sbr.rel (0) target = $region61
    $region60: #{medium_model_forward.1} parent=1 // pred_region
      %7053 = dma.done [#allocation5], 32
    $region61: #{medium_model_forward.1} parent=1 // pred_fallthru
      _
    %7054 = vsyncpa [#allocation5], 1

</llo_original>
